<compile_context>
chip_gen: v7x
topology: tpu7x:2x2x1
jax: 0.10.0
libtpu: 0.0.40
codegen_flags: <defaults>
</compile_context>

<pallas_src>
import functools
import math

import jax
import jax.numpy as jnp
from jax import lax
from jax.experimental import pallas as pl
from jax.experimental.pallas import tpu as pltpu


def _round_up(x, m):
    return ((x + m - 1) // m) * m


# -----------------------------------------------------------------------------
# Fused CLIP forward kernel (grid = (batch tiles, K tiles of the image matmul))
# -----------------------------------------------------------------------------
def _clip_fused_kernel(scale_ref, ids_ref, img_ref, w_img_ref, b_img_ref,
                       tok_emb_hbm, w_txt_ref, b_txt_ref,
                       li_ref, acc_ref, gather_ref, gather_sem,
                       *, bt, seq_len, lane):
    k = pl.program_id(1)
    n_k = pl.num_programs(1)

    # ---- first K step: zero the accumulator and kick off the token-embedding
    # row gather (HBM -> VMEM DMAs).  The copies overlap the pipelined image
    # matmul and are waited on at the last K step.
    @pl.when(k == 0)
    def _():
        acc_ref[...] = jnp.zeros_like(acc_ref)
        for l in range(seq_len):                       # static, unrolled
            for b in range(bt):
                idx = ids_ref[b * seq_len + l]         # SMEM scalar read
                pltpu.make_async_copy(tok_emb_hbm.at[idx],
                                      gather_ref.at[l, b],
                                      gather_sem.at[0]).start()

    # ---- image encoder stub: K-tiled pixels @ W_img (bf16 MXU, f32 acc).
    acc_ref[...] += jnp.dot(img_ref[...], w_img_ref[...],
                            preferred_element_type=jnp.float32)

    # ---- last K step: finish the text encoder, L2-normalize, write logits.
    @pl.when(k == n_k - 1)
    def _():
        img_feat = acc_ref[...] + b_img_ref[...]       # (TB, D) f32

        # Wait for all gathered embedding rows (equal-sized copies, one sem).
        for l in range(seq_len):
            for b in range(bt):
                idx = ids_ref[b * seq_len + l]
                pltpu.make_async_copy(tok_emb_hbm.at[idx],
                                      gather_ref.at[l, b],
                                      gather_sem.at[0]).wait()

        # Text encoder stub: mean-pool the gathered token embeddings (f32),
        # then a linear projection on the MXU.
        pooled = jnp.sum(gather_ref[...], axis=0) * (1.0 / seq_len)  # (Bt, WIDTH)
        txt_feat = jnp.dot(pooled.astype(jnp.bfloat16), w_txt_ref[...],
                           preferred_element_type=jnp.float32) + b_txt_ref[...]

        # L2 normalization (f32 elementwise, rsqrt on the EUP slot); the logit
        # scale is folded into the image-side normalization factor.
        eps = 1e-12
        scale = scale_ref[0]                           # exp() done outside
        inv_i = lax.rsqrt(jnp.sum(img_feat * img_feat, axis=1, keepdims=True) + eps)
        img_n = (img_feat * (inv_i * scale)).astype(jnp.bfloat16)    # (TB, D)
        inv_t = lax.rsqrt(jnp.sum(txt_feat * txt_feat, axis=1, keepdims=True) + eps)
        txt_n = txt_feat * inv_t                                     # (Bt, D) f32

        # Pad the text operand to a lane-dense (LANE, D) RHS in registers
        # (tile-aligned f32 concat, single cast to bf16; no scratch round-trip)
        # so the logits store is a full 128-lane unmasked vst.
        pad = lane - bt
        if pad:
            txt_n = jnp.concatenate(
                [txt_n, jnp.zeros((pad, txt_n.shape[1]), jnp.float32)], axis=0)
        txt_rhs = txt_n.astype(jnp.bfloat16)                         # (LANE, D)

        # logits_per_image = exp(logit_scale) * img_n @ txt_n.T (contraction on
        # the last dims of both operands; no explicit transpose fed to the MXU).
        li_ref[...] = lax.dot_general(img_n, txt_rhs, (((1,), (1,)), ((), ())),
                                      preferred_element_type=jnp.float32)


# -----------------------------------------------------------------------------
# Wrapper
# -----------------------------------------------------------------------------
def clip_forward(image, text, params):
    """image: (B, C, H, W) f32, text: (Bt, L) int32 -> (logits_i, logits_t)."""
    B = image.shape[0]
    Bt, L = text.shape
    In = image.shape[1] * image.shape[2] * image.shape[3]
    D = params["w_img"].shape[1]
    _V, WIDTH = params["tok_emb"].shape
    LANE = _round_up(max(Bt, 128), 128)                # lane-dense logits slab

    # Batch tile (M rows per grid step) and K tile (streamed pixel chunk).
    # TODO(synk): at production shapes pad/tile the batch to 128/256 rows and
    #             re-derive TK from the per-generation VMEM budget.
    TB = B
    TK = In
    for cand in (512, 256, 128):
        if In % cand == 0:
            TK = cand
            break
    n_k = In // TK

    # Activation cast only (weights are already stored in kernel dtypes).
    x = image.reshape(B, In).astype(jnp.bfloat16)
    ids = text.reshape(Bt * L).astype(jnp.int32)       # index data -> SMEM
    scale = jnp.exp(params["logit_scale"]).astype(jnp.float32)   # exp() once

    kernel = functools.partial(_clip_fused_kernel, bt=Bt, seq_len=L, lane=LANE)

    li_pad = pl.pallas_call(
        kernel,
        out_shape=jax.ShapeDtypeStruct((B, LANE), jnp.float32),
        grid=(B // TB, n_k),
        in_specs=[
            pl.BlockSpec(memory_space=pltpu.SMEM),             # exp(logit_scale)
            pl.BlockSpec(memory_space=pltpu.SMEM),             # flat token ids
            pl.BlockSpec((TB, TK), lambda i, k: (i, k)),       # image pixels
            pl.BlockSpec((TK, D), lambda i, k: (k, 0)),        # w_img streamed over K
            pl.BlockSpec((1, D), lambda i, k: (0, 0)),         # b_img
            pl.BlockSpec(memory_space=pl.ANY),                 # tok_emb stays in HBM
            pl.BlockSpec((WIDTH, D), lambda i, k: (0, 0)),     # w_txt (resident)
            pl.BlockSpec((1, D), lambda i, k: (0, 0)),         # b_txt
        ],
        out_specs=pl.BlockSpec((TB, LANE), lambda i, k: (i, 0)),
        scratch_shapes=[
            pltpu.VMEM((TB, D), jnp.float32),                  # image-feature accumulator
            pltpu.VMEM((L, Bt, WIDTH), jnp.float32),           # gathered token embeddings
            pltpu.SemaphoreType.DMA((1,)),                     # shared gather semaphore
        ],
        compiler_params=pltpu.CompilerParams(
            dimension_semantics=("parallel", "arbitrary")),    # batch || K-reduction
    )(scale, ids, x, params["w_img"], params["b_img"],
      params["tok_emb"], params["w_txt"], params["b_txt"])

    logits_per_image = li_pad[:, :Bt]
    # logits_per_text = logits_per_image.t() — a transpose, not a 2nd matmul.
    logits_per_text = logits_per_image.T
    return logits_per_image, logits_per_text


# -----------------------------------------------------------------------------
# Main
# -----------------------------------------------------------------------------
if __name__ == "__main__":
    key = jax.random.PRNGKey(0)
    k_img, k_txt, k1, k2, k3, k4, k5 = jax.random.split(key, 7)

    B = 8          # batch (images and texts)
    C, H, W = 3, 16, 16
    L = 8          # text sequence length
    VOCAB = 64
    WIDTH = 128    # transformer width (text pooled dim)
    D = 128        # shared embed dim

    image = jax.random.normal(k_img, (B, C, H, W), dtype=jnp.float32)
    text = jax.random.randint(k_txt, (B, L), 0, VOCAB, dtype=jnp.int32)

    in_dim = C * H * W
    # Weights are stored once in their kernel dtypes (no per-forward recast):
    # bf16 MXU operands, f32 biases, f32 embedding table (DMA-gathered rows).
    params = {
        "w_img": (jax.random.normal(k1, (in_dim, D), jnp.float32)
                  / math.sqrt(in_dim)).astype(jnp.bfloat16),
        "b_img": jax.random.normal(k2, (1, D), jnp.float32) * 0.01,
        "tok_emb": jax.random.normal(k3, (VOCAB, WIDTH), jnp.float32) * 0.02,
        "w_txt": (jax.random.normal(k4, (WIDTH, D), jnp.float32)
                  / math.sqrt(WIDTH)).astype(jnp.bfloat16),
        "b_txt": jax.random.normal(k5, (1, D), jnp.float32) * 0.01,
        # nn.Parameter(torch.log(torch.tensor(1 / 0.07)))
        "logit_scale": jnp.array([math.log(1.0 / 0.07)], dtype=jnp.float32),
    }

    logits_per_image, logits_per_text = clip_forward(image, text, params)
    jax.block_until_ready((logits_per_image, logits_per_text))

    # Pure-JAX reference (same bf16 matmul dtypes) — loose correctness check.
    def reference(image, text, params):
        x = image.reshape(image.shape[0], -1).astype(jnp.bfloat16)
        img_f = jnp.dot(x, params["w_img"],
                        preferred_element_type=jnp.float32) + params["b_img"]
        g = jnp.take(params["tok_emb"], text.reshape(-1), axis=0)
        pooled = jnp.mean(g.reshape(text.shape[0], text.shape[1], -1), axis=1)
        txt_f = jnp.dot(pooled.astype(jnp.bfloat16), params["w_txt"],
                        preferred_element_type=jnp.float32) + params["b_txt"]
        img_n = img_f / jnp.linalg.norm(img_f, axis=1, keepdims=True)
        txt_n = txt_f / jnp.linalg.norm(txt_f, axis=1, keepdims=True)
        li = jnp.exp(params["logit_scale"])[0] * (img_n @ txt_n.T)
        return li, li.T

    ref_li, _ = reference(image, text, params)

    assert logits_per_image.shape == (B, B)
    assert logits_per_text.shape == (B, B)
    assert bool(jnp.all(jnp.isfinite(logits_per_image)))
    assert bool(jnp.allclose(logits_per_text, logits_per_image.T))
    assert bool(jnp.allclose(logits_per_image, ref_li, rtol=5e-2, atol=1e-1))
    print("KERNEL_OK")
</pallas_src>

<mosaic_0001>
module attributes {stable_mosaic.version = 11 : i64} {
  func.func @_clip_fused_kernel(%arg0: i32, %arg1: i32, %arg2: memref<1xf32, #tpu.memory_space<smem>>, %arg3: memref<64xi32, #tpu.memory_space<smem>>, %arg4: memref<8x256xbf16, #tpu.memory_space<vmem>>, %arg5: memref<256x128xbf16, #tpu.memory_space<vmem>>, %arg6: memref<1x128xf32, #tpu.memory_space<vmem>>, %arg7: memref<64x128xf32, #tpu.memory_space<any>>, %arg8: memref<128x128xbf16, #tpu.memory_space<vmem>>, %arg9: memref<1x128xf32, #tpu.memory_space<vmem>>, %arg10: memref<8x128xf32, #tpu.memory_space<vmem>>, %arg11: memref<8x128xf32, #tpu.memory_space<vmem>>, %arg12: memref<8x8x128xf32, #tpu.memory_space<vmem>>, %arg13: memref<1x!tpu.dma_semaphore, #tpu.memory_space<semaphore_mem>>) attributes {dimension_semantics = [#tpu.dimension_semantics<parallel>, #tpu.dimension_semantics<arbitrary>], iteration_bounds = array<i64: 1, 3>, scalar_prefetch = 0 : i64, scratch_operands = 3 : i64, tpu.core_type = #tpu.core_type<tc>, window_params = [{transform_indices = @transform_0, window_bounds = array<i64: 1>}, {transform_indices = @transform_1, window_bounds = array<i64: 64>}, {transform_indices = @transform_2, window_bounds = array<i64: 8, 256>}, {transform_indices = @transform_3, window_bounds = array<i64: 256, 128>}, {pipeline_mode = #tpu.pipeline_mode<synchronous>, transform_indices = @transform_4, window_bounds = array<i64: 1, 128>}, {}, {pipeline_mode = #tpu.pipeline_mode<synchronous>, transform_indices = @transform_6, window_bounds = array<i64: 128, 128>}, {pipeline_mode = #tpu.pipeline_mode<synchronous>, transform_indices = @transform_7, window_bounds = array<i64: 1, 128>}, {transform_indices = @transform_8, window_bounds = array<i64: 8, 128>}]} {
    %c0_i32 = arith.constant 0 : i32
    %0 = arith.cmpi eq, %arg1, %c0_i32 : i32
    %1 = arith.extui %0 : i1 to i32
    %c0_i32_0 = arith.constant 0 : i32
    %2 = arith.cmpi ne, %1, %c0_i32_0 : i32
    scf.if %2 {
      %cst_9 = arith.constant 0.000000e+00 : f32
      %12 = vector.broadcast %cst_9 : f32 to vector<8x128xf32>
      %c0_10 = arith.constant 0 : index
      %c0_11 = arith.constant 0 : index
      %13 = vector.load %arg11[%c0_10, %c0_11] : memref<8x128xf32, #tpu.memory_space<vmem>>, vector<8x128xf32>
      tpu.vector_store %arg11[%c0_10, %c0_11], %12 {strides = array<i32>} : memref<8x128xf32, #tpu.memory_space<vmem>>, vector<8x128xf32>,
      %c0_12 = arith.constant 0 : index
      %14 = memref.load %arg3[%c0_12] : memref<64xi32, #tpu.memory_space<smem>>
      %c0_i32_13 = arith.constant 0 : i32
      %c0_i32_14 = arith.constant 0 : i32
      %c0_i32_15 = arith.constant 0 : i32
      %c0_i32_16 = arith.constant 0 : i32
      %15 = tpu.memref_slice %arg7[%14, %c0_i32_16] : memref<64x128xf32, #tpu.memory_space<any>> -> memref<1x128xf32, #tpu.memory_space<any>>
      %16 = tpu.memref_squeeze %15 : memref<1x128xf32, #tpu.memory_space<any>> -> memref<128xf32, #tpu.memory_space<any>>
      %c0_i32_17 = arith.constant 0 : i32
      %17 = tpu.memref_slice %arg12[%c0_i32_13, %c0_i32_14, %c0_i32_17] : memref<8x8x128xf32, #tpu.memory_space<vmem>> -> memref<1x1x128xf32, #tpu.memory_space<vmem>>
      %18 = tpu.memref_squeeze %17 : memref<1x1x128xf32, #tpu.memory_space<vmem>> -> memref<128xf32, #tpu.memory_space<vmem>>
      %19 = tpu.memref_slice %arg13[%c0_i32_15] : memref<1x!tpu.dma_semaphore, #tpu.memory_space<semaphore_mem>> -> memref<1x!tpu.dma_semaphore, #tpu.memory_space<semaphore_mem>>
      %20 = tpu.memref_squeeze %19 : memref<1x!tpu.dma_semaphore, #tpu.memory_space<semaphore_mem>> -> memref<!tpu.dma_semaphore, #tpu.memory_space<semaphore_mem>>
      tpu.enqueue_dma source(%16 : memref<128xf32, #tpu.memory_space<any>>) target(%18 : memref<128xf32, #tpu.memory_space<vmem>>) target_semaphore(%20 : memref<!tpu.dma_semaphore, #tpu.memory_space<semaphore_mem>>)
      %c8 = arith.constant 8 : index
      %21 = memref.load %arg3[%c8] : memref<64xi32, #tpu.memory_space<smem>>
      %c0_i32_18 = arith.constant 0 : i32
      %c1_i32 = arith.constant 1 : i32
      %c0_i32_19 = arith.constant 0 : i32
      %c0_i32_20 = arith.constant 0 : i32
      %22 = tpu.memref_slice %arg7[%21, %c0_i32_20] : memref<64x128xf32, #tpu.memory_space<any>> -> memref<1x128xf32, #tpu.memory_space<any>>
      %23 = tpu.memref_squeeze %22 : memref<1x128xf32, #tpu.memory_space<any>> -> memref<128xf32, #tpu.memory_space<any>>
      %c0_i32_21 = arith.constant 0 : i32
      %24 = tpu.memref_slice %arg12[%c0_i32_18, %c1_i32, %c0_i32_21] : memref<8x8x128xf32, #tpu.memory_space<vmem>> -> memref<1x1x128xf32, #tpu.memory_space<vmem>>
      %25 = tpu.memref_squeeze %24 : memref<1x1x128xf32, #tpu.memory_space<vmem>> -> memref<128xf32, #tpu.memory_space<vmem>>
      %26 = tpu.memref_slice %arg13[%c0_i32_19] : memref<1x!tpu.dma_semaphore, #tpu.memory_space<semaphore_mem>> -> memref<1x!tpu.dma_semaphore, #tpu.memory_space<semaphore_mem>>
      %27 = tpu.memref_squeeze %26 : memref<1x!tpu.dma_semaphore, #tpu.memory_space<semaphore_mem>> -> memref<!tpu.dma_semaphore, #tpu.memory_space<semaphore_mem>>
      tpu.enqueue_dma source(%23 : memref<128xf32, #tpu.memory_space<any>>) target(%25 : memref<128xf32, #tpu.memory_space<vmem>>) target_semaphore(%27 : memref<!tpu.dma_semaphore, #tpu.memory_space<semaphore_mem>>)
      %c16 = arith.constant 16 : index
      %28 = memref.load %arg3[%c16] : memref<64xi32, #tpu.memory_space<smem>>
      %c0_i32_22 = arith.constant 0 : i32
      %c2_i32_23 = arith.constant 2 : i32
      %c0_i32_24 = arith.constant 0 : i32
      %c0_i32_25 = arith.constant 0 : i32
      %29 = tpu.memref_slice %arg7[%28, %c0_i32_25] : memref<64x128xf32, #tpu.memory_space<any>> -> memref<1x128xf32, #tpu.memory_space<any>>
      %30 = tpu.memref_squeeze %29 : memref<1x128xf32, #tpu.memory_space<any>> -> memref<128xf32, #tpu.memory_space<any>>
      %c0_i32_26 = arith.constant 0 : i32
      %31 = tpu.memref_slice %arg12[%c0_i32_22, %c2_i32_23, %c0_i32_26] : memref<8x8x128xf32, #tpu.memory_space<vmem>> -> memref<1x1x128xf32, #tpu.memory_space<vmem>>
      %32 = tpu.memref_squeeze %31 : memref<1x1x128xf32, #tpu.memory_space<vmem>> -> memref<128xf32, #tpu.memory_space<vmem>>
      %33 = tpu.memref_slice %arg13[%c0_i32_24] : memref<1x!tpu.dma_semaphore, #tpu.memory_space<semaphore_mem>> -> memref<1x!tpu.dma_semaphore, #tpu.memory_space<semaphore_mem>>
      %34 = tpu.memref_squeeze %33 : memref<1x!tpu.dma_semaphore, #tpu.memory_space<semaphore_mem>> -> memref<!tpu.dma_semaphore, #tpu.memory_space<semaphore_mem>>
      tpu.enqueue_dma source(%30 : memref<128xf32, #tpu.memory_space<any>>) target(%32 : memref<128xf32, #tpu.memory_space<vmem>>) target_semaphore(%34 : memref<!tpu.dma_semaphore, #tpu.memory_space<semaphore_mem>>)
      %c24 = arith.constant 24 : index
      %35 = memref.load %arg3[%c24] : memref<64xi32, #tpu.memory_space<smem>>
      %c0_i32_27 = arith.constant 0 : i32
      %c3_i32 = arith.constant 3 : i32
      %c0_i32_28 = arith.constant 0 : i32
      %c0_i32_29 = arith.constant 0 : i32
      %36 = tpu.memref_slice %arg7[%35, %c0_i32_29] : memref<64x128xf32, #tpu.memory_space<any>> -> memref<1x128xf32, #tpu.memory_space<any>>
      %37 = tpu.memref_squeeze %36 : memref<1x128xf32, #tpu.memory_space<any>> -> memref<128xf32, #tpu.memory_space<any>>
      %c0_i32_30 = arith.constant 0 : i32
      %38 = tpu.memref_slice %arg12[%c0_i32_27, %c3_i32, %c0_i32_30] : memref<8x8x128xf32, #tpu.memory_space<vmem>> -> memref<1x1x128xf32, #tpu.memory_space<vmem>>
      %39 = tpu.memref_squeeze %38 : memref<1x1x128xf32, #tpu.memory_space<vmem>> -> memref<128xf32, #tpu.memory_space<vmem>>
      %40 = tpu.memref_slice %arg13[%c0_i32_28] : memref<1x!tpu.dma_semaphore, #tpu.memory_space<semaphore_mem>> -> memref<1x!tpu.dma_semaphore, #tpu.memory_space<semaphore_mem>>
      %41 = tpu.memref_squeeze %40 : memref<1x!tpu.dma_semaphore, #tpu.memory_space<semaphore_mem>> -> memref<!tpu.dma_semaphore, #tpu.memory_space<semaphore_mem>>
      tpu.enqueue_dma source(%37 : memref<128xf32, #tpu.memory_space<any>>) target(%39 : memref<128xf32, #tpu.memory_space<vmem>>) target_semaphore(%41 : memref<!tpu.dma_semaphore, #tpu.memory_space<semaphore_mem>>)
      %c32 = arith.constant 32 : index
      %42 = memref.load %arg3[%c32] : memref<64xi32, #tpu.memory_space<smem>>
      %c0_i32_31 = arith.constant 0 : i32
      %c4_i32 = arith.constant 4 : i32
      %c0_i32_32 = arith.constant 0 : i32
      %c0_i32_33 = arith.constant 0 : i32
      %43 = tpu.memref_slice %arg7[%42, %c0_i32_33] : memref<64x128xf32, #tpu.memory_space<any>> -> memref<1x128xf32, #tpu.memory_space<any>>
      %44 = tpu.memref_squeeze %43 : memref<1x128xf32, #tpu.memory_space<any>> -> memref<128xf32, #tpu.memory_space<any>>
      %c0_i32_34 = arith.constant 0 : i32
      %45 = tpu.memref_slice %arg12[%c0_i32_31, %c4_i32, %c0_i32_34] : memref<8x8x128xf32, #tpu.memory_space<vmem>> -> memref<1x1x128xf32, #tpu.memory_space<vmem>>
      %46 = tpu.memref_squeeze %45 : memref<1x1x128xf32, #tpu.memory_space<vmem>> -> memref<128xf32, #tpu.memory_space<vmem>>
      %47 = tpu.memref_slice %arg13[%c0_i32_32] : memref<1x!tpu.dma_semaphore, #tpu.memory_space<semaphore_mem>> -> memref<1x!tpu.dma_semaphore, #tpu.memory_space<semaphore_mem>>
      %48 = tpu.memref_squeeze %47 : memref<1x!tpu.dma_semaphore, #tpu.memory_space<semaphore_mem>> -> memref<!tpu.dma_semaphore, #tpu.memory_space<semaphore_mem>>
      tpu.enqueue_dma source(%44 : memref<128xf32, #tpu.memory_space<any>>) target(%46 : memref<128xf32, #tpu.memory_space<vmem>>) target_semaphore(%48 : memref<!tpu.dma_semaphore, #tpu.memory_space<semaphore_mem>>)
      %c40 = arith.constant 40 : index
      %49 = memref.load %arg3[%c40] : memref<64xi32, #tpu.memory_space<smem>>
      %c0_i32_35 = arith.constant 0 : i32
      %c5_i32 = arith.constant 5 : i32
      %c0_i32_36 = arith.constant 0 : i32
      %c0_i32_37 = arith.constant 0 : i32
      %50 = tpu.memref_slice %arg7[%49, %c0_i32_37] : memref<64x128xf32, #tpu.memory_space<any>> -> memref<1x128xf32, #tpu.memory_space<any>>
      %51 = tpu.memref_squeeze %50 : memref<1x128xf32, #tpu.memory_space<any>> -> memref<128xf32, #tpu.memory_space<any>>
      %c0_i32_38 = arith.constant 0 : i32
      %52 = tpu.memref_slice %arg12[%c0_i32_35, %c5_i32, %c0_i32_38] : memref<8x8x128xf32, #tpu.memory_space<vmem>> -> memref<1x1x128xf32, #tpu.memory_space<vmem>>
      %53 = tpu.memref_squeeze %52 : memref<1x1x128xf32, #tpu.memory_space<vmem>> -> memref<128xf32, #tpu.memory_space<vmem>>
      %54 = tpu.memref_slice %arg13[%c0_i32_36] : memref<1x!tpu.dma_semaphore, #tpu.memory_space<semaphore_mem>> -> memref<1x!tpu.dma_semaphore, #tpu.memory_space<semaphore_mem>>
      %55 = tpu.memref_squeeze %54 : memref<1x!tpu.dma_semaphore, #tpu.memory_space<semaphore_mem>> -> memref<!tpu.dma_semaphore, #tpu.memory_space<semaphore_mem>>
      tpu.enqueue_dma source(%51 : memref<128xf32, #tpu.memory_space<any>>) target(%53 : memref<128xf32, #tpu.memory_space<vmem>>) target_semaphore(%55 : memref<!tpu.dma_semaphore, #tpu.memory_space<semaphore_mem>>)
      %c48 = arith.constant 48 : index
      %56 = memref.load %arg3[%c48] : memref<64xi32, #tpu.memory_space<smem>>
      %c0_i32_39 = arith.constant 0 : i32
      %c6_i32 = arith.constant 6 : i32
      %c0_i32_40 = arith.constant 0 : i32
      %c0_i32_41 = arith.constant 0 : i32
      %57 = tpu.memref_slice %arg7[%56, %c0_i32_41] : memref<64x128xf32, #tpu.memory_space<any>> -> memref<1x128xf32, #tpu.memory_space<any>>
      %58 = tpu.memref_squeeze %57 : memref<1x128xf32, #tpu.memory_space<any>> -> memref<128xf32, #tpu.memory_space<any>>
      %c0_i32_42 = arith.constant 0 : i32
      %59 = tpu.memref_slice %arg12[%c0_i32_39, %c6_i32, %c0_i32_42] : memref<8x8x128xf32, #tpu.memory_space<vmem>> -> memref<1x1x128xf32, #tpu.memory_space<vmem>>
      %60 = tpu.memref_squeeze %59 : memref<1x1x128xf32, #tpu.memory_space<vmem>> -> memref<128xf32, #tpu.memory_space<vmem>>
      %61 = tpu.memref_slice %arg13[%c0_i32_40] : memref<1x!tpu.dma_semaphore, #tpu.memory_space<semaphore_mem>> -> memref<1x!tpu.dma_semaphore, #tpu.memory_space<semaphore_mem>>
      %62 = tpu.memref_squeeze %61 : memref<1x!tpu.dma_semaphore, #tpu.memory_space<semaphore_mem>> -> memref<!tpu.dma_semaphore, #tpu.memory_space<semaphore_mem>>
      tpu.enqueue_dma source(%58 : memref<128xf32, #tpu.memory_space<any>>) target(%60 : memref<128xf32, #tpu.memory_space<vmem>>) target_semaphore(%62 : memref<!tpu.dma_semaphore, #tpu.memory_space<semaphore_mem>>)
      %c56 = arith.constant 56 : index
      %63 = memref.load %arg3[%c56] : memref<64xi32, #tpu.memory_space<smem>>
      %c0_i32_43 = arith.constant 0 : i32
      %c7_i32 = arith.constant 7 : i32
      %c0_i32_44 = arith.constant 0 : i32
      %c0_i32_45 = arith.constant 0 : i32
      %64 = tpu.memref_slice %arg7[%63, %c0_i32_45] : memref<64x128xf32, #tpu.memory_space<any>> -> memref<1x128xf32, #tpu.memory_space<any>>
      %65 = tpu.memref_squeeze %64 : memref<1x128xf32, #tpu.memory_space<any>> -> memref<128xf32, #tpu.memory_space<any>>
      %c0_i32_46 = arith.constant 0 : i32
      %66 = tpu.memref_slice %arg12[%c0_i32_43, %c7_i32, %c0_i32_46] : memref<8x8x128xf32, #tpu.memory_space<vmem>> -> memref<1x1x128xf32, #tpu.memory_space<vmem>>
      %67 = tpu.memref_squeeze %66 : memref<1x1x128xf32, #tpu.memory_space<vmem>> -> memref<128xf32, #tpu.memory_space<vmem>>
      %68 = tpu.memref_slice %arg13[%c0_i32_44] : memref<1x!tpu.dma_semaphore, #tpu.memory_space<semaphore_mem>> -> memref<1x!tpu.dma_semaphore, #tpu.memory_space<semaphore_mem>>
      %69 = tpu.memref_squeeze %68 : memref<1x!tpu.dma_semaphore, #tpu.memory_space<semaphore_mem>> -> memref<!tpu.dma_semaphore, #tpu.memory_space<semaphore_mem>>
      tpu.enqueue_dma source(%65 : memref<128xf32, #tpu.memory_space<any>>) target(%67 : memref<128xf32, #tpu.memory_space<vmem>>) target_semaphore(%69 : memref<!tpu.dma_semaphore, #tpu.memory_space<semaphore_mem>>)
      %c1 = arith.constant 1 : index
      %70 = memref.load %arg3[%c1] : memref<64xi32, #tpu.memory_space<smem>>
      %c1_i32_47 = arith.constant 1 : i32
      %c0_i32_48 = arith.constant 0 : i32
      %c0_i32_49 = arith.constant 0 : i32
      %c0_i32_50 = arith.constant 0 : i32
      %71 = tpu.memref_slice %arg7[%70, %c0_i32_50] : memref<64x128xf32, #tpu.memory_space<any>> -> memref<1x128xf32, #tpu.memory_space<any>>
      %72 = tpu.memref_squeeze %71 : memref<1x128xf32, #tpu.memory_space<any>> -> memref<128xf32, #tpu.memory_space<any>>
      %c0_i32_51 = arith.constant 0 : i32
      %73 = tpu.memref_slice %arg12[%c1_i32_47, %c0_i32_48, %c0_i32_51] : memref<8x8x128xf32, #tpu.memory_space<vmem>> -> memref<1x1x128xf32, #tpu.memory_space<vmem>>
      %74 = tpu.memref_squeeze %73 : memref<1x1x128xf32, #tpu.memory_space<vmem>> -> memref<128xf32, #tpu.memory_space<vmem>>
      %75 = tpu.memref_slice %arg13[%c0_i32_49] : memref<1x!tpu.dma_semaphore, #tpu.memory_space<semaphore_mem>> -> memref<1x!tpu.dma_semaphore, #tpu.memory_space<semaphore_mem>>
      %76 = tpu.memref_squeeze %75 : memref<1x!tpu.dma_semaphore, #tpu.memory_space<semaphore_mem>> -> memref<!tpu.dma_semaphore, #tpu.memory_space<semaphore_mem>>
      tpu.enqueue_dma source(%72 : memref<128xf32, #tpu.memory_space<any>>) target(%74 : memref<128xf32, #tpu.memory_space<vmem>>) target_semaphore(%76 : memref<!tpu.dma_semaphore, #tpu.memory_space<semaphore_mem>>)
      %c9 = arith.constant 9 : index
      %77 = memref.load %arg3[%c9] : memref<64xi32, #tpu.memory_space<smem>>
      %c1_i32_52 = arith.constant 1 : i32
      %c1_i32_53 = arith.constant 1 : i32
      %c0_i32_54 = arith.constant 0 : i32
      %c0_i32_55 = arith.constant 0 : i32
      %78 = tpu.memref_slice %arg7[%77, %c0_i32_55] : memref<64x128xf32, #tpu.memory_space<any>> -> memref<1x128xf32, #tpu.memory_space<any>>
      %79 = tpu.memref_squeeze %78 : memref<1x128xf32, #tpu.memory_space<any>> -> memref<128xf32, #tpu.memory_space<any>>
      %c0_i32_56 = arith.constant 0 : i32
      %80 = tpu.memref_slice %arg12[%c1_i32_52, %c1_i32_53, %c0_i32_56] : memref<8x8x128xf32, #tpu.memory_space<vmem>> -> memref<1x1x128xf32, #tpu.memory_space<vmem>>
      %81 = tpu.memref_squeeze %80 : memref<1x1x128xf32, #tpu.memory_space<vmem>> -> memref<128xf32, #tpu.memory_space<vmem>>
      %82 = tpu.memref_slice %arg13[%c0_i32_54] : memref<1x!tpu.dma_semaphore, #tpu.memory_space<semaphore_mem>> -> memref<1x!tpu.dma_semaphore, #tpu.memory_space<semaphore_mem>>
      %83 = tpu.memref_squeeze %82 : memref<1x!tpu.dma_semaphore, #tpu.memory_space<semaphore_mem>> -> memref<!tpu.dma_semaphore, #tpu.memory_space<semaphore_mem>>
      tpu.enqueue_dma source(%79 : memref<128xf32, #tpu.memory_space<any>>) target(%81 : memref<128xf32, #tpu.memory_space<vmem>>) target_semaphore(%83 : memref<!tpu.dma_semaphore, #tpu.memory_space<semaphore_mem>>)
      %c17 = arith.constant 17 : index
      %84 = memref.load %arg3[%c17] : memref<64xi32, #tpu.memory_space<smem>>
      %c1_i32_57 = arith.constant 1 : i32
      %c2_i32_58 = arith.constant 2 : i32
      %c0_i32_59 = arith.constant 0 : i32
      %c0_i32_60 = arith.constant 0 : i32
      %85 = tpu.memref_slice %arg7[%84, %c0_i32_60] : memref<64x128xf32, #tpu.memory_space<any>> -> memref<1x128xf32, #tpu.memory_space<any>>
      %86 = tpu.memref_squeeze %85 : memref<1x128xf32, #tpu.memory_space<any>> -> memref<128xf32, #tpu.memory_space<any>>
      %c0_i32_61 = arith.constant 0 : i32
      %87 = tpu.memref_slice %arg12[%c1_i32_57, %c2_i32_58, %c0_i32_61] : memref<8x8x128xf32, #tpu.memory_space<vmem>> -> memref<1x1x128xf32, #tpu.memory_space<vmem>>
      %88 = tpu.memref_squeeze %87 : memref<1x1x128xf32, #tpu.memory_space<vmem>> -> memref<128xf32, #tpu.memory_space<vmem>>
      %89 = tpu.memref_slice %arg13[%c0_i32_59] : memref<1x!tpu.dma_semaphore, #tpu.memory_space<semaphore_mem>> -> memref<1x!tpu.dma_semaphore, #tpu.memory_space<semaphore_mem>>
      %90 = tpu.memref_squeeze %89 : memref<1x!tpu.dma_semaphore, #tpu.memory_space<semaphore_mem>> -> memref<!tpu.dma_semaphore, #tpu.memory_space<semaphore_mem>>
      tpu.enqueue_dma source(%86 : memref<128xf32, #tpu.memory_space<any>>) target(%88 : memref<128xf32, #tpu.memory_space<vmem>>) target_semaphore(%90 : memref<!tpu.dma_semaphore, #tpu.memory_space<semaphore_mem>>)
      %c25 = arith.constant 25 : index
      %91 = memref.load %arg3[%c25] : memref<64xi32, #tpu.memory_space<smem>>
      %c1_i32_62 = arith.constant 1 : i32
      %c3_i32_63 = arith.constant 3 : i32
      %c0_i32_64 = arith.constant 0 : i32
      %c0_i32_65 = arith.constant 0 : i32
      %92 = tpu.memref_slice %arg7[%91, %c0_i32_65] : memref<64x128xf32, #tpu.memory_space<any>> -> memref<1x128xf32, #tpu.memory_space<any>>
      %93 = tpu.memref_squeeze %92 : memref<1x128xf32, #tpu.memory_space<any>> -> memref<128xf32, #tpu.memory_space<any>>
      %c0_i32_66 = arith.constant 0 : i32
      %94 = tpu.memref_slice %arg12[%c1_i32_62, %c3_i32_63, %c0_i32_66] : memref<8x8x128xf32, #tpu.memory_space<vmem>> -> memref<1x1x128xf32, #tpu.memory_space<vmem>>
      %95 = tpu.memref_squeeze %94 : memref<1x1x128xf32, #tpu.memory_space<vmem>> -> memref<128xf32, #tpu.memory_space<vmem>>
      %96 = tpu.memref_slice %arg13[%c0_i32_64] : memref<1x!tpu.dma_semaphore, #tpu.memory_space<semaphore_mem>> -> memref<1x!tpu.dma_semaphore, #tpu.memory_space<semaphore_mem>>
      %97 = tpu.memref_squeeze %96 : memref<1x!tpu.dma_semaphore, #tpu.memory_space<semaphore_mem>> -> memref<!tpu.dma_semaphore, #tpu.memory_space<semaphore_mem>>
      tpu.enqueue_dma source(%93 : memref<128xf32, #tpu.memory_space<any>>) target(%95 : memref<128xf32, #tpu.memory_space<vmem>>) target_semaphore(%97 : memref<!tpu.dma_semaphore, #tpu.memory_space<semaphore_mem>>)
      %c33 = arith.constant 33 : index
      %98 = memref.load %arg3[%c33] : memref<64xi32, #tpu.memory_space<smem>>
      %c1_i32_67 = arith.constant 1 : i32
      %c4_i32_68 = arith.constant 4 : i32
      %c0_i32_69 = arith.constant 0 : i32
      %c0_i32_70 = arith.constant 0 : i32
      %99 = tpu.memref_slice %arg7[%98, %c0_i32_70] : memref<64x128xf32, #tpu.memory_space<any>> -> memref<1x128xf32, #tpu.memory_space<any>>
      %100 = tpu.memref_squeeze %99 : memref<1x128xf32, #tpu.memory_space<any>> -> memref<128xf32, #tpu.memory_space<any>>
      %c0_i32_71 = arith.constant 0 : i32
      %101 = tpu.memref_slice %arg12[%c1_i32_67, %c4_i32_68, %c0_i32_71] : memref<8x8x128xf32, #tpu.memory_space<vmem>> -> memref<1x1x128xf32, #tpu.memory_space<vmem>>
      %102 = tpu.memref_squeeze %101 : memref<1x1x128xf32, #tpu.memory_space<vmem>> -> memref<128xf32, #tpu.memory_space<vmem>>
      %103 = tpu.memref_slice %arg13[%c0_i32_69] : memref<1x!tpu.dma_semaphore, #tpu.memory_space<semaphore_mem>> -> memref<1x!tpu.dma_semaphore, #tpu.memory_space<semaphore_mem>>
      %104 = tpu.memref_squeeze %103 : memref<1x!tpu.dma_semaphore, #tpu.memory_space<semaphore_mem>> -> memref<!tpu.dma_semaphore, #tpu.memory_space<semaphore_mem>>
      tpu.enqueue_dma source(%100 : memref<128xf32, #tpu.memory_space<any>>) target(%102 : memref<128xf32, #tpu.memory_space<vmem>>) target_semaphore(%104 : memref<!tpu.dma_semaphore, #tpu.memory_space<semaphore_mem>>)
      %c41 = arith.constant 41 : index
      %105 = memref.load %arg3[%c41] : memref<64xi32, #tpu.memory_space<smem>>
      %c1_i32_72 = arith.constant 1 : i32
      %c5_i32_73 = arith.constant 5 : i32
      %c0_i32_74 = arith.constant 0 : i32
      %c0_i32_75 = arith.constant 0 : i32
      %106 = tpu.memref_slice %arg7[%105, %c0_i32_75] : memref<64x128xf32, #tpu.memory_space<any>> -> memref<1x128xf32, #tpu.memory_space<any>>
      %107 = tpu.memref_squeeze %106 : memref<1x128xf32, #tpu.memory_space<any>> -> memref<128xf32, #tpu.memory_space<any>>
      %c0_i32_76 = arith.constant 0 : i32
      %108 = tpu.memref_slice %arg12[%c1_i32_72, %c5_i32_73, %c0_i32_76] : memref<8x8x128xf32, #tpu.memory_space<vmem>> -> memref<1x1x128xf32, #tpu.memory_space<vmem>>
      %109 = tpu.memref_squeeze %108 : memref<1x1x128xf32, #tpu.memory_space<vmem>> -> memref<128xf32, #tpu.memory_space<vmem>>
      %110 = tpu.memref_slice %arg13[%c0_i32_74] : memref<1x!tpu.dma_semaphore, #tpu.memory_space<semaphore_mem>> -> memref<1x!tpu.dma_semaphore, #tpu.memory_space<semaphore_mem>>
      %111 = tpu.memref_squeeze %110 : memref<1x!tpu.dma_semaphore, #tpu.memory_space<semaphore_mem>> -> memref<!tpu.dma_semaphore, #tpu.memory_space<semaphore_mem>>
      tpu.enqueue_dma source(%107 : memref<128xf32, #tpu.memory_space<any>>) target(%109 : memref<128xf32, #tpu.memory_space<vmem>>) target_semaphore(%111 : memref<!tpu.dma_semaphore, #tpu.memory_space<semaphore_mem>>)
      %c49 = arith.constant 49 : index
      %112 = memref.load %arg3[%c49] : memref<64xi32, #tpu.memory_space<smem>>
      %c1_i32_77 = arith.constant 1 : i32
      %c6_i32_78 = arith.constant 6 : i32
      %c0_i32_79 = arith.constant 0 : i32
      %c0_i32_80 = arith.constant 0 : i32
      %113 = tpu.memref_slice %arg7[%112, %c0_i32_80] : memref<64x128xf32, #tpu.memory_space<any>> -> memref<1x128xf32, #tpu.memory_space<any>>
      %114 = tpu.memref_squeeze %113 : memref<1x128xf32, #tpu.memory_space<any>> -> memref<128xf32, #tpu.memory_space<any>>
      %c0_i32_81 = arith.constant 0 : i32
      %115 = tpu.memref_slice %arg12[%c1_i32_77, %c6_i32_78, %c0_i32_81] : memref<8x8x128xf32, #tpu.memory_space<vmem>> -> memref<1x1x128xf32, #tpu.memory_space<vmem>>
      %116 = tpu.memref_squeeze %115 : memref<1x1x128xf32, #tpu.memory_space<vmem>> -> memref<128xf32, #tpu.memory_space<vmem>>
      %117 = tpu.memref_slice %arg13[%c0_i32_79] : memref<1x!tpu.dma_semaphore, #tpu.memory_space<semaphore_mem>> -> memref<1x!tpu.dma_semaphore, #tpu.memory_space<semaphore_mem>>
      %118 = tpu.memref_squeeze %117 : memref<1x!tpu.dma_semaphore, #tpu.memory_space<semaphore_mem>> -> memref<!tpu.dma_semaphore, #tpu.memory_space<semaphore_mem>>
      tpu.enqueue_dma source(%114 : memref<128xf32, #tpu.memory_space<any>>) target(%116 : memref<128xf32, #tpu.memory_space<vmem>>) target_semaphore(%118 : memref<!tpu.dma_semaphore, #tpu.memory_space<semaphore_mem>>)
      %c57 = arith.constant 57 : index
      %119 = memref.load %arg3[%c57] : memref<64xi32, #tpu.memory_space<smem>>
      %c1_i32_82 = arith.constant 1 : i32
      %c7_i32_83 = arith.constant 7 : i32
      %c0_i32_84 = arith.constant 0 : i32
      %c0_i32_85 = arith.constant 0 : i32
      %120 = tpu.memref_slice %arg7[%119, %c0_i32_85] : memref<64x128xf32, #tpu.memory_space<any>> -> memref<1x128xf32, #tpu.memory_space<any>>
      %121 = tpu.memref_squeeze %120 : memref<1x128xf32, #tpu.memory_space<any>> -> memref<128xf32, #tpu.memory_space<any>>
      %c0_i32_86 = arith.constant 0 : i32
      %122 = tpu.memref_slice %arg12[%c1_i32_82, %c7_i32_83, %c0_i32_86] : memref<8x8x128xf32, #tpu.memory_space<vmem>> -> memref<1x1x128xf32, #tpu.memory_space<vmem>>
      %123 = tpu.memref_squeeze %122 : memref<1x1x128xf32, #tpu.memory_space<vmem>> -> memref<128xf32, #tpu.memory_space<vmem>>
      %124 = tpu.memref_slice %arg13[%c0_i32_84] : memref<1x!tpu.dma_semaphore, #tpu.memory_space<semaphore_mem>> -> memref<1x!tpu.dma_semaphore, #tpu.memory_space<semaphore_mem>>
      %125 = tpu.memref_squeeze %124 : memref<1x!tpu.dma_semaphore, #tpu.memory_space<semaphore_mem>> -> memref<!tpu.dma_semaphore, #tpu.memory_space<semaphore_mem>>
      tpu.enqueue_dma source(%121 : memref<128xf32, #tpu.memory_space<any>>) target(%123 : memref<128xf32, #tpu.memory_space<vmem>>) target_semaphore(%125 : memref<!tpu.dma_semaphore, #tpu.memory_space<semaphore_mem>>)
      %c2 = arith.constant 2 : index
      %126 = memref.load %arg3[%c2] : memref<64xi32, #tpu.memory_space<smem>>
      %c2_i32_87 = arith.constant 2 : i32
      %c0_i32_88 = arith.constant 0 : i32
      %c0_i32_89 = arith.constant 0 : i32
      %c0_i32_90 = arith.constant 0 : i32
      %127 = tpu.memref_slice %arg7[%126, %c0_i32_90] : memref<64x128xf32, #tpu.memory_space<any>> -> memref<1x128xf32, #tpu.memory_space<any>>
      %128 = tpu.memref_squeeze %127 : memref<1x128xf32, #tpu.memory_space<any>> -> memref<128xf32, #tpu.memory_space<any>>
      %c0_i32_91 = arith.constant 0 : i32
      %129 = tpu.memref_slice %arg12[%c2_i32_87, %c0_i32_88, %c0_i32_91] : memref<8x8x128xf32, #tpu.memory_space<vmem>> -> memref<1x1x128xf32, #tpu.memory_space<vmem>>
      %130 = tpu.memref_squeeze %129 : memref<1x1x128xf32, #tpu.memory_space<vmem>> -> memref<128xf32, #tpu.memory_space<vmem>>
      %131 = tpu.memref_slice %arg13[%c0_i32_89] : memref<1x!tpu.dma_semaphore, #tpu.memory_space<semaphore_mem>> -> memref<1x!tpu.dma_semaphore, #tpu.memory_space<semaphore_mem>>
      %132 = tpu.memref_squeeze %131 : memref<1x!tpu.dma_semaphore, #tpu.memory_space<semaphore_mem>> -> memref<!tpu.dma_semaphore, #tpu.memory_space<semaphore_mem>>
      tpu.enqueue_dma source(%128 : memref<128xf32, #tpu.memory_space<any>>) target(%130 : memref<128xf32, #tpu.memory_space<vmem>>) target_semaphore(%132 : memref<!tpu.dma_semaphore, #tpu.memory_space<semaphore_mem>>)
      %c10 = arith.constant 10 : index
      %133 = memref.load %arg3[%c10] : memref<64xi32, #tpu.memory_space<smem>>
      %c2_i32_92 = arith.constant 2 : i32
      %c1_i32_93 = arith.constant 1 : i32
      %c0_i32_94 = arith.constant 0 : i32
      %c0_i32_95 = arith.constant 0 : i32
      %134 = tpu.memref_slice %arg7[%133, %c0_i32_95] : memref<64x128xf32, #tpu.memory_space<any>> -> memref<1x128xf32, #tpu.memory_space<any>>
      %135 = tpu.memref_squeeze %134 : memref<1x128xf32, #tpu.memory_space<any>> -> memref<128xf32, #tpu.memory_space<any>>
      %c0_i32_96 = arith.constant 0 : i32
      %136 = tpu.memref_slice %arg12[%c2_i32_92, %c1_i32_93, %c0_i32_96] : memref<8x8x128xf32, #tpu.memory_space<vmem>> -> memref<1x1x128xf32, #tpu.memory_space<vmem>>
      %137 = tpu.memref_squeeze %136 : memref<1x1x128xf32, #tpu.memory_space<vmem>> -> memref<128xf32, #tpu.memory_space<vmem>>
      %138 = tpu.memref_slice %arg13[%c0_i32_94] : memref<1x!tpu.dma_semaphore, #tpu.memory_space<semaphore_mem>> -> memref<1x!tpu.dma_semaphore, #tpu.memory_space<semaphore_mem>>
      %139 = tpu.memref_squeeze %138 : memref<1x!tpu.dma_semaphore, #tpu.memory_space<semaphore_mem>> -> memref<!tpu.dma_semaphore, #tpu.memory_space<semaphore_mem>>
      tpu.enqueue_dma source(%135 : memref<128xf32, #tpu.memory_space<any>>) target(%137 : memref<128xf32, #tpu.memory_space<vmem>>) target_semaphore(%139 : memref<!tpu.dma_semaphore, #tpu.memory_space<semaphore_mem>>)
      %c18 = arith.constant 18 : index
      %140 = memref.load %arg3[%c18] : memref<64xi32, #tpu.memory_space<smem>>
      %c2_i32_97 = arith.constant 2 : i32
      %c2_i32_98 = arith.constant 2 : i32
      %c0_i32_99 = arith.constant 0 : i32
      %c0_i32_100 = arith.constant 0 : i32
      %141 = tpu.memref_slice %arg7[%140, %c0_i32_100] : memref<64x128xf32, #tpu.memory_space<any>> -> memref<1x128xf32, #tpu.memory_space<any>>
      %142 = tpu.memref_squeeze %141 : memref<1x128xf32, #tpu.memory_space<any>> -> memref<128xf32, #tpu.memory_space<any>>
      %c0_i32_101 = arith.constant 0 : i32
      %143 = tpu.memref_slice %arg12[%c2_i32_97, %c2_i32_98, %c0_i32_101] : memref<8x8x128xf32, #tpu.memory_space<vmem>> -> memref<1x1x128xf32, #tpu.memory_space<vmem>>
      %144 = tpu.memref_squeeze %143 : memref<1x1x128xf32, #tpu.memory_space<vmem>> -> memref<128xf32, #tpu.memory_space<vmem>>
      %145 = tpu.memref_slice %arg13[%c0_i32_99] : memref<1x!tpu.dma_semaphore, #tpu.memory_space<semaphore_mem>> -> memref<1x!tpu.dma_semaphore, #tpu.memory_space<semaphore_mem>>
      %146 = tpu.memref_squeeze %145 : memref<1x!tpu.dma_semaphore, #tpu.memory_space<semaphore_mem>> -> memref<!tpu.dma_semaphore, #tpu.memory_space<semaphore_mem>>
      tpu.enqueue_dma source(%142 : memref<128xf32, #tpu.memory_space<any>>) target(%144 : memref<128xf32, #tpu.memory_space<vmem>>) target_semaphore(%146 : memref<!tpu.dma_semaphore, #tpu.memory_space<semaphore_mem>>)
      %c26 = arith.constant 26 : index
      %147 = memref.load %arg3[%c26] : memref<64xi32, #tpu.memory_space<smem>>
      %c2_i32_102 = arith.constant 2 : i32
      %c3_i32_103 = arith.constant 3 : i32
      %c0_i32_104 = arith.constant 0 : i32
      %c0_i32_105 = arith.constant 0 : i32
      %148 = tpu.memref_slice %arg7[%147, %c0_i32_105] : memref<64x128xf32, #tpu.memory_space<any>> -> memref<1x128xf32, #tpu.memory_space<any>>
      %149 = tpu.memref_squeeze %148 : memref<1x128xf32, #tpu.memory_space<any>> -> memref<128xf32, #tpu.memory_space<any>>
      %c0_i32_106 = arith.constant 0 : i32
      %150 = tpu.memref_slice %arg12[%c2_i32_102, %c3_i32_103, %c0_i32_106] : memref<8x8x128xf32, #tpu.memory_space<vmem>> -> memref<1x1x128xf32, #tpu.memory_space<vmem>>
      %151 = tpu.memref_squeeze %150 : memref<1x1x128xf32, #tpu.memory_space<vmem>> -> memref<128xf32, #tpu.memory_space<vmem>>
      %152 = tpu.memref_slice %arg13[%c0_i32_104] : memref<1x!tpu.dma_semaphore, #tpu.memory_space<semaphore_mem>> -> memref<1x!tpu.dma_semaphore, #tpu.memory_space<semaphore_mem>>
      %153 = tpu.memref_squeeze %152 : memref<1x!tpu.dma_semaphore, #tpu.memory_space<semaphore_mem>> -> memref<!tpu.dma_semaphore, #tpu.memory_space<semaphore_mem>>
      tpu.enqueue_dma source(%149 : memref<128xf32, #tpu.memory_space<any>>) target(%151 : memref<128xf32, #tpu.memory_space<vmem>>) target_semaphore(%153 : memref<!tpu.dma_semaphore, #tpu.memory_space<semaphore_mem>>)
      %c34 = arith.constant 34 : index
      %154 = memref.load %arg3[%c34] : memref<64xi32, #tpu.memory_space<smem>>
      %c2_i32_107 = arith.constant 2 : i32
      %c4_i32_108 = arith.constant 4 : i32
      %c0_i32_109 = arith.constant 0 : i32
      %c0_i32_110 = arith.constant 0 : i32
      %155 = tpu.memref_slice %arg7[%154, %c0_i32_110] : memref<64x128xf32, #tpu.memory_space<any>> -> memref<1x128xf32, #tpu.memory_space<any>>
      %156 = tpu.memref_squeeze %155 : memref<1x128xf32, #tpu.memory_space<any>> -> memref<128xf32, #tpu.memory_space<any>>
      %c0_i32_111 = arith.constant 0 : i32
      %157 = tpu.memref_slice %arg12[%c2_i32_107, %c4_i32_108, %c0_i32_111] : memref<8x8x128xf32, #tpu.memory_space<vmem>> -> memref<1x1x128xf32, #tpu.memory_space<vmem>>
      %158 = tpu.memref_squeeze %157 : memref<1x1x128xf32, #tpu.memory_space<vmem>> -> memref<128xf32, #tpu.memory_space<vmem>>
      %159 = tpu.memref_slice %arg13[%c0_i32_109] : memref<1x!tpu.dma_semaphore, #tpu.memory_space<semaphore_mem>> -> memref<1x!tpu.dma_semaphore, #tpu.memory_space<semaphore_mem>>
      %160 = tpu.memref_squeeze %159 : memref<1x!tpu.dma_semaphore, #tpu.memory_space<semaphore_mem>> -> memref<!tpu.dma_semaphore, #tpu.memory_space<semaphore_mem>>
      tpu.enqueue_dma source(%156 : memref<128xf32, #tpu.memory_space<any>>) target(%158 : memref<128xf32, #tpu.memory_space<vmem>>) target_semaphore(%160 : memref<!tpu.dma_semaphore, #tpu.memory_space<semaphore_mem>>)
      %c42 = arith.constant 42 : index
      %161 = memref.load %arg3[%c42] : memref<64xi32, #tpu.memory_space<smem>>
      %c2_i32_112 = arith.constant 2 : i32
      %c5_i32_113 = arith.constant 5 : i32
      %c0_i32_114 = arith.constant 0 : i32
      %c0_i32_115 = arith.constant 0 : i32
      %162 = tpu.memref_slice %arg7[%161, %c0_i32_115] : memref<64x128xf32, #tpu.memory_space<any>> -> memref<1x128xf32, #tpu.memory_space<any>>
      %163 = tpu.memref_squeeze %162 : memref<1x128xf32, #tpu.memory_space<any>> -> memref<128xf32, #tpu.memory_space<any>>
      %c0_i32_116 = arith.constant 0 : i32
      %164 = tpu.memref_slice %arg12[%c2_i32_112, %c5_i32_113, %c0_i32_116] : memref<8x8x128xf32, #tpu.memory_space<vmem>> -> memref<1x1x128xf32, #tpu.memory_space<vmem>>
      %165 = tpu.memref_squeeze %164 : memref<1x1x128xf32, #tpu.memory_space<vmem>> -> memref<128xf32, #tpu.memory_space<vmem>>
      %166 = tpu.memref_slice %arg13[%c0_i32_114] : memref<1x!tpu.dma_semaphore, #tpu.memory_space<semaphore_mem>> -> memref<1x!tpu.dma_semaphore, #tpu.memory_space<semaphore_mem>>
      %167 = tpu.memref_squeeze %166 : memref<1x!tpu.dma_semaphore, #tpu.memory_space<semaphore_mem>> -> memref<!tpu.dma_semaphore, #tpu.memory_space<semaphore_mem>>
      tpu.enqueue_dma source(%163 : memref<128xf32, #tpu.memory_space<any>>) target(%165 : memref<128xf32, #tpu.memory_space<vmem>>) target_semaphore(%167 : memref<!tpu.dma_semaphore, #tpu.memory_space<semaphore_mem>>)
      %c50 = arith.constant 50 : index
      %168 = memref.load %arg3[%c50] : memref<64xi32, #tpu.memory_space<smem>>
      %c2_i32_117 = arith.constant 2 : i32
      %c6_i32_118 = arith.constant 6 : i32
      %c0_i32_119 = arith.constant 0 : i32
      %c0_i32_120 = arith.constant 0 : i32
      %169 = tpu.memref_slice %arg7[%168, %c0_i32_120] : memref<64x128xf32, #tpu.memory_space<any>> -> memref<1x128xf32, #tpu.memory_space<any>>
      %170 = tpu.memref_squeeze %169 : memref<1x128xf32, #tpu.memory_space<any>> -> memref<128xf32, #tpu.memory_space<any>>
      %c0_i32_121 = arith.constant 0 : i32
      %171 = tpu.memref_slice %arg12[%c2_i32_117, %c6_i32_118, %c0_i32_121] : memref<8x8x128xf32, #tpu.memory_space<vmem>> -> memref<1x1x128xf32, #tpu.memory_space<vmem>>
      %172 = tpu.memref_squeeze %171 : memref<1x1x128xf32, #tpu.memory_space<vmem>> -> memref<128xf32, #tpu.memory_space<vmem>>
      %173 = tpu.memref_slice %arg13[%c0_i32_119] : memref<1x!tpu.dma_semaphore, #tpu.memory_space<semaphore_mem>> -> memref<1x!tpu.dma_semaphore, #tpu.memory_space<semaphore_mem>>
      %174 = tpu.memref_squeeze %173 : memref<1x!tpu.dma_semaphore, #tpu.memory_space<semaphore_mem>> -> memref<!tpu.dma_semaphore, #tpu.memory_space<semaphore_mem>>
      tpu.enqueue_dma source(%170 : memref<128xf32, #tpu.memory_space<any>>) target(%172 : memref<128xf32, #tpu.memory_space<vmem>>) target_semaphore(%174 : memref<!tpu.dma_semaphore, #tpu.memory_space<semaphore_mem>>)
      %c58 = arith.constant 58 : index
      %175 = memref.load %arg3[%c58] : memref<64xi32, #tpu.memory_space<smem>>
      %c2_i32_122 = arith.constant 2 : i32
      %c7_i32_123 = arith.constant 7 : i32
      %c0_i32_124 = arith.constant 0 : i32
      %c0_i32_125 = arith.constant 0 : i32
      %176 = tpu.memref_slice %arg7[%175, %c0_i32_125] : memref<64x128xf32, #tpu.memory_space<any>> -> memref<1x128xf32, #tpu.memory_space<any>>
      %177 = tpu.memref_squeeze %176 : memref<1x128xf32, #tpu.memory_space<any>> -> memref<128xf32, #tpu.memory_space<any>>
      %c0_i32_126 = arith.constant 0 : i32
      %178 = tpu.memref_slice %arg12[%c2_i32_122, %c7_i32_123, %c0_i32_126] : memref<8x8x128xf32, #tpu.memory_space<vmem>> -> memref<1x1x128xf32, #tpu.memory_space<vmem>>
      %179 = tpu.memref_squeeze %178 : memref<1x1x128xf32, #tpu.memory_space<vmem>> -> memref<128xf32, #tpu.memory_space<vmem>>
      %180 = tpu.memref_slice %arg13[%c0_i32_124] : memref<1x!tpu.dma_semaphore, #tpu.memory_space<semaphore_mem>> -> memref<1x!tpu.dma_semaphore, #tpu.memory_space<semaphore_mem>>
      %181 = tpu.memref_squeeze %180 : memref<1x!tpu.dma_semaphore, #tpu.memory_space<semaphore_mem>> -> memref<!tpu.dma_semaphore, #tpu.memory_space<semaphore_mem>>
      tpu.enqueue_dma source(%177 : memref<128xf32, #tpu.memory_space<any>>) target(%179 : memref<128xf32, #tpu.memory_space<vmem>>) target_semaphore(%181 : memref<!tpu.dma_semaphore, #tpu.memory_space<semaphore_mem>>)
      %c3 = arith.constant 3 : index
      %182 = memref.load %arg3[%c3] : memref<64xi32, #tpu.memory_space<smem>>
      %c3_i32_127 = arith.constant 3 : i32
      %c0_i32_128 = arith.constant 0 : i32
      %c0_i32_129 = arith.constant 0 : i32
      %c0_i32_130 = arith.constant 0 : i32
      %183 = tpu.memref_slice %arg7[%182, %c0_i32_130] : memref<64x128xf32, #tpu.memory_space<any>> -> memref<1x128xf32, #tpu.memory_space<any>>
      %184 = tpu.memref_squeeze %183 : memref<1x128xf32, #tpu.memory_space<any>> -> memref<128xf32, #tpu.memory_space<any>>
      %c0_i32_131 = arith.constant 0 : i32
      %185 = tpu.memref_slice %arg12[%c3_i32_127, %c0_i32_128, %c0_i32_131] : memref<8x8x128xf32, #tpu.memory_space<vmem>> -> memref<1x1x128xf32, #tpu.memory_space<vmem>>
      %186 = tpu.memref_squeeze %185 : memref<1x1x128xf32, #tpu.memory_space<vmem>> -> memref<128xf32, #tpu.memory_space<vmem>>
      %187 = tpu.memref_slice %arg13[%c0_i32_129] : memref<1x!tpu.dma_semaphore, #tpu.memory_space<semaphore_mem>> -> memref<1x!tpu.dma_semaphore, #tpu.memory_space<semaphore_mem>>
      %188 = tpu.memref_squeeze %187 : memref<1x!tpu.dma_semaphore, #tpu.memory_space<semaphore_mem>> -> memref<!tpu.dma_semaphore, #tpu.memory_space<semaphore_mem>>
      tpu.enqueue_dma source(%184 : memref<128xf32, #tpu.memory_space<any>>) target(%186 : memref<128xf32, #tpu.memory_space<vmem>>) target_semaphore(%188 : memref<!tpu.dma_semaphore, #tpu.memory_space<semaphore_mem>>)
      %c11 = arith.constant 11 : index
      %189 = memref.load %arg3[%c11] : memref<64xi32, #tpu.memory_space<smem>>
      %c3_i32_132 = arith.constant 3 : i32
      %c1_i32_133 = arith.constant 1 : i32
      %c0_i32_134 = arith.constant 0 : i32
      %c0_i32_135 = arith.constant 0 : i32
      %190 = tpu.memref_slice %arg7[%189, %c0_i32_135] : memref<64x128xf32, #tpu.memory_space<any>> -> memref<1x128xf32, #tpu.memory_space<any>>
      %191 = tpu.memref_squeeze %190 : memref<1x128xf32, #tpu.memory_space<any>> -> memref<128xf32, #tpu.memory_space<any>>
      %c0_i32_136 = arith.constant 0 : i32
      %192 = tpu.memref_slice %arg12[%c3_i32_132, %c1_i32_133, %c0_i32_136] : memref<8x8x128xf32, #tpu.memory_space<vmem>> -> memref<1x1x128xf32, #tpu.memory_space<vmem>>
      %193 = tpu.memref_squeeze %192 : memref<1x1x128xf32, #tpu.memory_space<vmem>> -> memref<128xf32, #tpu.memory_space<vmem>>
      %194 = tpu.memref_slice %arg13[%c0_i32_134] : memref<1x!tpu.dma_semaphore, #tpu.memory_space<semaphore_mem>> -> memref<1x!tpu.dma_semaphore, #tpu.memory_space<semaphore_mem>>
      %195 = tpu.memref_squeeze %194 : memref<1x!tpu.dma_semaphore, #tpu.memory_space<semaphore_mem>> -> memref<!tpu.dma_semaphore, #tpu.memory_space<semaphore_mem>>
      tpu.enqueue_dma source(%191 : memref<128xf32, #tpu.memory_space<any>>) target(%193 : memref<128xf32, #tpu.memory_space<vmem>>) target_semaphore(%195 : memref<!tpu.dma_semaphore, #tpu.memory_space<semaphore_mem>>)
      %c19 = arith.constant 19 : index
      %196 = memref.load %arg3[%c19] : memref<64xi32, #tpu.memory_space<smem>>
      %c3_i32_137 = arith.constant 3 : i32
      %c2_i32_138 = arith.constant 2 : i32
      %c0_i32_139 = arith.constant 0 : i32
      %c0_i32_140 = arith.constant 0 : i32
      %197 = tpu.memref_slice %arg7[%196, %c0_i32_140] : memref<64x128xf32, #tpu.memory_space<any>> -> memref<1x128xf32, #tpu.memory_space<any>>
      %198 = tpu.memref_squeeze %197 : memref<1x128xf32, #tpu.memory_space<any>> -> memref<128xf32, #tpu.memory_space<any>>
      %c0_i32_141 = arith.constant 0 : i32
      %199 = tpu.memref_slice %arg12[%c3_i32_137, %c2_i32_138, %c0_i32_141] : memref<8x8x128xf32, #tpu.memory_space<vmem>> -> memref<1x1x128xf32, #tpu.memory_space<vmem>>
      %200 = tpu.memref_squeeze %199 : memref<1x1x128xf32, #tpu.memory_space<vmem>> -> memref<128xf32, #tpu.memory_space<vmem>>
      %201 = tpu.memref_slice %arg13[%c0_i32_139] : memref<1x!tpu.dma_semaphore, #tpu.memory_space<semaphore_mem>> -> memref<1x!tpu.dma_semaphore, #tpu.memory_space<semaphore_mem>>
      %202 = tpu.memref_squeeze %201 : memref<1x!tpu.dma_semaphore, #tpu.memory_space<semaphore_mem>> -> memref<!tpu.dma_semaphore, #tpu.memory_space<semaphore_mem>>
      tpu.enqueue_dma source(%198 : memref<128xf32, #tpu.memory_space<any>>) target(%200 : memref<128xf32, #tpu.memory_space<vmem>>) target_semaphore(%202 : memref<!tpu.dma_semaphore, #tpu.memory_space<semaphore_mem>>)
      %c27 = arith.constant 27 : index
      %203 = memref.load %arg3[%c27] : memref<64xi32, #tpu.memory_space<smem>>
      %c3_i32_142 = arith.constant 3 : i32
      %c3_i32_143 = arith.constant 3 : i32
      %c0_i32_144 = arith.constant 0 : i32
      %c0_i32_145 = arith.constant 0 : i32
      %204 = tpu.memref_slice %arg7[%203, %c0_i32_145] : memref<64x128xf32, #tpu.memory_space<any>> -> memref<1x128xf32, #tpu.memory_space<any>>
      %205 = tpu.memref_squeeze %204 : memref<1x128xf32, #tpu.memory_space<any>> -> memref<128xf32, #tpu.memory_space<any>>
      %c0_i32_146 = arith.constant 0 : i32
      %206 = tpu.memref_slice %arg12[%c3_i32_142, %c3_i32_143, %c0_i32_146] : memref<8x8x128xf32, #tpu.memory_space<vmem>> -> memref<1x1x128xf32, #tpu.memory_space<vmem>>
      %207 = tpu.memref_squeeze %206 : memref<1x1x128xf32, #tpu.memory_space<vmem>> -> memref<128xf32, #tpu.memory_space<vmem>>
      %208 = tpu.memref_slice %arg13[%c0_i32_144] : memref<1x!tpu.dma_semaphore, #tpu.memory_space<semaphore_mem>> -> memref<1x!tpu.dma_semaphore, #tpu.memory_space<semaphore_mem>>
      %209 = tpu.memref_squeeze %208 : memref<1x!tpu.dma_semaphore, #tpu.memory_space<semaphore_mem>> -> memref<!tpu.dma_semaphore, #tpu.memory_space<semaphore_mem>>
      tpu.enqueue_dma source(%205 : memref<128xf32, #tpu.memory_space<any>>) target(%207 : memref<128xf32, #tpu.memory_space<vmem>>) target_semaphore(%209 : memref<!tpu.dma_semaphore, #tpu.memory_space<semaphore_mem>>)
      %c35 = arith.constant 35 : index
      %210 = memref.load %arg3[%c35] : memref<64xi32, #tpu.memory_space<smem>>
      %c3_i32_147 = arith.constant 3 : i32
      %c4_i32_148 = arith.constant 4 : i32
      %c0_i32_149 = arith.constant 0 : i32
      %c0_i32_150 = arith.constant 0 : i32
      %211 = tpu.memref_slice %arg7[%210, %c0_i32_150] : memref<64x128xf32, #tpu.memory_space<any>> -> memref<1x128xf32, #tpu.memory_space<any>>
      %212 = tpu.memref_squeeze %211 : memref<1x128xf32, #tpu.memory_space<any>> -> memref<128xf32, #tpu.memory_space<any>>
      %c0_i32_151 = arith.constant 0 : i32
      %213 = tpu.memref_slice %arg12[%c3_i32_147, %c4_i32_148, %c0_i32_151] : memref<8x8x128xf32, #tpu.memory_space<vmem>> -> memref<1x1x128xf32, #tpu.memory_space<vmem>>
      %214 = tpu.memref_squeeze %213 : memref<1x1x128xf32, #tpu.memory_space<vmem>> -> memref<128xf32, #tpu.memory_space<vmem>>
      %215 = tpu.memref_slice %arg13[%c0_i32_149] : memref<1x!tpu.dma_semaphore, #tpu.memory_space<semaphore_mem>> -> memref<1x!tpu.dma_semaphore, #tpu.memory_space<semaphore_mem>>
      %216 = tpu.memref_squeeze %215 : memref<1x!tpu.dma_semaphore, #tpu.memory_space<semaphore_mem>> -> memref<!tpu.dma_semaphore, #tpu.memory_space<semaphore_mem>>
      tpu.enqueue_dma source(%212 : memref<128xf32, #tpu.memory_space<any>>) target(%214 : memref<128xf32, #tpu.memory_space<vmem>>) target_semaphore(%216 : memref<!tpu.dma_semaphore, #tpu.memory_space<semaphore_mem>>)
      %c43 = arith.constant 43 : index
      %217 = memref.load %arg3[%c43] : memref<64xi32, #tpu.memory_space<smem>>
      %c3_i32_152 = arith.constant 3 : i32
      %c5_i32_153 = arith.constant 5 : i32
      %c0_i32_154 = arith.constant 0 : i32
      %c0_i32_155 = arith.constant 0 : i32
      %218 = tpu.memref_slice %arg7[%217, %c0_i32_155] : memref<64x128xf32, #tpu.memory_space<any>> -> memref<1x128xf32, #tpu.memory_space<any>>
      %219 = tpu.memref_squeeze %218 : memref<1x128xf32, #tpu.memory_space<any>> -> memref<128xf32, #tpu.memory_space<any>>
      %c0_i32_156 = arith.constant 0 : i32
      %220 = tpu.memref_slice %arg12[%c3_i32_152, %c5_i32_153, %c0_i32_156] : memref<8x8x128xf32, #tpu.memory_space<vmem>> -> memref<1x1x128xf32, #tpu.memory_space<vmem>>
      %221 = tpu.memref_squeeze %220 : memref<1x1x128xf32, #tpu.memory_space<vmem>> -> memref<128xf32, #tpu.memory_space<vmem>>
      %222 = tpu.memref_slice %arg13[%c0_i32_154] : memref<1x!tpu.dma_semaphore, #tpu.memory_space<semaphore_mem>> -> memref<1x!tpu.dma_semaphore, #tpu.memory_space<semaphore_mem>>
      %223 = tpu.memref_squeeze %222 : memref<1x!tpu.dma_semaphore, #tpu.memory_space<semaphore_mem>> -> memref<!tpu.dma_semaphore, #tpu.memory_space<semaphore_mem>>
      tpu.enqueue_dma source(%219 : memref<128xf32, #tpu.memory_space<any>>) target(%221 : memref<128xf32, #tpu.memory_space<vmem>>) target_semaphore(%223 : memref<!tpu.dma_semaphore, #tpu.memory_space<semaphore_mem>>)
      %c51 = arith.constant 51 : index
      %224 = memref.load %arg3[%c51] : memref<64xi32, #tpu.memory_space<smem>>
      %c3_i32_157 = arith.constant 3 : i32
      %c6_i32_158 = arith.constant 6 : i32
      %c0_i32_159 = arith.constant 0 : i32
      %c0_i32_160 = arith.constant 0 : i32
      %225 = tpu.memref_slice %arg7[%224, %c0_i32_160] : memref<64x128xf32, #tpu.memory_space<any>> -> memref<1x128xf32, #tpu.memory_space<any>>
      %226 = tpu.memref_squeeze %225 : memref<1x128xf32, #tpu.memory_space<any>> -> memref<128xf32, #tpu.memory_space<any>>
      %c0_i32_161 = arith.constant 0 : i32
      %227 = tpu.memref_slice %arg12[%c3_i32_157, %c6_i32_158, %c0_i32_161] : memref<8x8x128xf32, #tpu.memory_space<vmem>> -> memref<1x1x128xf32, #tpu.memory_space<vmem>>
      %228 = tpu.memref_squeeze %227 : memref<1x1x128xf32, #tpu.memory_space<vmem>> -> memref<128xf32, #tpu.memory_space<vmem>>
      %229 = tpu.memref_slice %arg13[%c0_i32_159] : memref<1x!tpu.dma_semaphore, #tpu.memory_space<semaphore_mem>> -> memref<1x!tpu.dma_semaphore, #tpu.memory_space<semaphore_mem>>
      %230 = tpu.memref_squeeze %229 : memref<1x!tpu.dma_semaphore, #tpu.memory_space<semaphore_mem>> -> memref<!tpu.dma_semaphore, #tpu.memory_space<semaphore_mem>>
      tpu.enqueue_dma source(%226 : memref<128xf32, #tpu.memory_space<any>>) target(%228 : memref<128xf32, #tpu.memory_space<vmem>>) target_semaphore(%230 : memref<!tpu.dma_semaphore, #tpu.memory_space<semaphore_mem>>)
      %c59 = arith.constant 59 : index
      %231 = memref.load %arg3[%c59] : memref<64xi32, #tpu.memory_space<smem>>
      %c3_i32_162 = arith.constant 3 : i32
      %c7_i32_163 = arith.constant 7 : i32
      %c0_i32_164 = arith.constant 0 : i32
      %c0_i32_165 = arith.constant 0 : i32
      %232 = tpu.memref_slice %arg7[%231, %c0_i32_165] : memref<64x128xf32, #tpu.memory_space<any>> -> memref<1x128xf32, #tpu.memory_space<any>>
      %233 = tpu.memref_squeeze %232 : memref<1x128xf32, #tpu.memory_space<any>> -> memref<128xf32, #tpu.memory_space<any>>
      %c0_i32_166 = arith.constant 0 : i32
      %234 = tpu.memref_slice %arg12[%c3_i32_162, %c7_i32_163, %c0_i32_166] : memref<8x8x128xf32, #tpu.memory_space<vmem>> -> memref<1x1x128xf32, #tpu.memory_space<vmem>>
      %235 = tpu.memref_squeeze %234 : memref<1x1x128xf32, #tpu.memory_space<vmem>> -> memref<128xf32, #tpu.memory_space<vmem>>
      %236 = tpu.memref_slice %arg13[%c0_i32_164] : memref<1x!tpu.dma_semaphore, #tpu.memory_space<semaphore_mem>> -> memref<1x!tpu.dma_semaphore, #tpu.memory_space<semaphore_mem>>
      %237 = tpu.memref_squeeze %236 : memref<1x!tpu.dma_semaphore, #tpu.memory_space<semaphore_mem>> -> memref<!tpu.dma_semaphore, #tpu.memory_space<semaphore_mem>>
      tpu.enqueue_dma source(%233 : memref<128xf32, #tpu.memory_space<any>>) target(%235 : memref<128xf32, #tpu.memory_space<vmem>>) target_semaphore(%237 : memref<!tpu.dma_semaphore, #tpu.memory_space<semaphore_mem>>)
      %c4 = arith.constant 4 : index
      %238 = memref.load %arg3[%c4] : memref<64xi32, #tpu.memory_space<smem>>
      %c4_i32_167 = arith.constant 4 : i32
      %c0_i32_168 = arith.constant 0 : i32
      %c0_i32_169 = arith.constant 0 : i32
      %c0_i32_170 = arith.constant 0 : i32
      %239 = tpu.memref_slice %arg7[%238, %c0_i32_170] : memref<64x128xf32, #tpu.memory_space<any>> -> memref<1x128xf32, #tpu.memory_space<any>>
      %240 = tpu.memref_squeeze %239 : memref<1x128xf32, #tpu.memory_space<any>> -> memref<128xf32, #tpu.memory_space<any>>
      %c0_i32_171 = arith.constant 0 : i32
      %241 = tpu.memref_slice %arg12[%c4_i32_167, %c0_i32_168, %c0_i32_171] : memref<8x8x128xf32, #tpu.memory_space<vmem>> -> memref<1x1x128xf32, #tpu.memory_space<vmem>>
      %242 = tpu.memref_squeeze %241 : memref<1x1x128xf32, #tpu.memory_space<vmem>> -> memref<128xf32, #tpu.memory_space<vmem>>
      %243 = tpu.memref_slice %arg13[%c0_i32_169] : memref<1x!tpu.dma_semaphore, #tpu.memory_space<semaphore_mem>> -> memref<1x!tpu.dma_semaphore, #tpu.memory_space<semaphore_mem>>
      %244 = tpu.memref_squeeze %243 : memref<1x!tpu.dma_semaphore, #tpu.memory_space<semaphore_mem>> -> memref<!tpu.dma_semaphore, #tpu.memory_space<semaphore_mem>>
      tpu.enqueue_dma source(%240 : memref<128xf32, #tpu.memory_space<any>>) target(%242 : memref<128xf32, #tpu.memory_space<vmem>>) target_semaphore(%244 : memref<!tpu.dma_semaphore, #tpu.memory_space<semaphore_mem>>)
      %c12 = arith.constant 12 : index
      %245 = memref.load %arg3[%c12] : memref<64xi32, #tpu.memory_space<smem>>
      %c4_i32_172 = arith.constant 4 : i32
      %c1_i32_173 = arith.constant 1 : i32
      %c0_i32_174 = arith.constant 0 : i32
      %c0_i32_175 = arith.constant 0 : i32
      %246 = tpu.memref_slice %arg7[%245, %c0_i32_175] : memref<64x128xf32, #tpu.memory_space<any>> -> memref<1x128xf32, #tpu.memory_space<any>>
      %247 = tpu.memref_squeeze %246 : memref<1x128xf32, #tpu.memory_space<any>> -> memref<128xf32, #tpu.memory_space<any>>
      %c0_i32_176 = arith.constant 0 : i32
      %248 = tpu.memref_slice %arg12[%c4_i32_172, %c1_i32_173, %c0_i32_176] : memref<8x8x128xf32, #tpu.memory_space<vmem>> -> memref<1x1x128xf32, #tpu.memory_space<vmem>>
      %249 = tpu.memref_squeeze %248 : memref<1x1x128xf32, #tpu.memory_space<vmem>> -> memref<128xf32, #tpu.memory_space<vmem>>
      %250 = tpu.memref_slice %arg13[%c0_i32_174] : memref<1x!tpu.dma_semaphore, #tpu.memory_space<semaphore_mem>> -> memref<1x!tpu.dma_semaphore, #tpu.memory_space<semaphore_mem>>
      %251 = tpu.memref_squeeze %250 : memref<1x!tpu.dma_semaphore, #tpu.memory_space<semaphore_mem>> -> memref<!tpu.dma_semaphore, #tpu.memory_space<semaphore_mem>>
      tpu.enqueue_dma source(%247 : memref<128xf32, #tpu.memory_space<any>>) target(%249 : memref<128xf32, #tpu.memory_space<vmem>>) target_semaphore(%251 : memref<!tpu.dma_semaphore, #tpu.memory_space<semaphore_mem>>)
      %c20 = arith.constant 20 : index
      %252 = memref.load %arg3[%c20] : memref<64xi32, #tpu.memory_space<smem>>
      %c4_i32_177 = arith.constant 4 : i32
      %c2_i32_178 = arith.constant 2 : i32
      %c0_i32_179 = arith.constant 0 : i32
      %c0_i32_180 = arith.constant 0 : i32
      %253 = tpu.memref_slice %arg7[%252, %c0_i32_180] : memref<64x128xf32, #tpu.memory_space<any>> -> memref<1x128xf32, #tpu.memory_space<any>>
      %254 = tpu.memref_squeeze %253 : memref<1x128xf32, #tpu.memory_space<any>> -> memref<128xf32, #tpu.memory_space<any>>
      %c0_i32_181 = arith.constant 0 : i32
      %255 = tpu.memref_slice %arg12[%c4_i32_177, %c2_i32_178, %c0_i32_181] : memref<8x8x128xf32, #tpu.memory_space<vmem>> -> memref<1x1x128xf32, #tpu.memory_space<vmem>>
      %256 = tpu.memref_squeeze %255 : memref<1x1x128xf32, #tpu.memory_space<vmem>> -> memref<128xf32, #tpu.memory_space<vmem>>
      %257 = tpu.memref_slice %arg13[%c0_i32_179] : memref<1x!tpu.dma_semaphore, #tpu.memory_space<semaphore_mem>> -> memref<1x!tpu.dma_semaphore, #tpu.memory_space<semaphore_mem>>
      %258 = tpu.memref_squeeze %257 : memref<1x!tpu.dma_semaphore, #tpu.memory_space<semaphore_mem>> -> memref<!tpu.dma_semaphore, #tpu.memory_space<semaphore_mem>>
      tpu.enqueue_dma source(%254 : memref<128xf32, #tpu.memory_space<any>>) target(%256 : memref<128xf32, #tpu.memory_space<vmem>>) target_semaphore(%258 : memref<!tpu.dma_semaphore, #tpu.memory_space<semaphore_mem>>)
      %c28 = arith.constant 28 : index
      %259 = memref.load %arg3[%c28] : memref<64xi32, #tpu.memory_space<smem>>
      %c4_i32_182 = arith.constant 4 : i32
      %c3_i32_183 = arith.constant 3 : i32
      %c0_i32_184 = arith.constant 0 : i32
      %c0_i32_185 = arith.constant 0 : i32
      %260 = tpu.memref_slice %arg7[%259, %c0_i32_185] : memref<64x128xf32, #tpu.memory_space<any>> -> memref<1x128xf32, #tpu.memory_space<any>>
      %261 = tpu.memref_squeeze %260 : memref<1x128xf32, #tpu.memory_space<any>> -> memref<128xf32, #tpu.memory_space<any>>
      %c0_i32_186 = arith.constant 0 : i32
      %262 = tpu.memref_slice %arg12[%c4_i32_182, %c3_i32_183, %c0_i32_186] : memref<8x8x128xf32, #tpu.memory_space<vmem>> -> memref<1x1x128xf32, #tpu.memory_space<vmem>>
      %263 = tpu.memref_squeeze %262 : memref<1x1x128xf32, #tpu.memory_space<vmem>> -> memref<128xf32, #tpu.memory_space<vmem>>
      %264 = tpu.memref_slice %arg13[%c0_i32_184] : memref<1x!tpu.dma_semaphore, #tpu.memory_space<semaphore_mem>> -> memref<1x!tpu.dma_semaphore, #tpu.memory_space<semaphore_mem>>
      %265 = tpu.memref_squeeze %264 : memref<1x!tpu.dma_semaphore, #tpu.memory_space<semaphore_mem>> -> memref<!tpu.dma_semaphore, #tpu.memory_space<semaphore_mem>>
      tpu.enqueue_dma source(%261 : memref<128xf32, #tpu.memory_space<any>>) target(%263 : memref<128xf32, #tpu.memory_space<vmem>>) target_semaphore(%265 : memref<!tpu.dma_semaphore, #tpu.memory_space<semaphore_mem>>)
      %c36 = arith.constant 36 : index
      %266 = memref.load %arg3[%c36] : memref<64xi32, #tpu.memory_space<smem>>
      %c4_i32_187 = arith.constant 4 : i32
      %c4_i32_188 = arith.constant 4 : i32
      %c0_i32_189 = arith.constant 0 : i32
      %c0_i32_190 = arith.constant 0 : i32
      %267 = tpu.memref_slice %arg7[%266, %c0_i32_190] : memref<64x128xf32, #tpu.memory_space<any>> -> memref<1x128xf32, #tpu.memory_space<any>>
      %268 = tpu.memref_squeeze %267 : memref<1x128xf32, #tpu.memory_space<any>> -> memref<128xf32, #tpu.memory_space<any>>
      %c0_i32_191 = arith.constant 0 : i32
      %269 = tpu.memref_slice %arg12[%c4_i32_187, %c4_i32_188, %c0_i32_191] : memref<8x8x128xf32, #tpu.memory_space<vmem>> -> memref<1x1x128xf32, #tpu.memory_space<vmem>>
      %270 = tpu.memref_squeeze %269 : memref<1x1x128xf32, #tpu.memory_space<vmem>> -> memref<128xf32, #tpu.memory_space<vmem>>
      %271 = tpu.memref_slice %arg13[%c0_i32_189] : memref<1x!tpu.dma_semaphore, #tpu.memory_space<semaphore_mem>> -> memref<1x!tpu.dma_semaphore, #tpu.memory_space<semaphore_mem>>
      %272 = tpu.memref_squeeze %271 : memref<1x!tpu.dma_semaphore, #tpu.memory_space<semaphore_mem>> -> memref<!tpu.dma_semaphore, #tpu.memory_space<semaphore_mem>>
      tpu.enqueue_dma source(%268 : memref<128xf32, #tpu.memory_space<any>>) target(%270 : memref<128xf32, #tpu.memory_space<vmem>>) target_semaphore(%272 : memref<!tpu.dma_semaphore, #tpu.memory_space<semaphore_mem>>)
      %c44 = arith.constant 44 : index
      %273 = memref.load %arg3[%c44] : memref<64xi32, #tpu.memory_space<smem>>
      %c4_i32_192 = arith.constant 4 : i32
      %c5_i32_193 = arith.constant 5 : i32
      %c0_i32_194 = arith.constant 0 : i32
      %c0_i32_195 = arith.constant 0 : i32
      %274 = tpu.memref_slice %arg7[%273, %c0_i32_195] : memref<64x128xf32, #tpu.memory_space<any>> -> memref<1x128xf32, #tpu.memory_space<any>>
      %275 = tpu.memref_squeeze %274 : memref<1x128xf32, #tpu.memory_space<any>> -> memref<128xf32, #tpu.memory_space<any>>
      %c0_i32_196 = arith.constant 0 : i32
      %276 = tpu.memref_slice %arg12[%c4_i32_192, %c5_i32_193, %c0_i32_196] : memref<8x8x128xf32, #tpu.memory_space<vmem>> -> memref<1x1x128xf32, #tpu.memory_space<vmem>>
      %277 = tpu.memref_squeeze %276 : memref<1x1x128xf32, #tpu.memory_space<vmem>> -> memref<128xf32, #tpu.memory_space<vmem>>
      %278 = tpu.memref_slice %arg13[%c0_i32_194] : memref<1x!tpu.dma_semaphore, #tpu.memory_space<semaphore_mem>> -> memref<1x!tpu.dma_semaphore, #tpu.memory_space<semaphore_mem>>
      %279 = tpu.memref_squeeze %278 : memref<1x!tpu.dma_semaphore, #tpu.memory_space<semaphore_mem>> -> memref<!tpu.dma_semaphore, #tpu.memory_space<semaphore_mem>>
      tpu.enqueue_dma source(%275 : memref<128xf32, #tpu.memory_space<any>>) target(%277 : memref<128xf32, #tpu.memory_space<vmem>>) target_semaphore(%279 : memref<!tpu.dma_semaphore, #tpu.memory_space<semaphore_mem>>)
      %c52 = arith.constant 52 : index
      %280 = memref.load %arg3[%c52] : memref<64xi32, #tpu.memory_space<smem>>
      %c4_i32_197 = arith.constant 4 : i32
      %c6_i32_198 = arith.constant 6 : i32
      %c0_i32_199 = arith.constant 0 : i32
      %c0_i32_200 = arith.constant 0 : i32
      %281 = tpu.memref_slice %arg7[%280, %c0_i32_200] : memref<64x128xf32, #tpu.memory_space<any>> -> memref<1x128xf32, #tpu.memory_space<any>>
      %282 = tpu.memref_squeeze %281 : memref<1x128xf32, #tpu.memory_space<any>> -> memref<128xf32, #tpu.memory_space<any>>
      %c0_i32_201 = arith.constant 0 : i32
      %283 = tpu.memref_slice %arg12[%c4_i32_197, %c6_i32_198, %c0_i32_201] : memref<8x8x128xf32, #tpu.memory_space<vmem>> -> memref<1x1x128xf32, #tpu.memory_space<vmem>>
      %284 = tpu.memref_squeeze %283 : memref<1x1x128xf32, #tpu.memory_space<vmem>> -> memref<128xf32, #tpu.memory_space<vmem>>
      %285 = tpu.memref_slice %arg13[%c0_i32_199] : memref<1x!tpu.dma_semaphore, #tpu.memory_space<semaphore_mem>> -> memref<1x!tpu.dma_semaphore, #tpu.memory_space<semaphore_mem>>
      %286 = tpu.memref_squeeze %285 : memref<1x!tpu.dma_semaphore, #tpu.memory_space<semaphore_mem>> -> memref<!tpu.dma_semaphore, #tpu.memory_space<semaphore_mem>>
      tpu.enqueue_dma source(%282 : memref<128xf32, #tpu.memory_space<any>>) target(%284 : memref<128xf32, #tpu.memory_space<vmem>>) target_semaphore(%286 : memref<!tpu.dma_semaphore, #tpu.memory_space<semaphore_mem>>)
      %c60 = arith.constant 60 : index
      %287 = memref.load %arg3[%c60] : memref<64xi32, #tpu.memory_space<smem>>
      %c4_i32_202 = arith.constant 4 : i32
      %c7_i32_203 = arith.constant 7 : i32
      %c0_i32_204 = arith.constant 0 : i32
      %c0_i32_205 = arith.constant 0 : i32
      %288 = tpu.memref_slice %arg7[%287, %c0_i32_205] : memref<64x128xf32, #tpu.memory_space<any>> -> memref<1x128xf32, #tpu.memory_space<any>>
      %289 = tpu.memref_squeeze %288 : memref<1x128xf32, #tpu.memory_space<any>> -> memref<128xf32, #tpu.memory_space<any>>
      %c0_i32_206 = arith.constant 0 : i32
      %290 = tpu.memref_slice %arg12[%c4_i32_202, %c7_i32_203, %c0_i32_206] : memref<8x8x128xf32, #tpu.memory_space<vmem>> -> memref<1x1x128xf32, #tpu.memory_space<vmem>>
      %291 = tpu.memref_squeeze %290 : memref<1x1x128xf32, #tpu.memory_space<vmem>> -> memref<128xf32, #tpu.memory_space<vmem>>
      %292 = tpu.memref_slice %arg13[%c0_i32_204] : memref<1x!tpu.dma_semaphore, #tpu.memory_space<semaphore_mem>> -> memref<1x!tpu.dma_semaphore, #tpu.memory_space<semaphore_mem>>
      %293 = tpu.memref_squeeze %292 : memref<1x!tpu.dma_semaphore, #tpu.memory_space<semaphore_mem>> -> memref<!tpu.dma_semaphore, #tpu.memory_space<semaphore_mem>>
      tpu.enqueue_dma source(%289 : memref<128xf32, #tpu.memory_space<any>>) target(%291 : memref<128xf32, #tpu.memory_space<vmem>>) target_semaphore(%293 : memref<!tpu.dma_semaphore, #tpu.memory_space<semaphore_mem>>)
      %c5 = arith.constant 5 : index
      %294 = memref.load %arg3[%c5] : memref<64xi32, #tpu.memory_space<smem>>
      %c5_i32_207 = arith.constant 5 : i32
      %c0_i32_208 = arith.constant 0 : i32
      %c0_i32_209 = arith.constant 0 : i32
      %c0_i32_210 = arith.constant 0 : i32
      %295 = tpu.memref_slice %arg7[%294, %c0_i32_210] : memref<64x128xf32, #tpu.memory_space<any>> -> memref<1x128xf32, #tpu.memory_space<any>>
      %296 = tpu.memref_squeeze %295 : memref<1x128xf32, #tpu.memory_space<any>> -> memref<128xf32, #tpu.memory_space<any>>
      %c0_i32_211 = arith.constant 0 : i32
      %297 = tpu.memref_slice %arg12[%c5_i32_207, %c0_i32_208, %c0_i32_211] : memref<8x8x128xf32, #tpu.memory_space<vmem>> -> memref<1x1x128xf32, #tpu.memory_space<vmem>>
      %298 = tpu.memref_squeeze %297 : memref<1x1x128xf32, #tpu.memory_space<vmem>> -> memref<128xf32, #tpu.memory_space<vmem>>
      %299 = tpu.memref_slice %arg13[%c0_i32_209] : memref<1x!tpu.dma_semaphore, #tpu.memory_space<semaphore_mem>> -> memref<1x!tpu.dma_semaphore, #tpu.memory_space<semaphore_mem>>
      %300 = tpu.memref_squeeze %299 : memref<1x!tpu.dma_semaphore, #tpu.memory_space<semaphore_mem>> -> memref<!tpu.dma_semaphore, #tpu.memory_space<semaphore_mem>>
      tpu.enqueue_dma source(%296 : memref<128xf32, #tpu.memory_space<any>>) target(%298 : memref<128xf32, #tpu.memory_space<vmem>>) target_semaphore(%300 : memref<!tpu.dma_semaphore, #tpu.memory_space<semaphore_mem>>)
      %c13 = arith.constant 13 : index
      %301 = memref.load %arg3[%c13] : memref<64xi32, #tpu.memory_space<smem>>
      %c5_i32_212 = arith.constant 5 : i32
      %c1_i32_213 = arith.constant 1 : i32
      %c0_i32_214 = arith.constant 0 : i32
      %c0_i32_215 = arith.constant 0 : i32
      %302 = tpu.memref_slice %arg7[%301, %c0_i32_215] : memref<64x128xf32, #tpu.memory_space<any>> -> memref<1x128xf32, #tpu.memory_space<any>>
      %303 = tpu.memref_squeeze %302 : memref<1x128xf32, #tpu.memory_space<any>> -> memref<128xf32, #tpu.memory_space<any>>
      %c0_i32_216 = arith.constant 0 : i32
      %304 = tpu.memref_slice %arg12[%c5_i32_212, %c1_i32_213, %c0_i32_216] : memref<8x8x128xf32, #tpu.memory_space<vmem>> -> memref<1x1x128xf32, #tpu.memory_space<vmem>>
      %305 = tpu.memref_squeeze %304 : memref<1x1x128xf32, #tpu.memory_space<vmem>> -> memref<128xf32, #tpu.memory_space<vmem>>
      %306 = tpu.memref_slice %arg13[%c0_i32_214] : memref<1x!tpu.dma_semaphore, #tpu.memory_space<semaphore_mem>> -> memref<1x!tpu.dma_semaphore, #tpu.memory_space<semaphore_mem>>
      %307 = tpu.memref_squeeze %306 : memref<1x!tpu.dma_semaphore, #tpu.memory_space<semaphore_mem>> -> memref<!tpu.dma_semaphore, #tpu.memory_space<semaphore_mem>>
      tpu.enqueue_dma source(%303 : memref<128xf32, #tpu.memory_space<any>>) target(%305 : memref<128xf32, #tpu.memory_space<vmem>>) target_semaphore(%307 : memref<!tpu.dma_semaphore, #tpu.memory_space<semaphore_mem>>)
      %c21 = arith.constant 21 : index
      %308 = memref.load %arg3[%c21] : memref<64xi32, #tpu.memory_space<smem>>
      %c5_i32_217 = arith.constant 5 : i32
      %c2_i32_218 = arith.constant 2 : i32
      %c0_i32_219 = arith.constant 0 : i32
      %c0_i32_220 = arith.constant 0 : i32
      %309 = tpu.memref_slice %arg7[%308, %c0_i32_220] : memref<64x128xf32, #tpu.memory_space<any>> -> memref<1x128xf32, #tpu.memory_space<any>>
      %310 = tpu.memref_squeeze %309 : memref<1x128xf32, #tpu.memory_space<any>> -> memref<128xf32, #tpu.memory_space<any>>
      %c0_i32_221 = arith.constant 0 : i32
      %311 = tpu.memref_slice %arg12[%c5_i32_217, %c2_i32_218, %c0_i32_221] : memref<8x8x128xf32, #tpu.memory_space<vmem>> -> memref<1x1x128xf32, #tpu.memory_space<vmem>>
      %312 = tpu.memref_squeeze %311 : memref<1x1x128xf32, #tpu.memory_space<vmem>> -> memref<128xf32, #tpu.memory_space<vmem>>
      %313 = tpu.memref_slice %arg13[%c0_i32_219] : memref<1x!tpu.dma_semaphore, #tpu.memory_space<semaphore_mem>> -> memref<1x!tpu.dma_semaphore, #tpu.memory_space<semaphore_mem>>
      %314 = tpu.memref_squeeze %313 : memref<1x!tpu.dma_semaphore, #tpu.memory_space<semaphore_mem>> -> memref<!tpu.dma_semaphore, #tpu.memory_space<semaphore_mem>>
      tpu.enqueue_dma source(%310 : memref<128xf32, #tpu.memory_space<any>>) target(%312 : memref<128xf32, #tpu.memory_space<vmem>>) target_semaphore(%314 : memref<!tpu.dma_semaphore, #tpu.memory_space<semaphore_mem>>)
      %c29 = arith.constant 29 : index
      %315 = memref.load %arg3[%c29] : memref<64xi32, #tpu.memory_space<smem>>
      %c5_i32_222 = arith.constant 5 : i32
      %c3_i32_223 = arith.constant 3 : i32
      %c0_i32_224 = arith.constant 0 : i32
      %c0_i32_225 = arith.constant 0 : i32
      %316 = tpu.memref_slice %arg7[%315, %c0_i32_225] : memref<64x128xf32, #tpu.memory_space<any>> -> memref<1x128xf32, #tpu.memory_space<any>>
      %317 = tpu.memref_squeeze %316 : memref<1x128xf32, #tpu.memory_space<any>> -> memref<128xf32, #tpu.memory_space<any>>
      %c0_i32_226 = arith.constant 0 : i32
      %318 = tpu.memref_slice %arg12[%c5_i32_222, %c3_i32_223, %c0_i32_226] : memref<8x8x128xf32, #tpu.memory_space<vmem>> -> memref<1x1x128xf32, #tpu.memory_space<vmem>>
      %319 = tpu.memref_squeeze %318 : memref<1x1x128xf32, #tpu.memory_space<vmem>> -> memref<128xf32, #tpu.memory_space<vmem>>
      %320 = tpu.memref_slice %arg13[%c0_i32_224] : memref<1x!tpu.dma_semaphore, #tpu.memory_space<semaphore_mem>> -> memref<1x!tpu.dma_semaphore, #tpu.memory_space<semaphore_mem>>
      %321 = tpu.memref_squeeze %320 : memref<1x!tpu.dma_semaphore, #tpu.memory_space<semaphore_mem>> -> memref<!tpu.dma_semaphore, #tpu.memory_space<semaphore_mem>>
      tpu.enqueue_dma source(%317 : memref<128xf32, #tpu.memory_space<any>>) target(%319 : memref<128xf32, #tpu.memory_space<vmem>>) target_semaphore(%321 : memref<!tpu.dma_semaphore, #tpu.memory_space<semaphore_mem>>)
      %c37 = arith.constant 37 : index
      %322 = memref.load %arg3[%c37] : memref<64xi32, #tpu.memory_space<smem>>
      %c5_i32_227 = arith.constant 5 : i32
      %c4_i32_228 = arith.constant 4 : i32
      %c0_i32_229 = arith.constant 0 : i32
      %c0_i32_230 = arith.constant 0 : i32
      %323 = tpu.memref_slice %arg7[%322, %c0_i32_230] : memref<64x128xf32, #tpu.memory_space<any>> -> memref<1x128xf32, #tpu.memory_space<any>>
      %324 = tpu.memref_squeeze %323 : memref<1x128xf32, #tpu.memory_space<any>> -> memref<128xf32, #tpu.memory_space<any>>
      %c0_i32_231 = arith.constant 0 : i32
      %325 = tpu.memref_slice %arg12[%c5_i32_227, %c4_i32_228, %c0_i32_231] : memref<8x8x128xf32, #tpu.memory_space<vmem>> -> memref<1x1x128xf32, #tpu.memory_space<vmem>>
      %326 = tpu.memref_squeeze %325 : memref<1x1x128xf32, #tpu.memory_space<vmem>> -> memref<128xf32, #tpu.memory_space<vmem>>
      %327 = tpu.memref_slice %arg13[%c0_i32_229] : memref<1x!tpu.dma_semaphore, #tpu.memory_space<semaphore_mem>> -> memref<1x!tpu.dma_semaphore, #tpu.memory_space<semaphore_mem>>
      %328 = tpu.memref_squeeze %327 : memref<1x!tpu.dma_semaphore, #tpu.memory_space<semaphore_mem>> -> memref<!tpu.dma_semaphore, #tpu.memory_space<semaphore_mem>>
      tpu.enqueue_dma source(%324 : memref<128xf32, #tpu.memory_space<any>>) target(%326 : memref<128xf32, #tpu.memory_space<vmem>>) target_semaphore(%328 : memref<!tpu.dma_semaphore, #tpu.memory_space<semaphore_mem>>)
      %c45 = arith.constant 45 : index
      %329 = memref.load %arg3[%c45] : memref<64xi32, #tpu.memory_space<smem>>
      %c5_i32_232 = arith.constant 5 : i32
      %c5_i32_233 = arith.constant 5 : i32
      %c0_i32_234 = arith.constant 0 : i32
      %c0_i32_235 = arith.constant 0 : i32
      %330 = tpu.memref_slice %arg7[%329, %c0_i32_235] : memref<64x128xf32, #tpu.memory_space<any>> -> memref<1x128xf32, #tpu.memory_space<any>>
      %331 = tpu.memref_squeeze %330 : memref<1x128xf32, #tpu.memory_space<any>> -> memref<128xf32, #tpu.memory_space<any>>
      %c0_i32_236 = arith.constant 0 : i32
      %332 = tpu.memref_slice %arg12[%c5_i32_232, %c5_i32_233, %c0_i32_236] : memref<8x8x128xf32, #tpu.memory_space<vmem>> -> memref<1x1x128xf32, #tpu.memory_space<vmem>>
      %333 = tpu.memref_squeeze %332 : memref<1x1x128xf32, #tpu.memory_space<vmem>> -> memref<128xf32, #tpu.memory_space<vmem>>
      %334 = tpu.memref_slice %arg13[%c0_i32_234] : memref<1x!tpu.dma_semaphore, #tpu.memory_space<semaphore_mem>> -> memref<1x!tpu.dma_semaphore, #tpu.memory_space<semaphore_mem>>
      %335 = tpu.memref_squeeze %334 : memref<1x!tpu.dma_semaphore, #tpu.memory_space<semaphore_mem>> -> memref<!tpu.dma_semaphore, #tpu.memory_space<semaphore_mem>>
      tpu.enqueue_dma source(%331 : memref<128xf32, #tpu.memory_space<any>>) target(%333 : memref<128xf32, #tpu.memory_space<vmem>>) target_semaphore(%335 : memref<!tpu.dma_semaphore, #tpu.memory_space<semaphore_mem>>)
      %c53 = arith.constant 53 : index
      %336 = memref.load %arg3[%c53] : memref<64xi32, #tpu.memory_space<smem>>
      %c5_i32_237 = arith.constant 5 : i32
      %c6_i32_238 = arith.constant 6 : i32
      %c0_i32_239 = arith.constant 0 : i32
      %c0_i32_240 = arith.constant 0 : i32
      %337 = tpu.memref_slice %arg7[%336, %c0_i32_240] : memref<64x128xf32, #tpu.memory_space<any>> -> memref<1x128xf32, #tpu.memory_space<any>>
      %338 = tpu.memref_squeeze %337 : memref<1x128xf32, #tpu.memory_space<any>> -> memref<128xf32, #tpu.memory_space<any>>
      %c0_i32_241 = arith.constant 0 : i32
      %339 = tpu.memref_slice %arg12[%c5_i32_237, %c6_i32_238, %c0_i32_241] : memref<8x8x128xf32, #tpu.memory_space<vmem>> -> memref<1x1x128xf32, #tpu.memory_space<vmem>>
      %340 = tpu.memref_squeeze %339 : memref<1x1x128xf32, #tpu.memory_space<vmem>> -> memref<128xf32, #tpu.memory_space<vmem>>
      %341 = tpu.memref_slice %arg13[%c0_i32_239] : memref<1x!tpu.dma_semaphore, #tpu.memory_space<semaphore_mem>> -> memref<1x!tpu.dma_semaphore, #tpu.memory_space<semaphore_mem>>
      %342 = tpu.memref_squeeze %341 : memref<1x!tpu.dma_semaphore, #tpu.memory_space<semaphore_mem>> -> memref<!tpu.dma_semaphore, #tpu.memory_space<semaphore_mem>>
      tpu.enqueue_dma source(%338 : memref<128xf32, #tpu.memory_space<any>>) target(%340 : memref<128xf32, #tpu.memory_space<vmem>>) target_semaphore(%342 : memref<!tpu.dma_semaphore, #tpu.memory_space<semaphore_mem>>)
      %c61 = arith.constant 61 : index
      %343 = memref.load %arg3[%c61] : memref<64xi32, #tpu.memory_space<smem>>
      %c5_i32_242 = arith.constant 5 : i32
      %c7_i32_243 = arith.constant 7 : i32
      %c0_i32_244 = arith.constant 0 : i32
      %c0_i32_245 = arith.constant 0 : i32
      %344 = tpu.memref_slice %arg7[%343, %c0_i32_245] : memref<64x128xf32, #tpu.memory_space<any>> -> memref<1x128xf32, #tpu.memory_space<any>>
      %345 = tpu.memref_squeeze %344 : memref<1x128xf32, #tpu.memory_space<any>> -> memref<128xf32, #tpu.memory_space<any>>
      %c0_i32_246 = arith.constant 0 : i32
      %346 = tpu.memref_slice %arg12[%c5_i32_242, %c7_i32_243, %c0_i32_246] : memref<8x8x128xf32, #tpu.memory_space<vmem>> -> memref<1x1x128xf32, #tpu.memory_space<vmem>>
      %347 = tpu.memref_squeeze %346 : memref<1x1x128xf32, #tpu.memory_space<vmem>> -> memref<128xf32, #tpu.memory_space<vmem>>
      %348 = tpu.memref_slice %arg13[%c0_i32_244] : memref<1x!tpu.dma_semaphore, #tpu.memory_space<semaphore_mem>> -> memref<1x!tpu.dma_semaphore, #tpu.memory_space<semaphore_mem>>
      %349 = tpu.memref_squeeze %348 : memref<1x!tpu.dma_semaphore, #tpu.memory_space<semaphore_mem>> -> memref<!tpu.dma_semaphore, #tpu.memory_space<semaphore_mem>>
      tpu.enqueue_dma source(%345 : memref<128xf32, #tpu.memory_space<any>>) target(%347 : memref<128xf32, #tpu.memory_space<vmem>>) target_semaphore(%349 : memref<!tpu.dma_semaphore, #tpu.memory_space<semaphore_mem>>)
      %c6 = arith.constant 6 : index
      %350 = memref.load %arg3[%c6] : memref<64xi32, #tpu.memory_space<smem>>
      %c6_i32_247 = arith.constant 6 : i32
      %c0_i32_248 = arith.constant 0 : i32
      %c0_i32_249 = arith.constant 0 : i32
      %c0_i32_250 = arith.constant 0 : i32
      %351 = tpu.memref_slice %arg7[%350, %c0_i32_250] : memref<64x128xf32, #tpu.memory_space<any>> -> memref<1x128xf32, #tpu.memory_space<any>>
      %352 = tpu.memref_squeeze %351 : memref<1x128xf32, #tpu.memory_space<any>> -> memref<128xf32, #tpu.memory_space<any>>
      %c0_i32_251 = arith.constant 0 : i32
      %353 = tpu.memref_slice %arg12[%c6_i32_247, %c0_i32_248, %c0_i32_251] : memref<8x8x128xf32, #tpu.memory_space<vmem>> -> memref<1x1x128xf32, #tpu.memory_space<vmem>>
      %354 = tpu.memref_squeeze %353 : memref<1x1x128xf32, #tpu.memory_space<vmem>> -> memref<128xf32, #tpu.memory_space<vmem>>
      %355 = tpu.memref_slice %arg13[%c0_i32_249] : memref<1x!tpu.dma_semaphore, #tpu.memory_space<semaphore_mem>> -> memref<1x!tpu.dma_semaphore, #tpu.memory_space<semaphore_mem>>
      %356 = tpu.memref_squeeze %355 : memref<1x!tpu.dma_semaphore, #tpu.memory_space<semaphore_mem>> -> memref<!tpu.dma_semaphore, #tpu.memory_space<semaphore_mem>>
      tpu.enqueue_dma source(%352 : memref<128xf32, #tpu.memory_space<any>>) target(%354 : memref<128xf32, #tpu.memory_space<vmem>>) target_semaphore(%356 : memref<!tpu.dma_semaphore, #tpu.memory_space<semaphore_mem>>)
      %c14 = arith.constant 14 : index
      %357 = memref.load %arg3[%c14] : memref<64xi32, #tpu.memory_space<smem>>
      %c6_i32_252 = arith.constant 6 : i32
      %c1_i32_253 = arith.constant 1 : i32
      %c0_i32_254 = arith.constant 0 : i32
      %c0_i32_255 = arith.constant 0 : i32
      %358 = tpu.memref_slice %arg7[%357, %c0_i32_255] : memref<64x128xf32, #tpu.memory_space<any>> -> memref<1x128xf32, #tpu.memory_space<any>>
      %359 = tpu.memref_squeeze %358 : memref<1x128xf32, #tpu.memory_space<any>> -> memref<128xf32, #tpu.memory_space<any>>
      %c0_i32_256 = arith.constant 0 : i32
      %360 = tpu.memref_slice %arg12[%c6_i32_252, %c1_i32_253, %c0_i32_256] : memref<8x8x128xf32, #tpu.memory_space<vmem>> -> memref<1x1x128xf32, #tpu.memory_space<vmem>>
      %361 = tpu.memref_squeeze %360 : memref<1x1x128xf32, #tpu.memory_space<vmem>> -> memref<128xf32, #tpu.memory_space<vmem>>
      %362 = tpu.memref_slice %arg13[%c0_i32_254] : memref<1x!tpu.dma_semaphore, #tpu.memory_space<semaphore_mem>> -> memref<1x!tpu.dma_semaphore, #tpu.memory_space<semaphore_mem>>
      %363 = tpu.memref_squeeze %362 : memref<1x!tpu.dma_semaphore, #tpu.memory_space<semaphore_mem>> -> memref<!tpu.dma_semaphore, #tpu.memory_space<semaphore_mem>>
      tpu.enqueue_dma source(%359 : memref<128xf32, #tpu.memory_space<any>>) target(%361 : memref<128xf32, #tpu.memory_space<vmem>>) target_semaphore(%363 : memref<!tpu.dma_semaphore, #tpu.memory_space<semaphore_mem>>)
      %c22 = arith.constant 22 : index
      %364 = memref.load %arg3[%c22] : memref<64xi32, #tpu.memory_space<smem>>
      %c6_i32_257 = arith.constant 6 : i32
      %c2_i32_258 = arith.constant 2 : i32
      %c0_i32_259 = arith.constant 0 : i32
      %c0_i32_260 = arith.constant 0 : i32
      %365 = tpu.memref_slice %arg7[%364, %c0_i32_260] : memref<64x128xf32, #tpu.memory_space<any>> -> memref<1x128xf32, #tpu.memory_space<any>>
      %366 = tpu.memref_squeeze %365 : memref<1x128xf32, #tpu.memory_space<any>> -> memref<128xf32, #tpu.memory_space<any>>
      %c0_i32_261 = arith.constant 0 : i32
      %367 = tpu.memref_slice %arg12[%c6_i32_257, %c2_i32_258, %c0_i32_261] : memref<8x8x128xf32, #tpu.memory_space<vmem>> -> memref<1x1x128xf32, #tpu.memory_space<vmem>>
      %368 = tpu.memref_squeeze %367 : memref<1x1x128xf32, #tpu.memory_space<vmem>> -> memref<128xf32, #tpu.memory_space<vmem>>
      %369 = tpu.memref_slice %arg13[%c0_i32_259] : memref<1x!tpu.dma_semaphore, #tpu.memory_space<semaphore_mem>> -> memref<1x!tpu.dma_semaphore, #tpu.memory_space<semaphore_mem>>
      %370 = tpu.memref_squeeze %369 : memref<1x!tpu.dma_semaphore, #tpu.memory_space<semaphore_mem>> -> memref<!tpu.dma_semaphore, #tpu.memory_space<semaphore_mem>>
      tpu.enqueue_dma source(%366 : memref<128xf32, #tpu.memory_space<any>>) target(%368 : memref<128xf32, #tpu.memory_space<vmem>>) target_semaphore(%370 : memref<!tpu.dma_semaphore, #tpu.memory_space<semaphore_mem>>)
      %c30 = arith.constant 30 : index
      %371 = memref.load %arg3[%c30] : memref<64xi32, #tpu.memory_space<smem>>
      %c6_i32_262 = arith.constant 6 : i32
      %c3_i32_263 = arith.constant 3 : i32
      %c0_i32_264 = arith.constant 0 : i32
      %c0_i32_265 = arith.constant 0 : i32
      %372 = tpu.memref_slice %arg7[%371, %c0_i32_265] : memref<64x128xf32, #tpu.memory_space<any>> -> memref<1x128xf32, #tpu.memory_space<any>>
      %373 = tpu.memref_squeeze %372 : memref<1x128xf32, #tpu.memory_space<any>> -> memref<128xf32, #tpu.memory_space<any>>
      %c0_i32_266 = arith.constant 0 : i32
      %374 = tpu.memref_slice %arg12[%c6_i32_262, %c3_i32_263, %c0_i32_266] : memref<8x8x128xf32, #tpu.memory_space<vmem>> -> memref<1x1x128xf32, #tpu.memory_space<vmem>>
      %375 = tpu.memref_squeeze %374 : memref<1x1x128xf32, #tpu.memory_space<vmem>> -> memref<128xf32, #tpu.memory_space<vmem>>
      %376 = tpu.memref_slice %arg13[%c0_i32_264] : memref<1x!tpu.dma_semaphore, #tpu.memory_space<semaphore_mem>> -> memref<1x!tpu.dma_semaphore, #tpu.memory_space<semaphore_mem>>
      %377 = tpu.memref_squeeze %376 : memref<1x!tpu.dma_semaphore, #tpu.memory_space<semaphore_mem>> -> memref<!tpu.dma_semaphore, #tpu.memory_space<semaphore_mem>>
      tpu.enqueue_dma source(%373 : memref<128xf32, #tpu.memory_space<any>>) target(%375 : memref<128xf32, #tpu.memory_space<vmem>>) target_semaphore(%377 : memref<!tpu.dma_semaphore, #tpu.memory_space<semaphore_mem>>)
      %c38 = arith.constant 38 : index
      %378 = memref.load %arg3[%c38] : memref<64xi32, #tpu.memory_space<smem>>
      %c6_i32_267 = arith.constant 6 : i32
      %c4_i32_268 = arith.constant 4 : i32
      %c0_i32_269 = arith.constant 0 : i32
      %c0_i32_270 = arith.constant 0 : i32
      %379 = tpu.memref_slice %arg7[%378, %c0_i32_270] : memref<64x128xf32, #tpu.memory_space<any>> -> memref<1x128xf32, #tpu.memory_space<any>>
      %380 = tpu.memref_squeeze %379 : memref<1x128xf32, #tpu.memory_space<any>> -> memref<128xf32, #tpu.memory_space<any>>
      %c0_i32_271 = arith.constant 0 : i32
      %381 = tpu.memref_slice %arg12[%c6_i32_267, %c4_i32_268, %c0_i32_271] : memref<8x8x128xf32, #tpu.memory_space<vmem>> -> memref<1x1x128xf32, #tpu.memory_space<vmem>>
      %382 = tpu.memref_squeeze %381 : memref<1x1x128xf32, #tpu.memory_space<vmem>> -> memref<128xf32, #tpu.memory_space<vmem>>
      %383 = tpu.memref_slice %arg13[%c0_i32_269] : memref<1x!tpu.dma_semaphore, #tpu.memory_space<semaphore_mem>> -> memref<1x!tpu.dma_semaphore, #tpu.memory_space<semaphore_mem>>
      %384 = tpu.memref_squeeze %383 : memref<1x!tpu.dma_semaphore, #tpu.memory_space<semaphore_mem>> -> memref<!tpu.dma_semaphore, #tpu.memory_space<semaphore_mem>>
      tpu.enqueue_dma source(%380 : memref<128xf32, #tpu.memory_space<any>>) target(%382 : memref<128xf32, #tpu.memory_space<vmem>>) target_semaphore(%384 : memref<!tpu.dma_semaphore, #tpu.memory_space<semaphore_mem>>)
      %c46 = arith.constant 46 : index
      %385 = memref.load %arg3[%c46] : memref<64xi32, #tpu.memory_space<smem>>
      %c6_i32_272 = arith.constant 6 : i32
      %c5_i32_273 = arith.constant 5 : i32
      %c0_i32_274 = arith.constant 0 : i32
      %c0_i32_275 = arith.constant 0 : i32
      %386 = tpu.memref_slice %arg7[%385, %c0_i32_275] : memref<64x128xf32, #tpu.memory_space<any>> -> memref<1x128xf32, #tpu.memory_space<any>>
      %387 = tpu.memref_squeeze %386 : memref<1x128xf32, #tpu.memory_space<any>> -> memref<128xf32, #tpu.memory_space<any>>
      %c0_i32_276 = arith.constant 0 : i32
      %388 = tpu.memref_slice %arg12[%c6_i32_272, %c5_i32_273, %c0_i32_276] : memref<8x8x128xf32, #tpu.memory_space<vmem>> -> memref<1x1x128xf32, #tpu.memory_space<vmem>>
      %389 = tpu.memref_squeeze %388 : memref<1x1x128xf32, #tpu.memory_space<vmem>> -> memref<128xf32, #tpu.memory_space<vmem>>
      %390 = tpu.memref_slice %arg13[%c0_i32_274] : memref<1x!tpu.dma_semaphore, #tpu.memory_space<semaphore_mem>> -> memref<1x!tpu.dma_semaphore, #tpu.memory_space<semaphore_mem>>
      %391 = tpu.memref_squeeze %390 : memref<1x!tpu.dma_semaphore, #tpu.memory_space<semaphore_mem>> -> memref<!tpu.dma_semaphore, #tpu.memory_space<semaphore_mem>>
      tpu.enqueue_dma source(%387 : memref<128xf32, #tpu.memory_space<any>>) target(%389 : memref<128xf32, #tpu.memory_space<vmem>>) target_semaphore(%391 : memref<!tpu.dma_semaphore, #tpu.memory_space<semaphore_mem>>)
      %c54 = arith.constant 54 : index
      %392 = memref.load %arg3[%c54] : memref<64xi32, #tpu.memory_space<smem>>
      %c6_i32_277 = arith.constant 6 : i32
      %c6_i32_278 = arith.constant 6 : i32
      %c0_i32_279 = arith.constant 0 : i32
      %c0_i32_280 = arith.constant 0 : i32
      %393 = tpu.memref_slice %arg7[%392, %c0_i32_280] : memref<64x128xf32, #tpu.memory_space<any>> -> memref<1x128xf32, #tpu.memory_space<any>>
      %394 = tpu.memref_squeeze %393 : memref<1x128xf32, #tpu.memory_space<any>> -> memref<128xf32, #tpu.memory_space<any>>
      %c0_i32_281 = arith.constant 0 : i32
      %395 = tpu.memref_slice %arg12[%c6_i32_277, %c6_i32_278, %c0_i32_281] : memref<8x8x128xf32, #tpu.memory_space<vmem>> -> memref<1x1x128xf32, #tpu.memory_space<vmem>>
      %396 = tpu.memref_squeeze %395 : memref<1x1x128xf32, #tpu.memory_space<vmem>> -> memref<128xf32, #tpu.memory_space<vmem>>
      %397 = tpu.memref_slice %arg13[%c0_i32_279] : memref<1x!tpu.dma_semaphore, #tpu.memory_space<semaphore_mem>> -> memref<1x!tpu.dma_semaphore, #tpu.memory_space<semaphore_mem>>
      %398 = tpu.memref_squeeze %397 : memref<1x!tpu.dma_semaphore, #tpu.memory_space<semaphore_mem>> -> memref<!tpu.dma_semaphore, #tpu.memory_space<semaphore_mem>>
      tpu.enqueue_dma source(%394 : memref<128xf32, #tpu.memory_space<any>>) target(%396 : memref<128xf32, #tpu.memory_space<vmem>>) target_semaphore(%398 : memref<!tpu.dma_semaphore, #tpu.memory_space<semaphore_mem>>)
      %c62 = arith.constant 62 : index
      %399 = memref.load %arg3[%c62] : memref<64xi32, #tpu.memory_space<smem>>
      %c6_i32_282 = arith.constant 6 : i32
      %c7_i32_283 = arith.constant 7 : i32
      %c0_i32_284 = arith.constant 0 : i32
      %c0_i32_285 = arith.constant 0 : i32
      %400 = tpu.memref_slice %arg7[%399, %c0_i32_285] : memref<64x128xf32, #tpu.memory_space<any>> -> memref<1x128xf32, #tpu.memory_space<any>>
      %401 = tpu.memref_squeeze %400 : memref<1x128xf32, #tpu.memory_space<any>> -> memref<128xf32, #tpu.memory_space<any>>
      %c0_i32_286 = arith.constant 0 : i32
      %402 = tpu.memref_slice %arg12[%c6_i32_282, %c7_i32_283, %c0_i32_286] : memref<8x8x128xf32, #tpu.memory_space<vmem>> -> memref<1x1x128xf32, #tpu.memory_space<vmem>>
      %403 = tpu.memref_squeeze %402 : memref<1x1x128xf32, #tpu.memory_space<vmem>> -> memref<128xf32, #tpu.memory_space<vmem>>
      %404 = tpu.memref_slice %arg13[%c0_i32_284] : memref<1x!tpu.dma_semaphore, #tpu.memory_space<semaphore_mem>> -> memref<1x!tpu.dma_semaphore, #tpu.memory_space<semaphore_mem>>
      %405 = tpu.memref_squeeze %404 : memref<1x!tpu.dma_semaphore, #tpu.memory_space<semaphore_mem>> -> memref<!tpu.dma_semaphore, #tpu.memory_space<semaphore_mem>>
      tpu.enqueue_dma source(%401 : memref<128xf32, #tpu.memory_space<any>>) target(%403 : memref<128xf32, #tpu.memory_space<vmem>>) target_semaphore(%405 : memref<!tpu.dma_semaphore, #tpu.memory_space<semaphore_mem>>)
      %c7 = arith.constant 7 : index
      %406 = memref.load %arg3[%c7] : memref<64xi32, #tpu.memory_space<smem>>
      %c7_i32_287 = arith.constant 7 : i32
      %c0_i32_288 = arith.constant 0 : i32
      %c0_i32_289 = arith.constant 0 : i32
      %c0_i32_290 = arith.constant 0 : i32
      %407 = tpu.memref_slice %arg7[%406, %c0_i32_290] : memref<64x128xf32, #tpu.memory_space<any>> -> memref<1x128xf32, #tpu.memory_space<any>>
      %408 = tpu.memref_squeeze %407 : memref<1x128xf32, #tpu.memory_space<any>> -> memref<128xf32, #tpu.memory_space<any>>
      %c0_i32_291 = arith.constant 0 : i32
      %409 = tpu.memref_slice %arg12[%c7_i32_287, %c0_i32_288, %c0_i32_291] : memref<8x8x128xf32, #tpu.memory_space<vmem>> -> memref<1x1x128xf32, #tpu.memory_space<vmem>>
      %410 = tpu.memref_squeeze %409 : memref<1x1x128xf32, #tpu.memory_space<vmem>> -> memref<128xf32, #tpu.memory_space<vmem>>
      %411 = tpu.memref_slice %arg13[%c0_i32_289] : memref<1x!tpu.dma_semaphore, #tpu.memory_space<semaphore_mem>> -> memref<1x!tpu.dma_semaphore, #tpu.memory_space<semaphore_mem>>
      %412 = tpu.memref_squeeze %411 : memref<1x!tpu.dma_semaphore, #tpu.memory_space<semaphore_mem>> -> memref<!tpu.dma_semaphore, #tpu.memory_space<semaphore_mem>>
      tpu.enqueue_dma source(%408 : memref<128xf32, #tpu.memory_space<any>>) target(%410 : memref<128xf32, #tpu.memory_space<vmem>>) target_semaphore(%412 : memref<!tpu.dma_semaphore, #tpu.memory_space<semaphore_mem>>)
      %c15 = arith.constant 15 : index
      %413 = memref.load %arg3[%c15] : memref<64xi32, #tpu.memory_space<smem>>
      %c7_i32_292 = arith.constant 7 : i32
      %c1_i32_293 = arith.constant 1 : i32
      %c0_i32_294 = arith.constant 0 : i32
      %c0_i32_295 = arith.constant 0 : i32
      %414 = tpu.memref_slice %arg7[%413, %c0_i32_295] : memref<64x128xf32, #tpu.memory_space<any>> -> memref<1x128xf32, #tpu.memory_space<any>>
      %415 = tpu.memref_squeeze %414 : memref<1x128xf32, #tpu.memory_space<any>> -> memref<128xf32, #tpu.memory_space<any>>
      %c0_i32_296 = arith.constant 0 : i32
      %416 = tpu.memref_slice %arg12[%c7_i32_292, %c1_i32_293, %c0_i32_296] : memref<8x8x128xf32, #tpu.memory_space<vmem>> -> memref<1x1x128xf32, #tpu.memory_space<vmem>>
      %417 = tpu.memref_squeeze %416 : memref<1x1x128xf32, #tpu.memory_space<vmem>> -> memref<128xf32, #tpu.memory_space<vmem>>
      %418 = tpu.memref_slice %arg13[%c0_i32_294] : memref<1x!tpu.dma_semaphore, #tpu.memory_space<semaphore_mem>> -> memref<1x!tpu.dma_semaphore, #tpu.memory_space<semaphore_mem>>
      %419 = tpu.memref_squeeze %418 : memref<1x!tpu.dma_semaphore, #tpu.memory_space<semaphore_mem>> -> memref<!tpu.dma_semaphore, #tpu.memory_space<semaphore_mem>>
      tpu.enqueue_dma source(%415 : memref<128xf32, #tpu.memory_space<any>>) target(%417 : memref<128xf32, #tpu.memory_space<vmem>>) target_semaphore(%419 : memref<!tpu.dma_semaphore, #tpu.memory_space<semaphore_mem>>)
      %c23 = arith.constant 23 : index
      %420 = memref.load %arg3[%c23] : memref<64xi32, #tpu.memory_space<smem>>
      %c7_i32_297 = arith.constant 7 : i32
      %c2_i32_298 = arith.constant 2 : i32
      %c0_i32_299 = arith.constant 0 : i32
      %c0_i32_300 = arith.constant 0 : i32
      %421 = tpu.memref_slice %arg7[%420, %c0_i32_300] : memref<64x128xf32, #tpu.memory_space<any>> -> memref<1x128xf32, #tpu.memory_space<any>>
      %422 = tpu.memref_squeeze %421 : memref<1x128xf32, #tpu.memory_space<any>> -> memref<128xf32, #tpu.memory_space<any>>
      %c0_i32_301 = arith.constant 0 : i32
      %423 = tpu.memref_slice %arg12[%c7_i32_297, %c2_i32_298, %c0_i32_301] : memref<8x8x128xf32, #tpu.memory_space<vmem>> -> memref<1x1x128xf32, #tpu.memory_space<vmem>>
      %424 = tpu.memref_squeeze %423 : memref<1x1x128xf32, #tpu.memory_space<vmem>> -> memref<128xf32, #tpu.memory_space<vmem>>
      %425 = tpu.memref_slice %arg13[%c0_i32_299] : memref<1x!tpu.dma_semaphore, #tpu.memory_space<semaphore_mem>> -> memref<1x!tpu.dma_semaphore, #tpu.memory_space<semaphore_mem>>
      %426 = tpu.memref_squeeze %425 : memref<1x!tpu.dma_semaphore, #tpu.memory_space<semaphore_mem>> -> memref<!tpu.dma_semaphore, #tpu.memory_space<semaphore_mem>>
      tpu.enqueue_dma source(%422 : memref<128xf32, #tpu.memory_space<any>>) target(%424 : memref<128xf32, #tpu.memory_space<vmem>>) target_semaphore(%426 : memref<!tpu.dma_semaphore, #tpu.memory_space<semaphore_mem>>)
      %c31 = arith.constant 31 : index
      %427 = memref.load %arg3[%c31] : memref<64xi32, #tpu.memory_space<smem>>
      %c7_i32_302 = arith.constant 7 : i32
      %c3_i32_303 = arith.constant 3 : i32
      %c0_i32_304 = arith.constant 0 : i32
      %c0_i32_305 = arith.constant 0 : i32
      %428 = tpu.memref_slice %arg7[%427, %c0_i32_305] : memref<64x128xf32, #tpu.memory_space<any>> -> memref<1x128xf32, #tpu.memory_space<any>>
      %429 = tpu.memref_squeeze %428 : memref<1x128xf32, #tpu.memory_space<any>> -> memref<128xf32, #tpu.memory_space<any>>
      %c0_i32_306 = arith.constant 0 : i32
      %430 = tpu.memref_slice %arg12[%c7_i32_302, %c3_i32_303, %c0_i32_306] : memref<8x8x128xf32, #tpu.memory_space<vmem>> -> memref<1x1x128xf32, #tpu.memory_space<vmem>>
      %431 = tpu.memref_squeeze %430 : memref<1x1x128xf32, #tpu.memory_space<vmem>> -> memref<128xf32, #tpu.memory_space<vmem>>
      %432 = tpu.memref_slice %arg13[%c0_i32_304] : memref<1x!tpu.dma_semaphore, #tpu.memory_space<semaphore_mem>> -> memref<1x!tpu.dma_semaphore, #tpu.memory_space<semaphore_mem>>
      %433 = tpu.memref_squeeze %432 : memref<1x!tpu.dma_semaphore, #tpu.memory_space<semaphore_mem>> -> memref<!tpu.dma_semaphore, #tpu.memory_space<semaphore_mem>>
      tpu.enqueue_dma source(%429 : memref<128xf32, #tpu.memory_space<any>>) target(%431 : memref<128xf32, #tpu.memory_space<vmem>>) target_semaphore(%433 : memref<!tpu.dma_semaphore, #tpu.memory_space<semaphore_mem>>)
      %c39 = arith.constant 39 : index
      %434 = memref.load %arg3[%c39] : memref<64xi32, #tpu.memory_space<smem>>
      %c7_i32_307 = arith.constant 7 : i32
      %c4_i32_308 = arith.constant 4 : i32
      %c0_i32_309 = arith.constant 0 : i32
      %c0_i32_310 = arith.constant 0 : i32
      %435 = tpu.memref_slice %arg7[%434, %c0_i32_310] : memref<64x128xf32, #tpu.memory_space<any>> -> memref<1x128xf32, #tpu.memory_space<any>>
      %436 = tpu.memref_squeeze %435 : memref<1x128xf32, #tpu.memory_space<any>> -> memref<128xf32, #tpu.memory_space<any>>
      %c0_i32_311 = arith.constant 0 : i32
      %437 = tpu.memref_slice %arg12[%c7_i32_307, %c4_i32_308, %c0_i32_311] : memref<8x8x128xf32, #tpu.memory_space<vmem>> -> memref<1x1x128xf32, #tpu.memory_space<vmem>>
      %438 = tpu.memref_squeeze %437 : memref<1x1x128xf32, #tpu.memory_space<vmem>> -> memref<128xf32, #tpu.memory_space<vmem>>
      %439 = tpu.memref_slice %arg13[%c0_i32_309] : memref<1x!tpu.dma_semaphore, #tpu.memory_space<semaphore_mem>> -> memref<1x!tpu.dma_semaphore, #tpu.memory_space<semaphore_mem>>
      %440 = tpu.memref_squeeze %439 : memref<1x!tpu.dma_semaphore, #tpu.memory_space<semaphore_mem>> -> memref<!tpu.dma_semaphore, #tpu.memory_space<semaphore_mem>>
      tpu.enqueue_dma source(%436 : memref<128xf32, #tpu.memory_space<any>>) target(%438 : memref<128xf32, #tpu.memory_space<vmem>>) target_semaphore(%440 : memref<!tpu.dma_semaphore, #tpu.memory_space<semaphore_mem>>)
      %c47 = arith.constant 47 : index
      %441 = memref.load %arg3[%c47] : memref<64xi32, #tpu.memory_space<smem>>
      %c7_i32_312 = arith.constant 7 : i32
      %c5_i32_313 = arith.constant 5 : i32
      %c0_i32_314 = arith.constant 0 : i32
      %c0_i32_315 = arith.constant 0 : i32
      %442 = tpu.memref_slice %arg7[%441, %c0_i32_315] : memref<64x128xf32, #tpu.memory_space<any>> -> memref<1x128xf32, #tpu.memory_space<any>>
      %443 = tpu.memref_squeeze %442 : memref<1x128xf32, #tpu.memory_space<any>> -> memref<128xf32, #tpu.memory_space<any>>
      %c0_i32_316 = arith.constant 0 : i32
      %444 = tpu.memref_slice %arg12[%c7_i32_312, %c5_i32_313, %c0_i32_316] : memref<8x8x128xf32, #tpu.memory_space<vmem>> -> memref<1x1x128xf32, #tpu.memory_space<vmem>>
      %445 = tpu.memref_squeeze %444 : memref<1x1x128xf32, #tpu.memory_space<vmem>> -> memref<128xf32, #tpu.memory_space<vmem>>
      %446 = tpu.memref_slice %arg13[%c0_i32_314] : memref<1x!tpu.dma_semaphore, #tpu.memory_space<semaphore_mem>> -> memref<1x!tpu.dma_semaphore, #tpu.memory_space<semaphore_mem>>
      %447 = tpu.memref_squeeze %446 : memref<1x!tpu.dma_semaphore, #tpu.memory_space<semaphore_mem>> -> memref<!tpu.dma_semaphore, #tpu.memory_space<semaphore_mem>>
      tpu.enqueue_dma source(%443 : memref<128xf32, #tpu.memory_space<any>>) target(%445 : memref<128xf32, #tpu.memory_space<vmem>>) target_semaphore(%447 : memref<!tpu.dma_semaphore, #tpu.memory_space<semaphore_mem>>)
      %c55 = arith.constant 55 : index
      %448 = memref.load %arg3[%c55] : memref<64xi32, #tpu.memory_space<smem>>
      %c7_i32_317 = arith.constant 7 : i32
      %c6_i32_318 = arith.constant 6 : i32
      %c0_i32_319 = arith.constant 0 : i32
      %c0_i32_320 = arith.constant 0 : i32
      %449 = tpu.memref_slice %arg7[%448, %c0_i32_320] : memref<64x128xf32, #tpu.memory_space<any>> -> memref<1x128xf32, #tpu.memory_space<any>>
      %450 = tpu.memref_squeeze %449 : memref<1x128xf32, #tpu.memory_space<any>> -> memref<128xf32, #tpu.memory_space<any>>
      %c0_i32_321 = arith.constant 0 : i32
      %451 = tpu.memref_slice %arg12[%c7_i32_317, %c6_i32_318, %c0_i32_321] : memref<8x8x128xf32, #tpu.memory_space<vmem>> -> memref<1x1x128xf32, #tpu.memory_space<vmem>>
      %452 = tpu.memref_squeeze %451 : memref<1x1x128xf32, #tpu.memory_space<vmem>> -> memref<128xf32, #tpu.memory_space<vmem>>
      %453 = tpu.memref_slice %arg13[%c0_i32_319] : memref<1x!tpu.dma_semaphore, #tpu.memory_space<semaphore_mem>> -> memref<1x!tpu.dma_semaphore, #tpu.memory_space<semaphore_mem>>
      %454 = tpu.memref_squeeze %453 : memref<1x!tpu.dma_semaphore, #tpu.memory_space<semaphore_mem>> -> memref<!tpu.dma_semaphore, #tpu.memory_space<semaphore_mem>>
      tpu.enqueue_dma source(%450 : memref<128xf32, #tpu.memory_space<any>>) target(%452 : memref<128xf32, #tpu.memory_space<vmem>>) target_semaphore(%454 : memref<!tpu.dma_semaphore, #tpu.memory_space<semaphore_mem>>)
      %c63 = arith.constant 63 : index
      %455 = memref.load %arg3[%c63] : memref<64xi32, #tpu.memory_space<smem>>
      %c7_i32_322 = arith.constant 7 : i32
      %c7_i32_323 = arith.constant 7 : i32
      %c0_i32_324 = arith.constant 0 : i32
      %c0_i32_325 = arith.constant 0 : i32
      %456 = tpu.memref_slice %arg7[%455, %c0_i32_325] : memref<64x128xf32, #tpu.memory_space<any>> -> memref<1x128xf32, #tpu.memory_space<any>>
      %457 = tpu.memref_squeeze %456 : memref<1x128xf32, #tpu.memory_space<any>> -> memref<128xf32, #tpu.memory_space<any>>
      %c0_i32_326 = arith.constant 0 : i32
      %458 = tpu.memref_slice %arg12[%c7_i32_322, %c7_i32_323, %c0_i32_326] : memref<8x8x128xf32, #tpu.memory_space<vmem>> -> memref<1x1x128xf32, #tpu.memory_space<vmem>>
      %459 = tpu.memref_squeeze %458 : memref<1x1x128xf32, #tpu.memory_space<vmem>> -> memref<128xf32, #tpu.memory_space<vmem>>
      %460 = tpu.memref_slice %arg13[%c0_i32_324] : memref<1x!tpu.dma_semaphore, #tpu.memory_space<semaphore_mem>> -> memref<1x!tpu.dma_semaphore, #tpu.memory_space<semaphore_mem>>
      %461 = tpu.memref_squeeze %460 : memref<1x!tpu.dma_semaphore, #tpu.memory_space<semaphore_mem>> -> memref<!tpu.dma_semaphore, #tpu.memory_space<semaphore_mem>>
      tpu.enqueue_dma source(%457 : memref<128xf32, #tpu.memory_space<any>>) target(%459 : memref<128xf32, #tpu.memory_space<vmem>>) target_semaphore(%461 : memref<!tpu.dma_semaphore, #tpu.memory_space<semaphore_mem>>)
    } else {
    }
    %c0 = arith.constant 0 : index
    %c0_1 = arith.constant 0 : index
    %3 = vector.load %arg11[%c0, %c0_1] : memref<8x128xf32, #tpu.memory_space<vmem>>, vector<8x128xf32>
    %c0_2 = arith.constant 0 : index
    %c0_3 = arith.constant 0 : index
    %4 = vector.load %arg4[%c0_2, %c0_3] : memref<8x256xbf16, #tpu.memory_space<vmem>>, vector<8x256xbf16>
    %c0_4 = arith.constant 0 : index
    %c0_5 = arith.constant 0 : index
    %5 = vector.load %arg5[%c0_4, %c0_5] : memref<256x128xbf16, #tpu.memory_space<vmem>>, vector<256x128xbf16>
    %cst = arith.constant dense<0.000000e+00> : vector<8x128xf32>
    %6 = tpu.matmul %4, %5, %cst {dimension_numbers = #tpu.dot_dimension_numbers<[1], [0], [0], [1], [0, 0, 1, 1], [], []>} : vector<8x256xbf16>, vector<256x128xbf16>, vector<8x128xf32> -> vector<8x128xf32>
    %7 = arith.addf %3, %6 : vector<8x128xf32>
    %c0_6 = arith.constant 0 : index
    %c0_7 = arith.constant 0 : index
    %8 = vector.load %arg11[%c0_6, %c0_7] : memref<8x128xf32, #tpu.memory_space<vmem>>, vector<8x128xf32>
    tpu.vector_store %arg11[%c0_6, %c0_7], %7 {strides = array<i32>} : memref<8x128xf32, #tpu.memory_space<vmem>>, vector<8x128xf32>,
    %c2_i32 = arith.constant 2 : i32
    %9 = arith.cmpi eq, %arg1, %c2_i32 : i32
    %10 = arith.extui %9 : i1 to i32
    %c0_i32_8 = arith.constant 0 : i32
    %11 = arith.cmpi ne, %10, %c0_i32_8 : i32
    scf.if %11 {
      %c0_9 = arith.constant 0 : index
      %c0_10 = arith.constant 0 : index
      %12 = vector.load %arg11[%c0_9, %c0_10] : memref<8x128xf32, #tpu.memory_space<vmem>>, vector<8x128xf32>
      %c0_11 = arith.constant 0 : index
      %c0_12 = arith.constant 0 : index
      %13 = vector.load %arg6[%c0_11, %c0_12] : memref<1x128xf32, #tpu.memory_space<vmem>>, vector<1x128xf32>
      %14 = vector.broadcast %13 : vector<1x128xf32> to vector<8x128xf32>
      %15 = arith.addf %12, %14 : vector<8x128xf32>
      %c0_13 = arith.constant 0 : index
      %16 = memref.load %arg3[%c0_13] : memref<64xi32, #tpu.memory_space<smem>>
      %c0_i32_14 = arith.constant 0 : i32
      %c0_i32_15 = arith.constant 0 : i32
      %c0_i32_16 = arith.constant 0 : i32
      %c0_i32_17 = arith.constant 0 : i32
      %17 = tpu.memref_slice %arg7[%16, %c0_i32_17] : memref<64x128xf32, #tpu.memory_space<any>> -> memref<1x128xf32, #tpu.memory_space<any>>
      %18 = tpu.memref_squeeze %17 : memref<1x128xf32, #tpu.memory_space<any>> -> memref<128xf32, #tpu.memory_space<any>>
      %c0_i32_18 = arith.constant 0 : i32
      %19 = tpu.memref_slice %arg12[%c0_i32_14, %c0_i32_15, %c0_i32_18] : memref<8x8x128xf32, #tpu.memory_space<vmem>> -> memref<1x1x128xf32, #tpu.memory_space<vmem>>
      %20 = tpu.memref_squeeze %19 : memref<1x1x128xf32, #tpu.memory_space<vmem>> -> memref<128xf32, #tpu.memory_space<vmem>>
      %21 = tpu.memref_slice %arg13[%c0_i32_16] : memref<1x!tpu.dma_semaphore, #tpu.memory_space<semaphore_mem>> -> memref<1x!tpu.dma_semaphore, #tpu.memory_space<semaphore_mem>>
      %22 = tpu.memref_squeeze %21 : memref<1x!tpu.dma_semaphore, #tpu.memory_space<semaphore_mem>> -> memref<!tpu.dma_semaphore, #tpu.memory_space<semaphore_mem>>
      tpu.wait_dma2 semaphore(%22 : memref<!tpu.dma_semaphore, #tpu.memory_space<semaphore_mem>>) src(%18 : memref<128xf32, #tpu.memory_space<any>>) dst(%20 : memref<128xf32, #tpu.memory_space<vmem>>)
      %c8 = arith.constant 8 : index
      %23 = memref.load %arg3[%c8] : memref<64xi32, #tpu.memory_space<smem>>
      %c0_i32_19 = arith.constant 0 : i32
      %c1_i32 = arith.constant 1 : i32
      %c0_i32_20 = arith.constant 0 : i32
      %c0_i32_21 = arith.constant 0 : i32
      %24 = tpu.memref_slice %arg7[%23, %c0_i32_21] : memref<64x128xf32, #tpu.memory_space<any>> -> memref<1x128xf32, #tpu.memory_space<any>>
      %25 = tpu.memref_squeeze %24 : memref<1x128xf32, #tpu.memory_space<any>> -> memref<128xf32, #tpu.memory_space<any>>
      %c0_i32_22 = arith.constant 0 : i32
      %26 = tpu.memref_slice %arg12[%c0_i32_19, %c1_i32, %c0_i32_22] : memref<8x8x128xf32, #tpu.memory_space<vmem>> -> memref<1x1x128xf32, #tpu.memory_space<vmem>>
      %27 = tpu.memref_squeeze %26 : memref<1x1x128xf32, #tpu.memory_space<vmem>> -> memref<128xf32, #tpu.memory_space<vmem>>
      %28 = tpu.memref_slice %arg13[%c0_i32_20] : memref<1x!tpu.dma_semaphore, #tpu.memory_space<semaphore_mem>> -> memref<1x!tpu.dma_semaphore, #tpu.memory_space<semaphore_mem>>
      %29 = tpu.memref_squeeze %28 : memref<1x!tpu.dma_semaphore, #tpu.memory_space<semaphore_mem>> -> memref<!tpu.dma_semaphore, #tpu.memory_space<semaphore_mem>>
      tpu.wait_dma2 semaphore(%29 : memref<!tpu.dma_semaphore, #tpu.memory_space<semaphore_mem>>) src(%25 : memref<128xf32, #tpu.memory_space<any>>) dst(%27 : memref<128xf32, #tpu.memory_space<vmem>>)
      %c16 = arith.constant 16 : index
      %30 = memref.load %arg3[%c16] : memref<64xi32, #tpu.memory_space<smem>>
      %c0_i32_23 = arith.constant 0 : i32
      %c2_i32_24 = arith.constant 2 : i32
      %c0_i32_25 = arith.constant 0 : i32
      %c0_i32_26 = arith.constant 0 : i32
      %31 = tpu.memref_slice %arg7[%30, %c0_i32_26] : memref<64x128xf32, #tpu.memory_space<any>> -> memref<1x128xf32, #tpu.memory_space<any>>
      %32 = tpu.memref_squeeze %31 : memref<1x128xf32, #tpu.memory_space<any>> -> memref<128xf32, #tpu.memory_space<any>>
      %c0_i32_27 = arith.constant 0 : i32
      %33 = tpu.memref_slice %arg12[%c0_i32_23, %c2_i32_24, %c0_i32_27] : memref<8x8x128xf32, #tpu.memory_space<vmem>> -> memref<1x1x128xf32, #tpu.memory_space<vmem>>
      %34 = tpu.memref_squeeze %33 : memref<1x1x128xf32, #tpu.memory_space<vmem>> -> memref<128xf32, #tpu.memory_space<vmem>>
      %35 = tpu.memref_slice %arg13[%c0_i32_25] : memref<1x!tpu.dma_semaphore, #tpu.memory_space<semaphore_mem>> -> memref<1x!tpu.dma_semaphore, #tpu.memory_space<semaphore_mem>>
      %36 = tpu.memref_squeeze %35 : memref<1x!tpu.dma_semaphore, #tpu.memory_space<semaphore_mem>> -> memref<!tpu.dma_semaphore, #tpu.memory_space<semaphore_mem>>
      tpu.wait_dma2 semaphore(%36 : memref<!tpu.dma_semaphore, #tpu.memory_space<semaphore_mem>>) src(%32 : memref<128xf32, #tpu.memory_space<any>>) dst(%34 : memref<128xf32, #tpu.memory_space<vmem>>)
      %c24 = arith.constant 24 : index
      %37 = memref.load %arg3[%c24] : memref<64xi32, #tpu.memory_space<smem>>
      %c0_i32_28 = arith.constant 0 : i32
      %c3_i32 = arith.constant 3 : i32
      %c0_i32_29 = arith.constant 0 : i32
      %c0_i32_30 = arith.constant 0 : i32
      %38 = tpu.memref_slice %arg7[%37, %c0_i32_30] : memref<64x128xf32, #tpu.memory_space<any>> -> memref<1x128xf32, #tpu.memory_space<any>>
      %39 = tpu.memref_squeeze %38 : memref<1x128xf32, #tpu.memory_space<any>> -> memref<128xf32, #tpu.memory_space<any>>
      %c0_i32_31 = arith.constant 0 : i32
      %40 = tpu.memref_slice %arg12[%c0_i32_28, %c3_i32, %c0_i32_31] : memref<8x8x128xf32, #tpu.memory_space<vmem>> -> memref<1x1x128xf32, #tpu.memory_space<vmem>>
      %41 = tpu.memref_squeeze %40 : memref<1x1x128xf32, #tpu.memory_space<vmem>> -> memref<128xf32, #tpu.memory_space<vmem>>
      %42 = tpu.memref_slice %arg13[%c0_i32_29] : memref<1x!tpu.dma_semaphore, #tpu.memory_space<semaphore_mem>> -> memref<1x!tpu.dma_semaphore, #tpu.memory_space<semaphore_mem>>
      %43 = tpu.memref_squeeze %42 : memref<1x!tpu.dma_semaphore, #tpu.memory_space<semaphore_mem>> -> memref<!tpu.dma_semaphore, #tpu.memory_space<semaphore_mem>>
      tpu.wait_dma2 semaphore(%43 : memref<!tpu.dma_semaphore, #tpu.memory_space<semaphore_mem>>) src(%39 : memref<128xf32, #tpu.memory_space<any>>) dst(%41 : memref<128xf32, #tpu.memory_space<vmem>>)
      %c32 = arith.constant 32 : index
      %44 = memref.load %arg3[%c32] : memref<64xi32, #tpu.memory_space<smem>>
      %c0_i32_32 = arith.constant 0 : i32
      %c4_i32 = arith.constant 4 : i32
      %c0_i32_33 = arith.constant 0 : i32
      %c0_i32_34 = arith.constant 0 : i32
      %45 = tpu.memref_slice %arg7[%44, %c0_i32_34] : memref<64x128xf32, #tpu.memory_space<any>> -> memref<1x128xf32, #tpu.memory_space<any>>
      %46 = tpu.memref_squeeze %45 : memref<1x128xf32, #tpu.memory_space<any>> -> memref<128xf32, #tpu.memory_space<any>>
      %c0_i32_35 = arith.constant 0 : i32
      %47 = tpu.memref_slice %arg12[%c0_i32_32, %c4_i32, %c0_i32_35] : memref<8x8x128xf32, #tpu.memory_space<vmem>> -> memref<1x1x128xf32, #tpu.memory_space<vmem>>
      %48 = tpu.memref_squeeze %47 : memref<1x1x128xf32, #tpu.memory_space<vmem>> -> memref<128xf32, #tpu.memory_space<vmem>>
      %49 = tpu.memref_slice %arg13[%c0_i32_33] : memref<1x!tpu.dma_semaphore, #tpu.memory_space<semaphore_mem>> -> memref<1x!tpu.dma_semaphore, #tpu.memory_space<semaphore_mem>>
      %50 = tpu.memref_squeeze %49 : memref<1x!tpu.dma_semaphore, #tpu.memory_space<semaphore_mem>> -> memref<!tpu.dma_semaphore, #tpu.memory_space<semaphore_mem>>
      tpu.wait_dma2 semaphore(%50 : memref<!tpu.dma_semaphore, #tpu.memory_space<semaphore_mem>>) src(%46 : memref<128xf32, #tpu.memory_space<any>>) dst(%48 : memref<128xf32, #tpu.memory_space<vmem>>)
      %c40 = arith.constant 40 : index
      %51 = memref.load %arg3[%c40] : memref<64xi32, #tpu.memory_space<smem>>
      %c0_i32_36 = arith.constant 0 : i32
      %c5_i32 = arith.constant 5 : i32
      %c0_i32_37 = arith.constant 0 : i32
      %c0_i32_38 = arith.constant 0 : i32
      %52 = tpu.memref_slice %arg7[%51, %c0_i32_38] : memref<64x128xf32, #tpu.memory_space<any>> -> memref<1x128xf32, #tpu.memory_space<any>>
      %53 = tpu.memref_squeeze %52 : memref<1x128xf32, #tpu.memory_space<any>> -> memref<128xf32, #tpu.memory_space<any>>
      %c0_i32_39 = arith.constant 0 : i32
      %54 = tpu.memref_slice %arg12[%c0_i32_36, %c5_i32, %c0_i32_39] : memref<8x8x128xf32, #tpu.memory_space<vmem>> -> memref<1x1x128xf32, #tpu.memory_space<vmem>>
      %55 = tpu.memref_squeeze %54 : memref<1x1x128xf32, #tpu.memory_space<vmem>> -> memref<128xf32, #tpu.memory_space<vmem>>
      %56 = tpu.memref_slice %arg13[%c0_i32_37] : memref<1x!tpu.dma_semaphore, #tpu.memory_space<semaphore_mem>> -> memref<1x!tpu.dma_semaphore, #tpu.memory_space<semaphore_mem>>
      %57 = tpu.memref_squeeze %56 : memref<1x!tpu.dma_semaphore, #tpu.memory_space<semaphore_mem>> -> memref<!tpu.dma_semaphore, #tpu.memory_space<semaphore_mem>>
      tpu.wait_dma2 semaphore(%57 : memref<!tpu.dma_semaphore, #tpu.memory_space<semaphore_mem>>) src(%53 : memref<128xf32, #tpu.memory_space<any>>) dst(%55 : memref<128xf32, #tpu.memory_space<vmem>>)
      %c48 = arith.constant 48 : index
      %58 = memref.load %arg3[%c48] : memref<64xi32, #tpu.memory_space<smem>>
      %c0_i32_40 = arith.constant 0 : i32
      %c6_i32 = arith.constant 6 : i32
      %c0_i32_41 = arith.constant 0 : i32
      %c0_i32_42 = arith.constant 0 : i32
      %59 = tpu.memref_slice %arg7[%58, %c0_i32_42] : memref<64x128xf32, #tpu.memory_space<any>> -> memref<1x128xf32, #tpu.memory_space<any>>
      %60 = tpu.memref_squeeze %59 : memref<1x128xf32, #tpu.memory_space<any>> -> memref<128xf32, #tpu.memory_space<any>>
      %c0_i32_43 = arith.constant 0 : i32
      %61 = tpu.memref_slice %arg12[%c0_i32_40, %c6_i32, %c0_i32_43] : memref<8x8x128xf32, #tpu.memory_space<vmem>> -> memref<1x1x128xf32, #tpu.memory_space<vmem>>
      %62 = tpu.memref_squeeze %61 : memref<1x1x128xf32, #tpu.memory_space<vmem>> -> memref<128xf32, #tpu.memory_space<vmem>>
      %63 = tpu.memref_slice %arg13[%c0_i32_41] : memref<1x!tpu.dma_semaphore, #tpu.memory_space<semaphore_mem>> -> memref<1x!tpu.dma_semaphore, #tpu.memory_space<semaphore_mem>>
      %64 = tpu.memref_squeeze %63 : memref<1x!tpu.dma_semaphore, #tpu.memory_space<semaphore_mem>> -> memref<!tpu.dma_semaphore, #tpu.memory_space<semaphore_mem>>
      tpu.wait_dma2 semaphore(%64 : memref<!tpu.dma_semaphore, #tpu.memory_space<semaphore_mem>>) src(%60 : memref<128xf32, #tpu.memory_space<any>>) dst(%62 : memref<128xf32, #tpu.memory_space<vmem>>)
      %c56 = arith.constant 56 : index
      %65 = memref.load %arg3[%c56] : memref<64xi32, #tpu.memory_space<smem>>
      %c0_i32_44 = arith.constant 0 : i32
      %c7_i32 = arith.constant 7 : i32
      %c0_i32_45 = arith.constant 0 : i32
      %c0_i32_46 = arith.constant 0 : i32
      %66 = tpu.memref_slice %arg7[%65, %c0_i32_46] : memref<64x128xf32, #tpu.memory_space<any>> -> memref<1x128xf32, #tpu.memory_space<any>>
      %67 = tpu.memref_squeeze %66 : memref<1x128xf32, #tpu.memory_space<any>> -> memref<128xf32, #tpu.memory_space<any>>
      %c0_i32_47 = arith.constant 0 : i32
      %68 = tpu.memref_slice %arg12[%c0_i32_44, %c7_i32, %c0_i32_47] : memref<8x8x128xf32, #tpu.memory_space<vmem>> -> memref<1x1x128xf32, #tpu.memory_space<vmem>>
      %69 = tpu.memref_squeeze %68 : memref<1x1x128xf32, #tpu.memory_space<vmem>> -> memref<128xf32, #tpu.memory_space<vmem>>
      %70 = tpu.memref_slice %arg13[%c0_i32_45] : memref<1x!tpu.dma_semaphore, #tpu.memory_space<semaphore_mem>> -> memref<1x!tpu.dma_semaphore, #tpu.memory_space<semaphore_mem>>
      %71 = tpu.memref_squeeze %70 : memref<1x!tpu.dma_semaphore, #tpu.memory_space<semaphore_mem>> -> memref<!tpu.dma_semaphore, #tpu.memory_space<semaphore_mem>>
      tpu.wait_dma2 semaphore(%71 : memref<!tpu.dma_semaphore, #tpu.memory_space<semaphore_mem>>) src(%67 : memref<128xf32, #tpu.memory_space<any>>) dst(%69 : memref<128xf32, #tpu.memory_space<vmem>>)
      %c1 = arith.constant 1 : index
      %72 = memref.load %arg3[%c1] : memref<64xi32, #tpu.memory_space<smem>>
      %c1_i32_48 = arith.constant 1 : i32
      %c0_i32_49 = arith.constant 0 : i32
      %c0_i32_50 = arith.constant 0 : i32
      %c0_i32_51 = arith.constant 0 : i32
      %73 = tpu.memref_slice %arg7[%72, %c0_i32_51] : memref<64x128xf32, #tpu.memory_space<any>> -> memref<1x128xf32, #tpu.memory_space<any>>
      %74 = tpu.memref_squeeze %73 : memref<1x128xf32, #tpu.memory_space<any>> -> memref<128xf32, #tpu.memory_space<any>>
      %c0_i32_52 = arith.constant 0 : i32
      %75 = tpu.memref_slice %arg12[%c1_i32_48, %c0_i32_49, %c0_i32_52] : memref<8x8x128xf32, #tpu.memory_space<vmem>> -> memref<1x1x128xf32, #tpu.memory_space<vmem>>
      %76 = tpu.memref_squeeze %75 : memref<1x1x128xf32, #tpu.memory_space<vmem>> -> memref<128xf32, #tpu.memory_space<vmem>>
      %77 = tpu.memref_slice %arg13[%c0_i32_50] : memref<1x!tpu.dma_semaphore, #tpu.memory_space<semaphore_mem>> -> memref<1x!tpu.dma_semaphore, #tpu.memory_space<semaphore_mem>>
      %78 = tpu.memref_squeeze %77 : memref<1x!tpu.dma_semaphore, #tpu.memory_space<semaphore_mem>> -> memref<!tpu.dma_semaphore, #tpu.memory_space<semaphore_mem>>
      tpu.wait_dma2 semaphore(%78 : memref<!tpu.dma_semaphore, #tpu.memory_space<semaphore_mem>>) src(%74 : memref<128xf32, #tpu.memory_space<any>>) dst(%76 : memref<128xf32, #tpu.memory_space<vmem>>)
      %c9 = arith.constant 9 : index
      %79 = memref.load %arg3[%c9] : memref<64xi32, #tpu.memory_space<smem>>
      %c1_i32_53 = arith.constant 1 : i32
      %c1_i32_54 = arith.constant 1 : i32
      %c0_i32_55 = arith.constant 0 : i32
      %c0_i32_56 = arith.constant 0 : i32
      %80 = tpu.memref_slice %arg7[%79, %c0_i32_56] : memref<64x128xf32, #tpu.memory_space<any>> -> memref<1x128xf32, #tpu.memory_space<any>>
      %81 = tpu.memref_squeeze %80 : memref<1x128xf32, #tpu.memory_space<any>> -> memref<128xf32, #tpu.memory_space<any>>
      %c0_i32_57 = arith.constant 0 : i32
      %82 = tpu.memref_slice %arg12[%c1_i32_53, %c1_i32_54, %c0_i32_57] : memref<8x8x128xf32, #tpu.memory_space<vmem>> -> memref<1x1x128xf32, #tpu.memory_space<vmem>>
      %83 = tpu.memref_squeeze %82 : memref<1x1x128xf32, #tpu.memory_space<vmem>> -> memref<128xf32, #tpu.memory_space<vmem>>
      %84 = tpu.memref_slice %arg13[%c0_i32_55] : memref<1x!tpu.dma_semaphore, #tpu.memory_space<semaphore_mem>> -> memref<1x!tpu.dma_semaphore, #tpu.memory_space<semaphore_mem>>
      %85 = tpu.memref_squeeze %84 : memref<1x!tpu.dma_semaphore, #tpu.memory_space<semaphore_mem>> -> memref<!tpu.dma_semaphore, #tpu.memory_space<semaphore_mem>>
      tpu.wait_dma2 semaphore(%85 : memref<!tpu.dma_semaphore, #tpu.memory_space<semaphore_mem>>) src(%81 : memref<128xf32, #tpu.memory_space<any>>) dst(%83 : memref<128xf32, #tpu.memory_space<vmem>>)
      %c17 = arith.constant 17 : index
      %86 = memref.load %arg3[%c17] : memref<64xi32, #tpu.memory_space<smem>>
      %c1_i32_58 = arith.constant 1 : i32
      %c2_i32_59 = arith.constant 2 : i32
      %c0_i32_60 = arith.constant 0 : i32
      %c0_i32_61 = arith.constant 0 : i32
      %87 = tpu.memref_slice %arg7[%86, %c0_i32_61] : memref<64x128xf32, #tpu.memory_space<any>> -> memref<1x128xf32, #tpu.memory_space<any>>
      %88 = tpu.memref_squeeze %87 : memref<1x128xf32, #tpu.memory_space<any>> -> memref<128xf32, #tpu.memory_space<any>>
      %c0_i32_62 = arith.constant 0 : i32
      %89 = tpu.memref_slice %arg12[%c1_i32_58, %c2_i32_59, %c0_i32_62] : memref<8x8x128xf32, #tpu.memory_space<vmem>> -> memref<1x1x128xf32, #tpu.memory_space<vmem>>
      %90 = tpu.memref_squeeze %89 : memref<1x1x128xf32, #tpu.memory_space<vmem>> -> memref<128xf32, #tpu.memory_space<vmem>>
      %91 = tpu.memref_slice %arg13[%c0_i32_60] : memref<1x!tpu.dma_semaphore, #tpu.memory_space<semaphore_mem>> -> memref<1x!tpu.dma_semaphore, #tpu.memory_space<semaphore_mem>>
      %92 = tpu.memref_squeeze %91 : memref<1x!tpu.dma_semaphore, #tpu.memory_space<semaphore_mem>> -> memref<!tpu.dma_semaphore, #tpu.memory_space<semaphore_mem>>
      tpu.wait_dma2 semaphore(%92 : memref<!tpu.dma_semaphore, #tpu.memory_space<semaphore_mem>>) src(%88 : memref<128xf32, #tpu.memory_space<any>>) dst(%90 : memref<128xf32, #tpu.memory_space<vmem>>)
      %c25 = arith.constant 25 : index
      %93 = memref.load %arg3[%c25] : memref<64xi32, #tpu.memory_space<smem>>
      %c1_i32_63 = arith.constant 1 : i32
      %c3_i32_64 = arith.constant 3 : i32
      %c0_i32_65 = arith.constant 0 : i32
      %c0_i32_66 = arith.constant 0 : i32
      %94 = tpu.memref_slice %arg7[%93, %c0_i32_66] : memref<64x128xf32, #tpu.memory_space<any>> -> memref<1x128xf32, #tpu.memory_space<any>>
      %95 = tpu.memref_squeeze %94 : memref<1x128xf32, #tpu.memory_space<any>> -> memref<128xf32, #tpu.memory_space<any>>
      %c0_i32_67 = arith.constant 0 : i32
      %96 = tpu.memref_slice %arg12[%c1_i32_63, %c3_i32_64, %c0_i32_67] : memref<8x8x128xf32, #tpu.memory_space<vmem>> -> memref<1x1x128xf32, #tpu.memory_space<vmem>>
      %97 = tpu.memref_squeeze %96 : memref<1x1x128xf32, #tpu.memory_space<vmem>> -> memref<128xf32, #tpu.memory_space<vmem>>
      %98 = tpu.memref_slice %arg13[%c0_i32_65] : memref<1x!tpu.dma_semaphore, #tpu.memory_space<semaphore_mem>> -> memref<1x!tpu.dma_semaphore, #tpu.memory_space<semaphore_mem>>
      %99 = tpu.memref_squeeze %98 : memref<1x!tpu.dma_semaphore, #tpu.memory_space<semaphore_mem>> -> memref<!tpu.dma_semaphore, #tpu.memory_space<semaphore_mem>>
      tpu.wait_dma2 semaphore(%99 : memref<!tpu.dma_semaphore, #tpu.memory_space<semaphore_mem>>) src(%95 : memref<128xf32, #tpu.memory_space<any>>) dst(%97 : memref<128xf32, #tpu.memory_space<vmem>>)
      %c33 = arith.constant 33 : index
      %100 = memref.load %arg3[%c33] : memref<64xi32, #tpu.memory_space<smem>>
      %c1_i32_68 = arith.constant 1 : i32
      %c4_i32_69 = arith.constant 4 : i32
      %c0_i32_70 = arith.constant 0 : i32
      %c0_i32_71 = arith.constant 0 : i32
      %101 = tpu.memref_slice %arg7[%100, %c0_i32_71] : memref<64x128xf32, #tpu.memory_space<any>> -> memref<1x128xf32, #tpu.memory_space<any>>
      %102 = tpu.memref_squeeze %101 : memref<1x128xf32, #tpu.memory_space<any>> -> memref<128xf32, #tpu.memory_space<any>>
      %c0_i32_72 = arith.constant 0 : i32
      %103 = tpu.memref_slice %arg12[%c1_i32_68, %c4_i32_69, %c0_i32_72] : memref<8x8x128xf32, #tpu.memory_space<vmem>> -> memref<1x1x128xf32, #tpu.memory_space<vmem>>
      %104 = tpu.memref_squeeze %103 : memref<1x1x128xf32, #tpu.memory_space<vmem>> -> memref<128xf32, #tpu.memory_space<vmem>>
      %105 = tpu.memref_slice %arg13[%c0_i32_70] : memref<1x!tpu.dma_semaphore, #tpu.memory_space<semaphore_mem>> -> memref<1x!tpu.dma_semaphore, #tpu.memory_space<semaphore_mem>>
      %106 = tpu.memref_squeeze %105 : memref<1x!tpu.dma_semaphore, #tpu.memory_space<semaphore_mem>> -> memref<!tpu.dma_semaphore, #tpu.memory_space<semaphore_mem>>
      tpu.wait_dma2 semaphore(%106 : memref<!tpu.dma_semaphore, #tpu.memory_space<semaphore_mem>>) src(%102 : memref<128xf32, #tpu.memory_space<any>>) dst(%104 : memref<128xf32, #tpu.memory_space<vmem>>)
      %c41 = arith.constant 41 : index
      %107 = memref.load %arg3[%c41] : memref<64xi32, #tpu.memory_space<smem>>
      %c1_i32_73 = arith.constant 1 : i32
      %c5_i32_74 = arith.constant 5 : i32
      %c0_i32_75 = arith.constant 0 : i32
      %c0_i32_76 = arith.constant 0 : i32
      %108 = tpu.memref_slice %arg7[%107, %c0_i32_76] : memref<64x128xf32, #tpu.memory_space<any>> -> memref<1x128xf32, #tpu.memory_space<any>>
      %109 = tpu.memref_squeeze %108 : memref<1x128xf32, #tpu.memory_space<any>> -> memref<128xf32, #tpu.memory_space<any>>
      %c0_i32_77 = arith.constant 0 : i32
      %110 = tpu.memref_slice %arg12[%c1_i32_73, %c5_i32_74, %c0_i32_77] : memref<8x8x128xf32, #tpu.memory_space<vmem>> -> memref<1x1x128xf32, #tpu.memory_space<vmem>>
      %111 = tpu.memref_squeeze %110 : memref<1x1x128xf32, #tpu.memory_space<vmem>> -> memref<128xf32, #tpu.memory_space<vmem>>
      %112 = tpu.memref_slice %arg13[%c0_i32_75] : memref<1x!tpu.dma_semaphore, #tpu.memory_space<semaphore_mem>> -> memref<1x!tpu.dma_semaphore, #tpu.memory_space<semaphore_mem>>
      %113 = tpu.memref_squeeze %112 : memref<1x!tpu.dma_semaphore, #tpu.memory_space<semaphore_mem>> -> memref<!tpu.dma_semaphore, #tpu.memory_space<semaphore_mem>>
      tpu.wait_dma2 semaphore(%113 : memref<!tpu.dma_semaphore, #tpu.memory_space<semaphore_mem>>) src(%109 : memref<128xf32, #tpu.memory_space<any>>) dst(%111 : memref<128xf32, #tpu.memory_space<vmem>>)
      %c49 = arith.constant 49 : index
      %114 = memref.load %arg3[%c49] : memref<64xi32, #tpu.memory_space<smem>>
      %c1_i32_78 = arith.constant 1 : i32
      %c6_i32_79 = arith.constant 6 : i32
      %c0_i32_80 = arith.constant 0 : i32
      %c0_i32_81 = arith.constant 0 : i32
      %115 = tpu.memref_slice %arg7[%114, %c0_i32_81] : memref<64x128xf32, #tpu.memory_space<any>> -> memref<1x128xf32, #tpu.memory_space<any>>
      %116 = tpu.memref_squeeze %115 : memref<1x128xf32, #tpu.memory_space<any>> -> memref<128xf32, #tpu.memory_space<any>>
      %c0_i32_82 = arith.constant 0 : i32
      %117 = tpu.memref_slice %arg12[%c1_i32_78, %c6_i32_79, %c0_i32_82] : memref<8x8x128xf32, #tpu.memory_space<vmem>> -> memref<1x1x128xf32, #tpu.memory_space<vmem>>
      %118 = tpu.memref_squeeze %117 : memref<1x1x128xf32, #tpu.memory_space<vmem>> -> memref<128xf32, #tpu.memory_space<vmem>>
      %119 = tpu.memref_slice %arg13[%c0_i32_80] : memref<1x!tpu.dma_semaphore, #tpu.memory_space<semaphore_mem>> -> memref<1x!tpu.dma_semaphore, #tpu.memory_space<semaphore_mem>>
      %120 = tpu.memref_squeeze %119 : memref<1x!tpu.dma_semaphore, #tpu.memory_space<semaphore_mem>> -> memref<!tpu.dma_semaphore, #tpu.memory_space<semaphore_mem>>
      tpu.wait_dma2 semaphore(%120 : memref<!tpu.dma_semaphore, #tpu.memory_space<semaphore_mem>>) src(%116 : memref<128xf32, #tpu.memory_space<any>>) dst(%118 : memref<128xf32, #tpu.memory_space<vmem>>)
      %c57 = arith.constant 57 : index
      %121 = memref.load %arg3[%c57] : memref<64xi32, #tpu.memory_space<smem>>
      %c1_i32_83 = arith.constant 1 : i32
      %c7_i32_84 = arith.constant 7 : i32
      %c0_i32_85 = arith.constant 0 : i32
      %c0_i32_86 = arith.constant 0 : i32
      %122 = tpu.memref_slice %arg7[%121, %c0_i32_86] : memref<64x128xf32, #tpu.memory_space<any>> -> memref<1x128xf32, #tpu.memory_space<any>>
      %123 = tpu.memref_squeeze %122 : memref<1x128xf32, #tpu.memory_space<any>> -> memref<128xf32, #tpu.memory_space<any>>
      %c0_i32_87 = arith.constant 0 : i32
      %124 = tpu.memref_slice %arg12[%c1_i32_83, %c7_i32_84, %c0_i32_87] : memref<8x8x128xf32, #tpu.memory_space<vmem>> -> memref<1x1x128xf32, #tpu.memory_space<vmem>>
      %125 = tpu.memref_squeeze %124 : memref<1x1x128xf32, #tpu.memory_space<vmem>> -> memref<128xf32, #tpu.memory_space<vmem>>
      %126 = tpu.memref_slice %arg13[%c0_i32_85] : memref<1x!tpu.dma_semaphore, #tpu.memory_space<semaphore_mem>> -> memref<1x!tpu.dma_semaphore, #tpu.memory_space<semaphore_mem>>
      %127 = tpu.memref_squeeze %126 : memref<1x!tpu.dma_semaphore, #tpu.memory_space<semaphore_mem>> -> memref<!tpu.dma_semaphore, #tpu.memory_space<semaphore_mem>>
      tpu.wait_dma2 semaphore(%127 : memref<!tpu.dma_semaphore, #tpu.memory_space<semaphore_mem>>) src(%123 : memref<128xf32, #tpu.memory_space<any>>) dst(%125 : memref<128xf32, #tpu.memory_space<vmem>>)
      %c2 = arith.constant 2 : index
      %128 = memref.load %arg3[%c2] : memref<64xi32, #tpu.memory_space<smem>>
      %c2_i32_88 = arith.constant 2 : i32
      %c0_i32_89 = arith.constant 0 : i32
      %c0_i32_90 = arith.constant 0 : i32
      %c0_i32_91 = arith.constant 0 : i32
      %129 = tpu.memref_slice %arg7[%128, %c0_i32_91] : memref<64x128xf32, #tpu.memory_space<any>> -> memref<1x128xf32, #tpu.memory_space<any>>
      %130 = tpu.memref_squeeze %129 : memref<1x128xf32, #tpu.memory_space<any>> -> memref<128xf32, #tpu.memory_space<any>>
      %c0_i32_92 = arith.constant 0 : i32
      %131 = tpu.memref_slice %arg12[%c2_i32_88, %c0_i32_89, %c0_i32_92] : memref<8x8x128xf32, #tpu.memory_space<vmem>> -> memref<1x1x128xf32, #tpu.memory_space<vmem>>
      %132 = tpu.memref_squeeze %131 : memref<1x1x128xf32, #tpu.memory_space<vmem>> -> memref<128xf32, #tpu.memory_space<vmem>>
      %133 = tpu.memref_slice %arg13[%c0_i32_90] : memref<1x!tpu.dma_semaphore, #tpu.memory_space<semaphore_mem>> -> memref<1x!tpu.dma_semaphore, #tpu.memory_space<semaphore_mem>>
      %134 = tpu.memref_squeeze %133 : memref<1x!tpu.dma_semaphore, #tpu.memory_space<semaphore_mem>> -> memref<!tpu.dma_semaphore, #tpu.memory_space<semaphore_mem>>
      tpu.wait_dma2 semaphore(%134 : memref<!tpu.dma_semaphore, #tpu.memory_space<semaphore_mem>>) src(%130 : memref<128xf32, #tpu.memory_space<any>>) dst(%132 : memref<128xf32, #tpu.memory_space<vmem>>)
      %c10 = arith.constant 10 : index
      %135 = memref.load %arg3[%c10] : memref<64xi32, #tpu.memory_space<smem>>
      %c2_i32_93 = arith.constant 2 : i32
      %c1_i32_94 = arith.constant 1 : i32
      %c0_i32_95 = arith.constant 0 : i32
      %c0_i32_96 = arith.constant 0 : i32
      %136 = tpu.memref_slice %arg7[%135, %c0_i32_96] : memref<64x128xf32, #tpu.memory_space<any>> -> memref<1x128xf32, #tpu.memory_space<any>>
      %137 = tpu.memref_squeeze %136 : memref<1x128xf32, #tpu.memory_space<any>> -> memref<128xf32, #tpu.memory_space<any>>
      %c0_i32_97 = arith.constant 0 : i32
      %138 = tpu.memref_slice %arg12[%c2_i32_93, %c1_i32_94, %c0_i32_97] : memref<8x8x128xf32, #tpu.memory_space<vmem>> -> memref<1x1x128xf32, #tpu.memory_space<vmem>>
      %139 = tpu.memref_squeeze %138 : memref<1x1x128xf32, #tpu.memory_space<vmem>> -> memref<128xf32, #tpu.memory_space<vmem>>
      %140 = tpu.memref_slice %arg13[%c0_i32_95] : memref<1x!tpu.dma_semaphore, #tpu.memory_space<semaphore_mem>> -> memref<1x!tpu.dma_semaphore, #tpu.memory_space<semaphore_mem>>
      %141 = tpu.memref_squeeze %140 : memref<1x!tpu.dma_semaphore, #tpu.memory_space<semaphore_mem>> -> memref<!tpu.dma_semaphore, #tpu.memory_space<semaphore_mem>>
      tpu.wait_dma2 semaphore(%141 : memref<!tpu.dma_semaphore, #tpu.memory_space<semaphore_mem>>) src(%137 : memref<128xf32, #tpu.memory_space<any>>) dst(%139 : memref<128xf32, #tpu.memory_space<vmem>>)
      %c18 = arith.constant 18 : index
      %142 = memref.load %arg3[%c18] : memref<64xi32, #tpu.memory_space<smem>>
      %c2_i32_98 = arith.constant 2 : i32
      %c2_i32_99 = arith.constant 2 : i32
      %c0_i32_100 = arith.constant 0 : i32
      %c0_i32_101 = arith.constant 0 : i32
      %143 = tpu.memref_slice %arg7[%142, %c0_i32_101] : memref<64x128xf32, #tpu.memory_space<any>> -> memref<1x128xf32, #tpu.memory_space<any>>
      %144 = tpu.memref_squeeze %143 : memref<1x128xf32, #tpu.memory_space<any>> -> memref<128xf32, #tpu.memory_space<any>>
      %c0_i32_102 = arith.constant 0 : i32
      %145 = tpu.memref_slice %arg12[%c2_i32_98, %c2_i32_99, %c0_i32_102] : memref<8x8x128xf32, #tpu.memory_space<vmem>> -> memref<1x1x128xf32, #tpu.memory_space<vmem>>
      %146 = tpu.memref_squeeze %145 : memref<1x1x128xf32, #tpu.memory_space<vmem>> -> memref<128xf32, #tpu.memory_space<vmem>>
      %147 = tpu.memref_slice %arg13[%c0_i32_100] : memref<1x!tpu.dma_semaphore, #tpu.memory_space<semaphore_mem>> -> memref<1x!tpu.dma_semaphore, #tpu.memory_space<semaphore_mem>>
      %148 = tpu.memref_squeeze %147 : memref<1x!tpu.dma_semaphore, #tpu.memory_space<semaphore_mem>> -> memref<!tpu.dma_semaphore, #tpu.memory_space<semaphore_mem>>
      tpu.wait_dma2 semaphore(%148 : memref<!tpu.dma_semaphore, #tpu.memory_space<semaphore_mem>>) src(%144 : memref<128xf32, #tpu.memory_space<any>>) dst(%146 : memref<128xf32, #tpu.memory_space<vmem>>)
      %c26 = arith.constant 26 : index
      %149 = memref.load %arg3[%c26] : memref<64xi32, #tpu.memory_space<smem>>
      %c2_i32_103 = arith.constant 2 : i32
      %c3_i32_104 = arith.constant 3 : i32
      %c0_i32_105 = arith.constant 0 : i32
      %c0_i32_106 = arith.constant 0 : i32
      %150 = tpu.memref_slice %arg7[%149, %c0_i32_106] : memref<64x128xf32, #tpu.memory_space<any>> -> memref<1x128xf32, #tpu.memory_space<any>>
      %151 = tpu.memref_squeeze %150 : memref<1x128xf32, #tpu.memory_space<any>> -> memref<128xf32, #tpu.memory_space<any>>
      %c0_i32_107 = arith.constant 0 : i32
      %152 = tpu.memref_slice %arg12[%c2_i32_103, %c3_i32_104, %c0_i32_107] : memref<8x8x128xf32, #tpu.memory_space<vmem>> -> memref<1x1x128xf32, #tpu.memory_space<vmem>>
      %153 = tpu.memref_squeeze %152 : memref<1x1x128xf32, #tpu.memory_space<vmem>> -> memref<128xf32, #tpu.memory_space<vmem>>
      %154 = tpu.memref_slice %arg13[%c0_i32_105] : memref<1x!tpu.dma_semaphore, #tpu.memory_space<semaphore_mem>> -> memref<1x!tpu.dma_semaphore, #tpu.memory_space<semaphore_mem>>
      %155 = tpu.memref_squeeze %154 : memref<1x!tpu.dma_semaphore, #tpu.memory_space<semaphore_mem>> -> memref<!tpu.dma_semaphore, #tpu.memory_space<semaphore_mem>>
      tpu.wait_dma2 semaphore(%155 : memref<!tpu.dma_semaphore, #tpu.memory_space<semaphore_mem>>) src(%151 : memref<128xf32, #tpu.memory_space<any>>) dst(%153 : memref<128xf32, #tpu.memory_space<vmem>>)
      %c34 = arith.constant 34 : index
      %156 = memref.load %arg3[%c34] : memref<64xi32, #tpu.memory_space<smem>>
      %c2_i32_108 = arith.constant 2 : i32
      %c4_i32_109 = arith.constant 4 : i32
      %c0_i32_110 = arith.constant 0 : i32
      %c0_i32_111 = arith.constant 0 : i32
      %157 = tpu.memref_slice %arg7[%156, %c0_i32_111] : memref<64x128xf32, #tpu.memory_space<any>> -> memref<1x128xf32, #tpu.memory_space<any>>
      %158 = tpu.memref_squeeze %157 : memref<1x128xf32, #tpu.memory_space<any>> -> memref<128xf32, #tpu.memory_space<any>>
      %c0_i32_112 = arith.constant 0 : i32
      %159 = tpu.memref_slice %arg12[%c2_i32_108, %c4_i32_109, %c0_i32_112] : memref<8x8x128xf32, #tpu.memory_space<vmem>> -> memref<1x1x128xf32, #tpu.memory_space<vmem>>
      %160 = tpu.memref_squeeze %159 : memref<1x1x128xf32, #tpu.memory_space<vmem>> -> memref<128xf32, #tpu.memory_space<vmem>>
      %161 = tpu.memref_slice %arg13[%c0_i32_110] : memref<1x!tpu.dma_semaphore, #tpu.memory_space<semaphore_mem>> -> memref<1x!tpu.dma_semaphore, #tpu.memory_space<semaphore_mem>>
      %162 = tpu.memref_squeeze %161 : memref<1x!tpu.dma_semaphore, #tpu.memory_space<semaphore_mem>> -> memref<!tpu.dma_semaphore, #tpu.memory_space<semaphore_mem>>
      tpu.wait_dma2 semaphore(%162 : memref<!tpu.dma_semaphore, #tpu.memory_space<semaphore_mem>>) src(%158 : memref<128xf32, #tpu.memory_space<any>>) dst(%160 : memref<128xf32, #tpu.memory_space<vmem>>)
      %c42 = arith.constant 42 : index
      %163 = memref.load %arg3[%c42] : memref<64xi32, #tpu.memory_space<smem>>
      %c2_i32_113 = arith.constant 2 : i32
      %c5_i32_114 = arith.constant 5 : i32
      %c0_i32_115 = arith.constant 0 : i32
      %c0_i32_116 = arith.constant 0 : i32
      %164 = tpu.memref_slice %arg7[%163, %c0_i32_116] : memref<64x128xf32, #tpu.memory_space<any>> -> memref<1x128xf32, #tpu.memory_space<any>>
      %165 = tpu.memref_squeeze %164 : memref<1x128xf32, #tpu.memory_space<any>> -> memref<128xf32, #tpu.memory_space<any>>
      %c0_i32_117 = arith.constant 0 : i32
      %166 = tpu.memref_slice %arg12[%c2_i32_113, %c5_i32_114, %c0_i32_117] : memref<8x8x128xf32, #tpu.memory_space<vmem>> -> memref<1x1x128xf32, #tpu.memory_space<vmem>>
      %167 = tpu.memref_squeeze %166 : memref<1x1x128xf32, #tpu.memory_space<vmem>> -> memref<128xf32, #tpu.memory_space<vmem>>
      %168 = tpu.memref_slice %arg13[%c0_i32_115] : memref<1x!tpu.dma_semaphore, #tpu.memory_space<semaphore_mem>> -> memref<1x!tpu.dma_semaphore, #tpu.memory_space<semaphore_mem>>
      %169 = tpu.memref_squeeze %168 : memref<1x!tpu.dma_semaphore, #tpu.memory_space<semaphore_mem>> -> memref<!tpu.dma_semaphore, #tpu.memory_space<semaphore_mem>>
      tpu.wait_dma2 semaphore(%169 : memref<!tpu.dma_semaphore, #tpu.memory_space<semaphore_mem>>) src(%165 : memref<128xf32, #tpu.memory_space<any>>) dst(%167 : memref<128xf32, #tpu.memory_space<vmem>>)
      %c50 = arith.constant 50 : index
      %170 = memref.load %arg3[%c50] : memref<64xi32, #tpu.memory_space<smem>>
      %c2_i32_118 = arith.constant 2 : i32
      %c6_i32_119 = arith.constant 6 : i32
      %c0_i32_120 = arith.constant 0 : i32
      %c0_i32_121 = arith.constant 0 : i32
      %171 = tpu.memref_slice %arg7[%170, %c0_i32_121] : memref<64x128xf32, #tpu.memory_space<any>> -> memref<1x128xf32, #tpu.memory_space<any>>
      %172 = tpu.memref_squeeze %171 : memref<1x128xf32, #tpu.memory_space<any>> -> memref<128xf32, #tpu.memory_space<any>>
      %c0_i32_122 = arith.constant 0 : i32
      %173 = tpu.memref_slice %arg12[%c2_i32_118, %c6_i32_119, %c0_i32_122] : memref<8x8x128xf32, #tpu.memory_space<vmem>> -> memref<1x1x128xf32, #tpu.memory_space<vmem>>
      %174 = tpu.memref_squeeze %173 : memref<1x1x128xf32, #tpu.memory_space<vmem>> -> memref<128xf32, #tpu.memory_space<vmem>>
      %175 = tpu.memref_slice %arg13[%c0_i32_120] : memref<1x!tpu.dma_semaphore, #tpu.memory_space<semaphore_mem>> -> memref<1x!tpu.dma_semaphore, #tpu.memory_space<semaphore_mem>>
      %176 = tpu.memref_squeeze %175 : memref<1x!tpu.dma_semaphore, #tpu.memory_space<semaphore_mem>> -> memref<!tpu.dma_semaphore, #tpu.memory_space<semaphore_mem>>
      tpu.wait_dma2 semaphore(%176 : memref<!tpu.dma_semaphore, #tpu.memory_space<semaphore_mem>>) src(%172 : memref<128xf32, #tpu.memory_space<any>>) dst(%174 : memref<128xf32, #tpu.memory_space<vmem>>)
      %c58 = arith.constant 58 : index
      %177 = memref.load %arg3[%c58] : memref<64xi32, #tpu.memory_space<smem>>
      %c2_i32_123 = arith.constant 2 : i32
      %c7_i32_124 = arith.constant 7 : i32
      %c0_i32_125 = arith.constant 0 : i32
      %c0_i32_126 = arith.constant 0 : i32
      %178 = tpu.memref_slice %arg7[%177, %c0_i32_126] : memref<64x128xf32, #tpu.memory_space<any>> -> memref<1x128xf32, #tpu.memory_space<any>>
      %179 = tpu.memref_squeeze %178 : memref<1x128xf32, #tpu.memory_space<any>> -> memref<128xf32, #tpu.memory_space<any>>
      %c0_i32_127 = arith.constant 0 : i32
      %180 = tpu.memref_slice %arg12[%c2_i32_123, %c7_i32_124, %c0_i32_127] : memref<8x8x128xf32, #tpu.memory_space<vmem>> -> memref<1x1x128xf32, #tpu.memory_space<vmem>>
      %181 = tpu.memref_squeeze %180 : memref<1x1x128xf32, #tpu.memory_space<vmem>> -> memref<128xf32, #tpu.memory_space<vmem>>
      %182 = tpu.memref_slice %arg13[%c0_i32_125] : memref<1x!tpu.dma_semaphore, #tpu.memory_space<semaphore_mem>> -> memref<1x!tpu.dma_semaphore, #tpu.memory_space<semaphore_mem>>
      %183 = tpu.memref_squeeze %182 : memref<1x!tpu.dma_semaphore, #tpu.memory_space<semaphore_mem>> -> memref<!tpu.dma_semaphore, #tpu.memory_space<semaphore_mem>>
      tpu.wait_dma2 semaphore(%183 : memref<!tpu.dma_semaphore, #tpu.memory_space<semaphore_mem>>) src(%179 : memref<128xf32, #tpu.memory_space<any>>) dst(%181 : memref<128xf32, #tpu.memory_space<vmem>>)
      %c3 = arith.constant 3 : index
      %184 = memref.load %arg3[%c3] : memref<64xi32, #tpu.memory_space<smem>>
      %c3_i32_128 = arith.constant 3 : i32
      %c0_i32_129 = arith.constant 0 : i32
      %c0_i32_130 = arith.constant 0 : i32
      %c0_i32_131 = arith.constant 0 : i32
      %185 = tpu.memref_slice %arg7[%184, %c0_i32_131] : memref<64x128xf32, #tpu.memory_space<any>> -> memref<1x128xf32, #tpu.memory_space<any>>
      %186 = tpu.memref_squeeze %185 : memref<1x128xf32, #tpu.memory_space<any>> -> memref<128xf32, #tpu.memory_space<any>>
      %c0_i32_132 = arith.constant 0 : i32
      %187 = tpu.memref_slice %arg12[%c3_i32_128, %c0_i32_129, %c0_i32_132] : memref<8x8x128xf32, #tpu.memory_space<vmem>> -> memref<1x1x128xf32, #tpu.memory_space<vmem>>
      %188 = tpu.memref_squeeze %187 : memref<1x1x128xf32, #tpu.memory_space<vmem>> -> memref<128xf32, #tpu.memory_space<vmem>>
      %189 = tpu.memref_slice %arg13[%c0_i32_130] : memref<1x!tpu.dma_semaphore, #tpu.memory_space<semaphore_mem>> -> memref<1x!tpu.dma_semaphore, #tpu.memory_space<semaphore_mem>>
      %190 = tpu.memref_squeeze %189 : memref<1x!tpu.dma_semaphore, #tpu.memory_space<semaphore_mem>> -> memref<!tpu.dma_semaphore, #tpu.memory_space<semaphore_mem>>
      tpu.wait_dma2 semaphore(%190 : memref<!tpu.dma_semaphore, #tpu.memory_space<semaphore_mem>>) src(%186 : memref<128xf32, #tpu.memory_space<any>>) dst(%188 : memref<128xf32, #tpu.memory_space<vmem>>)
      %c11 = arith.constant 11 : index
      %191 = memref.load %arg3[%c11] : memref<64xi32, #tpu.memory_space<smem>>
      %c3_i32_133 = arith.constant 3 : i32
      %c1_i32_134 = arith.constant 1 : i32
      %c0_i32_135 = arith.constant 0 : i32
      %c0_i32_136 = arith.constant 0 : i32
      %192 = tpu.memref_slice %arg7[%191, %c0_i32_136] : memref<64x128xf32, #tpu.memory_space<any>> -> memref<1x128xf32, #tpu.memory_space<any>>
      %193 = tpu.memref_squeeze %192 : memref<1x128xf32, #tpu.memory_space<any>> -> memref<128xf32, #tpu.memory_space<any>>
      %c0_i32_137 = arith.constant 0 : i32
      %194 = tpu.memref_slice %arg12[%c3_i32_133, %c1_i32_134, %c0_i32_137] : memref<8x8x128xf32, #tpu.memory_space<vmem>> -> memref<1x1x128xf32, #tpu.memory_space<vmem>>
      %195 = tpu.memref_squeeze %194 : memref<1x1x128xf32, #tpu.memory_space<vmem>> -> memref<128xf32, #tpu.memory_space<vmem>>
      %196 = tpu.memref_slice %arg13[%c0_i32_135] : memref<1x!tpu.dma_semaphore, #tpu.memory_space<semaphore_mem>> -> memref<1x!tpu.dma_semaphore, #tpu.memory_space<semaphore_mem>>
      %197 = tpu.memref_squeeze %196 : memref<1x!tpu.dma_semaphore, #tpu.memory_space<semaphore_mem>> -> memref<!tpu.dma_semaphore, #tpu.memory_space<semaphore_mem>>
      tpu.wait_dma2 semaphore(%197 : memref<!tpu.dma_semaphore, #tpu.memory_space<semaphore_mem>>) src(%193 : memref<128xf32, #tpu.memory_space<any>>) dst(%195 : memref<128xf32, #tpu.memory_space<vmem>>)
      %c19 = arith.constant 19 : index
      %198 = memref.load %arg3[%c19] : memref<64xi32, #tpu.memory_space<smem>>
      %c3_i32_138 = arith.constant 3 : i32
      %c2_i32_139 = arith.constant 2 : i32
      %c0_i32_140 = arith.constant 0 : i32
      %c0_i32_141 = arith.constant 0 : i32
      %199 = tpu.memref_slice %arg7[%198, %c0_i32_141] : memref<64x128xf32, #tpu.memory_space<any>> -> memref<1x128xf32, #tpu.memory_space<any>>
      %200 = tpu.memref_squeeze %199 : memref<1x128xf32, #tpu.memory_space<any>> -> memref<128xf32, #tpu.memory_space<any>>
      %c0_i32_142 = arith.constant 0 : i32
      %201 = tpu.memref_slice %arg12[%c3_i32_138, %c2_i32_139, %c0_i32_142] : memref<8x8x128xf32, #tpu.memory_space<vmem>> -> memref<1x1x128xf32, #tpu.memory_space<vmem>>
      %202 = tpu.memref_squeeze %201 : memref<1x1x128xf32, #tpu.memory_space<vmem>> -> memref<128xf32, #tpu.memory_space<vmem>>
      %203 = tpu.memref_slice %arg13[%c0_i32_140] : memref<1x!tpu.dma_semaphore, #tpu.memory_space<semaphore_mem>> -> memref<1x!tpu.dma_semaphore, #tpu.memory_space<semaphore_mem>>
      %204 = tpu.memref_squeeze %203 : memref<1x!tpu.dma_semaphore, #tpu.memory_space<semaphore_mem>> -> memref<!tpu.dma_semaphore, #tpu.memory_space<semaphore_mem>>
      tpu.wait_dma2 semaphore(%204 : memref<!tpu.dma_semaphore, #tpu.memory_space<semaphore_mem>>) src(%200 : memref<128xf32, #tpu.memory_space<any>>) dst(%202 : memref<128xf32, #tpu.memory_space<vmem>>)
      %c27 = arith.constant 27 : index
      %205 = memref.load %arg3[%c27] : memref<64xi32, #tpu.memory_space<smem>>
      %c3_i32_143 = arith.constant 3 : i32
      %c3_i32_144 = arith.constant 3 : i32
      %c0_i32_145 = arith.constant 0 : i32
      %c0_i32_146 = arith.constant 0 : i32
      %206 = tpu.memref_slice %arg7[%205, %c0_i32_146] : memref<64x128xf32, #tpu.memory_space<any>> -> memref<1x128xf32, #tpu.memory_space<any>>
      %207 = tpu.memref_squeeze %206 : memref<1x128xf32, #tpu.memory_space<any>> -> memref<128xf32, #tpu.memory_space<any>>
      %c0_i32_147 = arith.constant 0 : i32
      %208 = tpu.memref_slice %arg12[%c3_i32_143, %c3_i32_144, %c0_i32_147] : memref<8x8x128xf32, #tpu.memory_space<vmem>> -> memref<1x1x128xf32, #tpu.memory_space<vmem>>
      %209 = tpu.memref_squeeze %208 : memref<1x1x128xf32, #tpu.memory_space<vmem>> -> memref<128xf32, #tpu.memory_space<vmem>>
      %210 = tpu.memref_slice %arg13[%c0_i32_145] : memref<1x!tpu.dma_semaphore, #tpu.memory_space<semaphore_mem>> -> memref<1x!tpu.dma_semaphore, #tpu.memory_space<semaphore_mem>>
      %211 = tpu.memref_squeeze %210 : memref<1x!tpu.dma_semaphore, #tpu.memory_space<semaphore_mem>> -> memref<!tpu.dma_semaphore, #tpu.memory_space<semaphore_mem>>
      tpu.wait_dma2 semaphore(%211 : memref<!tpu.dma_semaphore, #tpu.memory_space<semaphore_mem>>) src(%207 : memref<128xf32, #tpu.memory_space<any>>) dst(%209 : memref<128xf32, #tpu.memory_space<vmem>>)
      %c35 = arith.constant 35 : index
      %212 = memref.load %arg3[%c35] : memref<64xi32, #tpu.memory_space<smem>>
      %c3_i32_148 = arith.constant 3 : i32
      %c4_i32_149 = arith.constant 4 : i32
      %c0_i32_150 = arith.constant 0 : i32
      %c0_i32_151 = arith.constant 0 : i32
      %213 = tpu.memref_slice %arg7[%212, %c0_i32_151] : memref<64x128xf32, #tpu.memory_space<any>> -> memref<1x128xf32, #tpu.memory_space<any>>
      %214 = tpu.memref_squeeze %213 : memref<1x128xf32, #tpu.memory_space<any>> -> memref<128xf32, #tpu.memory_space<any>>
      %c0_i32_152 = arith.constant 0 : i32
      %215 = tpu.memref_slice %arg12[%c3_i32_148, %c4_i32_149, %c0_i32_152] : memref<8x8x128xf32, #tpu.memory_space<vmem>> -> memref<1x1x128xf32, #tpu.memory_space<vmem>>
      %216 = tpu.memref_squeeze %215 : memref<1x1x128xf32, #tpu.memory_space<vmem>> -> memref<128xf32, #tpu.memory_space<vmem>>
      %217 = tpu.memref_slice %arg13[%c0_i32_150] : memref<1x!tpu.dma_semaphore, #tpu.memory_space<semaphore_mem>> -> memref<1x!tpu.dma_semaphore, #tpu.memory_space<semaphore_mem>>
      %218 = tpu.memref_squeeze %217 : memref<1x!tpu.dma_semaphore, #tpu.memory_space<semaphore_mem>> -> memref<!tpu.dma_semaphore, #tpu.memory_space<semaphore_mem>>
      tpu.wait_dma2 semaphore(%218 : memref<!tpu.dma_semaphore, #tpu.memory_space<semaphore_mem>>) src(%214 : memref<128xf32, #tpu.memory_space<any>>) dst(%216 : memref<128xf32, #tpu.memory_space<vmem>>)
      %c43 = arith.constant 43 : index
      %219 = memref.load %arg3[%c43] : memref<64xi32, #tpu.memory_space<smem>>
      %c3_i32_153 = arith.constant 3 : i32
      %c5_i32_154 = arith.constant 5 : i32
      %c0_i32_155 = arith.constant 0 : i32
      %c0_i32_156 = arith.constant 0 : i32
      %220 = tpu.memref_slice %arg7[%219, %c0_i32_156] : memref<64x128xf32, #tpu.memory_space<any>> -> memref<1x128xf32, #tpu.memory_space<any>>
      %221 = tpu.memref_squeeze %220 : memref<1x128xf32, #tpu.memory_space<any>> -> memref<128xf32, #tpu.memory_space<any>>
      %c0_i32_157 = arith.constant 0 : i32
      %222 = tpu.memref_slice %arg12[%c3_i32_153, %c5_i32_154, %c0_i32_157] : memref<8x8x128xf32, #tpu.memory_space<vmem>> -> memref<1x1x128xf32, #tpu.memory_space<vmem>>
      %223 = tpu.memref_squeeze %222 : memref<1x1x128xf32, #tpu.memory_space<vmem>> -> memref<128xf32, #tpu.memory_space<vmem>>
      %224 = tpu.memref_slice %arg13[%c0_i32_155] : memref<1x!tpu.dma_semaphore, #tpu.memory_space<semaphore_mem>> -> memref<1x!tpu.dma_semaphore, #tpu.memory_space<semaphore_mem>>
      %225 = tpu.memref_squeeze %224 : memref<1x!tpu.dma_semaphore, #tpu.memory_space<semaphore_mem>> -> memref<!tpu.dma_semaphore, #tpu.memory_space<semaphore_mem>>
      tpu.wait_dma2 semaphore(%225 : memref<!tpu.dma_semaphore, #tpu.memory_space<semaphore_mem>>) src(%221 : memref<128xf32, #tpu.memory_space<any>>) dst(%223 : memref<128xf32, #tpu.memory_space<vmem>>)
      %c51 = arith.constant 51 : index
      %226 = memref.load %arg3[%c51] : memref<64xi32, #tpu.memory_space<smem>>
      %c3_i32_158 = arith.constant 3 : i32
      %c6_i32_159 = arith.constant 6 : i32
      %c0_i32_160 = arith.constant 0 : i32
      %c0_i32_161 = arith.constant 0 : i32
      %227 = tpu.memref_slice %arg7[%226, %c0_i32_161] : memref<64x128xf32, #tpu.memory_space<any>> -> memref<1x128xf32, #tpu.memory_space<any>>
      %228 = tpu.memref_squeeze %227 : memref<1x128xf32, #tpu.memory_space<any>> -> memref<128xf32, #tpu.memory_space<any>>
      %c0_i32_162 = arith.constant 0 : i32
      %229 = tpu.memref_slice %arg12[%c3_i32_158, %c6_i32_159, %c0_i32_162] : memref<8x8x128xf32, #tpu.memory_space<vmem>> -> memref<1x1x128xf32, #tpu.memory_space<vmem>>
      %230 = tpu.memref_squeeze %229 : memref<1x1x128xf32, #tpu.memory_space<vmem>> -> memref<128xf32, #tpu.memory_space<vmem>>
      %231 = tpu.memref_slice %arg13[%c0_i32_160] : memref<1x!tpu.dma_semaphore, #tpu.memory_space<semaphore_mem>> -> memref<1x!tpu.dma_semaphore, #tpu.memory_space<semaphore_mem>>
      %232 = tpu.memref_squeeze %231 : memref<1x!tpu.dma_semaphore, #tpu.memory_space<semaphore_mem>> -> memref<!tpu.dma_semaphore, #tpu.memory_space<semaphore_mem>>
      tpu.wait_dma2 semaphore(%232 : memref<!tpu.dma_semaphore, #tpu.memory_space<semaphore_mem>>) src(%228 : memref<128xf32, #tpu.memory_space<any>>) dst(%230 : memref<128xf32, #tpu.memory_space<vmem>>)
      %c59 = arith.constant 59 : index
      %233 = memref.load %arg3[%c59] : memref<64xi32, #tpu.memory_space<smem>>
      %c3_i32_163 = arith.constant 3 : i32
      %c7_i32_164 = arith.constant 7 : i32
      %c0_i32_165 = arith.constant 0 : i32
      %c0_i32_166 = arith.constant 0 : i32
      %234 = tpu.memref_slice %arg7[%233, %c0_i32_166] : memref<64x128xf32, #tpu.memory_space<any>> -> memref<1x128xf32, #tpu.memory_space<any>>
      %235 = tpu.memref_squeeze %234 : memref<1x128xf32, #tpu.memory_space<any>> -> memref<128xf32, #tpu.memory_space<any>>
      %c0_i32_167 = arith.constant 0 : i32
      %236 = tpu.memref_slice %arg12[%c3_i32_163, %c7_i32_164, %c0_i32_167] : memref<8x8x128xf32, #tpu.memory_space<vmem>> -> memref<1x1x128xf32, #tpu.memory_space<vmem>>
      %237 = tpu.memref_squeeze %236 : memref<1x1x128xf32, #tpu.memory_space<vmem>> -> memref<128xf32, #tpu.memory_space<vmem>>
      %238 = tpu.memref_slice %arg13[%c0_i32_165] : memref<1x!tpu.dma_semaphore, #tpu.memory_space<semaphore_mem>> -> memref<1x!tpu.dma_semaphore, #tpu.memory_space<semaphore_mem>>
      %239 = tpu.memref_squeeze %238 : memref<1x!tpu.dma_semaphore, #tpu.memory_space<semaphore_mem>> -> memref<!tpu.dma_semaphore, #tpu.memory_space<semaphore_mem>>
      tpu.wait_dma2 semaphore(%239 : memref<!tpu.dma_semaphore, #tpu.memory_space<semaphore_mem>>) src(%235 : memref<128xf32, #tpu.memory_space<any>>) dst(%237 : memref<128xf32, #tpu.memory_space<vmem>>)
      %c4 = arith.constant 4 : index
      %240 = memref.load %arg3[%c4] : memref<64xi32, #tpu.memory_space<smem>>
      %c4_i32_168 = arith.constant 4 : i32
      %c0_i32_169 = arith.constant 0 : i32
      %c0_i32_170 = arith.constant 0 : i32
      %c0_i32_171 = arith.constant 0 : i32
      %241 = tpu.memref_slice %arg7[%240, %c0_i32_171] : memref<64x128xf32, #tpu.memory_space<any>> -> memref<1x128xf32, #tpu.memory_space<any>>
      %242 = tpu.memref_squeeze %241 : memref<1x128xf32, #tpu.memory_space<any>> -> memref<128xf32, #tpu.memory_space<any>>
      %c0_i32_172 = arith.constant 0 : i32
      %243 = tpu.memref_slice %arg12[%c4_i32_168, %c0_i32_169, %c0_i32_172] : memref<8x8x128xf32, #tpu.memory_space<vmem>> -> memref<1x1x128xf32, #tpu.memory_space<vmem>>
      %244 = tpu.memref_squeeze %243 : memref<1x1x128xf32, #tpu.memory_space<vmem>> -> memref<128xf32, #tpu.memory_space<vmem>>
      %245 = tpu.memref_slice %arg13[%c0_i32_170] : memref<1x!tpu.dma_semaphore, #tpu.memory_space<semaphore_mem>> -> memref<1x!tpu.dma_semaphore, #tpu.memory_space<semaphore_mem>>
      %246 = tpu.memref_squeeze %245 : memref<1x!tpu.dma_semaphore, #tpu.memory_space<semaphore_mem>> -> memref<!tpu.dma_semaphore, #tpu.memory_space<semaphore_mem>>
      tpu.wait_dma2 semaphore(%246 : memref<!tpu.dma_semaphore, #tpu.memory_space<semaphore_mem>>) src(%242 : memref<128xf32, #tpu.memory_space<any>>) dst(%244 : memref<128xf32, #tpu.memory_space<vmem>>)
      %c12 = arith.constant 12 : index
      %247 = memref.load %arg3[%c12] : memref<64xi32, #tpu.memory_space<smem>>
      %c4_i32_173 = arith.constant 4 : i32
      %c1_i32_174 = arith.constant 1 : i32
      %c0_i32_175 = arith.constant 0 : i32
      %c0_i32_176 = arith.constant 0 : i32
      %248 = tpu.memref_slice %arg7[%247, %c0_i32_176] : memref<64x128xf32, #tpu.memory_space<any>> -> memref<1x128xf32, #tpu.memory_space<any>>
      %249 = tpu.memref_squeeze %248 : memref<1x128xf32, #tpu.memory_space<any>> -> memref<128xf32, #tpu.memory_space<any>>
      %c0_i32_177 = arith.constant 0 : i32
      %250 = tpu.memref_slice %arg12[%c4_i32_173, %c1_i32_174, %c0_i32_177] : memref<8x8x128xf32, #tpu.memory_space<vmem>> -> memref<1x1x128xf32, #tpu.memory_space<vmem>>
      %251 = tpu.memref_squeeze %250 : memref<1x1x128xf32, #tpu.memory_space<vmem>> -> memref<128xf32, #tpu.memory_space<vmem>>
      %252 = tpu.memref_slice %arg13[%c0_i32_175] : memref<1x!tpu.dma_semaphore, #tpu.memory_space<semaphore_mem>> -> memref<1x!tpu.dma_semaphore, #tpu.memory_space<semaphore_mem>>
      %253 = tpu.memref_squeeze %252 : memref<1x!tpu.dma_semaphore, #tpu.memory_space<semaphore_mem>> -> memref<!tpu.dma_semaphore, #tpu.memory_space<semaphore_mem>>
      tpu.wait_dma2 semaphore(%253 : memref<!tpu.dma_semaphore, #tpu.memory_space<semaphore_mem>>) src(%249 : memref<128xf32, #tpu.memory_space<any>>) dst(%251 : memref<128xf32, #tpu.memory_space<vmem>>)
      %c20 = arith.constant 20 : index
      %254 = memref.load %arg3[%c20] : memref<64xi32, #tpu.memory_space<smem>>
      %c4_i32_178 = arith.constant 4 : i32
      %c2_i32_179 = arith.constant 2 : i32
      %c0_i32_180 = arith.constant 0 : i32
      %c0_i32_181 = arith.constant 0 : i32
      %255 = tpu.memref_slice %arg7[%254, %c0_i32_181] : memref<64x128xf32, #tpu.memory_space<any>> -> memref<1x128xf32, #tpu.memory_space<any>>
      %256 = tpu.memref_squeeze %255 : memref<1x128xf32, #tpu.memory_space<any>> -> memref<128xf32, #tpu.memory_space<any>>
      %c0_i32_182 = arith.constant 0 : i32
      %257 = tpu.memref_slice %arg12[%c4_i32_178, %c2_i32_179, %c0_i32_182] : memref<8x8x128xf32, #tpu.memory_space<vmem>> -> memref<1x1x128xf32, #tpu.memory_space<vmem>>
      %258 = tpu.memref_squeeze %257 : memref<1x1x128xf32, #tpu.memory_space<vmem>> -> memref<128xf32, #tpu.memory_space<vmem>>
      %259 = tpu.memref_slice %arg13[%c0_i32_180] : memref<1x!tpu.dma_semaphore, #tpu.memory_space<semaphore_mem>> -> memref<1x!tpu.dma_semaphore, #tpu.memory_space<semaphore_mem>>
      %260 = tpu.memref_squeeze %259 : memref<1x!tpu.dma_semaphore, #tpu.memory_space<semaphore_mem>> -> memref<!tpu.dma_semaphore, #tpu.memory_space<semaphore_mem>>
      tpu.wait_dma2 semaphore(%260 : memref<!tpu.dma_semaphore, #tpu.memory_space<semaphore_mem>>) src(%256 : memref<128xf32, #tpu.memory_space<any>>) dst(%258 : memref<128xf32, #tpu.memory_space<vmem>>)
      %c28 = arith.constant 28 : index
      %261 = memref.load %arg3[%c28] : memref<64xi32, #tpu.memory_space<smem>>
      %c4_i32_183 = arith.constant 4 : i32
      %c3_i32_184 = arith.constant 3 : i32
      %c0_i32_185 = arith.constant 0 : i32
      %c0_i32_186 = arith.constant 0 : i32
      %262 = tpu.memref_slice %arg7[%261, %c0_i32_186] : memref<64x128xf32, #tpu.memory_space<any>> -> memref<1x128xf32, #tpu.memory_space<any>>
      %263 = tpu.memref_squeeze %262 : memref<1x128xf32, #tpu.memory_space<any>> -> memref<128xf32, #tpu.memory_space<any>>
      %c0_i32_187 = arith.constant 0 : i32
      %264 = tpu.memref_slice %arg12[%c4_i32_183, %c3_i32_184, %c0_i32_187] : memref<8x8x128xf32, #tpu.memory_space<vmem>> -> memref<1x1x128xf32, #tpu.memory_space<vmem>>
      %265 = tpu.memref_squeeze %264 : memref<1x1x128xf32, #tpu.memory_space<vmem>> -> memref<128xf32, #tpu.memory_space<vmem>>
      %266 = tpu.memref_slice %arg13[%c0_i32_185] : memref<1x!tpu.dma_semaphore, #tpu.memory_space<semaphore_mem>> -> memref<1x!tpu.dma_semaphore, #tpu.memory_space<semaphore_mem>>
      %267 = tpu.memref_squeeze %266 : memref<1x!tpu.dma_semaphore, #tpu.memory_space<semaphore_mem>> -> memref<!tpu.dma_semaphore, #tpu.memory_space<semaphore_mem>>
      tpu.wait_dma2 semaphore(%267 : memref<!tpu.dma_semaphore, #tpu.memory_space<semaphore_mem>>) src(%263 : memref<128xf32, #tpu.memory_space<any>>) dst(%265 : memref<128xf32, #tpu.memory_space<vmem>>)
      %c36 = arith.constant 36 : index
      %268 = memref.load %arg3[%c36] : memref<64xi32, #tpu.memory_space<smem>>
      %c4_i32_188 = arith.constant 4 : i32
      %c4_i32_189 = arith.constant 4 : i32
      %c0_i32_190 = arith.constant 0 : i32
      %c0_i32_191 = arith.constant 0 : i32
      %269 = tpu.memref_slice %arg7[%268, %c0_i32_191] : memref<64x128xf32, #tpu.memory_space<any>> -> memref<1x128xf32, #tpu.memory_space<any>>
      %270 = tpu.memref_squeeze %269 : memref<1x128xf32, #tpu.memory_space<any>> -> memref<128xf32, #tpu.memory_space<any>>
      %c0_i32_192 = arith.constant 0 : i32
      %271 = tpu.memref_slice %arg12[%c4_i32_188, %c4_i32_189, %c0_i32_192] : memref<8x8x128xf32, #tpu.memory_space<vmem>> -> memref<1x1x128xf32, #tpu.memory_space<vmem>>
      %272 = tpu.memref_squeeze %271 : memref<1x1x128xf32, #tpu.memory_space<vmem>> -> memref<128xf32, #tpu.memory_space<vmem>>
      %273 = tpu.memref_slice %arg13[%c0_i32_190] : memref<1x!tpu.dma_semaphore, #tpu.memory_space<semaphore_mem>> -> memref<1x!tpu.dma_semaphore, #tpu.memory_space<semaphore_mem>>
      %274 = tpu.memref_squeeze %273 : memref<1x!tpu.dma_semaphore, #tpu.memory_space<semaphore_mem>> -> memref<!tpu.dma_semaphore, #tpu.memory_space<semaphore_mem>>
      tpu.wait_dma2 semaphore(%274 : memref<!tpu.dma_semaphore, #tpu.memory_space<semaphore_mem>>) src(%270 : memref<128xf32, #tpu.memory_space<any>>) dst(%272 : memref<128xf32, #tpu.memory_space<vmem>>)
      %c44 = arith.constant 44 : index
      %275 = memref.load %arg3[%c44] : memref<64xi32, #tpu.memory_space<smem>>
      %c4_i32_193 = arith.constant 4 : i32
      %c5_i32_194 = arith.constant 5 : i32
      %c0_i32_195 = arith.constant 0 : i32
      %c0_i32_196 = arith.constant 0 : i32
      %276 = tpu.memref_slice %arg7[%275, %c0_i32_196] : memref<64x128xf32, #tpu.memory_space<any>> -> memref<1x128xf32, #tpu.memory_space<any>>
      %277 = tpu.memref_squeeze %276 : memref<1x128xf32, #tpu.memory_space<any>> -> memref<128xf32, #tpu.memory_space<any>>
      %c0_i32_197 = arith.constant 0 : i32
      %278 = tpu.memref_slice %arg12[%c4_i32_193, %c5_i32_194, %c0_i32_197] : memref<8x8x128xf32, #tpu.memory_space<vmem>> -> memref<1x1x128xf32, #tpu.memory_space<vmem>>
      %279 = tpu.memref_squeeze %278 : memref<1x1x128xf32, #tpu.memory_space<vmem>> -> memref<128xf32, #tpu.memory_space<vmem>>
      %280 = tpu.memref_slice %arg13[%c0_i32_195] : memref<1x!tpu.dma_semaphore, #tpu.memory_space<semaphore_mem>> -> memref<1x!tpu.dma_semaphore, #tpu.memory_space<semaphore_mem>>
      %281 = tpu.memref_squeeze %280 : memref<1x!tpu.dma_semaphore, #tpu.memory_space<semaphore_mem>> -> memref<!tpu.dma_semaphore, #tpu.memory_space<semaphore_mem>>
      tpu.wait_dma2 semaphore(%281 : memref<!tpu.dma_semaphore, #tpu.memory_space<semaphore_mem>>) src(%277 : memref<128xf32, #tpu.memory_space<any>>) dst(%279 : memref<128xf32, #tpu.memory_space<vmem>>)
      %c52 = arith.constant 52 : index
      %282 = memref.load %arg3[%c52] : memref<64xi32, #tpu.memory_space<smem>>
      %c4_i32_198 = arith.constant 4 : i32
      %c6_i32_199 = arith.constant 6 : i32
      %c0_i32_200 = arith.constant 0 : i32
      %c0_i32_201 = arith.constant 0 : i32
      %283 = tpu.memref_slice %arg7[%282, %c0_i32_201] : memref<64x128xf32, #tpu.memory_space<any>> -> memref<1x128xf32, #tpu.memory_space<any>>
      %284 = tpu.memref_squeeze %283 : memref<1x128xf32, #tpu.memory_space<any>> -> memref<128xf32, #tpu.memory_space<any>>
      %c0_i32_202 = arith.constant 0 : i32
      %285 = tpu.memref_slice %arg12[%c4_i32_198, %c6_i32_199, %c0_i32_202] : memref<8x8x128xf32, #tpu.memory_space<vmem>> -> memref<1x1x128xf32, #tpu.memory_space<vmem>>
      %286 = tpu.memref_squeeze %285 : memref<1x1x128xf32, #tpu.memory_space<vmem>> -> memref<128xf32, #tpu.memory_space<vmem>>
      %287 = tpu.memref_slice %arg13[%c0_i32_200] : memref<1x!tpu.dma_semaphore, #tpu.memory_space<semaphore_mem>> -> memref<1x!tpu.dma_semaphore, #tpu.memory_space<semaphore_mem>>
      %288 = tpu.memref_squeeze %287 : memref<1x!tpu.dma_semaphore, #tpu.memory_space<semaphore_mem>> -> memref<!tpu.dma_semaphore, #tpu.memory_space<semaphore_mem>>
      tpu.wait_dma2 semaphore(%288 : memref<!tpu.dma_semaphore, #tpu.memory_space<semaphore_mem>>) src(%284 : memref<128xf32, #tpu.memory_space<any>>) dst(%286 : memref<128xf32, #tpu.memory_space<vmem>>)
      %c60 = arith.constant 60 : index
      %289 = memref.load %arg3[%c60] : memref<64xi32, #tpu.memory_space<smem>>
      %c4_i32_203 = arith.constant 4 : i32
      %c7_i32_204 = arith.constant 7 : i32
      %c0_i32_205 = arith.constant 0 : i32
      %c0_i32_206 = arith.constant 0 : i32
      %290 = tpu.memref_slice %arg7[%289, %c0_i32_206] : memref<64x128xf32, #tpu.memory_space<any>> -> memref<1x128xf32, #tpu.memory_space<any>>
      %291 = tpu.memref_squeeze %290 : memref<1x128xf32, #tpu.memory_space<any>> -> memref<128xf32, #tpu.memory_space<any>>
      %c0_i32_207 = arith.constant 0 : i32
      %292 = tpu.memref_slice %arg12[%c4_i32_203, %c7_i32_204, %c0_i32_207] : memref<8x8x128xf32, #tpu.memory_space<vmem>> -> memref<1x1x128xf32, #tpu.memory_space<vmem>>
      %293 = tpu.memref_squeeze %292 : memref<1x1x128xf32, #tpu.memory_space<vmem>> -> memref<128xf32, #tpu.memory_space<vmem>>
      %294 = tpu.memref_slice %arg13[%c0_i32_205] : memref<1x!tpu.dma_semaphore, #tpu.memory_space<semaphore_mem>> -> memref<1x!tpu.dma_semaphore, #tpu.memory_space<semaphore_mem>>
      %295 = tpu.memref_squeeze %294 : memref<1x!tpu.dma_semaphore, #tpu.memory_space<semaphore_mem>> -> memref<!tpu.dma_semaphore, #tpu.memory_space<semaphore_mem>>
      tpu.wait_dma2 semaphore(%295 : memref<!tpu.dma_semaphore, #tpu.memory_space<semaphore_mem>>) src(%291 : memref<128xf32, #tpu.memory_space<any>>) dst(%293 : memref<128xf32, #tpu.memory_space<vmem>>)
      %c5 = arith.constant 5 : index
      %296 = memref.load %arg3[%c5] : memref<64xi32, #tpu.memory_space<smem>>
      %c5_i32_208 = arith.constant 5 : i32
      %c0_i32_209 = arith.constant 0 : i32
      %c0_i32_210 = arith.constant 0 : i32
      %c0_i32_211 = arith.constant 0 : i32
      %297 = tpu.memref_slice %arg7[%296, %c0_i32_211] : memref<64x128xf32, #tpu.memory_space<any>> -> memref<1x128xf32, #tpu.memory_space<any>>
      %298 = tpu.memref_squeeze %297 : memref<1x128xf32, #tpu.memory_space<any>> -> memref<128xf32, #tpu.memory_space<any>>
      %c0_i32_212 = arith.constant 0 : i32
      %299 = tpu.memref_slice %arg12[%c5_i32_208, %c0_i32_209, %c0_i32_212] : memref<8x8x128xf32, #tpu.memory_space<vmem>> -> memref<1x1x128xf32, #tpu.memory_space<vmem>>
      %300 = tpu.memref_squeeze %299 : memref<1x1x128xf32, #tpu.memory_space<vmem>> -> memref<128xf32, #tpu.memory_space<vmem>>
      %301 = tpu.memref_slice %arg13[%c0_i32_210] : memref<1x!tpu.dma_semaphore, #tpu.memory_space<semaphore_mem>> -> memref<1x!tpu.dma_semaphore, #tpu.memory_space<semaphore_mem>>
      %302 = tpu.memref_squeeze %301 : memref<1x!tpu.dma_semaphore, #tpu.memory_space<semaphore_mem>> -> memref<!tpu.dma_semaphore, #tpu.memory_space<semaphore_mem>>
      tpu.wait_dma2 semaphore(%302 : memref<!tpu.dma_semaphore, #tpu.memory_space<semaphore_mem>>) src(%298 : memref<128xf32, #tpu.memory_space<any>>) dst(%300 : memref<128xf32, #tpu.memory_space<vmem>>)
      %c13 = arith.constant 13 : index
      %303 = memref.load %arg3[%c13] : memref<64xi32, #tpu.memory_space<smem>>
      %c5_i32_213 = arith.constant 5 : i32
      %c1_i32_214 = arith.constant 1 : i32
      %c0_i32_215 = arith.constant 0 : i32
      %c0_i32_216 = arith.constant 0 : i32
      %304 = tpu.memref_slice %arg7[%303, %c0_i32_216] : memref<64x128xf32, #tpu.memory_space<any>> -> memref<1x128xf32, #tpu.memory_space<any>>
      %305 = tpu.memref_squeeze %304 : memref<1x128xf32, #tpu.memory_space<any>> -> memref<128xf32, #tpu.memory_space<any>>
      %c0_i32_217 = arith.constant 0 : i32
      %306 = tpu.memref_slice %arg12[%c5_i32_213, %c1_i32_214, %c0_i32_217] : memref<8x8x128xf32, #tpu.memory_space<vmem>> -> memref<1x1x128xf32, #tpu.memory_space<vmem>>
      %307 = tpu.memref_squeeze %306 : memref<1x1x128xf32, #tpu.memory_space<vmem>> -> memref<128xf32, #tpu.memory_space<vmem>>
      %308 = tpu.memref_slice %arg13[%c0_i32_215] : memref<1x!tpu.dma_semaphore, #tpu.memory_space<semaphore_mem>> -> memref<1x!tpu.dma_semaphore, #tpu.memory_space<semaphore_mem>>
      %309 = tpu.memref_squeeze %308 : memref<1x!tpu.dma_semaphore, #tpu.memory_space<semaphore_mem>> -> memref<!tpu.dma_semaphore, #tpu.memory_space<semaphore_mem>>
      tpu.wait_dma2 semaphore(%309 : memref<!tpu.dma_semaphore, #tpu.memory_space<semaphore_mem>>) src(%305 : memref<128xf32, #tpu.memory_space<any>>) dst(%307 : memref<128xf32, #tpu.memory_space<vmem>>)
      %c21 = arith.constant 21 : index
      %310 = memref.load %arg3[%c21] : memref<64xi32, #tpu.memory_space<smem>>
      %c5_i32_218 = arith.constant 5 : i32
      %c2_i32_219 = arith.constant 2 : i32
      %c0_i32_220 = arith.constant 0 : i32
      %c0_i32_221 = arith.constant 0 : i32
      %311 = tpu.memref_slice %arg7[%310, %c0_i32_221] : memref<64x128xf32, #tpu.memory_space<any>> -> memref<1x128xf32, #tpu.memory_space<any>>
      %312 = tpu.memref_squeeze %311 : memref<1x128xf32, #tpu.memory_space<any>> -> memref<128xf32, #tpu.memory_space<any>>
      %c0_i32_222 = arith.constant 0 : i32
      %313 = tpu.memref_slice %arg12[%c5_i32_218, %c2_i32_219, %c0_i32_222] : memref<8x8x128xf32, #tpu.memory_space<vmem>> -> memref<1x1x128xf32, #tpu.memory_space<vmem>>
      %314 = tpu.memref_squeeze %313 : memref<1x1x128xf32, #tpu.memory_space<vmem>> -> memref<128xf32, #tpu.memory_space<vmem>>
      %315 = tpu.memref_slice %arg13[%c0_i32_220] : memref<1x!tpu.dma_semaphore, #tpu.memory_space<semaphore_mem>> -> memref<1x!tpu.dma_semaphore, #tpu.memory_space<semaphore_mem>>
      %316 = tpu.memref_squeeze %315 : memref<1x!tpu.dma_semaphore, #tpu.memory_space<semaphore_mem>> -> memref<!tpu.dma_semaphore, #tpu.memory_space<semaphore_mem>>
      tpu.wait_dma2 semaphore(%316 : memref<!tpu.dma_semaphore, #tpu.memory_space<semaphore_mem>>) src(%312 : memref<128xf32, #tpu.memory_space<any>>) dst(%314 : memref<128xf32, #tpu.memory_space<vmem>>)
      %c29 = arith.constant 29 : index
      %317 = memref.load %arg3[%c29] : memref<64xi32, #tpu.memory_space<smem>>
      %c5_i32_223 = arith.constant 5 : i32
      %c3_i32_224 = arith.constant 3 : i32
      %c0_i32_225 = arith.constant 0 : i32
      %c0_i32_226 = arith.constant 0 : i32
      %318 = tpu.memref_slice %arg7[%317, %c0_i32_226] : memref<64x128xf32, #tpu.memory_space<any>> -> memref<1x128xf32, #tpu.memory_space<any>>
      %319 = tpu.memref_squeeze %318 : memref<1x128xf32, #tpu.memory_space<any>> -> memref<128xf32, #tpu.memory_space<any>>
      %c0_i32_227 = arith.constant 0 : i32
      %320 = tpu.memref_slice %arg12[%c5_i32_223, %c3_i32_224, %c0_i32_227] : memref<8x8x128xf32, #tpu.memory_space<vmem>> -> memref<1x1x128xf32, #tpu.memory_space<vmem>>
      %321 = tpu.memref_squeeze %320 : memref<1x1x128xf32, #tpu.memory_space<vmem>> -> memref<128xf32, #tpu.memory_space<vmem>>
      %322 = tpu.memref_slice %arg13[%c0_i32_225] : memref<1x!tpu.dma_semaphore, #tpu.memory_space<semaphore_mem>> -> memref<1x!tpu.dma_semaphore, #tpu.memory_space<semaphore_mem>>
      %323 = tpu.memref_squeeze %322 : memref<1x!tpu.dma_semaphore, #tpu.memory_space<semaphore_mem>> -> memref<!tpu.dma_semaphore, #tpu.memory_space<semaphore_mem>>
      tpu.wait_dma2 semaphore(%323 : memref<!tpu.dma_semaphore, #tpu.memory_space<semaphore_mem>>) src(%319 : memref<128xf32, #tpu.memory_space<any>>) dst(%321 : memref<128xf32, #tpu.memory_space<vmem>>)
      %c37 = arith.constant 37 : index
      %324 = memref.load %arg3[%c37] : memref<64xi32, #tpu.memory_space<smem>>
      %c5_i32_228 = arith.constant 5 : i32
      %c4_i32_229 = arith.constant 4 : i32
      %c0_i32_230 = arith.constant 0 : i32
      %c0_i32_231 = arith.constant 0 : i32
      %325 = tpu.memref_slice %arg7[%324, %c0_i32_231] : memref<64x128xf32, #tpu.memory_space<any>> -> memref<1x128xf32, #tpu.memory_space<any>>
      %326 = tpu.memref_squeeze %325 : memref<1x128xf32, #tpu.memory_space<any>> -> memref<128xf32, #tpu.memory_space<any>>
      %c0_i32_232 = arith.constant 0 : i32
      %327 = tpu.memref_slice %arg12[%c5_i32_228, %c4_i32_229, %c0_i32_232] : memref<8x8x128xf32, #tpu.memory_space<vmem>> -> memref<1x1x128xf32, #tpu.memory_space<vmem>>
      %328 = tpu.memref_squeeze %327 : memref<1x1x128xf32, #tpu.memory_space<vmem>> -> memref<128xf32, #tpu.memory_space<vmem>>
      %329 = tpu.memref_slice %arg13[%c0_i32_230] : memref<1x!tpu.dma_semaphore, #tpu.memory_space<semaphore_mem>> -> memref<1x!tpu.dma_semaphore, #tpu.memory_space<semaphore_mem>>
      %330 = tpu.memref_squeeze %329 : memref<1x!tpu.dma_semaphore, #tpu.memory_space<semaphore_mem>> -> memref<!tpu.dma_semaphore, #tpu.memory_space<semaphore_mem>>
      tpu.wait_dma2 semaphore(%330 : memref<!tpu.dma_semaphore, #tpu.memory_space<semaphore_mem>>) src(%326 : memref<128xf32, #tpu.memory_space<any>>) dst(%328 : memref<128xf32, #tpu.memory_space<vmem>>)
      %c45 = arith.constant 45 : index
      %331 = memref.load %arg3[%c45] : memref<64xi32, #tpu.memory_space<smem>>
      %c5_i32_233 = arith.constant 5 : i32
      %c5_i32_234 = arith.constant 5 : i32
      %c0_i32_235 = arith.constant 0 : i32
      %c0_i32_236 = arith.constant 0 : i32
      %332 = tpu.memref_slice %arg7[%331, %c0_i32_236] : memref<64x128xf32, #tpu.memory_space<any>> -> memref<1x128xf32, #tpu.memory_space<any>>
      %333 = tpu.memref_squeeze %332 : memref<1x128xf32, #tpu.memory_space<any>> -> memref<128xf32, #tpu.memory_space<any>>
      %c0_i32_237 = arith.constant 0 : i32
      %334 = tpu.memref_slice %arg12[%c5_i32_233, %c5_i32_234, %c0_i32_237] : memref<8x8x128xf32, #tpu.memory_space<vmem>> -> memref<1x1x128xf32, #tpu.memory_space<vmem>>
      %335 = tpu.memref_squeeze %334 : memref<1x1x128xf32, #tpu.memory_space<vmem>> -> memref<128xf32, #tpu.memory_space<vmem>>
      %336 = tpu.memref_slice %arg13[%c0_i32_235] : memref<1x!tpu.dma_semaphore, #tpu.memory_space<semaphore_mem>> -> memref<1x!tpu.dma_semaphore, #tpu.memory_space<semaphore_mem>>
      %337 = tpu.memref_squeeze %336 : memref<1x!tpu.dma_semaphore, #tpu.memory_space<semaphore_mem>> -> memref<!tpu.dma_semaphore, #tpu.memory_space<semaphore_mem>>
      tpu.wait_dma2 semaphore(%337 : memref<!tpu.dma_semaphore, #tpu.memory_space<semaphore_mem>>) src(%333 : memref<128xf32, #tpu.memory_space<any>>) dst(%335 : memref<128xf32, #tpu.memory_space<vmem>>)
      %c53 = arith.constant 53 : index
      %338 = memref.load %arg3[%c53] : memref<64xi32, #tpu.memory_space<smem>>
      %c5_i32_238 = arith.constant 5 : i32
      %c6_i32_239 = arith.constant 6 : i32
      %c0_i32_240 = arith.constant 0 : i32
      %c0_i32_241 = arith.constant 0 : i32
      %339 = tpu.memref_slice %arg7[%338, %c0_i32_241] : memref<64x128xf32, #tpu.memory_space<any>> -> memref<1x128xf32, #tpu.memory_space<any>>
      %340 = tpu.memref_squeeze %339 : memref<1x128xf32, #tpu.memory_space<any>> -> memref<128xf32, #tpu.memory_space<any>>
      %c0_i32_242 = arith.constant 0 : i32
      %341 = tpu.memref_slice %arg12[%c5_i32_238, %c6_i32_239, %c0_i32_242] : memref<8x8x128xf32, #tpu.memory_space<vmem>> -> memref<1x1x128xf32, #tpu.memory_space<vmem>>
      %342 = tpu.memref_squeeze %341 : memref<1x1x128xf32, #tpu.memory_space<vmem>> -> memref<128xf32, #tpu.memory_space<vmem>>
      %343 = tpu.memref_slice %arg13[%c0_i32_240] : memref<1x!tpu.dma_semaphore, #tpu.memory_space<semaphore_mem>> -> memref<1x!tpu.dma_semaphore, #tpu.memory_space<semaphore_mem>>
      %344 = tpu.memref_squeeze %343 : memref<1x!tpu.dma_semaphore, #tpu.memory_space<semaphore_mem>> -> memref<!tpu.dma_semaphore, #tpu.memory_space<semaphore_mem>>
      tpu.wait_dma2 semaphore(%344 : memref<!tpu.dma_semaphore, #tpu.memory_space<semaphore_mem>>) src(%340 : memref<128xf32, #tpu.memory_space<any>>) dst(%342 : memref<128xf32, #tpu.memory_space<vmem>>)
      %c61 = arith.constant 61 : index
      %345 = memref.load %arg3[%c61] : memref<64xi32, #tpu.memory_space<smem>>
      %c5_i32_243 = arith.constant 5 : i32
      %c7_i32_244 = arith.constant 7 : i32
      %c0_i32_245 = arith.constant 0 : i32
      %c0_i32_246 = arith.constant 0 : i32
      %346 = tpu.memref_slice %arg7[%345, %c0_i32_246] : memref<64x128xf32, #tpu.memory_space<any>> -> memref<1x128xf32, #tpu.memory_space<any>>
      %347 = tpu.memref_squeeze %346 : memref<1x128xf32, #tpu.memory_space<any>> -> memref<128xf32, #tpu.memory_space<any>>
      %c0_i32_247 = arith.constant 0 : i32
      %348 = tpu.memref_slice %arg12[%c5_i32_243, %c7_i32_244, %c0_i32_247] : memref<8x8x128xf32, #tpu.memory_space<vmem>> -> memref<1x1x128xf32, #tpu.memory_space<vmem>>
      %349 = tpu.memref_squeeze %348 : memref<1x1x128xf32, #tpu.memory_space<vmem>> -> memref<128xf32, #tpu.memory_space<vmem>>
      %350 = tpu.memref_slice %arg13[%c0_i32_245] : memref<1x!tpu.dma_semaphore, #tpu.memory_space<semaphore_mem>> -> memref<1x!tpu.dma_semaphore, #tpu.memory_space<semaphore_mem>>
      %351 = tpu.memref_squeeze %350 : memref<1x!tpu.dma_semaphore, #tpu.memory_space<semaphore_mem>> -> memref<!tpu.dma_semaphore, #tpu.memory_space<semaphore_mem>>
      tpu.wait_dma2 semaphore(%351 : memref<!tpu.dma_semaphore, #tpu.memory_space<semaphore_mem>>) src(%347 : memref<128xf32, #tpu.memory_space<any>>) dst(%349 : memref<128xf32, #tpu.memory_space<vmem>>)
      %c6 = arith.constant 6 : index
      %352 = memref.load %arg3[%c6] : memref<64xi32, #tpu.memory_space<smem>>
      %c6_i32_248 = arith.constant 6 : i32
      %c0_i32_249 = arith.constant 0 : i32
      %c0_i32_250 = arith.constant 0 : i32
      %c0_i32_251 = arith.constant 0 : i32
      %353 = tpu.memref_slice %arg7[%352, %c0_i32_251] : memref<64x128xf32, #tpu.memory_space<any>> -> memref<1x128xf32, #tpu.memory_space<any>>
      %354 = tpu.memref_squeeze %353 : memref<1x128xf32, #tpu.memory_space<any>> -> memref<128xf32, #tpu.memory_space<any>>
      %c0_i32_252 = arith.constant 0 : i32
      %355 = tpu.memref_slice %arg12[%c6_i32_248, %c0_i32_249, %c0_i32_252] : memref<8x8x128xf32, #tpu.memory_space<vmem>> -> memref<1x1x128xf32, #tpu.memory_space<vmem>>
      %356 = tpu.memref_squeeze %355 : memref<1x1x128xf32, #tpu.memory_space<vmem>> -> memref<128xf32, #tpu.memory_space<vmem>>
      %357 = tpu.memref_slice %arg13[%c0_i32_250] : memref<1x!tpu.dma_semaphore, #tpu.memory_space<semaphore_mem>> -> memref<1x!tpu.dma_semaphore, #tpu.memory_space<semaphore_mem>>
      %358 = tpu.memref_squeeze %357 : memref<1x!tpu.dma_semaphore, #tpu.memory_space<semaphore_mem>> -> memref<!tpu.dma_semaphore, #tpu.memory_space<semaphore_mem>>
      tpu.wait_dma2 semaphore(%358 : memref<!tpu.dma_semaphore, #tpu.memory_space<semaphore_mem>>) src(%354 : memref<128xf32, #tpu.memory_space<any>>) dst(%356 : memref<128xf32, #tpu.memory_space<vmem>>)
      %c14 = arith.constant 14 : index
      %359 = memref.load %arg3[%c14] : memref<64xi32, #tpu.memory_space<smem>>
      %c6_i32_253 = arith.constant 6 : i32
      %c1_i32_254 = arith.constant 1 : i32
      %c0_i32_255 = arith.constant 0 : i32
      %c0_i32_256 = arith.constant 0 : i32
      %360 = tpu.memref_slice %arg7[%359, %c0_i32_256] : memref<64x128xf32, #tpu.memory_space<any>> -> memref<1x128xf32, #tpu.memory_space<any>>
      %361 = tpu.memref_squeeze %360 : memref<1x128xf32, #tpu.memory_space<any>> -> memref<128xf32, #tpu.memory_space<any>>
      %c0_i32_257 = arith.constant 0 : i32
      %362 = tpu.memref_slice %arg12[%c6_i32_253, %c1_i32_254, %c0_i32_257] : memref<8x8x128xf32, #tpu.memory_space<vmem>> -> memref<1x1x128xf32, #tpu.memory_space<vmem>>
      %363 = tpu.memref_squeeze %362 : memref<1x1x128xf32, #tpu.memory_space<vmem>> -> memref<128xf32, #tpu.memory_space<vmem>>
      %364 = tpu.memref_slice %arg13[%c0_i32_255] : memref<1x!tpu.dma_semaphore, #tpu.memory_space<semaphore_mem>> -> memref<1x!tpu.dma_semaphore, #tpu.memory_space<semaphore_mem>>
      %365 = tpu.memref_squeeze %364 : memref<1x!tpu.dma_semaphore, #tpu.memory_space<semaphore_mem>> -> memref<!tpu.dma_semaphore, #tpu.memory_space<semaphore_mem>>
      tpu.wait_dma2 semaphore(%365 : memref<!tpu.dma_semaphore, #tpu.memory_space<semaphore_mem>>) src(%361 : memref<128xf32, #tpu.memory_space<any>>) dst(%363 : memref<128xf32, #tpu.memory_space<vmem>>)
      %c22 = arith.constant 22 : index
      %366 = memref.load %arg3[%c22] : memref<64xi32, #tpu.memory_space<smem>>
      %c6_i32_258 = arith.constant 6 : i32
      %c2_i32_259 = arith.constant 2 : i32
      %c0_i32_260 = arith.constant 0 : i32
      %c0_i32_261 = arith.constant 0 : i32
      %367 = tpu.memref_slice %arg7[%366, %c0_i32_261] : memref<64x128xf32, #tpu.memory_space<any>> -> memref<1x128xf32, #tpu.memory_space<any>>
      %368 = tpu.memref_squeeze %367 : memref<1x128xf32, #tpu.memory_space<any>> -> memref<128xf32, #tpu.memory_space<any>>
      %c0_i32_262 = arith.constant 0 : i32
      %369 = tpu.memref_slice %arg12[%c6_i32_258, %c2_i32_259, %c0_i32_262] : memref<8x8x128xf32, #tpu.memory_space<vmem>> -> memref<1x1x128xf32, #tpu.memory_space<vmem>>
      %370 = tpu.memref_squeeze %369 : memref<1x1x128xf32, #tpu.memory_space<vmem>> -> memref<128xf32, #tpu.memory_space<vmem>>
      %371 = tpu.memref_slice %arg13[%c0_i32_260] : memref<1x!tpu.dma_semaphore, #tpu.memory_space<semaphore_mem>> -> memref<1x!tpu.dma_semaphore, #tpu.memory_space<semaphore_mem>>
      %372 = tpu.memref_squeeze %371 : memref<1x!tpu.dma_semaphore, #tpu.memory_space<semaphore_mem>> -> memref<!tpu.dma_semaphore, #tpu.memory_space<semaphore_mem>>
      tpu.wait_dma2 semaphore(%372 : memref<!tpu.dma_semaphore, #tpu.memory_space<semaphore_mem>>) src(%368 : memref<128xf32, #tpu.memory_space<any>>) dst(%370 : memref<128xf32, #tpu.memory_space<vmem>>)
      %c30 = arith.constant 30 : index
      %373 = memref.load %arg3[%c30] : memref<64xi32, #tpu.memory_space<smem>>
      %c6_i32_263 = arith.constant 6 : i32
      %c3_i32_264 = arith.constant 3 : i32
      %c0_i32_265 = arith.constant 0 : i32
      %c0_i32_266 = arith.constant 0 : i32
      %374 = tpu.memref_slice %arg7[%373, %c0_i32_266] : memref<64x128xf32, #tpu.memory_space<any>> -> memref<1x128xf32, #tpu.memory_space<any>>
      %375 = tpu.memref_squeeze %374 : memref<1x128xf32, #tpu.memory_space<any>> -> memref<128xf32, #tpu.memory_space<any>>
      %c0_i32_267 = arith.constant 0 : i32
      %376 = tpu.memref_slice %arg12[%c6_i32_263, %c3_i32_264, %c0_i32_267] : memref<8x8x128xf32, #tpu.memory_space<vmem>> -> memref<1x1x128xf32, #tpu.memory_space<vmem>>
      %377 = tpu.memref_squeeze %376 : memref<1x1x128xf32, #tpu.memory_space<vmem>> -> memref<128xf32, #tpu.memory_space<vmem>>
      %378 = tpu.memref_slice %arg13[%c0_i32_265] : memref<1x!tpu.dma_semaphore, #tpu.memory_space<semaphore_mem>> -> memref<1x!tpu.dma_semaphore, #tpu.memory_space<semaphore_mem>>
      %379 = tpu.memref_squeeze %378 : memref<1x!tpu.dma_semaphore, #tpu.memory_space<semaphore_mem>> -> memref<!tpu.dma_semaphore, #tpu.memory_space<semaphore_mem>>
      tpu.wait_dma2 semaphore(%379 : memref<!tpu.dma_semaphore, #tpu.memory_space<semaphore_mem>>) src(%375 : memref<128xf32, #tpu.memory_space<any>>) dst(%377 : memref<128xf32, #tpu.memory_space<vmem>>)
      %c38 = arith.constant 38 : index
      %380 = memref.load %arg3[%c38] : memref<64xi32, #tpu.memory_space<smem>>
      %c6_i32_268 = arith.constant 6 : i32
      %c4_i32_269 = arith.constant 4 : i32
      %c0_i32_270 = arith.constant 0 : i32
      %c0_i32_271 = arith.constant 0 : i32
      %381 = tpu.memref_slice %arg7[%380, %c0_i32_271] : memref<64x128xf32, #tpu.memory_space<any>> -> memref<1x128xf32, #tpu.memory_space<any>>
      %382 = tpu.memref_squeeze %381 : memref<1x128xf32, #tpu.memory_space<any>> -> memref<128xf32, #tpu.memory_space<any>>
      %c0_i32_272 = arith.constant 0 : i32
      %383 = tpu.memref_slice %arg12[%c6_i32_268, %c4_i32_269, %c0_i32_272] : memref<8x8x128xf32, #tpu.memory_space<vmem>> -> memref<1x1x128xf32, #tpu.memory_space<vmem>>
      %384 = tpu.memref_squeeze %383 : memref<1x1x128xf32, #tpu.memory_space<vmem>> -> memref<128xf32, #tpu.memory_space<vmem>>
      %385 = tpu.memref_slice %arg13[%c0_i32_270] : memref<1x!tpu.dma_semaphore, #tpu.memory_space<semaphore_mem>> -> memref<1x!tpu.dma_semaphore, #tpu.memory_space<semaphore_mem>>
      %386 = tpu.memref_squeeze %385 : memref<1x!tpu.dma_semaphore, #tpu.memory_space<semaphore_mem>> -> memref<!tpu.dma_semaphore, #tpu.memory_space<semaphore_mem>>
      tpu.wait_dma2 semaphore(%386 : memref<!tpu.dma_semaphore, #tpu.memory_space<semaphore_mem>>) src(%382 : memref<128xf32, #tpu.memory_space<any>>) dst(%384 : memref<128xf32, #tpu.memory_space<vmem>>)
      %c46 = arith.constant 46 : index
      %387 = memref.load %arg3[%c46] : memref<64xi32, #tpu.memory_space<smem>>
      %c6_i32_273 = arith.constant 6 : i32
      %c5_i32_274 = arith.constant 5 : i32
      %c0_i32_275 = arith.constant 0 : i32
      %c0_i32_276 = arith.constant 0 : i32
      %388 = tpu.memref_slice %arg7[%387, %c0_i32_276] : memref<64x128xf32, #tpu.memory_space<any>> -> memref<1x128xf32, #tpu.memory_space<any>>
      %389 = tpu.memref_squeeze %388 : memref<1x128xf32, #tpu.memory_space<any>> -> memref<128xf32, #tpu.memory_space<any>>
      %c0_i32_277 = arith.constant 0 : i32
      %390 = tpu.memref_slice %arg12[%c6_i32_273, %c5_i32_274, %c0_i32_277] : memref<8x8x128xf32, #tpu.memory_space<vmem>> -> memref<1x1x128xf32, #tpu.memory_space<vmem>>
      %391 = tpu.memref_squeeze %390 : memref<1x1x128xf32, #tpu.memory_space<vmem>> -> memref<128xf32, #tpu.memory_space<vmem>>
      %392 = tpu.memref_slice %arg13[%c0_i32_275] : memref<1x!tpu.dma_semaphore, #tpu.memory_space<semaphore_mem>> -> memref<1x!tpu.dma_semaphore, #tpu.memory_space<semaphore_mem>>
      %393 = tpu.memref_squeeze %392 : memref<1x!tpu.dma_semaphore, #tpu.memory_space<semaphore_mem>> -> memref<!tpu.dma_semaphore, #tpu.memory_space<semaphore_mem>>
      tpu.wait_dma2 semaphore(%393 : memref<!tpu.dma_semaphore, #tpu.memory_space<semaphore_mem>>) src(%389 : memref<128xf32, #tpu.memory_space<any>>) dst(%391 : memref<128xf32, #tpu.memory_space<vmem>>)
      %c54 = arith.constant 54 : index
      %394 = memref.load %arg3[%c54] : memref<64xi32, #tpu.memory_space<smem>>
      %c6_i32_278 = arith.constant 6 : i32
      %c6_i32_279 = arith.constant 6 : i32
      %c0_i32_280 = arith.constant 0 : i32
      %c0_i32_281 = arith.constant 0 : i32
      %395 = tpu.memref_slice %arg7[%394, %c0_i32_281] : memref<64x128xf32, #tpu.memory_space<any>> -> memref<1x128xf32, #tpu.memory_space<any>>
      %396 = tpu.memref_squeeze %395 : memref<1x128xf32, #tpu.memory_space<any>> -> memref<128xf32, #tpu.memory_space<any>>
      %c0_i32_282 = arith.constant 0 : i32
      %397 = tpu.memref_slice %arg12[%c6_i32_278, %c6_i32_279, %c0_i32_282] : memref<8x8x128xf32, #tpu.memory_space<vmem>> -> memref<1x1x128xf32, #tpu.memory_space<vmem>>
      %398 = tpu.memref_squeeze %397 : memref<1x1x128xf32, #tpu.memory_space<vmem>> -> memref<128xf32, #tpu.memory_space<vmem>>
      %399 = tpu.memref_slice %arg13[%c0_i32_280] : memref<1x!tpu.dma_semaphore, #tpu.memory_space<semaphore_mem>> -> memref<1x!tpu.dma_semaphore, #tpu.memory_space<semaphore_mem>>
      %400 = tpu.memref_squeeze %399 : memref<1x!tpu.dma_semaphore, #tpu.memory_space<semaphore_mem>> -> memref<!tpu.dma_semaphore, #tpu.memory_space<semaphore_mem>>
      tpu.wait_dma2 semaphore(%400 : memref<!tpu.dma_semaphore, #tpu.memory_space<semaphore_mem>>) src(%396 : memref<128xf32, #tpu.memory_space<any>>) dst(%398 : memref<128xf32, #tpu.memory_space<vmem>>)
      %c62 = arith.constant 62 : index
      %401 = memref.load %arg3[%c62] : memref<64xi32, #tpu.memory_space<smem>>
      %c6_i32_283 = arith.constant 6 : i32
      %c7_i32_284 = arith.constant 7 : i32
      %c0_i32_285 = arith.constant 0 : i32
      %c0_i32_286 = arith.constant 0 : i32
      %402 = tpu.memref_slice %arg7[%401, %c0_i32_286] : memref<64x128xf32, #tpu.memory_space<any>> -> memref<1x128xf32, #tpu.memory_space<any>>
      %403 = tpu.memref_squeeze %402 : memref<1x128xf32, #tpu.memory_space<any>> -> memref<128xf32, #tpu.memory_space<any>>
      %c0_i32_287 = arith.constant 0 : i32
      %404 = tpu.memref_slice %arg12[%c6_i32_283, %c7_i32_284, %c0_i32_287] : memref<8x8x128xf32, #tpu.memory_space<vmem>> -> memref<1x1x128xf32, #tpu.memory_space<vmem>>
      %405 = tpu.memref_squeeze %404 : memref<1x1x128xf32, #tpu.memory_space<vmem>> -> memref<128xf32, #tpu.memory_space<vmem>>
      %406 = tpu.memref_slice %arg13[%c0_i32_285] : memref<1x!tpu.dma_semaphore, #tpu.memory_space<semaphore_mem>> -> memref<1x!tpu.dma_semaphore, #tpu.memory_space<semaphore_mem>>
      %407 = tpu.memref_squeeze %406 : memref<1x!tpu.dma_semaphore, #tpu.memory_space<semaphore_mem>> -> memref<!tpu.dma_semaphore, #tpu.memory_space<semaphore_mem>>
      tpu.wait_dma2 semaphore(%407 : memref<!tpu.dma_semaphore, #tpu.memory_space<semaphore_mem>>) src(%403 : memref<128xf32, #tpu.memory_space<any>>) dst(%405 : memref<128xf32, #tpu.memory_space<vmem>>)
      %c7 = arith.constant 7 : index
      %408 = memref.load %arg3[%c7] : memref<64xi32, #tpu.memory_space<smem>>
      %c7_i32_288 = arith.constant 7 : i32
      %c0_i32_289 = arith.constant 0 : i32
      %c0_i32_290 = arith.constant 0 : i32
      %c0_i32_291 = arith.constant 0 : i32
      %409 = tpu.memref_slice %arg7[%408, %c0_i32_291] : memref<64x128xf32, #tpu.memory_space<any>> -> memref<1x128xf32, #tpu.memory_space<any>>
      %410 = tpu.memref_squeeze %409 : memref<1x128xf32, #tpu.memory_space<any>> -> memref<128xf32, #tpu.memory_space<any>>
      %c0_i32_292 = arith.constant 0 : i32
      %411 = tpu.memref_slice %arg12[%c7_i32_288, %c0_i32_289, %c0_i32_292] : memref<8x8x128xf32, #tpu.memory_space<vmem>> -> memref<1x1x128xf32, #tpu.memory_space<vmem>>
      %412 = tpu.memref_squeeze %411 : memref<1x1x128xf32, #tpu.memory_space<vmem>> -> memref<128xf32, #tpu.memory_space<vmem>>
      %413 = tpu.memref_slice %arg13[%c0_i32_290] : memref<1x!tpu.dma_semaphore, #tpu.memory_space<semaphore_mem>> -> memref<1x!tpu.dma_semaphore, #tpu.memory_space<semaphore_mem>>
      %414 = tpu.memref_squeeze %413 : memref<1x!tpu.dma_semaphore, #tpu.memory_space<semaphore_mem>> -> memref<!tpu.dma_semaphore, #tpu.memory_space<semaphore_mem>>
      tpu.wait_dma2 semaphore(%414 : memref<!tpu.dma_semaphore, #tpu.memory_space<semaphore_mem>>) src(%410 : memref<128xf32, #tpu.memory_space<any>>) dst(%412 : memref<128xf32, #tpu.memory_space<vmem>>)
      %c15 = arith.constant 15 : index
      %415 = memref.load %arg3[%c15] : memref<64xi32, #tpu.memory_space<smem>>
      %c7_i32_293 = arith.constant 7 : i32
      %c1_i32_294 = arith.constant 1 : i32
      %c0_i32_295 = arith.constant 0 : i32
      %c0_i32_296 = arith.constant 0 : i32
      %416 = tpu.memref_slice %arg7[%415, %c0_i32_296] : memref<64x128xf32, #tpu.memory_space<any>> -> memref<1x128xf32, #tpu.memory_space<any>>
      %417 = tpu.memref_squeeze %416 : memref<1x128xf32, #tpu.memory_space<any>> -> memref<128xf32, #tpu.memory_space<any>>
      %c0_i32_297 = arith.constant 0 : i32
      %418 = tpu.memref_slice %arg12[%c7_i32_293, %c1_i32_294, %c0_i32_297] : memref<8x8x128xf32, #tpu.memory_space<vmem>> -> memref<1x1x128xf32, #tpu.memory_space<vmem>>
      %419 = tpu.memref_squeeze %418 : memref<1x1x128xf32, #tpu.memory_space<vmem>> -> memref<128xf32, #tpu.memory_space<vmem>>
      %420 = tpu.memref_slice %arg13[%c0_i32_295] : memref<1x!tpu.dma_semaphore, #tpu.memory_space<semaphore_mem>> -> memref<1x!tpu.dma_semaphore, #tpu.memory_space<semaphore_mem>>
      %421 = tpu.memref_squeeze %420 : memref<1x!tpu.dma_semaphore, #tpu.memory_space<semaphore_mem>> -> memref<!tpu.dma_semaphore, #tpu.memory_space<semaphore_mem>>
      tpu.wait_dma2 semaphore(%421 : memref<!tpu.dma_semaphore, #tpu.memory_space<semaphore_mem>>) src(%417 : memref<128xf32, #tpu.memory_space<any>>) dst(%419 : memref<128xf32, #tpu.memory_space<vmem>>)
      %c23 = arith.constant 23 : index
      %422 = memref.load %arg3[%c23] : memref<64xi32, #tpu.memory_space<smem>>
      %c7_i32_298 = arith.constant 7 : i32
      %c2_i32_299 = arith.constant 2 : i32
      %c0_i32_300 = arith.constant 0 : i32
      %c0_i32_301 = arith.constant 0 : i32
      %423 = tpu.memref_slice %arg7[%422, %c0_i32_301] : memref<64x128xf32, #tpu.memory_space<any>> -> memref<1x128xf32, #tpu.memory_space<any>>
      %424 = tpu.memref_squeeze %423 : memref<1x128xf32, #tpu.memory_space<any>> -> memref<128xf32, #tpu.memory_space<any>>
      %c0_i32_302 = arith.constant 0 : i32
      %425 = tpu.memref_slice %arg12[%c7_i32_298, %c2_i32_299, %c0_i32_302] : memref<8x8x128xf32, #tpu.memory_space<vmem>> -> memref<1x1x128xf32, #tpu.memory_space<vmem>>
      %426 = tpu.memref_squeeze %425 : memref<1x1x128xf32, #tpu.memory_space<vmem>> -> memref<128xf32, #tpu.memory_space<vmem>>
      %427 = tpu.memref_slice %arg13[%c0_i32_300] : memref<1x!tpu.dma_semaphore, #tpu.memory_space<semaphore_mem>> -> memref<1x!tpu.dma_semaphore, #tpu.memory_space<semaphore_mem>>
      %428 = tpu.memref_squeeze %427 : memref<1x!tpu.dma_semaphore, #tpu.memory_space<semaphore_mem>> -> memref<!tpu.dma_semaphore, #tpu.memory_space<semaphore_mem>>
      tpu.wait_dma2 semaphore(%428 : memref<!tpu.dma_semaphore, #tpu.memory_space<semaphore_mem>>) src(%424 : memref<128xf32, #tpu.memory_space<any>>) dst(%426 : memref<128xf32, #tpu.memory_space<vmem>>)
      %c31 = arith.constant 31 : index
      %429 = memref.load %arg3[%c31] : memref<64xi32, #tpu.memory_space<smem>>
      %c7_i32_303 = arith.constant 7 : i32
      %c3_i32_304 = arith.constant 3 : i32
      %c0_i32_305 = arith.constant 0 : i32
      %c0_i32_306 = arith.constant 0 : i32
      %430 = tpu.memref_slice %arg7[%429, %c0_i32_306] : memref<64x128xf32, #tpu.memory_space<any>> -> memref<1x128xf32, #tpu.memory_space<any>>
      %431 = tpu.memref_squeeze %430 : memref<1x128xf32, #tpu.memory_space<any>> -> memref<128xf32, #tpu.memory_space<any>>
      %c0_i32_307 = arith.constant 0 : i32
      %432 = tpu.memref_slice %arg12[%c7_i32_303, %c3_i32_304, %c0_i32_307] : memref<8x8x128xf32, #tpu.memory_space<vmem>> -> memref<1x1x128xf32, #tpu.memory_space<vmem>>
      %433 = tpu.memref_squeeze %432 : memref<1x1x128xf32, #tpu.memory_space<vmem>> -> memref<128xf32, #tpu.memory_space<vmem>>
      %434 = tpu.memref_slice %arg13[%c0_i32_305] : memref<1x!tpu.dma_semaphore, #tpu.memory_space<semaphore_mem>> -> memref<1x!tpu.dma_semaphore, #tpu.memory_space<semaphore_mem>>
      %435 = tpu.memref_squeeze %434 : memref<1x!tpu.dma_semaphore, #tpu.memory_space<semaphore_mem>> -> memref<!tpu.dma_semaphore, #tpu.memory_space<semaphore_mem>>
      tpu.wait_dma2 semaphore(%435 : memref<!tpu.dma_semaphore, #tpu.memory_space<semaphore_mem>>) src(%431 : memref<128xf32, #tpu.memory_space<any>>) dst(%433 : memref<128xf32, #tpu.memory_space<vmem>>)
      %c39 = arith.constant 39 : index
      %436 = memref.load %arg3[%c39] : memref<64xi32, #tpu.memory_space<smem>>
      %c7_i32_308 = arith.constant 7 : i32
      %c4_i32_309 = arith.constant 4 : i32
      %c0_i32_310 = arith.constant 0 : i32
      %c0_i32_311 = arith.constant 0 : i32
      %437 = tpu.memref_slice %arg7[%436, %c0_i32_311] : memref<64x128xf32, #tpu.memory_space<any>> -> memref<1x128xf32, #tpu.memory_space<any>>
      %438 = tpu.memref_squeeze %437 : memref<1x128xf32, #tpu.memory_space<any>> -> memref<128xf32, #tpu.memory_space<any>>
      %c0_i32_312 = arith.constant 0 : i32
      %439 = tpu.memref_slice %arg12[%c7_i32_308, %c4_i32_309, %c0_i32_312] : memref<8x8x128xf32, #tpu.memory_space<vmem>> -> memref<1x1x128xf32, #tpu.memory_space<vmem>>
      %440 = tpu.memref_squeeze %439 : memref<1x1x128xf32, #tpu.memory_space<vmem>> -> memref<128xf32, #tpu.memory_space<vmem>>
      %441 = tpu.memref_slice %arg13[%c0_i32_310] : memref<1x!tpu.dma_semaphore, #tpu.memory_space<semaphore_mem>> -> memref<1x!tpu.dma_semaphore, #tpu.memory_space<semaphore_mem>>
      %442 = tpu.memref_squeeze %441 : memref<1x!tpu.dma_semaphore, #tpu.memory_space<semaphore_mem>> -> memref<!tpu.dma_semaphore, #tpu.memory_space<semaphore_mem>>
      tpu.wait_dma2 semaphore(%442 : memref<!tpu.dma_semaphore, #tpu.memory_space<semaphore_mem>>) src(%438 : memref<128xf32, #tpu.memory_space<any>>) dst(%440 : memref<128xf32, #tpu.memory_space<vmem>>)
      %c47 = arith.constant 47 : index
      %443 = memref.load %arg3[%c47] : memref<64xi32, #tpu.memory_space<smem>>
      %c7_i32_313 = arith.constant 7 : i32
      %c5_i32_314 = arith.constant 5 : i32
      %c0_i32_315 = arith.constant 0 : i32
      %c0_i32_316 = arith.constant 0 : i32
      %444 = tpu.memref_slice %arg7[%443, %c0_i32_316] : memref<64x128xf32, #tpu.memory_space<any>> -> memref<1x128xf32, #tpu.memory_space<any>>
      %445 = tpu.memref_squeeze %444 : memref<1x128xf32, #tpu.memory_space<any>> -> memref<128xf32, #tpu.memory_space<any>>
      %c0_i32_317 = arith.constant 0 : i32
      %446 = tpu.memref_slice %arg12[%c7_i32_313, %c5_i32_314, %c0_i32_317] : memref<8x8x128xf32, #tpu.memory_space<vmem>> -> memref<1x1x128xf32, #tpu.memory_space<vmem>>
      %447 = tpu.memref_squeeze %446 : memref<1x1x128xf32, #tpu.memory_space<vmem>> -> memref<128xf32, #tpu.memory_space<vmem>>
      %448 = tpu.memref_slice %arg13[%c0_i32_315] : memref<1x!tpu.dma_semaphore, #tpu.memory_space<semaphore_mem>> -> memref<1x!tpu.dma_semaphore, #tpu.memory_space<semaphore_mem>>
      %449 = tpu.memref_squeeze %448 : memref<1x!tpu.dma_semaphore, #tpu.memory_space<semaphore_mem>> -> memref<!tpu.dma_semaphore, #tpu.memory_space<semaphore_mem>>
      tpu.wait_dma2 semaphore(%449 : memref<!tpu.dma_semaphore, #tpu.memory_space<semaphore_mem>>) src(%445 : memref<128xf32, #tpu.memory_space<any>>) dst(%447 : memref<128xf32, #tpu.memory_space<vmem>>)
      %c55 = arith.constant 55 : index
      %450 = memref.load %arg3[%c55] : memref<64xi32, #tpu.memory_space<smem>>
      %c7_i32_318 = arith.constant 7 : i32
      %c6_i32_319 = arith.constant 6 : i32
      %c0_i32_320 = arith.constant 0 : i32
      %c0_i32_321 = arith.constant 0 : i32
      %451 = tpu.memref_slice %arg7[%450, %c0_i32_321] : memref<64x128xf32, #tpu.memory_space<any>> -> memref<1x128xf32, #tpu.memory_space<any>>
      %452 = tpu.memref_squeeze %451 : memref<1x128xf32, #tpu.memory_space<any>> -> memref<128xf32, #tpu.memory_space<any>>
      %c0_i32_322 = arith.constant 0 : i32
      %453 = tpu.memref_slice %arg12[%c7_i32_318, %c6_i32_319, %c0_i32_322] : memref<8x8x128xf32, #tpu.memory_space<vmem>> -> memref<1x1x128xf32, #tpu.memory_space<vmem>>
      %454 = tpu.memref_squeeze %453 : memref<1x1x128xf32, #tpu.memory_space<vmem>> -> memref<128xf32, #tpu.memory_space<vmem>>
      %455 = tpu.memref_slice %arg13[%c0_i32_320] : memref<1x!tpu.dma_semaphore, #tpu.memory_space<semaphore_mem>> -> memref<1x!tpu.dma_semaphore, #tpu.memory_space<semaphore_mem>>
      %456 = tpu.memref_squeeze %455 : memref<1x!tpu.dma_semaphore, #tpu.memory_space<semaphore_mem>> -> memref<!tpu.dma_semaphore, #tpu.memory_space<semaphore_mem>>
      tpu.wait_dma2 semaphore(%456 : memref<!tpu.dma_semaphore, #tpu.memory_space<semaphore_mem>>) src(%452 : memref<128xf32, #tpu.memory_space<any>>) dst(%454 : memref<128xf32, #tpu.memory_space<vmem>>)
      %c63 = arith.constant 63 : index
      %457 = memref.load %arg3[%c63] : memref<64xi32, #tpu.memory_space<smem>>
      %c7_i32_323 = arith.constant 7 : i32
      %c7_i32_324 = arith.constant 7 : i32
      %c0_i32_325 = arith.constant 0 : i32
      %c0_i32_326 = arith.constant 0 : i32
      %458 = tpu.memref_slice %arg7[%457, %c0_i32_326] : memref<64x128xf32, #tpu.memory_space<any>> -> memref<1x128xf32, #tpu.memory_space<any>>
      %459 = tpu.memref_squeeze %458 : memref<1x128xf32, #tpu.memory_space<any>> -> memref<128xf32, #tpu.memory_space<any>>
      %c0_i32_327 = arith.constant 0 : i32
      %460 = tpu.memref_slice %arg12[%c7_i32_323, %c7_i32_324, %c0_i32_327] : memref<8x8x128xf32, #tpu.memory_space<vmem>> -> memref<1x1x128xf32, #tpu.memory_space<vmem>>
      %461 = tpu.memref_squeeze %460 : memref<1x1x128xf32, #tpu.memory_space<vmem>> -> memref<128xf32, #tpu.memory_space<vmem>>
      %462 = tpu.memref_slice %arg13[%c0_i32_325] : memref<1x!tpu.dma_semaphore, #tpu.memory_space<semaphore_mem>> -> memref<1x!tpu.dma_semaphore, #tpu.memory_space<semaphore_mem>>
      %463 = tpu.memref_squeeze %462 : memref<1x!tpu.dma_semaphore, #tpu.memory_space<semaphore_mem>> -> memref<!tpu.dma_semaphore, #tpu.memory_space<semaphore_mem>>
      tpu.wait_dma2 semaphore(%463 : memref<!tpu.dma_semaphore, #tpu.memory_space<semaphore_mem>>) src(%459 : memref<128xf32, #tpu.memory_space<any>>) dst(%461 : memref<128xf32, #tpu.memory_space<vmem>>)
      %c0_328 = arith.constant 0 : index
      %c0_329 = arith.constant 0 : index
      %c0_330 = arith.constant 0 : index
      %464 = vector.load %arg12[%c0_328, %c0_329, %c0_330] : memref<8x8x128xf32, #tpu.memory_space<vmem>>, vector<8x8x128xf32>
      %cst_331 = arith.constant dense<0.000000e+00> : vector<8x128xf32>
      %465 = vector.multi_reduction <add>, %464, %cst_331 [0] : vector<8x8x128xf32> to vector<8x128xf32>
      %cst_332 = arith.constant 1.250000e-01 : f32
      %466 = vector.broadcast %cst_332 : f32 to vector<8x128xf32>
      %467 = arith.mulf %465, %466 : vector<8x128xf32>
      %468 = arith.truncf %467 : vector<8x128xf32> to vector<8x128xbf16>
      %c0_333 = arith.constant 0 : index
      %c0_334 = arith.constant 0 : index
      %469 = vector.load %arg8[%c0_333, %c0_334] : memref<128x128xbf16, #tpu.memory_space<vmem>>, vector<128x128xbf16>
      %cst_335 = arith.constant dense<0.000000e+00> : vector<8x128xf32>
      %470 = tpu.matmul %468, %469, %cst_335 {dimension_numbers = #tpu.dot_dimension_numbers<[1], [0], [0], [1], [0, 0, 1, 1], [], []>} : vector<8x128xbf16>, vector<128x128xbf16>, vector<8x128xf32> -> vector<8x128xf32>
      %c0_336 = arith.constant 0 : index
      %c0_337 = arith.constant 0 : index
      %471 = vector.load %arg9[%c0_336, %c0_337] : memref<1x128xf32, #tpu.memory_space<vmem>>, vector<1x128xf32>
      %472 = vector.broadcast %471 : vector<1x128xf32> to vector<8x128xf32>
      %473 = arith.addf %470, %472 : vector<8x128xf32>
      %c0_338 = arith.constant 0 : index
      %474 = memref.load %arg2[%c0_338] : memref<1xf32, #tpu.memory_space<smem>>
      %475 = arith.mulf %15, %15 : vector<8x128xf32>
      %cst_339 = arith.constant dense<0.000000e+00> : vector<8xf32>
      %476 = vector.multi_reduction <add>, %475, %cst_339 [1] : vector<8x128xf32> to vector<8xf32>
      %477 = vector.shape_cast %476 : vector<8xf32> to vector<8x1xf32>
      %cst_340 = arith.constant 9.99999996E-13 : f32
      %478 = vector.broadcast %cst_340 : f32 to vector<8x1xf32>
      %479 = arith.addf %477, %478 : vector<8x1xf32>
      %480 = math.rsqrt %479 : vector<8x1xf32>
      %481 = vector.broadcast %474 : f32 to vector<8x1xf32>
      %482 = arith.mulf %480, %481 : vector<8x1xf32>
      %483 = vector.broadcast %482 : vector<8x1xf32> to vector<8x128xf32>
      %484 = arith.mulf %15, %483 : vector<8x128xf32>
      %485 = arith.truncf %484 : vector<8x128xf32> to vector<8x128xbf16>
      %486 = arith.mulf %473, %473 : vector<8x128xf32>
      %cst_341 = arith.constant dense<0.000000e+00> : vector<8xf32>
      %487 = vector.multi_reduction <add>, %486, %cst_341 [1] : vector<8x128xf32> to vector<8xf32>
      %488 = vector.shape_cast %487 : vector<8xf32> to vector<8x1xf32>
      %cst_342 = arith.constant 9.99999996E-13 : f32
      %489 = vector.broadcast %cst_342 : f32 to vector<8x1xf32>
      %490 = arith.addf %488, %489 : vector<8x1xf32>
      %491 = math.rsqrt %490 : vector<8x1xf32>
      %492 = vector.broadcast %491 : vector<8x1xf32> to vector<8x128xf32>
      %493 = arith.mulf %473, %492 : vector<8x128xf32>
      %cst_343 = arith.constant 0.000000e+00 : f32
      %494 = vector.broadcast %cst_343 : f32 to vector<120x128xf32>
      %495 = tpu.concatenate %493, %494 in 0 : vector<8x128xf32>, vector<120x128xf32> -> vector<128x128xf32>
      %496 = arith.truncf %495 : vector<128x128xf32> to vector<128x128xbf16>
      %cst_344 = arith.constant dense<0.000000e+00> : vector<8x128xf32>
      %497 = tpu.matmul %485, %496, %cst_344 {dimension_numbers = #tpu.dot_dimension_numbers<[1], [1], [0], [0], [0, 0, 1, 0], [], []>} : vector<8x128xbf16>, vector<128x128xbf16>, vector<8x128xf32> -> vector<8x128xf32>
      %c0_345 = arith.constant 0 : index
      %c0_346 = arith.constant 0 : index
      %498 = vector.load %arg10[%c0_345, %c0_346] : memref<8x128xf32, #tpu.memory_space<vmem>>, vector<8x128xf32>
      tpu.vector_store %arg10[%c0_345, %c0_346], %497 {strides = array<i32>} : memref<8x128xf32, #tpu.memory_space<vmem>>, vector<8x128xf32>,
    } else {
    }
    return
  }
  func.func @transform_0(%arg0: i32, %arg1: i32) -> i32 {
    %c0_i32 = arith.constant 0 : i32
    %c0_i32_0 = arith.constant 0 : i32
    return %c0_i32 : i32
  }
  func.func @transform_1(%arg0: i32, %arg1: i32) -> i32 {
    %c0_i32 = arith.constant 0 : i32
    %c0_i32_0 = arith.constant 0 : i32
    return %c0_i32 : i32
  }
  func.func @transform_2(%arg0: i32, %arg1: i32) -> (i32, i32) {
    %c0_i32 = arith.constant 0 : i32
    return %arg0, %arg1 : i32, i32
  }
  func.func @transform_3(%arg0: i32, %arg1: i32) -> (i32, i32) {
    %c0_i32 = arith.constant 0 : i32
    %c0_i32_0 = arith.constant 0 : i32
    return %arg1, %c0_i32 : i32, i32
  }
  func.func @transform_4(%arg0: i32, %arg1: i32) -> (i32, i32) {
    %c0_i32 = arith.constant 0 : i32
    %c0_i32_0 = arith.constant 0 : i32
    %c0_i32_1 = arith.constant 0 : i32
    return %c0_i32, %c0_i32_0 : i32, i32
  }
  func.func @transform_6(%arg0: i32, %arg1: i32) -> (i32, i32) {
    %c0_i32 = arith.constant 0 : i32
    %c0_i32_0 = arith.constant 0 : i32
    %c0_i32_1 = arith.constant 0 : i32
    return %c0_i32, %c0_i32_0 : i32, i32
  }
  func.func @transform_7(%arg0: i32, %arg1: i32) -> (i32, i32) {
    %c0_i32 = arith.constant 0 : i32
    %c0_i32_0 = arith.constant 0 : i32
    %c0_i32_1 = arith.constant 0 : i32
    return %c0_i32, %c0_i32_0 : i32, i32
  }
  func.func @transform_8(%arg0: i32, %arg1: i32) -> (i32, i32) {
    %c0_i32 = arith.constant 0 : i32
    %c0_i32_0 = arith.constant 0 : i32
    return %arg0, %c0_i32 : i32, i32
  }
}

</mosaic_0001>

<llo_original>
// kernel: tpu_custom_call.1
$region0: #{tpu_custom_call.1}
  #allocation0 [shape = 'u32[]', space=smem, size = 0x4, offset = 0x4, fixed_abs, tag = 'smem constant byte address 0x4 - core index']
  #allocation1 [shape = 'u32[144,128]{1,0:T(1,128)}', space=vmem, size = 0x12000, scoped, tag = 'internal scratch']
  #allocation2 [shape = 'f32[8,128]{1,0:T(8,128)}', space=vmem, size = 0x1000, scoped, tag = 'scratch operand']
  #allocation3 [shape = 'f32[8,8,128]{2,1,0:T(8,128)}', space=vmem, size = 0x8000, scoped, tag = 'scratch operand']
  #allocation4 [shape = 's32[1]{0}', space=sflag, size = 0x4, scoped, tag = 'scratch operand']
  #allocation5 [shape = 'f32[1]{0:T(128)S(6)}', space=smem, size = 0x200, scoped, tag = 'scoped memory for tpu_custom_call.1']
  #allocation15 [shape = 's32[]', space=sflag, size = 0x4, offset = 0, fixed_abs, tag = 'sflag constant byte address 0x0 - dummy sync flag']
  #allocation16 [shape = 's32[]', space=sflag, size = 0x4, offset = 0, fixed_abs, tag = 'sflag constant byte address 0x0 - dummy sync flag']
  #allocation17 [shape = 'u32[]', space=smem, size = 0x4, offset = 0x44, fixed_abs, tag = 'smem constant byte address 0x44 - assertion arg 0']
  #allocation18 [shape = 'u32[]', space=smem, size = 0x4, offset = 0x48, fixed_abs, tag = 'smem constant byte address 0x48 - assertion arg 1']
  #allocation19 [shape = 's32[]', space=sflag, size = 0x4, offset = 0, fixed_abs, tag = 'sflag constant byte address 0x0 - dummy sync flag']
  #allocation20 [shape = 's32[]', space=sflag, size = 0x4, offset = 0, fixed_abs, tag = 'sflag constant byte address 0x0 - dummy sync flag']
  #allocation21 [shape = 's32[]', space=sflag, size = 0x4, offset = 0, fixed_abs, tag = 'sflag constant byte address 0x0 - dummy sync flag']
  #allocation22 [shape = 's32[]', space=sflag, size = 0x4, offset = 0, fixed_abs, tag = 'sflag constant byte address 0x0 - dummy sync flag']
  #allocation23 [shape = 's32[]', space=sflag, size = 0x4, offset = 0, fixed_abs, tag = 'sflag constant byte address 0x0 - dummy sync flag']
  #allocation24 [shape = 's32[]', space=sflag, size = 0x4, offset = 0, fixed_abs, tag = 'sflag constant byte address 0x0 - dummy sync flag']
  #allocation25 [shape = 's32[]', space=sflag, size = 0x4, offset = 0, fixed_abs, tag = 'sflag constant byte address 0x0 - dummy sync flag']
  #allocation26 [shape = 's32[]', space=sflag, size = 0x4, offset = 0, fixed_abs, tag = 'sflag constant byte address 0x0 - dummy sync flag']
  #allocation27 [shape = 's32[]', space=sflag, size = 0x4, offset = 0, fixed_abs, tag = 'sflag constant byte address 0x0 - dummy sync flag']
  #allocation28 [shape = 's32[]', space=sflag, size = 0x4, offset = 0, fixed_abs, tag = 'sflag constant byte address 0x0 - dummy sync flag']
  #allocation29 [shape = 's32[]', space=sflag, size = 0x4, offset = 0, fixed_abs, tag = 'sflag constant byte address 0x0 - dummy sync flag']
  #allocation30 [shape = 's32[]', space=sflag, size = 0x4, offset = 0, fixed_abs, tag = 'sflag constant byte address 0x0 - dummy sync flag']
  #allocation31 [shape = 's32[]', space=sflag, size = 0x4, offset = 0, fixed_abs, tag = 'sflag constant byte address 0x0 - dummy sync flag']
  #allocation32 [shape = 's32[]', space=sflag, size = 0x4, offset = 0, fixed_abs, tag = 'sflag constant byte address 0x0 - dummy sync flag']
  #allocation33 [shape = 's32[]', space=sflag, size = 0x4, offset = 0, fixed_abs, tag = 'sflag constant byte address 0x0 - dummy sync flag']
  #allocation34 [shape = 's32[]', space=sflag, size = 0x4, offset = 0, fixed_abs, tag = 'sflag constant byte address 0x0 - dummy sync flag']
  #allocation35 [shape = 's32[]', space=sflag, size = 0x4, offset = 0, fixed_abs, tag = 'sflag constant byte address 0x0 - dummy sync flag']
  #allocation36 [shape = 's32[]', space=sflag, size = 0x4, offset = 0, fixed_abs, tag = 'sflag constant byte address 0x0 - dummy sync flag']
  #allocation37 [shape = 's32[]', space=sflag, size = 0x4, offset = 0, fixed_abs, tag = 'sflag constant byte address 0x0 - dummy sync flag']
  #allocation38 [shape = 's32[]', space=sflag, size = 0x4, offset = 0, fixed_abs, tag = 'sflag constant byte address 0x0 - dummy sync flag']
  #allocation39 [shape = 's32[]', space=sflag, size = 0x4, offset = 0, fixed_abs, tag = 'sflag constant byte address 0x0 - dummy sync flag']
  #allocation40 [shape = 's32[]', space=sflag, size = 0x4, offset = 0, fixed_abs, tag = 'sflag constant byte address 0x0 - dummy sync flag']
  #allocation41 [shape = 's32[]', space=sflag, size = 0x4, offset = 0, fixed_abs, tag = 'sflag constant byte address 0x0 - dummy sync flag']
  #allocation42 [shape = 's32[]', space=sflag, size = 0x4, offset = 0, fixed_abs, tag = 'sflag constant byte address 0x0 - dummy sync flag']
  #allocation43 [shape = 's32[]', space=sflag, size = 0x4, offset = 0, fixed_abs, tag = 'sflag constant byte address 0x0 - dummy sync flag']
  #allocation44 [shape = 's32[]', space=sflag, size = 0x4, offset = 0, fixed_abs, tag = 'sflag constant byte address 0x0 - dummy sync flag']
  #allocation45 [shape = 's32[]', space=sflag, size = 0x4, offset = 0, fixed_abs, tag = 'sflag constant byte address 0x0 - dummy sync flag']
  #allocation46 [shape = 's32[]', space=sflag, size = 0x4, offset = 0, fixed_abs, tag = 'sflag constant byte address 0x0 - dummy sync flag']
  #allocation47 [shape = 's32[]', space=sflag, size = 0x4, offset = 0, fixed_abs, tag = 'sflag constant byte address 0x0 - dummy sync flag']
  #allocation48 [shape = 's32[]', space=sflag, size = 0x4, offset = 0, fixed_abs, tag = 'sflag constant byte address 0x0 - dummy sync flag']
  #allocation49 [shape = 's32[]', space=sflag, size = 0x4, offset = 0, fixed_abs, tag = 'sflag constant byte address 0x0 - dummy sync flag']
  #allocation50 [shape = 's32[]', space=sflag, size = 0x4, offset = 0, fixed_abs, tag = 'sflag constant byte address 0x0 - dummy sync flag']
  #allocation51 [shape = 's32[]', space=sflag, size = 0x4, offset = 0, fixed_abs, tag = 'sflag constant byte address 0x0 - dummy sync flag']
  #allocation52 [shape = 's32[]', space=sflag, size = 0x4, offset = 0, fixed_abs, tag = 'sflag constant byte address 0x0 - dummy sync flag']
  #allocation53 [shape = 's32[]', space=sflag, size = 0x4, offset = 0, fixed_abs, tag = 'sflag constant byte address 0x0 - dummy sync flag']
  #allocation54 [shape = 's32[]', space=sflag, size = 0x4, offset = 0, fixed_abs, tag = 'sflag constant byte address 0x0 - dummy sync flag']
  #allocation55 [shape = 's32[]', space=sflag, size = 0x4, offset = 0, fixed_abs, tag = 'sflag constant byte address 0x0 - dummy sync flag']
  #allocation56 [shape = 's32[]', space=sflag, size = 0x4, offset = 0, fixed_abs, tag = 'sflag constant byte address 0x0 - dummy sync flag']
  #allocation57 [shape = 's32[]', space=sflag, size = 0x4, offset = 0, fixed_abs, tag = 'sflag constant byte address 0x0 - dummy sync flag']
  #allocation58 [shape = 's32[]', space=sflag, size = 0x4, offset = 0, fixed_abs, tag = 'sflag constant byte address 0x0 - dummy sync flag']
  #allocation59 [shape = 's32[]', space=sflag, size = 0x4, offset = 0, fixed_abs, tag = 'sflag constant byte address 0x0 - dummy sync flag']
  #allocation60 [shape = 's32[]', space=sflag, size = 0x4, offset = 0, fixed_abs, tag = 'sflag constant byte address 0x0 - dummy sync flag']
  #allocation61 [shape = 's32[]', space=sflag, size = 0x4, offset = 0, fixed_abs, tag = 'sflag constant byte address 0x0 - dummy sync flag']
  #allocation62 [shape = 's32[]', space=sflag, size = 0x4, offset = 0, fixed_abs, tag = 'sflag constant byte address 0x0 - dummy sync flag']
  #allocation63 [shape = 's32[]', space=sflag, size = 0x4, offset = 0, fixed_abs, tag = 'sflag constant byte address 0x0 - dummy sync flag']
  #allocation64 [shape = 's32[]', space=sflag, size = 0x4, offset = 0, fixed_abs, tag = 'sflag constant byte address 0x0 - dummy sync flag']
  #allocation65 [shape = 's32[]', space=sflag, size = 0x4, offset = 0, fixed_abs, tag = 'sflag constant byte address 0x0 - dummy sync flag']
  #allocation66 [shape = 's32[]', space=sflag, size = 0x4, offset = 0, fixed_abs, tag = 'sflag constant byte address 0x0 - dummy sync flag']
  #allocation67 [shape = 's32[]', space=sflag, size = 0x4, offset = 0, fixed_abs, tag = 'sflag constant byte address 0x0 - dummy sync flag']
  #allocation68 [shape = 's32[]', space=sflag, size = 0x4, offset = 0, fixed_abs, tag = 'sflag constant byte address 0x0 - dummy sync flag']
  #allocation69 [shape = 's32[]', space=sflag, size = 0x4, offset = 0, fixed_abs, tag = 'sflag constant byte address 0x0 - dummy sync flag']
  #allocation70 [shape = 's32[]', space=sflag, size = 0x4, offset = 0, fixed_abs, tag = 'sflag constant byte address 0x0 - dummy sync flag']
  #allocation71 [shape = 's32[]', space=sflag, size = 0x4, offset = 0, fixed_abs, tag = 'sflag constant byte address 0x0 - dummy sync flag']
  #allocation72 [shape = 's32[]', space=sflag, size = 0x4, offset = 0, fixed_abs, tag = 'sflag constant byte address 0x0 - dummy sync flag']
  #allocation73 [shape = 's32[]', space=sflag, size = 0x4, offset = 0, fixed_abs, tag = 'sflag constant byte address 0x0 - dummy sync flag']
  #allocation74 [shape = 's32[]', space=sflag, size = 0x4, offset = 0, fixed_abs, tag = 'sflag constant byte address 0x0 - dummy sync flag']
  #allocation75 [shape = 's32[]', space=sflag, size = 0x4, offset = 0, fixed_abs, tag = 'sflag constant byte address 0x0 - dummy sync flag']
  #allocation76 [shape = 's32[]', space=sflag, size = 0x4, offset = 0, fixed_abs, tag = 'sflag constant byte address 0x0 - dummy sync flag']
  #allocation77 [shape = 's32[]', space=sflag, size = 0x4, offset = 0, fixed_abs, tag = 'sflag constant byte address 0x0 - dummy sync flag']
  #allocation78 [shape = 's32[]', space=sflag, size = 0x4, offset = 0, fixed_abs, tag = 'sflag constant byte address 0x0 - dummy sync flag']
  #allocation79 [shape = 's32[]', space=sflag, size = 0x4, offset = 0, fixed_abs, tag = 'sflag constant byte address 0x0 - dummy sync flag']
  #allocation80 [shape = 's32[]', space=sflag, size = 0x4, offset = 0, fixed_abs, tag = 'sflag constant byte address 0x0 - dummy sync flag']
  #allocation81 [shape = 's32[]', space=sflag, size = 0x4, offset = 0, fixed_abs, tag = 'sflag constant byte address 0x0 - dummy sync flag']
  #allocation82 [shape = 's32[]', space=sflag, size = 0x4, offset = 0, fixed_abs, tag = 'sflag constant byte address 0x0 - dummy sync flag']
  #allocation83 [shape = 's32[]', space=sflag, size = 0x4, offset = 0, fixed_abs, tag = 'sflag constant byte address 0x0 - dummy sync flag']
  #allocation84 [shape = 's32[]', space=sflag, size = 0x4, offset = 0, fixed_abs, tag = 'sflag constant byte address 0x0 - dummy sync flag']
  #allocation85 [shape = 's32[]', space=sflag, size = 0x4, offset = 0, fixed_abs, tag = 'sflag constant byte address 0x0 - dummy sync flag']
  #allocation86 [shape = 's32[]', space=sflag, size = 0x4, offset = 0, fixed_abs, tag = 'sflag constant byte address 0x0 - dummy sync flag']
  #allocation87 [shape = 's32[]', space=sflag, size = 0x4, offset = 0, fixed_abs, tag = 'sflag constant byte address 0x0 - dummy sync flag']
  #allocation88 [shape = 's32[]', space=sflag, size = 0x4, offset = 0, fixed_abs, tag = 'sflag constant byte address 0x0 - dummy sync flag']
  #allocation89 [shape = 's32[]', space=sflag, size = 0x4, offset = 0, fixed_abs, tag = 'sflag constant byte address 0x0 - dummy sync flag']
  #allocation90 [shape = 's32[]', space=sflag, size = 0x4, offset = 0, fixed_abs, tag = 'sflag constant byte address 0x0 - dummy sync flag']
  #allocation91 [shape = 's32[]', space=sflag, size = 0x4, offset = 0, fixed_abs, tag = 'sflag constant byte address 0x0 - dummy sync flag']
  #allocation92 [shape = 's32[]', space=sflag, size = 0x4, offset = 0, fixed_abs, tag = 'sflag constant byte address 0x0 - dummy sync flag']
  #allocation93 [shape = 's32[]', space=sflag, size = 0x4, offset = 0, fixed_abs, tag = 'sflag constant byte address 0x0 - dummy sync flag']
  #allocation94 [shape = 's32[]', space=sflag, size = 0x4, offset = 0, fixed_abs, tag = 'sflag constant byte address 0x0 - dummy sync flag']
  #allocation95 [shape = 's32[]', space=sflag, size = 0x4, offset = 0, fixed_abs, tag = 'sflag constant byte address 0x0 - dummy sync flag']
  #allocation96 [shape = 's32[]', space=sflag, size = 0x4, offset = 0, fixed_abs, tag = 'sflag constant byte address 0x0 - dummy sync flag']
  #allocation97 [shape = 's32[]', space=sflag, size = 0x4, offset = 0, fixed_abs, tag = 'sflag constant byte address 0x0 - dummy sync flag']
  #allocation98 [shape = 's32[]', space=sflag, size = 0x4, offset = 0, fixed_abs, tag = 'sflag constant byte address 0x0 - dummy sync flag']
  #allocation99 [shape = 's32[]', space=sflag, size = 0x4, offset = 0, fixed_abs, tag = 'sflag constant byte address 0x0 - dummy sync flag']
  #allocation100 [shape = 's32[]', space=sflag, size = 0x4, offset = 0, fixed_abs, tag = 'sflag constant byte address 0x0 - dummy sync flag']
  #allocation101 [shape = 's32[]', space=sflag, size = 0x4, offset = 0, fixed_abs, tag = 'sflag constant byte address 0x0 - dummy sync flag']
  #allocation102 [shape = 's32[]', space=sflag, size = 0x4, offset = 0, fixed_abs, tag = 'sflag constant byte address 0x0 - dummy sync flag']
  #allocation103 [shape = 's32[]', space=sflag, size = 0x4, offset = 0, fixed_abs, tag = 'sflag constant byte address 0x0 - dummy sync flag']
  #allocation104 [shape = 's32[]', space=sflag, size = 0x4, offset = 0, fixed_abs, tag = 'sflag constant byte address 0x0 - dummy sync flag']
  #allocation105 [shape = 's32[]', space=sflag, size = 0x4, offset = 0, fixed_abs, tag = 'sflag constant byte address 0x0 - dummy sync flag']
  #allocation106 [shape = 's32[]', space=sflag, size = 0x4, offset = 0, fixed_abs, tag = 'sflag constant byte address 0x0 - dummy sync flag']
  #allocation107 [shape = 's32[]', space=sflag, size = 0x4, offset = 0, fixed_abs, tag = 'sflag constant byte address 0x0 - dummy sync flag']
  #allocation108 [shape = 's32[]', space=sflag, size = 0x4, offset = 0, fixed_abs, tag = 'sflag constant byte address 0x0 - dummy sync flag']
  #allocation109 [shape = 's32[]', space=sflag, size = 0x4, offset = 0, fixed_abs, tag = 'sflag constant byte address 0x0 - dummy sync flag']
  #allocation110 [shape = 's32[]', space=sflag, size = 0x4, offset = 0, fixed_abs, tag = 'sflag constant byte address 0x0 - dummy sync flag']
  #allocation111 [shape = 's32[]', space=sflag, size = 0x4, offset = 0, fixed_abs, tag = 'sflag constant byte address 0x0 - dummy sync flag']
  #allocation112 [shape = 's32[]', space=sflag, size = 0x4, offset = 0, fixed_abs, tag = 'sflag constant byte address 0x0 - dummy sync flag']
  #allocation113 [shape = 's32[]', space=sflag, size = 0x4, offset = 0, fixed_abs, tag = 'sflag constant byte address 0x0 - dummy sync flag']
  #allocation114 [shape = 's32[]', space=sflag, size = 0x4, offset = 0, fixed_abs, tag = 'sflag constant byte address 0x0 - dummy sync flag']
  #allocation115 [shape = 's32[]', space=sflag, size = 0x4, offset = 0, fixed_abs, tag = 'sflag constant byte address 0x0 - dummy sync flag']
  #allocation116 [shape = 's32[]', space=sflag, size = 0x4, offset = 0, fixed_abs, tag = 'sflag constant byte address 0x0 - dummy sync flag']
  #allocation117 [shape = 's32[]', space=sflag, size = 0x4, offset = 0, fixed_abs, tag = 'sflag constant byte address 0x0 - dummy sync flag']
  #allocation118 [shape = 's32[]', space=sflag, size = 0x4, offset = 0, fixed_abs, tag = 'sflag constant byte address 0x0 - dummy sync flag']
  #allocation119 [shape = 's32[]', space=sflag, size = 0x4, offset = 0, fixed_abs, tag = 'sflag constant byte address 0x0 - dummy sync flag']
  #allocation120 [shape = 's32[]', space=sflag, size = 0x4, offset = 0, fixed_abs, tag = 'sflag constant byte address 0x0 - dummy sync flag']
  #allocation121 [shape = 's32[]', space=sflag, size = 0x4, offset = 0, fixed_abs, tag = 'sflag constant byte address 0x0 - dummy sync flag']
  #allocation122 [shape = 's32[]', space=sflag, size = 0x4, offset = 0, fixed_abs, tag = 'sflag constant byte address 0x0 - dummy sync flag']
  #allocation123 [shape = 's32[]', space=sflag, size = 0x4, offset = 0, fixed_abs, tag = 'sflag constant byte address 0x0 - dummy sync flag']
  #allocation124 [shape = 's32[]', space=sflag, size = 0x4, offset = 0, fixed_abs, tag = 'sflag constant byte address 0x0 - dummy sync flag']
  #allocation125 [shape = 's32[]', space=sflag, size = 0x4, offset = 0, fixed_abs, tag = 'sflag constant byte address 0x0 - dummy sync flag']
  #allocation126 [shape = 's32[]', space=sflag, size = 0x4, offset = 0, fixed_abs, tag = 'sflag constant byte address 0x0 - dummy sync flag']
  #allocation127 [shape = 's32[]', space=sflag, size = 0x4, offset = 0, fixed_abs, tag = 'sflag constant byte address 0x0 - dummy sync flag']
  #allocation128 [shape = 's32[]', space=sflag, size = 0x4, offset = 0, fixed_abs, tag = 'sflag constant byte address 0x0 - dummy sync flag']
  #allocation129 [shape = 's32[]', space=sflag, size = 0x4, offset = 0, fixed_abs, tag = 'sflag constant byte address 0x0 - dummy sync flag']
  #allocation130 [shape = 's32[]', space=sflag, size = 0x4, offset = 0, fixed_abs, tag = 'sflag constant byte address 0x0 - dummy sync flag']
  #allocation131 [shape = 's32[]', space=sflag, size = 0x4, offset = 0, fixed_abs, tag = 'sflag constant byte address 0x0 - dummy sync flag']
  #allocation132 [shape = 's32[]', space=sflag, size = 0x4, offset = 0, fixed_abs, tag = 'sflag constant byte address 0x0 - dummy sync flag']
  #allocation133 [shape = 's32[]', space=sflag, size = 0x4, offset = 0, fixed_abs, tag = 'sflag constant byte address 0x0 - dummy sync flag']
  #allocation134 [shape = 's32[]', space=sflag, size = 0x4, offset = 0, fixed_abs, tag = 'sflag constant byte address 0x0 - dummy sync flag']
  #allocation135 [shape = 's32[]', space=sflag, size = 0x4, offset = 0, fixed_abs, tag = 'sflag constant byte address 0x0 - dummy sync flag']
  #allocation136 [shape = 's32[]', space=sflag, size = 0x4, offset = 0, fixed_abs, tag = 'sflag constant byte address 0x0 - dummy sync flag']
  #allocation137 [shape = 's32[]', space=sflag, size = 0x4, offset = 0, fixed_abs, tag = 'sflag constant byte address 0x0 - dummy sync flag']
  #allocation138 [shape = 's32[]', space=sflag, size = 0x4, offset = 0, fixed_abs, tag = 'sflag constant byte address 0x0 - dummy sync flag']
  #allocation139 [shape = 's32[]', space=sflag, size = 0x4, offset = 0, fixed_abs, tag = 'sflag constant byte address 0x0 - dummy sync flag']
  #allocation140 [shape = 's32[]', space=sflag, size = 0x4, offset = 0, fixed_abs, tag = 'sflag constant byte address 0x0 - dummy sync flag']
  #allocation141 [shape = 's32[]', space=sflag, size = 0x4, offset = 0, fixed_abs, tag = 'sflag constant byte address 0x0 - dummy sync flag']
  #allocation142 [shape = 's32[]', space=sflag, size = 0x4, offset = 0, fixed_abs, tag = 'sflag constant byte address 0x0 - dummy sync flag']
  #allocation143 [shape = 's32[]', space=sflag, size = 0x4, offset = 0, fixed_abs, tag = 'sflag constant byte address 0x0 - dummy sync flag']
  #allocation144 [shape = 's32[]', space=sflag, size = 0x4, offset = 0, fixed_abs, tag = 'sflag constant byte address 0x0 - dummy sync flag']
  %s0 = inlined_call_operand.<no memory space> [shape: f32[1], index: 0, kind: input, shape index: {}]
  %s1 = inlined_call_operand.vmem [shape: s32[64], index: 1, kind: input, shape index: {}]
  %s2 = inlined_call_operand.hbm [shape: bf16[8,768], index: 2, kind: input, shape index: {}]
  %s3 = inlined_call_operand.hbm [shape: bf16[768,128], index: 3, kind: input, shape index: {}]
  %s4 = inlined_call_operand.vmem [shape: f32[1,128], index: 4, kind: input, shape index: {}]
  %s5 = inlined_call_operand.hbm [shape: f32[64,128], index: 5, kind: input, shape index: {}]
  %s6 = inlined_call_operand.hbm [shape: bf16[128,128], index: 6, kind: input, shape index: {}]
  %s7 = inlined_call_operand.vmem [shape: f32[1,128], index: 7, kind: input, shape index: {}]
  %s8 = inlined_call_operand.hbm [shape: f32[8,128], index: 8, kind: output, shape index: {}]
  %s9 = sld [smem:[#allocation0]]
  $region341: #{tpu_custom_call.1} parent=0
    _
  %s11 = ssub.s32 1, %s9
  %s12 = scalar_select 0, %s11, %s9
  %13 = sst [smem:[#allocation5]] %s0
  $region1: #{tpu_custom_call.1} parent=0
    #allocation6 [shape = 'u8[512]{0}', space=smem, size = 0x200, scoped, tag = 'input window, operand 1, single buffered']
    #allocation7 [shape = 's32[2]{0}', space=sflag, size = 0x8, scoped, tag = 'scoped memory for tpu_custom_call.1']
    #allocation8 [shape = 's32[2]{0}', space=sflag, size = 0x8, scoped, tag = 'scoped memory for tpu_custom_call.1']
    #allocation9 [shape = 's32[2]{0}', space=sflag, size = 0x8, scoped, tag = 'scoped memory for tpu_custom_call.1']
    #allocation10 [shape = 'u8[8192]{0}', space=vmem, size = 0x2000, scoped, tag = 'input window, operand 2']
    #allocation11 [shape = 'u8[131072]{0}', space=vmem, size = 0x20000, scoped, tag = 'input window, operand 3']
    #allocation12 [shape = 's32[2]{0}', space=sflag, size = 0x8, scoped, tag = 'scoped memory for tpu_custom_call.1']
    #allocation13 [shape = 'u8[32768]{0}', space=vmem, size = 0x8000, scoped, tag = 'input window, operand 6, single buffered']
    #allocation14 [shape = 'u8[4096]{0}', space=vmem, size = 0x1000, scoped, tag = 'output window, operand 0, single buffered']
    %14 = vsyncpa [#allocation9], 0
    %15 = vsyncpa [#allocation7], 0
    %s16 = scalar_lea.sflag [#allocation7], 1
    %17 = vsyncpa %s16, 0
    %18 = vsyncpa [#allocation12], 0
    %s19 = scalar_lea.sflag [#allocation12], 1
    %20 = vsyncpa %s19, 0
    %21 = vsyncpa [#allocation8], 0
    loop: start=0, step=1, limit=5
    $region2: #{tpu_custom_call.1} parent=1 // loop_pre_header
      _
    $region3: #{tpu_custom_call.1} parent=1 // loop_header
      %s23 = sphi 0, %s27
      %p24 = scmp.ge.s32.totalorder %s23, 5
      %s30 = sphi 0, %s42
      %s31 = sphi 0, %s38
      %s32 = sphi 0, %s30
      %s33 = sphi 0, %s31
      %s34 = sphi 0, %s32
      %s35 = sphi 0, %s33
      %s43 = sphi 0, %s43
      %s45 = sphi 0, %s43
      %s46 = sphi 0, %s45
      %s60 = sphi 0, %s46
      %s64 = sphi 0, %s64
      %s66 = sphi 0, %s64
      %s67 = sphi 0, %s66
      %s81 = sphi 0, %s67
      %s89 = sphi 0, %s91
      %s92 = sphi 0, %s89
      %s93 = sphi 0, %s92
      %s109 = sphi 0, %s93
      %s115 = sphi 0, %s117
      %s118 = sphi 0, %s115
      %s119 = sphi 0, %s118
      %s135 = sphi 0, %s119
      %s139 = sphi 0, %s139
      %s141 = sphi 0, %s139
      %s142 = sphi 0, %s141
      %s156 = sphi 0, %s142
      %s160 = sphi 0, %s160
      %s162 = sphi 0, %s160
      %s163 = sphi 0, %s162
      %s177 = sphi 0, %s163
      %s181 = sphi 0, %s181
      %s183 = sphi 0, %s181
      %s184 = sphi 0, %s183
      %s198 = sphi 0, %s184
      %s204 = sphi 0, %s206
      %s207 = sphi 0, %s204
      %s208 = sphi 0, %s207
      %s224 = sphi 0, %s208
    $region4: #{tpu_custom_call.1} parent=1 // loop_header_branch
      %26 = sbr.rel (%p24) target = $region8
    $region5: #{tpu_custom_call.1} parent=1 // loop_body
      %s28 = ssub.s32 %s23, 1
      %s29 = ssub.s32 %s23, 2
      %s36 = sadd.s32 1, %s31
      %p37 = scmp.ge.s32.totalorder %s36, 3
      %s38 = scalar_select %p37, 0, %s36
      %s39 = sadd.s32 1, %s30
      %s40 = scalar_select %p37, %s39, %s30
      %p41 = scmp.ge.s32.totalorder %s40, 1
      %s42 = scalar_select %p41, 0, %s40
      %s44 = sadd.s32 %s43, 1
      %p47 = scmp.eq.s32.totalorder %s23, 2
      %p48 = scmp.ne.s32.totalorder %s43, %s45
      %p49 = scmp.eq.s32.totalorder %s23, 0
      %p50 = por %p48, %p49
      %p51 = scmp.ne.s32.totalorder %s43, %s45
      %p52 = scmp.eq.s32.totalorder %s28, 2
      %p53 = por %p51, %p52
      %p54 = scmp.ne.s32.totalorder %s45, %s46
      %p55 = scmp.eq.s32.totalorder %s28, 0
      %p56 = por %p54, %p55
      %p57 = scmp.ne.s32.totalorder %s45, %s46
      %p58 = scmp.eq.s32.totalorder %s29, 2
      %p59 = por %p57, %p58
      %p61 = scmp.ne.s32.totalorder %s46, %s60
      %p62 = scmp.eq.s32.totalorder %s29, 0
      %p63 = por %p61, %p62
      %s65 = sadd.s32 %s64, 1
      %p68 = scmp.eq.s32.totalorder %s23, 2
      %p69 = scmp.ne.s32.totalorder %s64, %s66
      %p70 = scmp.eq.s32.totalorder %s23, 0
      %p71 = por %p69, %p70
      %p72 = scmp.ne.s32.totalorder %s64, %s66
      %p73 = scmp.eq.s32.totalorder %s28, 2
      %p74 = por %p72, %p73
      %p75 = scmp.ne.s32.totalorder %s66, %s67
      %p76 = scmp.eq.s32.totalorder %s28, 0
      %p77 = por %p75, %p76
      %p78 = scmp.ne.s32.totalorder %s66, %s67
      %p79 = scmp.eq.s32.totalorder %s29, 2
      %p80 = por %p78, %p79
      %p82 = scmp.ne.s32.totalorder %s67, %s81
      %p83 = scmp.eq.s32.totalorder %s29, 0
      %p84 = por %p82, %p83
      %s85 = ssub.s32 %s30, %s42
      %s86 = ssub.s32 %s31, %s38
      %s87 = sor.u32 %s85, %s86
      %p88 = scmp.eq.s32.totalorder %s87, 0
      %s90 = sadd.s32 %s89, 1
      %s91 = scalar_select %p88, %s89, %s90
      %p94 = pneg %p88
      %p95 = scmp.eq.s32.totalorder %s23, 2
      %p96 = por %p94, %p95
      %p97 = scmp.ne.s32.totalorder %s89, %s92
      %p98 = scmp.eq.s32.totalorder %s23, 0
      %p99 = por %p97, %p98
      %p100 = scmp.ne.s32.totalorder %s89, %s92
      %p101 = scmp.eq.s32.totalorder %s28, 2
      %p102 = por %p100, %p101
      %p103 = scmp.ne.s32.totalorder %s92, %s93
      %p104 = scmp.eq.s32.totalorder %s28, 0
      %p105 = por %p103, %p104
      %p106 = scmp.ne.s32.totalorder %s92, %s93
      %p107 = scmp.eq.s32.totalorder %s29, 2
      %p108 = por %p106, %p107
      %p110 = scmp.ne.s32.totalorder %s93, %s109
      %p111 = scmp.eq.s32.totalorder %s29, 0
      %p112 = por %p110, %p111
      %s113 = ssub.s32 %s31, %s38
      %p114 = scmp.eq.s32.totalorder %s113, 0
      %s116 = sadd.s32 %s115, 1
      %s117 = scalar_select %p114, %s115, %s116
      %p120 = pneg %p114
      %p121 = scmp.eq.s32.totalorder %s23, 2
      %p122 = por %p120, %p121
      %p123 = scmp.ne.s32.totalorder %s115, %s118
      %p124 = scmp.eq.s32.totalorder %s23, 0
      %p125 = por %p123, %p124
      %p126 = scmp.ne.s32.totalorder %s115, %s118
      %p127 = scmp.eq.s32.totalorder %s28, 2
      %p128 = por %p126, %p127
      %p129 = scmp.ne.s32.totalorder %s118, %s119
      %p130 = scmp.eq.s32.totalorder %s28, 0
      %p131 = por %p129, %p130
      %p132 = scmp.ne.s32.totalorder %s118, %s119
      %p133 = scmp.eq.s32.totalorder %s29, 2
      %p134 = por %p132, %p133
      %p136 = scmp.ne.s32.totalorder %s119, %s135
      %p137 = scmp.eq.s32.totalorder %s29, 0
      %p138 = por %p136, %p137
      %s140 = sadd.s32 %s139, 1
      %p143 = scmp.eq.s32.totalorder %s23, 2
      %p144 = scmp.ne.s32.totalorder %s139, %s141
      %p145 = scmp.eq.s32.totalorder %s23, 0
      %p146 = por %p144, %p145
      %p147 = scmp.ne.s32.totalorder %s139, %s141
      %p148 = scmp.eq.s32.totalorder %s28, 2
      %p149 = por %p147, %p148
      %p150 = scmp.ne.s32.totalorder %s141, %s142
      %p151 = scmp.eq.s32.totalorder %s28, 0
      %p152 = por %p150, %p151
      %p153 = scmp.ne.s32.totalorder %s141, %s142
      %p154 = scmp.eq.s32.totalorder %s29, 2
      %p155 = por %p153, %p154
      %p157 = scmp.ne.s32.totalorder %s142, %s156
      %p158 = scmp.eq.s32.totalorder %s29, 0
      %p159 = por %p157, %p158
      %s161 = sadd.s32 %s160, 1
      %p164 = scmp.eq.s32.totalorder %s23, 2
      %p165 = scmp.ne.s32.totalorder %s160, %s162
      %p166 = scmp.eq.s32.totalorder %s23, 0
      %p167 = por %p165, %p166
      %p168 = scmp.ne.s32.totalorder %s160, %s162
      %p169 = scmp.eq.s32.totalorder %s28, 2
      %p170 = por %p168, %p169
      %p171 = scmp.ne.s32.totalorder %s162, %s163
      %p172 = scmp.eq.s32.totalorder %s28, 0
      %p173 = por %p171, %p172
      %p174 = scmp.ne.s32.totalorder %s162, %s163
      %p175 = scmp.eq.s32.totalorder %s29, 2
      %p176 = por %p174, %p175
      %p178 = scmp.ne.s32.totalorder %s163, %s177
      %p179 = scmp.eq.s32.totalorder %s29, 0
      %p180 = por %p178, %p179
      %s182 = sadd.s32 %s181, 1
      %p185 = scmp.eq.s32.totalorder %s23, 2
      %p186 = scmp.ne.s32.totalorder %s181, %s183
      %p187 = scmp.eq.s32.totalorder %s23, 0
      %p188 = por %p186, %p187
      %p189 = scmp.ne.s32.totalorder %s181, %s183
      %p190 = scmp.eq.s32.totalorder %s28, 2
      %p191 = por %p189, %p190
      %p192 = scmp.ne.s32.totalorder %s183, %s184
      %p193 = scmp.eq.s32.totalorder %s28, 0
      %p194 = por %p192, %p193
      %p195 = scmp.ne.s32.totalorder %s183, %s184
      %p196 = scmp.eq.s32.totalorder %s29, 2
      %p197 = por %p195, %p196
      %p199 = scmp.ne.s32.totalorder %s184, %s198
      %p200 = scmp.eq.s32.totalorder %s29, 0
      %p201 = por %p199, %p200
      %s202 = ssub.s32 %s30, %s42
      %p203 = scmp.eq.s32.totalorder %s202, 0
      %s205 = sadd.s32 %s204, 1
      %s206 = scalar_select %p203, %s204, %s205
      %p209 = pneg %p203
      %p210 = scmp.eq.s32.totalorder %s23, 2
      %p211 = por %p209, %p210
      %p212 = scmp.ne.s32.totalorder %s204, %s207
      %p213 = scmp.eq.s32.totalorder %s23, 0
      %p214 = por %p212, %p213
      %p215 = scmp.ne.s32.totalorder %s204, %s207
      %p216 = scmp.eq.s32.totalorder %s28, 2
      %p217 = por %p215, %p216
      %p218 = scmp.ne.s32.totalorder %s207, %s208
      %p219 = scmp.eq.s32.totalorder %s28, 0
      %p220 = por %p218, %p219
      %p221 = scmp.ne.s32.totalorder %s207, %s208
      %p222 = scmp.eq.s32.totalorder %s29, 2
      %p223 = por %p221, %p222
      %p225 = scmp.ne.s32.totalorder %s208, %s224
      %p226 = scmp.eq.s32.totalorder %s29, 0
      %p227 = por %p225, %p226
      %p228 = scmp.le.s32.totalorder 1, %s23
      %p229 = scmp.lt.s32.totalorder %s23, 4
      %p230 = pnand %p228, %p229
      %p231 = pneg %p230
      // Predicated region
      $region9: #{tpu_custom_call.1} parent=5 // pred_check
        _
      $region10: #{tpu_custom_call.1} parent=5 // pred_check_branch
        %233 = sbr.rel (%p230) target = $region12
      $region11: #{tpu_custom_call.1} parent=5 // pred_region
        %s234 = ssub.s32 %s23, 1
        // Predicated region
        $region13: #{tpu_custom_call.1} parent=11 // pred_check
          %p235 = pneg %p56
        $region14: #{tpu_custom_call.1} parent=11 // pred_check_branch
          %237 = sbr.rel (%p235) target = $region16
        $region15: #{tpu_custom_call.1} parent=11 // pred_region
          _
        $region16: #{tpu_custom_call.1} parent=11 // pred_fallthru
          _
        // Predicated region
        $region17: #{tpu_custom_call.1} parent=11 // pred_check
          %p238 = pneg %p77
        $region18: #{tpu_custom_call.1} parent=11 // pred_check_branch
          %240 = sbr.rel (%p238) target = $region20
        $region19: #{tpu_custom_call.1} parent=11 // pred_region
          %s242 = ssub.s32 16, 16
          %243 = vsyncadd [#allocation9], %s242
          %s245 = sshll.u32 %s1, 4
          %s246 = int_to_ptr.vmem [resolvable:$true] %s245
          %248 = dma.vmem_to_smem %s246, 16, [#allocation6], [#allocation9]
        $region20: #{tpu_custom_call.1} parent=11 // pred_fallthru
          _
        // Predicated region
        $region21: #{tpu_custom_call.1} parent=11 // pred_check
          %p249 = pneg %p152
        $region22: #{tpu_custom_call.1} parent=11 // pred_check_branch
          %251 = sbr.rel (%p249) target = $region24
        $region23: #{tpu_custom_call.1} parent=11 // pred_region
          _
        $region24: #{tpu_custom_call.1} parent=11 // pred_fallthru
          _
        // Predicated region
        $region25: #{tpu_custom_call.1} parent=11 // pred_check
          %p252 = pneg %p173
        $region26: #{tpu_custom_call.1} parent=11 // pred_check_branch
          %254 = sbr.rel (%p252) target = $region28
        $region27: #{tpu_custom_call.1} parent=11 // pred_region
          %s256 = ssub.s32 1024, 1024
          %257 = vsyncadd [#allocation12], %s256
          %s258 = sshll.u32 [#allocation13], 4
          %s259 = int_to_ptr.vmem [resolvable:$true] %s258
          %264 = dma.hbm_to_vmem [thread:$0]  %s6, 1024, %s259, [#allocation12], 64, 64, 4
        $region28: #{tpu_custom_call.1} parent=11 // pred_fallthru
          _
        // Predicated region
        $region29: #{tpu_custom_call.1} parent=11 // pred_check
          %p265 = pneg %p194
        $region30: #{tpu_custom_call.1} parent=11 // pred_check_branch
          %267 = sbr.rel (%p265) target = $region32
        $region31: #{tpu_custom_call.1} parent=11 // pred_region
          _
        $region32: #{tpu_custom_call.1} parent=11 // pred_fallthru
          _
      $region12: #{tpu_custom_call.1} parent=5 // pred_fallthru
        _
      %p268 = scmp.lt.s32.totalorder %s23, 3
      // Predicated region
      $region33: #{tpu_custom_call.1} parent=5 // pred_check
        %p269 = pneg %p268
      $region34: #{tpu_custom_call.1} parent=5 // pred_check_branch
        %271 = sbr.rel (%p269) target = $region36
      $region35: #{tpu_custom_call.1} parent=5 // pred_region
        // Predicated region
        $region37: #{tpu_custom_call.1} parent=35 // pred_check
          %p272 = pneg %p99
        $region38: #{tpu_custom_call.1} parent=35 // pred_check_branch
          %274 = sbr.rel (%p272) target = $region40
        $region39: #{tpu_custom_call.1} parent=35 // pred_region
          %s275 = sand.u32 %s89, 1
          %s276 = scalar_lea.sflag [#allocation7], %s275
          %s277 = sand.u32 %s89, 1
          %s278 = smul.addr %s277, 8
          %s279 = scalar_lea.vmem [#allocation10], %s278
          %s280 = smul.u32 2, %s31
          %s282 = ssub.s32 128, 128
          %283 = vsyncadd %s276, %s282
          %s284 = smul.addr %s30, 6
          %s285 = sadd.s32 %s280, %s284
          %s286 = smul.addr %s285, 64
          %s287 = scalar_lea.hbm %s2, %s286
          %s289 = sshll.u32 %s279, 4
          %s290 = int_to_ptr.vmem [resolvable:$true] %s289
          %292 = dma.hbm_to_vmem [thread:$0]  %s287, 128, %s290, %s276
        $region40: #{tpu_custom_call.1} parent=35 // pred_fallthru
          _
        // Predicated region
        $region41: #{tpu_custom_call.1} parent=35 // pred_check
          %p293 = pneg %p125
        $region42: #{tpu_custom_call.1} parent=35 // pred_check_branch
          %295 = sbr.rel (%p293) target = $region44
        $region43: #{tpu_custom_call.1} parent=35 // pred_region
          %s296 = sand.u32 %s23, 1
          %s297 = scalar_lea.sflag [#allocation12], %s296
          %s298 = sand.u32 %s115, 1
          %s299 = smul.addr %s298, 128
          %s300 = scalar_lea.vmem [#allocation11], %s299
          %s301 = smul.u32 32, %s31
          %s303 = ssub.s32 2048, 2048
          %304 = vsyncadd %s297, %s303
          %s305 = smul.addr %s301, 64
          %s306 = scalar_lea.hbm %s3, %s305
          %s307 = sshll.u32 %s300, 4
          %s308 = int_to_ptr.vmem [resolvable:$true] %s307
          %313 = dma.hbm_to_vmem [thread:$0]  %s306, 2048, %s308, %s297, 64, 64, 4
        $region44: #{tpu_custom_call.1} parent=35 // pred_fallthru
          _
      $region36: #{tpu_custom_call.1} parent=5 // pred_fallthru
        _
      %p314 = scmp.le.s32.totalorder 1, %s23
      %p315 = scmp.lt.s32.totalorder %s23, 4
      %p316 = pnand %p314, %p315
      %p317 = pneg %p316
      // Predicated region
      $region45: #{tpu_custom_call.1} parent=5 // pred_check
        _
      $region46: #{tpu_custom_call.1} parent=5 // pred_check_branch
        %319 = sbr.rel (%p316) target = $region48
      $region47: #{tpu_custom_call.1} parent=5 // pred_region
        %s320 = ssub.s32 %s23, 1
        // Predicated region
        $region49: #{tpu_custom_call.1} parent=47 // pred_check
          %p321 = pneg %p77
        $region50: #{tpu_custom_call.1} parent=47 // pred_check_branch
          %323 = sbr.rel (%p321) target = $region52
        $region51: #{tpu_custom_call.1} parent=47 // pred_region
          %324 = dma.done [#allocation9], 16
        $region52: #{tpu_custom_call.1} parent=47 // pred_fallthru
          _
        %s325 = sand.u32 %s92, 1
        %s326 = scalar_lea.sflag [#allocation7], %s325
        %s327 = sand.u32 %s92, 1
        %s328 = smul.addr %s327, 8
        %s329 = scalar_lea.vmem [#allocation10], %s328
        // Predicated region
        $region53: #{tpu_custom_call.1} parent=47 // pred_check
          %p330 = pneg %p105
        $region54: #{tpu_custom_call.1} parent=47 // pred_check_branch
          %332 = sbr.rel (%p330) target = $region56
        $region55: #{tpu_custom_call.1} parent=47 // pred_region
          %333 = dma.done %s326, 128
        $region56: #{tpu_custom_call.1} parent=47 // pred_fallthru
          _
        %s334 = sand.u32 %s28, 1
        %s335 = scalar_lea.sflag [#allocation12], %s334
        %s336 = sand.u32 %s118, 1
        %s337 = smul.addr %s336, 128
        %s338 = scalar_lea.vmem [#allocation11], %s337
        // Predicated region
        $region57: #{tpu_custom_call.1} parent=47 // pred_check
          %p339 = pneg %p131
        $region58: #{tpu_custom_call.1} parent=47 // pred_check_branch
          %341 = sbr.rel (%p339) target = $region60
        $region59: #{tpu_custom_call.1} parent=47 // pred_region
          %342 = dma.done %s335, 2048
        $region60: #{tpu_custom_call.1} parent=47 // pred_fallthru
          _
        // Predicated region
        $region61: #{tpu_custom_call.1} parent=47 // pred_check
          %p343 = pneg %p173
        $region62: #{tpu_custom_call.1} parent=47 // pred_check_branch
          %345 = sbr.rel (%p343) target = $region64
        $region63: #{tpu_custom_call.1} parent=47 // pred_region
          %346 = dma.done [#allocation12], 1024
        $region64: #{tpu_custom_call.1} parent=47 // pred_fallthru
          _
        %347 = sfence
        %p348 = pneg %p56
        %p349 = pneg %p53
        %p350 = pneg %p77
        %p351 = pneg %p74
        %s352 = sand.u32 %s92, 1
        %s353 = scalar_lea.sflag [#allocation7], %s352
        %s354 = sand.u32 %s92, 1
        %s355 = smul.addr %s354, 8
        %s356 = scalar_lea.vmem [#allocation10], %s355
        %p357 = pneg %p105
        %p358 = pneg %p102
        %s359 = sand.u32 %s28, 1
        %s360 = scalar_lea.sflag [#allocation12], %s359
        %s361 = sand.u32 %s118, 1
        %s362 = smul.addr %s361, 128
        %s363 = scalar_lea.vmem [#allocation11], %s362
        %p364 = pneg %p131
        %p365 = pneg %p128
        %p366 = pneg %p152
        %p367 = pneg %p149
        %p368 = pneg %p173
        %p369 = pneg %p170
        %p370 = pneg %p194
        %p371 = pneg %p191
        %p372 = pneg %p220
        %p373 = pneg %p217
        %s374 = smul.u32 2, %s33
        %s375 = smul.u32 32, %s33
        %p377 = scmp.eq.s32.totalorder %s33, 0
        // Predicated region
        $region65: #{tpu_custom_call.1} parent=47 // pred_check
          %p378 = pneg %p377
        $region66: #{tpu_custom_call.1} parent=47 // pred_check_branch
          %380 = sbr.rel (%p378) target = $region68
        $region67: #{tpu_custom_call.1} parent=47 // pred_region
          %381 = vst [vmem:[#allocation2] sm:$0xff] 0.0
          %s382 = sld [smem:[#allocation6]]
          %s383 = smul.addr %s382, 16
          %s384 = scalar_lea.hbm %s5, %s383
          // Predicated region
          $region69: #{tpu_custom_call.1} parent=67 // pred_check
            _
          $region70: #{tpu_custom_call.1} parent=67 // pred_check_branch
            %386 = sbr.rel target = $region72
          $region71: #{tpu_custom_call.1} parent=67 // pred_region
            %387 = sst [smem:[#allocation17]] [#allocation16]
            %388 = sst [smem:[#allocation18]] [#allocation15]
          $region72: #{tpu_custom_call.1} parent=67 // pred_fallthru
            _
          %390 = shalt.err (0)
          %s392 = sshll.u32 [#allocation3], 4
          %s393 = int_to_ptr.vmem [resolvable:$true] %s392
          %395 = dma.hbm_to_vmem [thread:$0]  %s384, 16, %s393, [#allocation4]
          %s396 = sld [smem:[#allocation6 + $0x8]]
          %s397 = smul.addr %s396, 16
          %s398 = scalar_lea.hbm %s5, %s397
          %s399 = scalar_lea.vmem [#allocation3], 1
          // Predicated region
          $region73: #{tpu_custom_call.1} parent=67 // pred_check
            _
          $region74: #{tpu_custom_call.1} parent=67 // pred_check_branch
            %401 = sbr.rel target = $region76
          $region75: #{tpu_custom_call.1} parent=67 // pred_region
            %402 = sst [smem:[#allocation17]] [#allocation20]
            %403 = sst [smem:[#allocation18]] [#allocation19]
          $region76: #{tpu_custom_call.1} parent=67 // pred_fallthru
            _
          %405 = shalt.err (0)
          %s407 = sshll.u32 %s399, 4
          %s408 = int_to_ptr.vmem [resolvable:$true] %s407
          %410 = dma.hbm_to_vmem [thread:$0]  %s398, 16, %s408, [#allocation4]
          %s411 = sld [smem:[#allocation6 + $0x10]]
          %s412 = smul.addr %s411, 16
          %s413 = scalar_lea.hbm %s5, %s412
          %s414 = scalar_lea.vmem [#allocation3], 2
          // Predicated region
          $region77: #{tpu_custom_call.1} parent=67 // pred_check
            _
          $region78: #{tpu_custom_call.1} parent=67 // pred_check_branch
            %416 = sbr.rel target = $region80
          $region79: #{tpu_custom_call.1} parent=67 // pred_region
            %417 = sst [smem:[#allocation17]] [#allocation22]
            %418 = sst [smem:[#allocation18]] [#allocation21]
          $region80: #{tpu_custom_call.1} parent=67 // pred_fallthru
            _
          %420 = shalt.err (0)
          %s422 = sshll.u32 %s414, 4
          %s423 = int_to_ptr.vmem [resolvable:$true] %s422
          %425 = dma.hbm_to_vmem [thread:$0]  %s413, 16, %s423, [#allocation4]
          %s426 = sld [smem:[#allocation6 + $0x18]]
          %s427 = smul.addr %s426, 16
          %s428 = scalar_lea.hbm %s5, %s427
          %s429 = scalar_lea.vmem [#allocation3], 3
          // Predicated region
          $region81: #{tpu_custom_call.1} parent=67 // pred_check
            _
          $region82: #{tpu_custom_call.1} parent=67 // pred_check_branch
            %431 = sbr.rel target = $region84
          $region83: #{tpu_custom_call.1} parent=67 // pred_region
            %432 = sst [smem:[#allocation17]] [#allocation24]
            %433 = sst [smem:[#allocation18]] [#allocation23]
          $region84: #{tpu_custom_call.1} parent=67 // pred_fallthru
            _
          %435 = shalt.err (0)
          %s437 = sshll.u32 %s429, 4
          %s438 = int_to_ptr.vmem [resolvable:$true] %s437
          %440 = dma.hbm_to_vmem [thread:$0]  %s428, 16, %s438, [#allocation4]
          %s441 = sld [smem:[#allocation6 + $0x20]]
          %s442 = smul.addr %s441, 16
          %s443 = scalar_lea.hbm %s5, %s442
          %s444 = scalar_lea.vmem [#allocation3], 4
          // Predicated region
          $region85: #{tpu_custom_call.1} parent=67 // pred_check
            _
          $region86: #{tpu_custom_call.1} parent=67 // pred_check_branch
            %446 = sbr.rel target = $region88
          $region87: #{tpu_custom_call.1} parent=67 // pred_region
            %447 = sst [smem:[#allocation17]] [#allocation26]
            %448 = sst [smem:[#allocation18]] [#allocation25]
          $region88: #{tpu_custom_call.1} parent=67 // pred_fallthru
            _
          %450 = shalt.err (0)
          %s452 = sshll.u32 %s444, 4
          %s453 = int_to_ptr.vmem [resolvable:$true] %s452
          %455 = dma.hbm_to_vmem [thread:$0]  %s443, 16, %s453, [#allocation4]
          %s456 = sld [smem:[#allocation6 + $0x28]]
          %s457 = smul.addr %s456, 16
          %s458 = scalar_lea.hbm %s5, %s457
          %s459 = scalar_lea.vmem [#allocation3], 5
          // Predicated region
          $region89: #{tpu_custom_call.1} parent=67 // pred_check
            _
          $region90: #{tpu_custom_call.1} parent=67 // pred_check_branch
            %461 = sbr.rel target = $region92
          $region91: #{tpu_custom_call.1} parent=67 // pred_region
            %462 = sst [smem:[#allocation17]] [#allocation28]
            %463 = sst [smem:[#allocation18]] [#allocation27]
          $region92: #{tpu_custom_call.1} parent=67 // pred_fallthru
            _
          %465 = shalt.err (0)
          %s467 = sshll.u32 %s459, 4
          %s468 = int_to_ptr.vmem [resolvable:$true] %s467
          %470 = dma.hbm_to_vmem [thread:$0]  %s458, 16, %s468, [#allocation4]
          %s471 = sld [smem:[#allocation6 + $0x30]]
          %s472 = smul.addr %s471, 16
          %s473 = scalar_lea.hbm %s5, %s472
          %s474 = scalar_lea.vmem [#allocation3], 6
          // Predicated region
          $region93: #{tpu_custom_call.1} parent=67 // pred_check
            _
          $region94: #{tpu_custom_call.1} parent=67 // pred_check_branch
            %476 = sbr.rel target = $region96
          $region95: #{tpu_custom_call.1} parent=67 // pred_region
            %477 = sst [smem:[#allocation17]] [#allocation30]
            %478 = sst [smem:[#allocation18]] [#allocation29]
          $region96: #{tpu_custom_call.1} parent=67 // pred_fallthru
            _
          %480 = shalt.err (0)
          %s482 = sshll.u32 %s474, 4
          %s483 = int_to_ptr.vmem [resolvable:$true] %s482
          %485 = dma.hbm_to_vmem [thread:$0]  %s473, 16, %s483, [#allocation4]
          %s486 = sld [smem:[#allocation6 + $0x38]]
          %s487 = smul.addr %s486, 16
          %s488 = scalar_lea.hbm %s5, %s487
          %s489 = scalar_lea.vmem [#allocation3], 7
          // Predicated region
          $region97: #{tpu_custom_call.1} parent=67 // pred_check
            _
          $region98: #{tpu_custom_call.1} parent=67 // pred_check_branch
            %491 = sbr.rel target = $region100
          $region99: #{tpu_custom_call.1} parent=67 // pred_region
            %492 = sst [smem:[#allocation17]] [#allocation32]
            %493 = sst [smem:[#allocation18]] [#allocation31]
          $region100: #{tpu_custom_call.1} parent=67 // pred_fallthru
            _
          %495 = shalt.err (0)
          %s497 = sshll.u32 %s489, 4
          %s498 = int_to_ptr.vmem [resolvable:$true] %s497
          %500 = dma.hbm_to_vmem [thread:$0]  %s488, 16, %s498, [#allocation4]
          %s501 = sld [smem:[#allocation6 + $0x1]]
          %s502 = smul.addr %s501, 16
          %s503 = scalar_lea.hbm %s5, %s502
          %s504 = scalar_lea.vmem [#allocation3], 8
          // Predicated region
          $region101: #{tpu_custom_call.1} parent=67 // pred_check
            _
          $region102: #{tpu_custom_call.1} parent=67 // pred_check_branch
            %506 = sbr.rel target = $region104
          $region103: #{tpu_custom_call.1} parent=67 // pred_region
            %507 = sst [smem:[#allocation17]] [#allocation34]
            %508 = sst [smem:[#allocation18]] [#allocation33]
          $region104: #{tpu_custom_call.1} parent=67 // pred_fallthru
            _
          %510 = shalt.err (0)
          %s512 = sshll.u32 %s504, 4
          %s513 = int_to_ptr.vmem [resolvable:$true] %s512
          %515 = dma.hbm_to_vmem [thread:$0]  %s503, 16, %s513, [#allocation4]
          %s516 = sld [smem:[#allocation6 + $0x9]]
          %s517 = smul.addr %s516, 16
          %s518 = scalar_lea.hbm %s5, %s517
          %s519 = scalar_lea.vmem [#allocation3], 9
          // Predicated region
          $region105: #{tpu_custom_call.1} parent=67 // pred_check
            _
          $region106: #{tpu_custom_call.1} parent=67 // pred_check_branch
            %521 = sbr.rel target = $region108
          $region107: #{tpu_custom_call.1} parent=67 // pred_region
            %522 = sst [smem:[#allocation17]] [#allocation36]
            %523 = sst [smem:[#allocation18]] [#allocation35]
          $region108: #{tpu_custom_call.1} parent=67 // pred_fallthru
            _
          %525 = shalt.err (0)
          %s527 = sshll.u32 %s519, 4
          %s528 = int_to_ptr.vmem [resolvable:$true] %s527
          %530 = dma.hbm_to_vmem [thread:$0]  %s518, 16, %s528, [#allocation4]
          %s531 = sld [smem:[#allocation6 + $0x11]]
          %s532 = smul.addr %s531, 16
          %s533 = scalar_lea.hbm %s5, %s532
          %s534 = scalar_lea.vmem [#allocation3], 10
          // Predicated region
          $region109: #{tpu_custom_call.1} parent=67 // pred_check
            _
          $region110: #{tpu_custom_call.1} parent=67 // pred_check_branch
            %536 = sbr.rel target = $region112
          $region111: #{tpu_custom_call.1} parent=67 // pred_region
            %537 = sst [smem:[#allocation17]] [#allocation38]
            %538 = sst [smem:[#allocation18]] [#allocation37]
          $region112: #{tpu_custom_call.1} parent=67 // pred_fallthru
            _
          %540 = shalt.err (0)
          %s542 = sshll.u32 %s534, 4
          %s543 = int_to_ptr.vmem [resolvable:$true] %s542
          %545 = dma.hbm_to_vmem [thread:$0]  %s533, 16, %s543, [#allocation4]
          %s546 = sld [smem:[#allocation6 + $0x19]]
          %s547 = smul.addr %s546, 16
          %s548 = scalar_lea.hbm %s5, %s547
          %s549 = scalar_lea.vmem [#allocation3], 11
          // Predicated region
          $region113: #{tpu_custom_call.1} parent=67 // pred_check
            _
          $region114: #{tpu_custom_call.1} parent=67 // pred_check_branch
            %551 = sbr.rel target = $region116
          $region115: #{tpu_custom_call.1} parent=67 // pred_region
            %552 = sst [smem:[#allocation17]] [#allocation40]
            %553 = sst [smem:[#allocation18]] [#allocation39]
          $region116: #{tpu_custom_call.1} parent=67 // pred_fallthru
            _
          %555 = shalt.err (0)
          %s557 = sshll.u32 %s549, 4
          %s558 = int_to_ptr.vmem [resolvable:$true] %s557
          %560 = dma.hbm_to_vmem [thread:$0]  %s548, 16, %s558, [#allocation4]
          %s561 = sld [smem:[#allocation6 + $0x21]]
          %s562 = smul.addr %s561, 16
          %s563 = scalar_lea.hbm %s5, %s562
          %s564 = scalar_lea.vmem [#allocation3], 12
          // Predicated region
          $region117: #{tpu_custom_call.1} parent=67 // pred_check
            _
          $region118: #{tpu_custom_call.1} parent=67 // pred_check_branch
            %566 = sbr.rel target = $region120
          $region119: #{tpu_custom_call.1} parent=67 // pred_region
            %567 = sst [smem:[#allocation17]] [#allocation42]
            %568 = sst [smem:[#allocation18]] [#allocation41]
          $region120: #{tpu_custom_call.1} parent=67 // pred_fallthru
            _
          %570 = shalt.err (0)
          %s572 = sshll.u32 %s564, 4
          %s573 = int_to_ptr.vmem [resolvable:$true] %s572
          %575 = dma.hbm_to_vmem [thread:$0]  %s563, 16, %s573, [#allocation4]
          %s576 = sld [smem:[#allocation6 + $0x29]]
          %s577 = smul.addr %s576, 16
          %s578 = scalar_lea.hbm %s5, %s577
          %s579 = scalar_lea.vmem [#allocation3], 13
          // Predicated region
          $region121: #{tpu_custom_call.1} parent=67 // pred_check
            _
          $region122: #{tpu_custom_call.1} parent=67 // pred_check_branch
            %581 = sbr.rel target = $region124
          $region123: #{tpu_custom_call.1} parent=67 // pred_region
            %582 = sst [smem:[#allocation17]] [#allocation44]
            %583 = sst [smem:[#allocation18]] [#allocation43]
          $region124: #{tpu_custom_call.1} parent=67 // pred_fallthru
            _
          %585 = shalt.err (0)
          %s587 = sshll.u32 %s579, 4
          %s588 = int_to_ptr.vmem [resolvable:$true] %s587
          %590 = dma.hbm_to_vmem [thread:$0]  %s578, 16, %s588, [#allocation4]
          %s591 = sld [smem:[#allocation6 + $0x31]]
          %s592 = smul.addr %s591, 16
          %s593 = scalar_lea.hbm %s5, %s592
          %s594 = scalar_lea.vmem [#allocation3], 14
          // Predicated region
          $region125: #{tpu_custom_call.1} parent=67 // pred_check
            _
          $region126: #{tpu_custom_call.1} parent=67 // pred_check_branch
            %596 = sbr.rel target = $region128
          $region127: #{tpu_custom_call.1} parent=67 // pred_region
            %597 = sst [smem:[#allocation17]] [#allocation46]
            %598 = sst [smem:[#allocation18]] [#allocation45]
          $region128: #{tpu_custom_call.1} parent=67 // pred_fallthru
            _
          %600 = shalt.err (0)
          %s602 = sshll.u32 %s594, 4
          %s603 = int_to_ptr.vmem [resolvable:$true] %s602
          %605 = dma.hbm_to_vmem [thread:$0]  %s593, 16, %s603, [#allocation4]
          %s606 = sld [smem:[#allocation6 + $0x39]]
          %s607 = smul.addr %s606, 16
          %s608 = scalar_lea.hbm %s5, %s607
          %s609 = scalar_lea.vmem [#allocation3], 15
          // Predicated region
          $region129: #{tpu_custom_call.1} parent=67 // pred_check
            _
          $region130: #{tpu_custom_call.1} parent=67 // pred_check_branch
            %611 = sbr.rel target = $region132
          $region131: #{tpu_custom_call.1} parent=67 // pred_region
            %612 = sst [smem:[#allocation17]] [#allocation48]
            %613 = sst [smem:[#allocation18]] [#allocation47]
          $region132: #{tpu_custom_call.1} parent=67 // pred_fallthru
            _
          %615 = shalt.err (0)
          %s617 = sshll.u32 %s609, 4
          %s618 = int_to_ptr.vmem [resolvable:$true] %s617
          %620 = dma.hbm_to_vmem [thread:$0]  %s608, 16, %s618, [#allocation4]
          %s621 = sld [smem:[#allocation6 + $0x2]]
          %s622 = smul.addr %s621, 16
          %s623 = scalar_lea.hbm %s5, %s622
          %s624 = scalar_lea.vmem [#allocation3], 16
          // Predicated region
          $region133: #{tpu_custom_call.1} parent=67 // pred_check
            _
          $region134: #{tpu_custom_call.1} parent=67 // pred_check_branch
            %626 = sbr.rel target = $region136
          $region135: #{tpu_custom_call.1} parent=67 // pred_region
            %627 = sst [smem:[#allocation17]] [#allocation50]
            %628 = sst [smem:[#allocation18]] [#allocation49]
          $region136: #{tpu_custom_call.1} parent=67 // pred_fallthru
            _
          %630 = shalt.err (0)
          %s632 = sshll.u32 %s624, 4
          %s633 = int_to_ptr.vmem [resolvable:$true] %s632
          %635 = dma.hbm_to_vmem [thread:$0]  %s623, 16, %s633, [#allocation4]
          %s636 = sld [smem:[#allocation6 + $0xa]]
          %s637 = smul.addr %s636, 16
          %s638 = scalar_lea.hbm %s5, %s637
          %s639 = scalar_lea.vmem [#allocation3], 17
          // Predicated region
          $region137: #{tpu_custom_call.1} parent=67 // pred_check
            _
          $region138: #{tpu_custom_call.1} parent=67 // pred_check_branch
            %641 = sbr.rel target = $region140
          $region139: #{tpu_custom_call.1} parent=67 // pred_region
            %642 = sst [smem:[#allocation17]] [#allocation52]
            %643 = sst [smem:[#allocation18]] [#allocation51]
          $region140: #{tpu_custom_call.1} parent=67 // pred_fallthru
            _
          %645 = shalt.err (0)
          %s647 = sshll.u32 %s639, 4
          %s648 = int_to_ptr.vmem [resolvable:$true] %s647
          %650 = dma.hbm_to_vmem [thread:$0]  %s638, 16, %s648, [#allocation4]
          %s651 = sld [smem:[#allocation6 + $0x12]]
          %s652 = smul.addr %s651, 16
          %s653 = scalar_lea.hbm %s5, %s652
          %s654 = scalar_lea.vmem [#allocation3], 18
          // Predicated region
          $region141: #{tpu_custom_call.1} parent=67 // pred_check
            _
          $region142: #{tpu_custom_call.1} parent=67 // pred_check_branch
            %656 = sbr.rel target = $region144
          $region143: #{tpu_custom_call.1} parent=67 // pred_region
            %657 = sst [smem:[#allocation17]] [#allocation54]
            %658 = sst [smem:[#allocation18]] [#allocation53]
          $region144: #{tpu_custom_call.1} parent=67 // pred_fallthru
            _
          %660 = shalt.err (0)
          %s662 = sshll.u32 %s654, 4
          %s663 = int_to_ptr.vmem [resolvable:$true] %s662
          %665 = dma.hbm_to_vmem [thread:$0]  %s653, 16, %s663, [#allocation4]
          %s666 = sld [smem:[#allocation6 + $0x1a]]
          %s667 = smul.addr %s666, 16
          %s668 = scalar_lea.hbm %s5, %s667
          %s669 = scalar_lea.vmem [#allocation3], 19
          // Predicated region
          $region145: #{tpu_custom_call.1} parent=67 // pred_check
            _
          $region146: #{tpu_custom_call.1} parent=67 // pred_check_branch
            %671 = sbr.rel target = $region148
          $region147: #{tpu_custom_call.1} parent=67 // pred_region
            %672 = sst [smem:[#allocation17]] [#allocation56]
            %673 = sst [smem:[#allocation18]] [#allocation55]
          $region148: #{tpu_custom_call.1} parent=67 // pred_fallthru
            _
          %675 = shalt.err (0)
          %s677 = sshll.u32 %s669, 4
          %s678 = int_to_ptr.vmem [resolvable:$true] %s677
          %680 = dma.hbm_to_vmem [thread:$0]  %s668, 16, %s678, [#allocation4]
          %s681 = sld [smem:[#allocation6 + $0x22]]
          %s682 = smul.addr %s681, 16
          %s683 = scalar_lea.hbm %s5, %s682
          %s684 = scalar_lea.vmem [#allocation3], 20
          // Predicated region
          $region149: #{tpu_custom_call.1} parent=67 // pred_check
            _
          $region150: #{tpu_custom_call.1} parent=67 // pred_check_branch
            %686 = sbr.rel target = $region152
          $region151: #{tpu_custom_call.1} parent=67 // pred_region
            %687 = sst [smem:[#allocation17]] [#allocation58]
            %688 = sst [smem:[#allocation18]] [#allocation57]
          $region152: #{tpu_custom_call.1} parent=67 // pred_fallthru
            _
          %690 = shalt.err (0)
          %s692 = sshll.u32 %s684, 4
          %s693 = int_to_ptr.vmem [resolvable:$true] %s692
          %695 = dma.hbm_to_vmem [thread:$0]  %s683, 16, %s693, [#allocation4]
          %s696 = sld [smem:[#allocation6 + $0x2a]]
          %s697 = smul.addr %s696, 16
          %s698 = scalar_lea.hbm %s5, %s697
          %s699 = scalar_lea.vmem [#allocation3], 21
          // Predicated region
          $region153: #{tpu_custom_call.1} parent=67 // pred_check
            _
          $region154: #{tpu_custom_call.1} parent=67 // pred_check_branch
            %701 = sbr.rel target = $region156
          $region155: #{tpu_custom_call.1} parent=67 // pred_region
            %702 = sst [smem:[#allocation17]] [#allocation60]
            %703 = sst [smem:[#allocation18]] [#allocation59]
          $region156: #{tpu_custom_call.1} parent=67 // pred_fallthru
            _
          %705 = shalt.err (0)
          %s707 = sshll.u32 %s699, 4
          %s708 = int_to_ptr.vmem [resolvable:$true] %s707
          %710 = dma.hbm_to_vmem [thread:$0]  %s698, 16, %s708, [#allocation4]
          %s711 = sld [smem:[#allocation6 + $0x32]]
          %s712 = smul.addr %s711, 16
          %s713 = scalar_lea.hbm %s5, %s712
          %s714 = scalar_lea.vmem [#allocation3], 22
          // Predicated region
          $region157: #{tpu_custom_call.1} parent=67 // pred_check
            _
          $region158: #{tpu_custom_call.1} parent=67 // pred_check_branch
            %716 = sbr.rel target = $region160
          $region159: #{tpu_custom_call.1} parent=67 // pred_region
            %717 = sst [smem:[#allocation17]] [#allocation62]
            %718 = sst [smem:[#allocation18]] [#allocation61]
          $region160: #{tpu_custom_call.1} parent=67 // pred_fallthru
            _
          %720 = shalt.err (0)
          %s722 = sshll.u32 %s714, 4
          %s723 = int_to_ptr.vmem [resolvable:$true] %s722
          %725 = dma.hbm_to_vmem [thread:$0]  %s713, 16, %s723, [#allocation4]
          %s726 = sld [smem:[#allocation6 + $0x3a]]
          %s727 = smul.addr %s726, 16
          %s728 = scalar_lea.hbm %s5, %s727
          %s729 = scalar_lea.vmem [#allocation3], 23
          // Predicated region
          $region161: #{tpu_custom_call.1} parent=67 // pred_check
            _
          $region162: #{tpu_custom_call.1} parent=67 // pred_check_branch
            %731 = sbr.rel target = $region164
          $region163: #{tpu_custom_call.1} parent=67 // pred_region
            %732 = sst [smem:[#allocation17]] [#allocation64]
            %733 = sst [smem:[#allocation18]] [#allocation63]
          $region164: #{tpu_custom_call.1} parent=67 // pred_fallthru
            _
          %735 = shalt.err (0)
          %s737 = sshll.u32 %s729, 4
          %s738 = int_to_ptr.vmem [resolvable:$true] %s737
          %740 = dma.hbm_to_vmem [thread:$0]  %s728, 16, %s738, [#allocation4]
          %s741 = sld [smem:[#allocation6 + $0x3]]
          %s742 = smul.addr %s741, 16
          %s743 = scalar_lea.hbm %s5, %s742
          %s744 = scalar_lea.vmem [#allocation3], 24
          // Predicated region
          $region165: #{tpu_custom_call.1} parent=67 // pred_check
            _
          $region166: #{tpu_custom_call.1} parent=67 // pred_check_branch
            %746 = sbr.rel target = $region168
          $region167: #{tpu_custom_call.1} parent=67 // pred_region
            %747 = sst [smem:[#allocation17]] [#allocation66]
            %748 = sst [smem:[#allocation18]] [#allocation65]
          $region168: #{tpu_custom_call.1} parent=67 // pred_fallthru
            _
          %750 = shalt.err (0)
          %s752 = sshll.u32 %s744, 4
          %s753 = int_to_ptr.vmem [resolvable:$true] %s752
          %755 = dma.hbm_to_vmem [thread:$0]  %s743, 16, %s753, [#allocation4]
          %s756 = sld [smem:[#allocation6 + $0xb]]
          %s757 = smul.addr %s756, 16
          %s758 = scalar_lea.hbm %s5, %s757
          %s759 = scalar_lea.vmem [#allocation3], 25
          // Predicated region
          $region169: #{tpu_custom_call.1} parent=67 // pred_check
            _
          $region170: #{tpu_custom_call.1} parent=67 // pred_check_branch
            %761 = sbr.rel target = $region172
          $region171: #{tpu_custom_call.1} parent=67 // pred_region
            %762 = sst [smem:[#allocation17]] [#allocation68]
            %763 = sst [smem:[#allocation18]] [#allocation67]
          $region172: #{tpu_custom_call.1} parent=67 // pred_fallthru
            _
          %765 = shalt.err (0)
          %s767 = sshll.u32 %s759, 4
          %s768 = int_to_ptr.vmem [resolvable:$true] %s767
          %770 = dma.hbm_to_vmem [thread:$0]  %s758, 16, %s768, [#allocation4]
          %s771 = sld [smem:[#allocation6 + $0x13]]
          %s772 = smul.addr %s771, 16
          %s773 = scalar_lea.hbm %s5, %s772
          %s774 = scalar_lea.vmem [#allocation3], 26
          // Predicated region
          $region173: #{tpu_custom_call.1} parent=67 // pred_check
            _
          $region174: #{tpu_custom_call.1} parent=67 // pred_check_branch
            %776 = sbr.rel target = $region176
          $region175: #{tpu_custom_call.1} parent=67 // pred_region
            %777 = sst [smem:[#allocation17]] [#allocation70]
            %778 = sst [smem:[#allocation18]] [#allocation69]
          $region176: #{tpu_custom_call.1} parent=67 // pred_fallthru
            _
          %780 = shalt.err (0)
          %s782 = sshll.u32 %s774, 4
          %s783 = int_to_ptr.vmem [resolvable:$true] %s782
          %785 = dma.hbm_to_vmem [thread:$0]  %s773, 16, %s783, [#allocation4]
          %s786 = sld [smem:[#allocation6 + $0x1b]]
          %s787 = smul.addr %s786, 16
          %s788 = scalar_lea.hbm %s5, %s787
          %s789 = scalar_lea.vmem [#allocation3], 27
          // Predicated region
          $region177: #{tpu_custom_call.1} parent=67 // pred_check
            _
          $region178: #{tpu_custom_call.1} parent=67 // pred_check_branch
            %791 = sbr.rel target = $region180
          $region179: #{tpu_custom_call.1} parent=67 // pred_region
            %792 = sst [smem:[#allocation17]] [#allocation72]
            %793 = sst [smem:[#allocation18]] [#allocation71]
          $region180: #{tpu_custom_call.1} parent=67 // pred_fallthru
            _
          %795 = shalt.err (0)
          %s797 = sshll.u32 %s789, 4
          %s798 = int_to_ptr.vmem [resolvable:$true] %s797
          %800 = dma.hbm_to_vmem [thread:$0]  %s788, 16, %s798, [#allocation4]
          %s801 = sld [smem:[#allocation6 + $0x23]]
          %s802 = smul.addr %s801, 16
          %s803 = scalar_lea.hbm %s5, %s802
          %s804 = scalar_lea.vmem [#allocation3], 28
          // Predicated region
          $region181: #{tpu_custom_call.1} parent=67 // pred_check
            _
          $region182: #{tpu_custom_call.1} parent=67 // pred_check_branch
            %806 = sbr.rel target = $region184
          $region183: #{tpu_custom_call.1} parent=67 // pred_region
            %807 = sst [smem:[#allocation17]] [#allocation74]
            %808 = sst [smem:[#allocation18]] [#allocation73]
          $region184: #{tpu_custom_call.1} parent=67 // pred_fallthru
            _
          %810 = shalt.err (0)
          %s812 = sshll.u32 %s804, 4
          %s813 = int_to_ptr.vmem [resolvable:$true] %s812
          %815 = dma.hbm_to_vmem [thread:$0]  %s803, 16, %s813, [#allocation4]
          %s816 = sld [smem:[#allocation6 + $0x2b]]
          %s817 = smul.addr %s816, 16
          %s818 = scalar_lea.hbm %s5, %s817
          %s819 = scalar_lea.vmem [#allocation3], 29
          // Predicated region
          $region185: #{tpu_custom_call.1} parent=67 // pred_check
            _
          $region186: #{tpu_custom_call.1} parent=67 // pred_check_branch
            %821 = sbr.rel target = $region188
          $region187: #{tpu_custom_call.1} parent=67 // pred_region
            %822 = sst [smem:[#allocation17]] [#allocation76]
            %823 = sst [smem:[#allocation18]] [#allocation75]
          $region188: #{tpu_custom_call.1} parent=67 // pred_fallthru
            _
          %825 = shalt.err (0)
          %s827 = sshll.u32 %s819, 4
          %s828 = int_to_ptr.vmem [resolvable:$true] %s827
          %830 = dma.hbm_to_vmem [thread:$0]  %s818, 16, %s828, [#allocation4]
          %s831 = sld [smem:[#allocation6 + $0x33]]
          %s832 = smul.addr %s831, 16
          %s833 = scalar_lea.hbm %s5, %s832
          %s834 = scalar_lea.vmem [#allocation3], 30
          // Predicated region
          $region189: #{tpu_custom_call.1} parent=67 // pred_check
            _
          $region190: #{tpu_custom_call.1} parent=67 // pred_check_branch
            %836 = sbr.rel target = $region192
          $region191: #{tpu_custom_call.1} parent=67 // pred_region
            %837 = sst [smem:[#allocation17]] [#allocation78]
            %838 = sst [smem:[#allocation18]] [#allocation77]
          $region192: #{tpu_custom_call.1} parent=67 // pred_fallthru
            _
          %840 = shalt.err (0)
          %s842 = sshll.u32 %s834, 4
          %s843 = int_to_ptr.vmem [resolvable:$true] %s842
          %845 = dma.hbm_to_vmem [thread:$0]  %s833, 16, %s843, [#allocation4]
          %s846 = sld [smem:[#allocation6 + $0x3b]]
          %s847 = smul.addr %s846, 16
          %s848 = scalar_lea.hbm %s5, %s847
          %s849 = scalar_lea.vmem [#allocation3], 31
          // Predicated region
          $region193: #{tpu_custom_call.1} parent=67 // pred_check
            _
          $region194: #{tpu_custom_call.1} parent=67 // pred_check_branch
            %851 = sbr.rel target = $region196
          $region195: #{tpu_custom_call.1} parent=67 // pred_region
            %852 = sst [smem:[#allocation17]] [#allocation80]
            %853 = sst [smem:[#allocation18]] [#allocation79]
          $region196: #{tpu_custom_call.1} parent=67 // pred_fallthru
            _
          %855 = shalt.err (0)
          %s857 = sshll.u32 %s849, 4
          %s858 = int_to_ptr.vmem [resolvable:$true] %s857
          %860 = dma.hbm_to_vmem [thread:$0]  %s848, 16, %s858, [#allocation4]
          %s861 = sld [smem:[#allocation6 + $0x4]]
          %s862 = smul.addr %s861, 16
          %s863 = scalar_lea.hbm %s5, %s862
          %s864 = scalar_lea.vmem [#allocation3], 32
          // Predicated region
          $region197: #{tpu_custom_call.1} parent=67 // pred_check
            _
          $region198: #{tpu_custom_call.1} parent=67 // pred_check_branch
            %866 = sbr.rel target = $region200
          $region199: #{tpu_custom_call.1} parent=67 // pred_region
            %867 = sst [smem:[#allocation17]] [#allocation82]
            %868 = sst [smem:[#allocation18]] [#allocation81]
          $region200: #{tpu_custom_call.1} parent=67 // pred_fallthru
            _
          %870 = shalt.err (0)
          %s872 = sshll.u32 %s864, 4
          %s873 = int_to_ptr.vmem [resolvable:$true] %s872
          %875 = dma.hbm_to_vmem [thread:$0]  %s863, 16, %s873, [#allocation4]
          %s876 = sld [smem:[#allocation6 + $0xc]]
          %s877 = smul.addr %s876, 16
          %s878 = scalar_lea.hbm %s5, %s877
          %s879 = scalar_lea.vmem [#allocation3], 33
          // Predicated region
          $region201: #{tpu_custom_call.1} parent=67 // pred_check
            _
          $region202: #{tpu_custom_call.1} parent=67 // pred_check_branch
            %881 = sbr.rel target = $region204
          $region203: #{tpu_custom_call.1} parent=67 // pred_region
            %882 = sst [smem:[#allocation17]] [#allocation84]
            %883 = sst [smem:[#allocation18]] [#allocation83]
          $region204: #{tpu_custom_call.1} parent=67 // pred_fallthru
            _
          %885 = shalt.err (0)
          %s887 = sshll.u32 %s879, 4
          %s888 = int_to_ptr.vmem [resolvable:$true] %s887
          %890 = dma.hbm_to_vmem [thread:$0]  %s878, 16, %s888, [#allocation4]
          %s891 = sld [smem:[#allocation6 + $0x14]]
          %s892 = smul.addr %s891, 16
          %s893 = scalar_lea.hbm %s5, %s892
          %s894 = scalar_lea.vmem [#allocation3], 34
          // Predicated region
          $region205: #{tpu_custom_call.1} parent=67 // pred_check
            _
          $region206: #{tpu_custom_call.1} parent=67 // pred_check_branch
            %896 = sbr.rel target = $region208
          $region207: #{tpu_custom_call.1} parent=67 // pred_region
            %897 = sst [smem:[#allocation17]] [#allocation86]
            %898 = sst [smem:[#allocation18]] [#allocation85]
          $region208: #{tpu_custom_call.1} parent=67 // pred_fallthru
            _
          %900 = shalt.err (0)
          %s902 = sshll.u32 %s894, 4
          %s903 = int_to_ptr.vmem [resolvable:$true] %s902
          %905 = dma.hbm_to_vmem [thread:$0]  %s893, 16, %s903, [#allocation4]
          %s906 = sld [smem:[#allocation6 + $0x1c]]
          %s907 = smul.addr %s906, 16
          %s908 = scalar_lea.hbm %s5, %s907
          %s909 = scalar_lea.vmem [#allocation3], 35
          // Predicated region
          $region209: #{tpu_custom_call.1} parent=67 // pred_check
            _
          $region210: #{tpu_custom_call.1} parent=67 // pred_check_branch
            %911 = sbr.rel target = $region212
          $region211: #{tpu_custom_call.1} parent=67 // pred_region
            %912 = sst [smem:[#allocation17]] [#allocation88]
            %913 = sst [smem:[#allocation18]] [#allocation87]
          $region212: #{tpu_custom_call.1} parent=67 // pred_fallthru
            _
          %915 = shalt.err (0)
          %s917 = sshll.u32 %s909, 4
          %s918 = int_to_ptr.vmem [resolvable:$true] %s917
          %920 = dma.hbm_to_vmem [thread:$0]  %s908, 16, %s918, [#allocation4]
          %s921 = sld [smem:[#allocation6 + $0x24]]
          %s922 = smul.addr %s921, 16
          %s923 = scalar_lea.hbm %s5, %s922
          %s924 = scalar_lea.vmem [#allocation3], 36
          // Predicated region
          $region213: #{tpu_custom_call.1} parent=67 // pred_check
            _
          $region214: #{tpu_custom_call.1} parent=67 // pred_check_branch
            %926 = sbr.rel target = $region216
          $region215: #{tpu_custom_call.1} parent=67 // pred_region
            %927 = sst [smem:[#allocation17]] [#allocation90]
            %928 = sst [smem:[#allocation18]] [#allocation89]
          $region216: #{tpu_custom_call.1} parent=67 // pred_fallthru
            _
          %930 = shalt.err (0)
          %s932 = sshll.u32 %s924, 4
          %s933 = int_to_ptr.vmem [resolvable:$true] %s932
          %935 = dma.hbm_to_vmem [thread:$0]  %s923, 16, %s933, [#allocation4]
          %s936 = sld [smem:[#allocation6 + $0x2c]]
          %s937 = smul.addr %s936, 16
          %s938 = scalar_lea.hbm %s5, %s937
          %s939 = scalar_lea.vmem [#allocation3], 37
          // Predicated region
          $region217: #{tpu_custom_call.1} parent=67 // pred_check
            _
          $region218: #{tpu_custom_call.1} parent=67 // pred_check_branch
            %941 = sbr.rel target = $region220
          $region219: #{tpu_custom_call.1} parent=67 // pred_region
            %942 = sst [smem:[#allocation17]] [#allocation92]
            %943 = sst [smem:[#allocation18]] [#allocation91]
          $region220: #{tpu_custom_call.1} parent=67 // pred_fallthru
            _
          %945 = shalt.err (0)
          %s947 = sshll.u32 %s939, 4
          %s948 = int_to_ptr.vmem [resolvable:$true] %s947
          %950 = dma.hbm_to_vmem [thread:$0]  %s938, 16, %s948, [#allocation4]
          %s951 = sld [smem:[#allocation6 + $0x34]]
          %s952 = smul.addr %s951, 16
          %s953 = scalar_lea.hbm %s5, %s952
          %s954 = scalar_lea.vmem [#allocation3], 38
          // Predicated region
          $region221: #{tpu_custom_call.1} parent=67 // pred_check
            _
          $region222: #{tpu_custom_call.1} parent=67 // pred_check_branch
            %956 = sbr.rel target = $region224
          $region223: #{tpu_custom_call.1} parent=67 // pred_region
            %957 = sst [smem:[#allocation17]] [#allocation94]
            %958 = sst [smem:[#allocation18]] [#allocation93]
          $region224: #{tpu_custom_call.1} parent=67 // pred_fallthru
            _
          %960 = shalt.err (0)
          %s962 = sshll.u32 %s954, 4
          %s963 = int_to_ptr.vmem [resolvable:$true] %s962
          %965 = dma.hbm_to_vmem [thread:$0]  %s953, 16, %s963, [#allocation4]
          %s966 = sld [smem:[#allocation6 + $0x3c]]
          %s967 = smul.addr %s966, 16
          %s968 = scalar_lea.hbm %s5, %s967
          %s969 = scalar_lea.vmem [#allocation3], 39
          // Predicated region
          $region225: #{tpu_custom_call.1} parent=67 // pred_check
            _
          $region226: #{tpu_custom_call.1} parent=67 // pred_check_branch
            %971 = sbr.rel target = $region228
          $region227: #{tpu_custom_call.1} parent=67 // pred_region
            %972 = sst [smem:[#allocation17]] [#allocation96]
            %973 = sst [smem:[#allocation18]] [#allocation95]
          $region228: #{tpu_custom_call.1} parent=67 // pred_fallthru
            _
          %975 = shalt.err (0)
          %s977 = sshll.u32 %s969, 4
          %s978 = int_to_ptr.vmem [resolvable:$true] %s977
          %980 = dma.hbm_to_vmem [thread:$0]  %s968, 16, %s978, [#allocation4]
          %s981 = sld [smem:[#allocation6 + $0x5]]
          %s982 = smul.addr %s981, 16
          %s983 = scalar_lea.hbm %s5, %s982
          %s984 = scalar_lea.vmem [#allocation3], 40
          // Predicated region
          $region229: #{tpu_custom_call.1} parent=67 // pred_check
            _
          $region230: #{tpu_custom_call.1} parent=67 // pred_check_branch
            %986 = sbr.rel target = $region232
          $region231: #{tpu_custom_call.1} parent=67 // pred_region
            %987 = sst [smem:[#allocation17]] [#allocation98]
            %988 = sst [smem:[#allocation18]] [#allocation97]
          $region232: #{tpu_custom_call.1} parent=67 // pred_fallthru
            _
          %990 = shalt.err (0)
          %s992 = sshll.u32 %s984, 4
          %s993 = int_to_ptr.vmem [resolvable:$true] %s992
          %995 = dma.hbm_to_vmem [thread:$0]  %s983, 16, %s993, [#allocation4]
          %s996 = sld [smem:[#allocation6 + $0xd]]
          %s997 = smul.addr %s996, 16
          %s998 = scalar_lea.hbm %s5, %s997
          %s999 = scalar_lea.vmem [#allocation3], 41
          // Predicated region
          $region233: #{tpu_custom_call.1} parent=67 // pred_check
            _
          $region234: #{tpu_custom_call.1} parent=67 // pred_check_branch
            %1001 = sbr.rel target = $region236
          $region235: #{tpu_custom_call.1} parent=67 // pred_region
            %1002 = sst [smem:[#allocation17]] [#allocation100]
            %1003 = sst [smem:[#allocation18]] [#allocation99]
          $region236: #{tpu_custom_call.1} parent=67 // pred_fallthru
            _
          %1005 = shalt.err (0)
          %s1007 = sshll.u32 %s999, 4
          %s1008 = int_to_ptr.vmem [resolvable:$true] %s1007
          %1010 = dma.hbm_to_vmem [thread:$0]  %s998, 16, %s1008, [#allocation4]
          %s1011 = sld [smem:[#allocation6 + $0x15]]
          %s1012 = smul.addr %s1011, 16
          %s1013 = scalar_lea.hbm %s5, %s1012
          %s1014 = scalar_lea.vmem [#allocation3], 42
          // Predicated region
          $region237: #{tpu_custom_call.1} parent=67 // pred_check
            _
          $region238: #{tpu_custom_call.1} parent=67 // pred_check_branch
            %1016 = sbr.rel target = $region240
          $region239: #{tpu_custom_call.1} parent=67 // pred_region
            %1017 = sst [smem:[#allocation17]] [#allocation102]
            %1018 = sst [smem:[#allocation18]] [#allocation101]
          $region240: #{tpu_custom_call.1} parent=67 // pred_fallthru
            _
          %1020 = shalt.err (0)
          %s1022 = sshll.u32 %s1014, 4
          %s1023 = int_to_ptr.vmem [resolvable:$true] %s1022
          %1025 = dma.hbm_to_vmem [thread:$0]  %s1013, 16, %s1023, [#allocation4]
          %s1026 = sld [smem:[#allocation6 + $0x1d]]
          %s1027 = smul.addr %s1026, 16
          %s1028 = scalar_lea.hbm %s5, %s1027
          %s1029 = scalar_lea.vmem [#allocation3], 43
          // Predicated region
          $region241: #{tpu_custom_call.1} parent=67 // pred_check
            _
          $region242: #{tpu_custom_call.1} parent=67 // pred_check_branch
            %1031 = sbr.rel target = $region244
          $region243: #{tpu_custom_call.1} parent=67 // pred_region
            %1032 = sst [smem:[#allocation17]] [#allocation104]
            %1033 = sst [smem:[#allocation18]] [#allocation103]
          $region244: #{tpu_custom_call.1} parent=67 // pred_fallthru
            _
          %1035 = shalt.err (0)
          %s1037 = sshll.u32 %s1029, 4
          %s1038 = int_to_ptr.vmem [resolvable:$true] %s1037
          %1040 = dma.hbm_to_vmem [thread:$0]  %s1028, 16, %s1038, [#allocation4]
          %s1041 = sld [smem:[#allocation6 + $0x25]]
          %s1042 = smul.addr %s1041, 16
          %s1043 = scalar_lea.hbm %s5, %s1042
          %s1044 = scalar_lea.vmem [#allocation3], 44
          // Predicated region
          $region245: #{tpu_custom_call.1} parent=67 // pred_check
            _
          $region246: #{tpu_custom_call.1} parent=67 // pred_check_branch
            %1046 = sbr.rel target = $region248
          $region247: #{tpu_custom_call.1} parent=67 // pred_region
            %1047 = sst [smem:[#allocation17]] [#allocation106]
            %1048 = sst [smem:[#allocation18]] [#allocation105]
          $region248: #{tpu_custom_call.1} parent=67 // pred_fallthru
            _
          %1050 = shalt.err (0)
          %s1052 = sshll.u32 %s1044, 4
          %s1053 = int_to_ptr.vmem [resolvable:$true] %s1052
          %1055 = dma.hbm_to_vmem [thread:$0]  %s1043, 16, %s1053, [#allocation4]
          %s1056 = sld [smem:[#allocation6 + $0x2d]]
          %s1057 = smul.addr %s1056, 16
          %s1058 = scalar_lea.hbm %s5, %s1057
          %s1059 = scalar_lea.vmem [#allocation3], 45
          // Predicated region
          $region249: #{tpu_custom_call.1} parent=67 // pred_check
            _
          $region250: #{tpu_custom_call.1} parent=67 // pred_check_branch
            %1061 = sbr.rel target = $region252
          $region251: #{tpu_custom_call.1} parent=67 // pred_region
            %1062 = sst [smem:[#allocation17]] [#allocation108]
            %1063 = sst [smem:[#allocation18]] [#allocation107]
          $region252: #{tpu_custom_call.1} parent=67 // pred_fallthru
            _
          %1065 = shalt.err (0)
          %s1067 = sshll.u32 %s1059, 4
          %s1068 = int_to_ptr.vmem [resolvable:$true] %s1067
          %1070 = dma.hbm_to_vmem [thread:$0]  %s1058, 16, %s1068, [#allocation4]
          %s1071 = sld [smem:[#allocation6 + $0x35]]
          %s1072 = smul.addr %s1071, 16
          %s1073 = scalar_lea.hbm %s5, %s1072
          %s1074 = scalar_lea.vmem [#allocation3], 46
          // Predicated region
          $region253: #{tpu_custom_call.1} parent=67 // pred_check
            _
          $region254: #{tpu_custom_call.1} parent=67 // pred_check_branch
            %1076 = sbr.rel target = $region256
          $region255: #{tpu_custom_call.1} parent=67 // pred_region
            %1077 = sst [smem:[#allocation17]] [#allocation110]
            %1078 = sst [smem:[#allocation18]] [#allocation109]
          $region256: #{tpu_custom_call.1} parent=67 // pred_fallthru
            _
          %1080 = shalt.err (0)
          %s1082 = sshll.u32 %s1074, 4
          %s1083 = int_to_ptr.vmem [resolvable:$true] %s1082
          %1085 = dma.hbm_to_vmem [thread:$0]  %s1073, 16, %s1083, [#allocation4]
          %s1086 = sld [smem:[#allocation6 + $0x3d]]
          %s1087 = smul.addr %s1086, 16
          %s1088 = scalar_lea.hbm %s5, %s1087
          %s1089 = scalar_lea.vmem [#allocation3], 47
          // Predicated region
          $region257: #{tpu_custom_call.1} parent=67 // pred_check
            _
          $region258: #{tpu_custom_call.1} parent=67 // pred_check_branch
            %1091 = sbr.rel target = $region260
          $region259: #{tpu_custom_call.1} parent=67 // pred_region
            %1092 = sst [smem:[#allocation17]] [#allocation112]
            %1093 = sst [smem:[#allocation18]] [#allocation111]
          $region260: #{tpu_custom_call.1} parent=67 // pred_fallthru
            _
          %1095 = shalt.err (0)
          %s1097 = sshll.u32 %s1089, 4
          %s1098 = int_to_ptr.vmem [resolvable:$true] %s1097
          %1100 = dma.hbm_to_vmem [thread:$0]  %s1088, 16, %s1098, [#allocation4]
          %s1101 = sld [smem:[#allocation6 + $0x6]]
          %s1102 = smul.addr %s1101, 16
          %s1103 = scalar_lea.hbm %s5, %s1102
          %s1104 = scalar_lea.vmem [#allocation3], 48
          // Predicated region
          $region261: #{tpu_custom_call.1} parent=67 // pred_check
            _
          $region262: #{tpu_custom_call.1} parent=67 // pred_check_branch
            %1106 = sbr.rel target = $region264
          $region263: #{tpu_custom_call.1} parent=67 // pred_region
            %1107 = sst [smem:[#allocation17]] [#allocation114]
            %1108 = sst [smem:[#allocation18]] [#allocation113]
          $region264: #{tpu_custom_call.1} parent=67 // pred_fallthru
            _
          %1110 = shalt.err (0)
          %s1112 = sshll.u32 %s1104, 4
          %s1113 = int_to_ptr.vmem [resolvable:$true] %s1112
          %1115 = dma.hbm_to_vmem [thread:$0]  %s1103, 16, %s1113, [#allocation4]
          %s1116 = sld [smem:[#allocation6 + $0xe]]
          %s1117 = smul.addr %s1116, 16
          %s1118 = scalar_lea.hbm %s5, %s1117
          %s1119 = scalar_lea.vmem [#allocation3], 49
          // Predicated region
          $region265: #{tpu_custom_call.1} parent=67 // pred_check
            _
          $region266: #{tpu_custom_call.1} parent=67 // pred_check_branch
            %1121 = sbr.rel target = $region268
          $region267: #{tpu_custom_call.1} parent=67 // pred_region
            %1122 = sst [smem:[#allocation17]] [#allocation116]
            %1123 = sst [smem:[#allocation18]] [#allocation115]
          $region268: #{tpu_custom_call.1} parent=67 // pred_fallthru
            _
          %1125 = shalt.err (0)
          %s1127 = sshll.u32 %s1119, 4
          %s1128 = int_to_ptr.vmem [resolvable:$true] %s1127
          %1130 = dma.hbm_to_vmem [thread:$0]  %s1118, 16, %s1128, [#allocation4]
          %s1131 = sld [smem:[#allocation6 + $0x16]]
          %s1132 = smul.addr %s1131, 16
          %s1133 = scalar_lea.hbm %s5, %s1132
          %s1134 = scalar_lea.vmem [#allocation3], 50
          // Predicated region
          $region269: #{tpu_custom_call.1} parent=67 // pred_check
            _
          $region270: #{tpu_custom_call.1} parent=67 // pred_check_branch
            %1136 = sbr.rel target = $region272
          $region271: #{tpu_custom_call.1} parent=67 // pred_region
            %1137 = sst [smem:[#allocation17]] [#allocation118]
            %1138 = sst [smem:[#allocation18]] [#allocation117]
          $region272: #{tpu_custom_call.1} parent=67 // pred_fallthru
            _
          %1140 = shalt.err (0)
          %s1142 = sshll.u32 %s1134, 4
          %s1143 = int_to_ptr.vmem [resolvable:$true] %s1142
          %1145 = dma.hbm_to_vmem [thread:$0]  %s1133, 16, %s1143, [#allocation4]
          %s1146 = sld [smem:[#allocation6 + $0x1e]]
          %s1147 = smul.addr %s1146, 16
          %s1148 = scalar_lea.hbm %s5, %s1147
          %s1149 = scalar_lea.vmem [#allocation3], 51
          // Predicated region
          $region273: #{tpu_custom_call.1} parent=67 // pred_check
            _
          $region274: #{tpu_custom_call.1} parent=67 // pred_check_branch
            %1151 = sbr.rel target = $region276
          $region275: #{tpu_custom_call.1} parent=67 // pred_region
            %1152 = sst [smem:[#allocation17]] [#allocation120]
            %1153 = sst [smem:[#allocation18]] [#allocation119]
          $region276: #{tpu_custom_call.1} parent=67 // pred_fallthru
            _
          %1155 = shalt.err (0)
          %s1157 = sshll.u32 %s1149, 4
          %s1158 = int_to_ptr.vmem [resolvable:$true] %s1157
          %1160 = dma.hbm_to_vmem [thread:$0]  %s1148, 16, %s1158, [#allocation4]
          %s1161 = sld [smem:[#allocation6 + $0x26]]
          %s1162 = smul.addr %s1161, 16
          %s1163 = scalar_lea.hbm %s5, %s1162
          %s1164 = scalar_lea.vmem [#allocation3], 52
          // Predicated region
          $region277: #{tpu_custom_call.1} parent=67 // pred_check
            _
          $region278: #{tpu_custom_call.1} parent=67 // pred_check_branch
            %1166 = sbr.rel target = $region280
          $region279: #{tpu_custom_call.1} parent=67 // pred_region
            %1167 = sst [smem:[#allocation17]] [#allocation122]
            %1168 = sst [smem:[#allocation18]] [#allocation121]
          $region280: #{tpu_custom_call.1} parent=67 // pred_fallthru
            _
          %1170 = shalt.err (0)
          %s1172 = sshll.u32 %s1164, 4
          %s1173 = int_to_ptr.vmem [resolvable:$true] %s1172
          %1175 = dma.hbm_to_vmem [thread:$0]  %s1163, 16, %s1173, [#allocation4]
          %s1176 = sld [smem:[#allocation6 + $0x2e]]
          %s1177 = smul.addr %s1176, 16
          %s1178 = scalar_lea.hbm %s5, %s1177
          %s1179 = scalar_lea.vmem [#allocation3], 53
          // Predicated region
          $region281: #{tpu_custom_call.1} parent=67 // pred_check
            _
          $region282: #{tpu_custom_call.1} parent=67 // pred_check_branch
            %1181 = sbr.rel target = $region284
          $region283: #{tpu_custom_call.1} parent=67 // pred_region
            %1182 = sst [smem:[#allocation17]] [#allocation124]
            %1183 = sst [smem:[#allocation18]] [#allocation123]
          $region284: #{tpu_custom_call.1} parent=67 // pred_fallthru
            _
          %1185 = shalt.err (0)
          %s1187 = sshll.u32 %s1179, 4
          %s1188 = int_to_ptr.vmem [resolvable:$true] %s1187
          %1190 = dma.hbm_to_vmem [thread:$0]  %s1178, 16, %s1188, [#allocation4]
          %s1191 = sld [smem:[#allocation6 + $0x36]]
          %s1192 = smul.addr %s1191, 16
          %s1193 = scalar_lea.hbm %s5, %s1192
          %s1194 = scalar_lea.vmem [#allocation3], 54
          // Predicated region
          $region285: #{tpu_custom_call.1} parent=67 // pred_check
            _
          $region286: #{tpu_custom_call.1} parent=67 // pred_check_branch
            %1196 = sbr.rel target = $region288
          $region287: #{tpu_custom_call.1} parent=67 // pred_region
            %1197 = sst [smem:[#allocation17]] [#allocation126]
            %1198 = sst [smem:[#allocation18]] [#allocation125]
          $region288: #{tpu_custom_call.1} parent=67 // pred_fallthru
            _
          %1200 = shalt.err (0)
          %s1202 = sshll.u32 %s1194, 4
          %s1203 = int_to_ptr.vmem [resolvable:$true] %s1202
          %1205 = dma.hbm_to_vmem [thread:$0]  %s1193, 16, %s1203, [#allocation4]
          %s1206 = sld [smem:[#allocation6 + $0x3e]]
          %s1207 = smul.addr %s1206, 16
          %s1208 = scalar_lea.hbm %s5, %s1207
          %s1209 = scalar_lea.vmem [#allocation3], 55
          // Predicated region
          $region289: #{tpu_custom_call.1} parent=67 // pred_check
            _
          $region290: #{tpu_custom_call.1} parent=67 // pred_check_branch
            %1211 = sbr.rel target = $region292
          $region291: #{tpu_custom_call.1} parent=67 // pred_region
            %1212 = sst [smem:[#allocation17]] [#allocation128]
            %1213 = sst [smem:[#allocation18]] [#allocation127]
          $region292: #{tpu_custom_call.1} parent=67 // pred_fallthru
            _
          %1215 = shalt.err (0)
          %s1217 = sshll.u32 %s1209, 4
          %s1218 = int_to_ptr.vmem [resolvable:$true] %s1217
          %1220 = dma.hbm_to_vmem [thread:$0]  %s1208, 16, %s1218, [#allocation4]
          %s1221 = sld [smem:[#allocation6 + $0x7]]
          %s1222 = smul.addr %s1221, 16
          %s1223 = scalar_lea.hbm %s5, %s1222
          %s1224 = scalar_lea.vmem [#allocation3], 56
          // Predicated region
          $region293: #{tpu_custom_call.1} parent=67 // pred_check
            _
          $region294: #{tpu_custom_call.1} parent=67 // pred_check_branch
            %1226 = sbr.rel target = $region296
          $region295: #{tpu_custom_call.1} parent=67 // pred_region
            %1227 = sst [smem:[#allocation17]] [#allocation130]
            %1228 = sst [smem:[#allocation18]] [#allocation129]
          $region296: #{tpu_custom_call.1} parent=67 // pred_fallthru
            _
          %1230 = shalt.err (0)
          %s1232 = sshll.u32 %s1224, 4
          %s1233 = int_to_ptr.vmem [resolvable:$true] %s1232
          %1235 = dma.hbm_to_vmem [thread:$0]  %s1223, 16, %s1233, [#allocation4]
          %s1236 = sld [smem:[#allocation6 + $0xf]]
          %s1237 = smul.addr %s1236, 16
          %s1238 = scalar_lea.hbm %s5, %s1237
          %s1239 = scalar_lea.vmem [#allocation3], 57
          // Predicated region
          $region297: #{tpu_custom_call.1} parent=67 // pred_check
            _
          $region298: #{tpu_custom_call.1} parent=67 // pred_check_branch
            %1241 = sbr.rel target = $region300
          $region299: #{tpu_custom_call.1} parent=67 // pred_region
            %1242 = sst [smem:[#allocation17]] [#allocation132]
            %1243 = sst [smem:[#allocation18]] [#allocation131]
          $region300: #{tpu_custom_call.1} parent=67 // pred_fallthru
            _
          %1245 = shalt.err (0)
          %s1247 = sshll.u32 %s1239, 4
          %s1248 = int_to_ptr.vmem [resolvable:$true] %s1247
          %1250 = dma.hbm_to_vmem [thread:$0]  %s1238, 16, %s1248, [#allocation4]
          %s1251 = sld [smem:[#allocation6 + $0x17]]
          %s1252 = smul.addr %s1251, 16
          %s1253 = scalar_lea.hbm %s5, %s1252
          %s1254 = scalar_lea.vmem [#allocation3], 58
          // Predicated region
          $region301: #{tpu_custom_call.1} parent=67 // pred_check
            _
          $region302: #{tpu_custom_call.1} parent=67 // pred_check_branch
            %1256 = sbr.rel target = $region304
          $region303: #{tpu_custom_call.1} parent=67 // pred_region
            %1257 = sst [smem:[#allocation17]] [#allocation134]
            %1258 = sst [smem:[#allocation18]] [#allocation133]
          $region304: #{tpu_custom_call.1} parent=67 // pred_fallthru
            _
          %1260 = shalt.err (0)
          %s1262 = sshll.u32 %s1254, 4
          %s1263 = int_to_ptr.vmem [resolvable:$true] %s1262
          %1265 = dma.hbm_to_vmem [thread:$0]  %s1253, 16, %s1263, [#allocation4]
          %s1266 = sld [smem:[#allocation6 + $0x1f]]
          %s1267 = smul.addr %s1266, 16
          %s1268 = scalar_lea.hbm %s5, %s1267
          %s1269 = scalar_lea.vmem [#allocation3], 59
          // Predicated region
          $region305: #{tpu_custom_call.1} parent=67 // pred_check
            _
          $region306: #{tpu_custom_call.1} parent=67 // pred_check_branch
            %1271 = sbr.rel target = $region308
          $region307: #{tpu_custom_call.1} parent=67 // pred_region
            %1272 = sst [smem:[#allocation17]] [#allocation136]
            %1273 = sst [smem:[#allocation18]] [#allocation135]
          $region308: #{tpu_custom_call.1} parent=67 // pred_fallthru
            _
          %1275 = shalt.err (0)
          %s1277 = sshll.u32 %s1269, 4
          %s1278 = int_to_ptr.vmem [resolvable:$true] %s1277
          %1280 = dma.hbm_to_vmem [thread:$0]  %s1268, 16, %s1278, [#allocation4]
          %s1281 = sld [smem:[#allocation6 + $0x27]]
          %s1282 = smul.addr %s1281, 16
          %s1283 = scalar_lea.hbm %s5, %s1282
          %s1284 = scalar_lea.vmem [#allocation3], 60
          // Predicated region
          $region309: #{tpu_custom_call.1} parent=67 // pred_check
            _
          $region310: #{tpu_custom_call.1} parent=67 // pred_check_branch
            %1286 = sbr.rel target = $region312
          $region311: #{tpu_custom_call.1} parent=67 // pred_region
            %1287 = sst [smem:[#allocation17]] [#allocation138]
            %1288 = sst [smem:[#allocation18]] [#allocation137]
          $region312: #{tpu_custom_call.1} parent=67 // pred_fallthru
            _
          %1290 = shalt.err (0)
          %s1292 = sshll.u32 %s1284, 4
          %s1293 = int_to_ptr.vmem [resolvable:$true] %s1292
          %1295 = dma.hbm_to_vmem [thread:$0]  %s1283, 16, %s1293, [#allocation4]
          %s1296 = sld [smem:[#allocation6 + $0x2f]]
          %s1297 = smul.addr %s1296, 16
          %s1298 = scalar_lea.hbm %s5, %s1297
          %s1299 = scalar_lea.vmem [#allocation3], 61
          // Predicated region
          $region313: #{tpu_custom_call.1} parent=67 // pred_check
            _
          $region314: #{tpu_custom_call.1} parent=67 // pred_check_branch
            %1301 = sbr.rel target = $region316
          $region315: #{tpu_custom_call.1} parent=67 // pred_region
            %1302 = sst [smem:[#allocation17]] [#allocation140]
            %1303 = sst [smem:[#allocation18]] [#allocation139]
          $region316: #{tpu_custom_call.1} parent=67 // pred_fallthru
            _
          %1305 = shalt.err (0)
          %s1307 = sshll.u32 %s1299, 4
          %s1308 = int_to_ptr.vmem [resolvable:$true] %s1307
          %1310 = dma.hbm_to_vmem [thread:$0]  %s1298, 16, %s1308, [#allocation4]
          %s1311 = sld [smem:[#allocation6 + $0x37]]
          %s1312 = smul.addr %s1311, 16
          %s1313 = scalar_lea.hbm %s5, %s1312
          %s1314 = scalar_lea.vmem [#allocation3], 62
          // Predicated region
          $region317: #{tpu_custom_call.1} parent=67 // pred_check
            _
          $region318: #{tpu_custom_call.1} parent=67 // pred_check_branch
            %1316 = sbr.rel target = $region320
          $region319: #{tpu_custom_call.1} parent=67 // pred_region
            %1317 = sst [smem:[#allocation17]] [#allocation142]
            %1318 = sst [smem:[#allocation18]] [#allocation141]
          $region320: #{tpu_custom_call.1} parent=67 // pred_fallthru
            _
          %1320 = shalt.err (0)
          %s1322 = sshll.u32 %s1314, 4
          %s1323 = int_to_ptr.vmem [resolvable:$true] %s1322
          %1325 = dma.hbm_to_vmem [thread:$0]  %s1313, 16, %s1323, [#allocation4]
          %s1326 = sld [smem:[#allocation6 + $0x3f]]
          %s1327 = smul.addr %s1326, 16
          %s1328 = scalar_lea.hbm %s5, %s1327
          %s1329 = scalar_lea.vmem [#allocation3], 63
          // Predicated region
          $region321: #{tpu_custom_call.1} parent=67 // pred_check
            _
          $region322: #{tpu_custom_call.1} parent=67 // pred_check_branch
            %1331 = sbr.rel target = $region324
          $region323: #{tpu_custom_call.1} parent=67 // pred_region
            %1332 = sst [smem:[#allocation17]] [#allocation144]
            %1333 = sst [smem:[#allocation18]] [#allocation143]
          $region324: #{tpu_custom_call.1} parent=67 // pred_fallthru
            _
          %1335 = shalt.err (0)
          %s1337 = sshll.u32 %s1329, 4
          %s1338 = int_to_ptr.vmem [resolvable:$true] %s1337
          %1340 = dma.hbm_to_vmem [thread:$0]  %s1328, 16, %s1338, [#allocation4]
        $region68: #{tpu_custom_call.1} parent=47 // pred_fallthru
          _
        %v1341 = vld [vmem:[#allocation2] sm:$0xff]
        %v1342 = vld [vmem:[%s329] sm:$0xff]
        %v1343 = vld [vmem:[%s338] sm:$0xf]
        %v1344 = vld [vmem:[%s338 + $0x4] sm:$0xf]
        %v1345 = vld [vmem:[%s338 + $0x8] sm:$0xf]
        %v1346 = vld [vmem:[%s338 + $0xc] sm:$0xf]
        %v1347 = vld [vmem:[%s338 + $0x10] sm:$0xf]
        %v1348 = vld [vmem:[%s338 + $0x14] sm:$0xf]
        %v1349 = vld [vmem:[%s338 + $0x18] sm:$0xf]
        %v1350 = vld [vmem:[%s338 + $0x1c] sm:$0xf]
        %v1351 = vld [vmem:[%s338 + $0x20] sm:$0xf]
        %v1352 = vld [vmem:[%s338 + $0x24] sm:$0xf]
        %v1353 = vld [vmem:[%s338 + $0x28] sm:$0xf]
        %v1354 = vld [vmem:[%s338 + $0x2c] sm:$0xf]
        %v1355 = vld [vmem:[%s338 + $0x30] sm:$0xf]
        %v1356 = vld [vmem:[%s338 + $0x34] sm:$0xf]
        %v1357 = vld [vmem:[%s338 + $0x38] sm:$0xf]
        %v1358 = vld [vmem:[%s338 + $0x3c] sm:$0xf]
        %v1359 = vld [vmem:[%s338 + $0x40] sm:$0xf]
        %v1360 = vld [vmem:[%s338 + $0x44] sm:$0xf]
        %v1361 = vld [vmem:[%s338 + $0x48] sm:$0xf]
        %v1362 = vld [vmem:[%s338 + $0x4c] sm:$0xf]
        %v1363 = vld [vmem:[%s338 + $0x50] sm:$0xf]
        %v1364 = vld [vmem:[%s338 + $0x54] sm:$0xf]
        %v1365 = vld [vmem:[%s338 + $0x58] sm:$0xf]
        %v1366 = vld [vmem:[%s338 + $0x5c] sm:$0xf]
        %v1367 = vld [vmem:[%s338 + $0x60] sm:$0xf]
        %v1368 = vld [vmem:[%s338 + $0x64] sm:$0xf]
        %v1369 = vld [vmem:[%s338 + $0x68] sm:$0xf]
        %v1370 = vld [vmem:[%s338 + $0x6c] sm:$0xf]
        %v1371 = vld [vmem:[%s338 + $0x70] sm:$0xf]
        %v1372 = vld [vmem:[%s338 + $0x74] sm:$0xf]
        %v1373 = vld [vmem:[%s338 + $0x78] sm:$0xf]
        %v1374 = vld [vmem:[%s338 + $0x7c] sm:$0xf]
        %v1376 = vunpack.c.l.b16 %v1342
        %v1377 = vunpack.c.h.b16 %v1342
        %v1378 = vpack.c.b16 %v1376, %v1376
        %v1379 = vpack.c.b16 %v1377, %v1377
        %v1414 = vunpack.c.l.b16 %v1343
        %v1415 = vunpack.c.l.b16 %v1344
        %v1416 = vunpack.c.l.b16 %v1345
        %v1417 = vunpack.c.l.b16 %v1346
        %v1418 = vunpack.c.l.b16 %v1347
        %v1419 = vunpack.c.l.b16 %v1348
        %v1420 = vunpack.c.l.b16 %v1349
        %v1421 = vunpack.c.l.b16 %v1350
        %v1422 = vunpack.c.l.b16 %v1351
        %v1423 = vunpack.c.l.b16 %v1352
        %v1424 = vunpack.c.l.b16 %v1353
        %v1425 = vunpack.c.l.b16 %v1354
        %v1426 = vunpack.c.l.b16 %v1355
        %v1427 = vunpack.c.l.b16 %v1356
        %v1428 = vunpack.c.l.b16 %v1357
        %v1429 = vunpack.c.l.b16 %v1358
        %v1430 = vunpack.c.l.b16 %v1359
        %v1431 = vunpack.c.l.b16 %v1360
        %v1432 = vunpack.c.l.b16 %v1361
        %v1433 = vunpack.c.l.b16 %v1362
        %v1434 = vunpack.c.l.b16 %v1363
        %v1435 = vunpack.c.l.b16 %v1364
        %v1436 = vunpack.c.l.b16 %v1365
        %v1437 = vunpack.c.l.b16 %v1366
        %v1438 = vunpack.c.l.b16 %v1367
        %v1439 = vunpack.c.l.b16 %v1368
        %v1440 = vunpack.c.l.b16 %v1369
        %v1441 = vunpack.c.l.b16 %v1370
        %v1442 = vunpack.c.l.b16 %v1371
        %v1443 = vunpack.c.l.b16 %v1372
        %v1444 = vunpack.c.l.b16 %v1373
        %v1445 = vunpack.c.l.b16 %v1374
        %v1446 = vpack.c.b16 %v1415, %v1414
        %v1447 = vpack.c.b16 %v1417, %v1416
        %v1448 = vpack.c.b16 %v1419, %v1418
        %v1449 = vpack.c.b16 %v1421, %v1420
        %v1450 = vpack.c.b16 %v1423, %v1422
        %v1451 = vpack.c.b16 %v1425, %v1424
        %v1452 = vpack.c.b16 %v1427, %v1426
        %v1453 = vpack.c.b16 %v1429, %v1428
        %v1454 = vpack.c.b16 %v1431, %v1430
        %v1455 = vpack.c.b16 %v1433, %v1432
        %v1456 = vpack.c.b16 %v1435, %v1434
        %v1457 = vpack.c.b16 %v1437, %v1436
        %v1458 = vpack.c.b16 %v1439, %v1438
        %v1459 = vpack.c.b16 %v1441, %v1440
        %v1460 = vpack.c.b16 %v1443, %v1442
        %v1461 = vpack.c.b16 %v1445, %v1444
        %1478 = vmatprep.subr.bf16.mxu0 0
        %1479 = vmatpush1.bf16.msra.mxu0 %v1446
        %1480 = vmatprep.subr.bf16.mxu0 0
        %1481 = vmatpush1.bf16.msra.mxu0 %v1447
        %1482 = vmatprep.subr.bf16.mxu0 0
        %1483 = vmatpush1.bf16.msra.mxu0 %v1448
        %1484 = vmatprep.subr.bf16.mxu0 0
        %1485 = vmatpush1.bf16.msra.mxu0 %v1449
        %1486 = vmatprep.subr.bf16.mxu0 0
        %1487 = vmatpush1.bf16.msra.mxu0 %v1450
        %1488 = vmatprep.subr.bf16.mxu0 0
        %1489 = vmatpush1.bf16.msra.mxu0 %v1451
        %1490 = vmatprep.subr.bf16.mxu0 0
        %1491 = vmatpush1.bf16.msra.mxu0 %v1452
        %1492 = vmatprep.subr.bf16.mxu0 0
        %1493 = vmatpush1.bf16.msra.mxu0 %v1453
        %1494 = vmatprep.subr.bf16.mxu0 0
        %1495 = vmatpush1.bf16.msra.mxu0 %v1454
        %1496 = vmatprep.subr.bf16.mxu0 0
        %1497 = vmatpush1.bf16.msra.mxu0 %v1455
        %1498 = vmatprep.subr.bf16.mxu0 0
        %1499 = vmatpush1.bf16.msra.mxu0 %v1456
        %1500 = vmatprep.subr.bf16.mxu0 0
        %1501 = vmatpush1.bf16.msra.mxu0 %v1457
        %1502 = vmatprep.subr.bf16.mxu0 0
        %1503 = vmatpush1.bf16.msra.mxu0 %v1458
        %1504 = vmatprep.subr.bf16.mxu0 0
        %1505 = vmatpush1.bf16.msra.mxu0 %v1459
        %1506 = vmatprep.subr.bf16.mxu0 0
        %1507 = vmatpush1.bf16.msra.mxu0 %v1460
        %1508 = vmatprep.subr.bf16.mxu0 0
        %1509 = vmatpush1.bf16.msra.mxu0 %v1461
        %1510 = vmatprep.mubr.bf16.mxu0 %v1379
        %1511 = vmatmul.mubr.bf16.gmra.mrb[0].mxu0 %v1378
        %v1512 = vpop.f32.mrb[0].mxu0
        %v1513 = vadd.f32 0.0, %v1512
        %v1514 = vpop.f32.mrb[0].mxu0
        %v1515 = vpop.f32.mrb[0].mxu0
        %v1516 = vpop.f32.mrb[0].mxu0
        %1517 = vdwg.mxu0
        %v1518 = vadd.f32 %v1341, %v1513
        %1519 = vst [vmem:[#allocation2] sm:$0xff] %v1518
        %p1520 = scmp.eq.s32.totalorder %s33, 2
        // Predicated region
        $region325: #{tpu_custom_call.1} parent=47 // pred_check
          %p1521 = pneg %p1520
        $region326: #{tpu_custom_call.1} parent=47 // pred_check_branch
          %1523 = sbr.rel (%p1521) target = $region328
        $region327: #{tpu_custom_call.1} parent=47 // pred_region
          %v1524 = vld [vmem:[#allocation2] sm:$0xff]
          %v1525 = vld [vmem:[%s4] sm:$0x1]
          %v1527 = vlaneseq
          %v1528 = vshrl.u32 %v1527, 7
          %v1529 = vsub.s32 0, %v1528
          %v1530 = vrot.slane %v1525, %v1529
          %v1532 = vadd.f32 %v1524, %v1530
          %s1533 = sld [smem:[#allocation6]]
          %1535 = dma.done [#allocation4], 16
          %s1536 = sld [smem:[#allocation6 + $0x8]]
          %1538 = dma.done [#allocation4], 16
          %s1539 = sld [smem:[#allocation6 + $0x10]]
          %1541 = dma.done [#allocation4], 16
          %s1542 = sld [smem:[#allocation6 + $0x18]]
          %1544 = dma.done [#allocation4], 16
          %s1545 = sld [smem:[#allocation6 + $0x20]]
          %1547 = dma.done [#allocation4], 16
          %s1548 = sld [smem:[#allocation6 + $0x28]]
          %1550 = dma.done [#allocation4], 16
          %s1551 = sld [smem:[#allocation6 + $0x30]]
          %1553 = dma.done [#allocation4], 16
          %s1554 = sld [smem:[#allocation6 + $0x38]]
          %1556 = dma.done [#allocation4], 16
          %s1557 = sld [smem:[#allocation6 + $0x1]]
          %1559 = dma.done [#allocation4], 16
          %s1560 = sld [smem:[#allocation6 + $0x9]]
          %1562 = dma.done [#allocation4], 16
          %s1563 = sld [smem:[#allocation6 + $0x11]]
          %1565 = dma.done [#allocation4], 16
          %s1566 = sld [smem:[#allocation6 + $0x19]]
          %1568 = dma.done [#allocation4], 16
          %s1569 = sld [smem:[#allocation6 + $0x21]]
          %1571 = dma.done [#allocation4], 16
          %s1572 = sld [smem:[#allocation6 + $0x29]]
          %1574 = dma.done [#allocation4], 16
          %s1575 = sld [smem:[#allocation6 + $0x31]]
          %1577 = dma.done [#allocation4], 16
          %s1578 = sld [smem:[#allocation6 + $0x39]]
          %1580 = dma.done [#allocation4], 16
          %s1581 = sld [smem:[#allocation6 + $0x2]]
          %1583 = dma.done [#allocation4], 16
          %s1584 = sld [smem:[#allocation6 + $0xa]]
          %1586 = dma.done [#allocation4], 16
          %s1587 = sld [smem:[#allocation6 + $0x12]]
          %1589 = dma.done [#allocation4], 16
          %s1590 = sld [smem:[#allocation6 + $0x1a]]
          %1592 = dma.done [#allocation4], 16
          %s1593 = sld [smem:[#allocation6 + $0x22]]
          %1595 = dma.done [#allocation4], 16
          %s1596 = sld [smem:[#allocation6 + $0x2a]]
          %1598 = dma.done [#allocation4], 16
          %s1599 = sld [smem:[#allocation6 + $0x32]]
          %1601 = dma.done [#allocation4], 16
          %s1602 = sld [smem:[#allocation6 + $0x3a]]
          %1604 = dma.done [#allocation4], 16
          %s1605 = sld [smem:[#allocation6 + $0x3]]
          %1607 = dma.done [#allocation4], 16
          %s1608 = sld [smem:[#allocation6 + $0xb]]
          %1610 = dma.done [#allocation4], 16
          %s1611 = sld [smem:[#allocation6 + $0x13]]
          %1613 = dma.done [#allocation4], 16
          %s1614 = sld [smem:[#allocation6 + $0x1b]]
          %1616 = dma.done [#allocation4], 16
          %s1617 = sld [smem:[#allocation6 + $0x23]]
          %1619 = dma.done [#allocation4], 16
          %s1620 = sld [smem:[#allocation6 + $0x2b]]
          %1622 = dma.done [#allocation4], 16
          %s1623 = sld [smem:[#allocation6 + $0x33]]
          %1625 = dma.done [#allocation4], 16
          %s1626 = sld [smem:[#allocation6 + $0x3b]]
          %1628 = dma.done [#allocation4], 16
          %s1629 = sld [smem:[#allocation6 + $0x4]]
          %1631 = dma.done [#allocation4], 16
          %s1632 = sld [smem:[#allocation6 + $0xc]]
          %1634 = dma.done [#allocation4], 16
          %s1635 = sld [smem:[#allocation6 + $0x14]]
          %1637 = dma.done [#allocation4], 16
          %s1638 = sld [smem:[#allocation6 + $0x1c]]
          %1640 = dma.done [#allocation4], 16
          %s1641 = sld [smem:[#allocation6 + $0x24]]
          %1643 = dma.done [#allocation4], 16
          %s1644 = sld [smem:[#allocation6 + $0x2c]]
          %1646 = dma.done [#allocation4], 16
          %s1647 = sld [smem:[#allocation6 + $0x34]]
          %1649 = dma.done [#allocation4], 16
          %s1650 = sld [smem:[#allocation6 + $0x3c]]
          %1652 = dma.done [#allocation4], 16
          %s1653 = sld [smem:[#allocation6 + $0x5]]
          %1655 = dma.done [#allocation4], 16
          %s1656 = sld [smem:[#allocation6 + $0xd]]
          %1658 = dma.done [#allocation4], 16
          %s1659 = sld [smem:[#allocation6 + $0x15]]
          %1661 = dma.done [#allocation4], 16
          %s1662 = sld [smem:[#allocation6 + $0x1d]]
          %1664 = dma.done [#allocation4], 16
          %s1665 = sld [smem:[#allocation6 + $0x25]]
          %1667 = dma.done [#allocation4], 16
          %s1668 = sld [smem:[#allocation6 + $0x2d]]
          %1670 = dma.done [#allocation4], 16
          %s1671 = sld [smem:[#allocation6 + $0x35]]
          %1673 = dma.done [#allocation4], 16
          %s1674 = sld [smem:[#allocation6 + $0x3d]]
          %1676 = dma.done [#allocation4], 16
          %s1677 = sld [smem:[#allocation6 + $0x6]]
          %1679 = dma.done [#allocation4], 16
          %s1680 = sld [smem:[#allocation6 + $0xe]]
          %1682 = dma.done [#allocation4], 16
          %s1683 = sld [smem:[#allocation6 + $0x16]]
          %1685 = dma.done [#allocation4], 16
          %s1686 = sld [smem:[#allocation6 + $0x1e]]
          %1688 = dma.done [#allocation4], 16
          %s1689 = sld [smem:[#allocation6 + $0x26]]
          %1691 = dma.done [#allocation4], 16
          %s1692 = sld [smem:[#allocation6 + $0x2e]]
          %1694 = dma.done [#allocation4], 16
          %s1695 = sld [smem:[#allocation6 + $0x36]]
          %1697 = dma.done [#allocation4], 16
          %s1698 = sld [smem:[#allocation6 + $0x3e]]
          %1700 = dma.done [#allocation4], 16
          %s1701 = sld [smem:[#allocation6 + $0x7]]
          %1703 = dma.done [#allocation4], 16
          %s1704 = sld [smem:[#allocation6 + $0xf]]
          %1706 = dma.done [#allocation4], 16
          %s1707 = sld [smem:[#allocation6 + $0x17]]
          %1709 = dma.done [#allocation4], 16
          %s1710 = sld [smem:[#allocation6 + $0x1f]]
          %1712 = dma.done [#allocation4], 16
          %s1713 = sld [smem:[#allocation6 + $0x27]]
          %1715 = dma.done [#allocation4], 16
          %s1716 = sld [smem:[#allocation6 + $0x2f]]
          %1718 = dma.done [#allocation4], 16
          %s1719 = sld [smem:[#allocation6 + $0x37]]
          %1721 = dma.done [#allocation4], 16
          %s1722 = sld [smem:[#allocation6 + $0x3f]]
          %1724 = dma.done [#allocation4], 16
          %v1725 = vld [vmem:[#allocation3] sm:$0xff]
          %v1726 = vld [vmem:[#allocation3 + $0x8] sm:$0xff]
          %v1727 = vld [vmem:[#allocation3 + $0x10] sm:$0xff]
          %v1728 = vld [vmem:[#allocation3 + $0x18] sm:$0xff]
          %v1729 = vld [vmem:[#allocation3 + $0x20] sm:$0xff]
          %v1730 = vld [vmem:[#allocation3 + $0x28] sm:$0xff]
          %v1731 = vld [vmem:[#allocation3 + $0x30] sm:$0xff]
          %v1732 = vld [vmem:[#allocation3 + $0x38] sm:$0xff]
          %v1733 = vadd.f32 %v1725, %v1726
          %v1734 = vadd.f32 %v1733, %v1727
          %v1735 = vadd.f32 %v1734, %v1728
          %v1736 = vadd.f32 %v1735, %v1729
          %v1737 = vadd.f32 %v1736, %v1730
          %v1738 = vadd.f32 %v1737, %v1731
          %v1739 = vadd.f32 %v1738, %v1732
          %v1740 = vmul.f32 %v1739, 0.125
          %v1741 = vpack.c.bf16 %v1740, %v1740
          %v1742 = vld [vmem:[#allocation13] sm:$0xf]
          %v1743 = vld [vmem:[#allocation13 + $0x4] sm:$0xf]
          %v1744 = vld [vmem:[#allocation13 + $0x8] sm:$0xf]
          %v1745 = vld [vmem:[#allocation13 + $0xc] sm:$0xf]
          %v1746 = vld [vmem:[#allocation13 + $0x10] sm:$0xf]
          %v1747 = vld [vmem:[#allocation13 + $0x14] sm:$0xf]
          %v1748 = vld [vmem:[#allocation13 + $0x18] sm:$0xf]
          %v1749 = vld [vmem:[#allocation13 + $0x1c] sm:$0xf]
          %v1750 = vld [vmem:[#allocation13 + $0x20] sm:$0xf]
          %v1751 = vld [vmem:[#allocation13 + $0x24] sm:$0xf]
          %v1752 = vld [vmem:[#allocation13 + $0x28] sm:$0xf]
          %v1753 = vld [vmem:[#allocation13 + $0x2c] sm:$0xf]
          %v1754 = vld [vmem:[#allocation13 + $0x30] sm:$0xf]
          %v1755 = vld [vmem:[#allocation13 + $0x34] sm:$0xf]
          %v1756 = vld [vmem:[#allocation13 + $0x38] sm:$0xf]
          %v1757 = vld [vmem:[#allocation13 + $0x3c] sm:$0xf]
          %v1758 = vld [vmem:[%s7] sm:$0x1]
          %v1760 = vlaneseq
          %v1761 = vshrl.u32 %v1760, 7
          %v1762 = vsub.s32 0, %v1761
          %v1763 = vrot.slane %v1758, %v1762
          %v1781 = vunpack.c.l.b16 %v1742
          %v1782 = vunpack.c.l.b16 %v1743
          %v1783 = vunpack.c.l.b16 %v1744
          %v1784 = vunpack.c.l.b16 %v1745
          %v1785 = vunpack.c.l.b16 %v1746
          %v1786 = vunpack.c.l.b16 %v1747
          %v1787 = vunpack.c.l.b16 %v1748
          %v1788 = vunpack.c.l.b16 %v1749
          %v1789 = vunpack.c.l.b16 %v1750
          %v1790 = vunpack.c.l.b16 %v1751
          %v1791 = vunpack.c.l.b16 %v1752
          %v1792 = vunpack.c.l.b16 %v1753
          %v1793 = vunpack.c.l.b16 %v1754
          %v1794 = vunpack.c.l.b16 %v1755
          %v1795 = vunpack.c.l.b16 %v1756
          %v1796 = vunpack.c.l.b16 %v1757
          %v1797 = vpack.c.b16 %v1782, %v1781
          %v1798 = vpack.c.b16 %v1784, %v1783
          %v1799 = vpack.c.b16 %v1786, %v1785
          %v1800 = vpack.c.b16 %v1788, %v1787
          %v1801 = vpack.c.b16 %v1790, %v1789
          %v1802 = vpack.c.b16 %v1792, %v1791
          %v1803 = vpack.c.b16 %v1794, %v1793
          %v1804 = vpack.c.b16 %v1796, %v1795
          %1813 = vmatprep.subr.bf16.mxu0 0
          %1814 = vmatpush1.bf16.msra.mxu0 %v1797
          %1815 = vmatprep.subr.bf16.mxu0 0
          %1816 = vmatpush1.bf16.msra.mxu0 %v1798
          %1817 = vmatprep.subr.bf16.mxu0 0
          %1818 = vmatpush1.bf16.msra.mxu0 %v1799
          %1819 = vmatprep.subr.bf16.mxu0 0
          %1820 = vmatpush1.bf16.msra.mxu0 %v1800
          %1821 = vmatprep.subr.bf16.mxu0 0
          %1822 = vmatpush1.bf16.msra.mxu0 %v1801
          %1823 = vmatprep.subr.bf16.mxu0 0
          %1824 = vmatpush1.bf16.msra.mxu0 %v1802
          %1825 = vmatprep.subr.bf16.mxu0 0
          %1826 = vmatpush1.bf16.msra.mxu0 %v1803
          %1827 = vmatprep.subr.bf16.mxu0 0
          %1828 = vmatpush1.bf16.msra.mxu0 %v1804
          %1829 = vmatprep.subr.bf16.mxu0 0
          %1830 = vmatpush1.bf16.msra.mxu0 0
          %1831 = vmatprep.subr.bf16.mxu0 0
          %1832 = vmatpush1.bf16.msra.mxu0 0
          %1833 = vmatprep.subr.bf16.mxu0 0
          %1834 = vmatpush1.bf16.msra.mxu0 0
          %1835 = vmatprep.subr.bf16.mxu0 0
          %1836 = vmatpush1.bf16.msra.mxu0 0
          %1837 = vmatprep.subr.bf16.mxu0 0
          %1838 = vmatpush1.bf16.msra.mxu0 0
          %1839 = vmatprep.subr.bf16.mxu0 0
          %1840 = vmatpush1.bf16.msra.mxu0 0
          %1841 = vmatprep.subr.bf16.mxu0 0
          %1842 = vmatpush1.bf16.msra.mxu0 0
          %1843 = vmatprep.subr.bf16.mxu0 0
          %1844 = vmatpush1.bf16.msra.mxu0 0
          %1845 = vmatprep.mubr.bf16.mxu0 0
          %1846 = vmatmul.mubr.bf16.gmra.mrb[0].mxu0 %v1741
          %v1847 = vpop.f32.mrb[0].mxu0
          %v1848 = vadd.f32 %v1763, %v1847
          %v1849 = vpop.f32.mrb[0].mxu0
          %v1850 = vpop.f32.mrb[0].mxu0
          %v1851 = vpop.f32.mrb[0].mxu0
          %1852 = vdwg.mxu0
          %s1853 = sld [smem:[#allocation5]]
          %v1854 = vmul.f32 %v1532, %v1532
          %1855 = vadd.xlane.f32.xlu0 %v1854
          %v1856 = vpop.xlane.xlu0 %1855
          %v1857 = vadd.f32 %v1856, 1e-12
          %v1858 = vrsqrt.pop %v1857
          %v1859 = vstv %s1853
          %v1860 = vmul.f32 %v1858, %v1859
          %v1861 = vmul.f32 %v1532, %v1860
          %v1862 = vpack.c.bf16 %v1861, %v1861
          %v1863 = vmul.f32 %v1848, %v1848
          %1864 = vadd.xlane.f32.xlu0 %v1863
          %v1865 = vpop.xlane.xlu0 %1864
          %v1866 = vadd.f32 %v1865, 1e-12
          %v1867 = vrsqrt.pop %v1866
          %v1868 = vmul.f32 %v1848, %v1867
          %v1869 = vpack.c.bf16 0.0, %v1868
          %v1870 = vpack.c.bf16 0.0, 0.0
          %1871 = vmatprep.subr.bf16.mxu0 0
          %1872 = vmatpush1.bf16.xpose.msra.mxu0 %v1869
          %1873 = vmatprep.subr.bf16.mxu0 0
          %1874 = vmatpush1.bf16.xpose.msra.mxu0 %v1870
          %1875 = vmatprep.subr.bf16.mxu0 0
          %1876 = vmatpush1.bf16.xpose.msra.mxu0 %v1870
          %1877 = vmatprep.subr.bf16.mxu0 0
          %1878 = vmatpush1.bf16.xpose.msra.mxu0 %v1870
          %1879 = vmatprep.subr.bf16.mxu0 0
          %1880 = vmatpush1.bf16.xpose.msra.mxu0 %v1870
          %1881 = vmatprep.subr.bf16.mxu0 0
          %1882 = vmatpush1.bf16.xpose.msra.mxu0 %v1870
          %1883 = vmatprep.subr.bf16.mxu0 0
          %1884 = vmatpush1.bf16.xpose.msra.mxu0 %v1870
          %1885 = vmatprep.subr.bf16.mxu0 0
          %1886 = vmatpush1.bf16.xpose.msra.mxu0 %v1870
          %1887 = vmatprep.subr.bf16.mxu0 0
          %1888 = vmatpush1.bf16.xpose.msra.mxu0 0
          %1889 = vmatprep.subr.bf16.mxu0 0
          %1890 = vmatpush1.bf16.xpose.msra.mxu0 0
          %1891 = vmatprep.subr.bf16.mxu0 0
          %1892 = vmatpush1.bf16.xpose.msra.mxu0 0
          %1893 = vmatprep.subr.bf16.mxu0 0
          %1894 = vmatpush1.bf16.xpose.msra.mxu0 0
          %1895 = vmatprep.subr.bf16.mxu0 0
          %1896 = vmatpush1.bf16.xpose.msra.mxu0 0
          %1897 = vmatprep.subr.bf16.mxu0 0
          %1898 = vmatpush1.bf16.xpose.msra.mxu0 0
          %1899 = vmatprep.subr.bf16.mxu0 0
          %1900 = vmatpush1.bf16.xpose.msra.mxu0 0
          %1901 = vmatprep.subr.bf16.mxu0 0
          %1902 = vmatpush1.bf16.xpose.msra.mxu0 0
          %1903 = vmatprep.mubr.bf16.mxu0 0
          %1904 = vmatmul.mubr.bf16.gmra.mrb[0].mxu0 %v1862
          %v1905 = vpop.f32.mrb[0].mxu0
          %v1906 = vadd.f32 0.0, %v1905
          %v1907 = vpop.f32.mrb[0].mxu0
          %v1908 = vpop.f32.mrb[0].mxu0
          %v1909 = vpop.f32.mrb[0].mxu0
          %1910 = vdwg.mxu0
          %1911 = vst [vmem:[#allocation14] sm:$0xff] %v1906
        $region328: #{tpu_custom_call.1} parent=47 // pred_fallthru
          _
        // Predicated region
        $region329: #{tpu_custom_call.1} parent=47 // pred_check
          %p1912 = pneg %p217
        $region330: #{tpu_custom_call.1} parent=47 // pred_check_branch
          %1914 = sbr.rel (%p1912) target = $region332
        $region331: #{tpu_custom_call.1} parent=47 // pred_region
          %s1916 = ssub.s32 128, 128
          %1917 = vsyncadd [#allocation8], %s1916
          %s1918 = smul.addr %s32, 128
          %s1919 = scalar_lea.hbm %s8, %s1918
          %s1921 = sshll.u32 [#allocation14], 4
          %s1922 = int_to_ptr.vmem [resolvable:$true] %s1921
          %1924 = dma.vmem_to_hbm [thread:$0]  %s1922, 128, %s1919, [#allocation8]
        $region332: #{tpu_custom_call.1} parent=47 // pred_fallthru
          _
        // Predicated region
        $region333: #{tpu_custom_call.1} parent=47 // pred_check
          %p1925 = pneg %p217
        $region334: #{tpu_custom_call.1} parent=47 // pred_check_branch
          %1927 = sbr.rel (%p1925) target = $region336
        $region335: #{tpu_custom_call.1} parent=47 // pred_region
          %1928 = dma.done [#allocation8], 128
        $region336: #{tpu_custom_call.1} parent=47 // pred_fallthru
          _
      $region48: #{tpu_custom_call.1} parent=5 // pred_fallthru
        _
      %p1929 = scmp.le.s32.totalorder 2, %s23
      // Predicated region
      $region337: #{tpu_custom_call.1} parent=5 // pred_check
        %p1930 = pneg %p1929
      $region338: #{tpu_custom_call.1} parent=5 // pred_check_branch
        %1932 = sbr.rel (%p1930) target = $region340
      $region339: #{tpu_custom_call.1} parent=5 // pred_region
        %s1933 = ssub.s32 %s23, 2
      $region340: #{tpu_custom_call.1} parent=5 // pred_fallthru
        _
    $region6: #{tpu_custom_call.1} parent=1 // loop_footer
      %s27 = sadd.s32 1, %s23
    $region7: #{tpu_custom_call.1} parent=1 // loop_footer_branch
      %22 = sbr.rel target = $region3
    $region8: #{tpu_custom_call.1} parent=1 // loop_exit
      _
    %1934 = vsyncpa [#allocation7], 1
    %s1935 = scalar_lea.sflag [#allocation7], 1
    %1936 = vsyncpa %s1935, 1
    %1937 = vsyncpa [#allocation12], 1
    %s1938 = scalar_lea.sflag [#allocation12], 1
    %1939 = vsyncpa %s1938, 1
    %1940 = vsyncpa [#allocation8], 1
    %s1941 = scalar_lea.sflag [#allocation8], 1
    %1942 = vsyncpa %s1941, 1
    %1943 = vsyncpa [#allocation9], 1
    %s1944 = scalar_lea.sflag [#allocation9], 1
    %1945 = vsyncpa %s1944, 1
  %1946 = vsyncmov [#allocation4]
  %s1947 = vpop.sfrf %1946
  %p1948 = scmp.eq.s32.totalorder %s1947, 0
  %p1949 = pneg %p1948
  %1951 = shalt.err (%p1949)

</llo_original>
